<compile_context>
chip_gen: v6e
topology: v6e:2x2x1
jax: 0.10.0
libtpu: 0.0.40
codegen_flags: <defaults>
</compile_context>

<pallas_src>
import numpy as np
import jax
import jax.numpy as jnp
from jax.experimental import pallas as pl
from jax.experimental.pallas import tpu as pltpu

LANES = 128
CONV_DEFS = ((1, 4), (4, 8), (8, 8))     # (Cin, Cout) of the three conv layers
HID = 512                                 # 500 hidden units padded to a lane tile
OUTP = 128                                # 5 outputs padded to one full lane tile
EPS = 1e-5


def _reflect(i, n):
    # ReflectionPad2d(1) source index for padded coordinate i-? in [-1, n].
    if i < 0:
        return -i
    if i >= n:
        return 2 * n - 2 - i
    return i


# -----------------------------------------------------------------------------
# Host-side constant packing for the conv stack
# -----------------------------------------------------------------------------
def _build_consts(conv_raw, *, N, H, W, NS):
    """Pack every small conv-stack constant into one (rows, 128) f32 slab.

    In-kernel activation layout: rows = h*NS + s, lanes = w*C + c.
      conv:  y = sum_dy (S_dy @ x) @ B_dy   (reflection pad folded into S/B)
      BN  :  mean_bcast = M @ (y @ G)       (per-branch batch statistics)
    """
    R = H * NS
    chunks = []
    next_row = 0

    def _add(mat):
        nonlocal next_row
        mat = np.asarray(mat, np.float32)
        padded = np.zeros((mat.shape[0], LANES), np.float32)
        padded[:, : mat.shape[1]] = mat
        chunks.append(padded)
        start = next_row
        next_row += mat.shape[0]
        return start

    # Row (h-axis) shift matrices S_dy, shared by all three layers.
    off_s = next_row
    for dy in range(3):
        S = np.zeros((R, R), np.float32)
        for h in range(H):
            hs = _reflect(h + dy - 1, H)
            for s in range(NS):
                S[h * NS + s, hs * NS + s] = 1.0
        _add(S)

    # Per-branch BatchNorm row-averaging matrix M (divisor N*H*W).
    s_of_row = np.tile(np.arange(NS), H)
    b_of_row = s_of_row // N
    M = (b_of_row[:, None] == b_of_row[None, :]).astype(np.float32) / (N * H * W)
    off_m = _add(M)

    layers = []
    for (cin, cout), (wt, bias, gamma, beta) in zip(CONV_DEFS, conv_raw):
        wt = np.asarray(wt, np.float32)               # (Cout, Cin, 3, 3)
        wi, wo = W * cin, W * cout
        # B_dy: w-axis reflection shift + conv taps of kernel row dy.
        off_b = next_row
        for dy in range(3):
            B = np.zeros((wi, wo), np.float32)
            for dx in range(3):
                for w in range(W):
                    ws = _reflect(w + dx - 1, W)
                    B[ws * cin:(ws + 1) * cin, w * cout:(w + 1) * cout] += wt[:, :, dy, dx].T
            _add(B)
        # G: per-channel sum over the W lane groups, broadcast back to (w, c).
        c_of_lane = np.arange(wo) % cout
        G = (c_of_lane[:, None] == c_of_lane[None, :]).astype(np.float32)
        off_g = _add(G)
        # Affine rows tiled to the (w, c) lane order: conv bias, BN gamma, BN beta.
        aff = np.stack([np.tile(np.asarray(bias, np.float32), W),
                        np.tile(np.asarray(gamma, np.float32), W),
                        np.tile(np.asarray(beta, np.float32), W)], axis=0)
        off_a = _add(aff)
        layers.append(dict(cin=cin, cout=cout, off_b=off_b, off_g=off_g, off_a=off_a))

    slab = jnp.asarray(np.concatenate(chunks, axis=0))
    meta = dict(H=H, W=W, NS=NS, R=R, off_s=off_s, off_m=off_m, layers=layers)
    return slab, meta


def _prep_fc(fc_raw, *, H, W):
    (w1, b1), (w2, b2), (w3, b3) = fc_raw             # PyTorch layouts (out, in)
    C = CONV_DEFS[-1][1]
    feat = C * H * W
    # fc1 fan-in permuted from PyTorch's (c, h, w) flatten order to the kernel's
    # lane-dense (h, w, c) order; zero-pad to 512/128; bf16 weights.
    w1k = jnp.transpose(w1.reshape(-1, C, H, W), (2, 3, 1, 0)).reshape(feat, -1)
    w1p = jnp.zeros((feat, HID), jnp.float32).at[:, : w1k.shape[1]].set(w1k).astype(jnp.bfloat16)
    w2p = jnp.zeros((HID, HID), jnp.float32).at[: w2.shape[1], : w2.shape[0]].set(w2.T).astype(jnp.bfloat16)
    w3p = jnp.zeros((HID, OUTP), jnp.float32).at[: w3.shape[1], : w3.shape[0]].set(w3.T).astype(jnp.bfloat16)
    fcb = jnp.zeros((3, HID), jnp.float32)
    fcb = fcb.at[0, : b1.shape[0]].set(b1).at[1, : b2.shape[0]].set(b2).at[2, : b3.shape[0]].set(b3)
    return w1p, w2p, w3p, fcb


# -----------------------------------------------------------------------------
# Fused kernel: cnn1 stack + fc1 stack (fc weight DMA hidden under the conv)
# -----------------------------------------------------------------------------
def _make_kernel(meta):
    H, W, NS, R = meta["H"], meta["W"], meta["NS"], meta["R"]
    off_s, off_m = meta["off_s"], meta["off_m"]
    layers = meta["layers"]

    def kernel(x_ref, c_ref, fcb_ref, w1_hbm, w2_hbm, w3_hbm, o_ref,
               w1_v, w2_v, w3_v, feat_v, sem):
        # Kick off the fc weight fetches; they complete while the conv runs.
        cp1 = pltpu.make_async_copy(w1_hbm, w1_v, sem.at[0]); cp1.start()
        cp2 = pltpu.make_async_copy(w2_hbm, w2_v, sem.at[1]); cp2.start()
        cp3 = pltpu.make_async_copy(w3_hbm, w3_v, sem.at[2]); cp3.start()

        # ---------- cnn1: 3 x [ReflectionPad2d(1) -> Conv3x3 -> ReLU -> BN] ----
        y = x_ref[0]                                        # (R, W*Cin0) f32
        M = c_ref[off_m:off_m + R, 0:R]                     # per-branch BN averaging
        for lyr in layers:
            cin, cout = lyr["cin"], lyr["cout"]
            wi, wo = W * cin, W * cout
            acc = None
            for dy in range(3):
                if dy == 1:                                 # center row: S is identity
                    shifted = y
                else:
                    S = c_ref[off_s + dy * R: off_s + (dy + 1) * R, 0:R]
                    shifted = jnp.dot(S, y, preferred_element_type=jnp.float32)
                B = c_ref[lyr["off_b"] + dy * wi: lyr["off_b"] + (dy + 1) * wi, 0:wo]
                t = jnp.dot(shifted, B, preferred_element_type=jnp.float32)
                acc = t if acc is None else acc + t
            aff = c_ref[lyr["off_a"]:lyr["off_a"] + 3, 0:wo]
            y = jnp.maximum(acc + aff[0:1, :], 0.0)         # conv bias + ReLU
            # BatchNorm2d (training-mode batch stats, per branch) on the MXU.
            G = c_ref[lyr["off_g"]:lyr["off_g"] + wo, 0:wo]
            mean = jnp.dot(M, jnp.dot(y, G, preferred_element_type=jnp.float32),
                           preferred_element_type=jnp.float32)
            msq = jnp.dot(M, jnp.dot(y * y, G, preferred_element_type=jnp.float32),
                          preferred_element_type=jnp.float32)
            var = jnp.maximum(msq - mean * mean, 0.0)
            y = (y - mean) * jax.lax.rsqrt(var + EPS) * aff[1:2, :] + aff[2:3, :]

        wc = W * layers[-1]["cout"]                          # 128 feature lanes
        feat_v[...] = y.astype(jnp.bfloat16)                 # lane-dense bf16 slab

        # ---------- fc1: Linear -> ReLU -> Linear -> ReLU -> Linear ------------
        cp1.wait(); cp2.wait(); cp3.wait()
        h1 = jnp.zeros((NS, HID), jnp.float32)
        for h in range(H):                                   # contract fan-in per h-block
            h1 = h1 + jnp.dot(feat_v[h * NS:(h + 1) * NS, :],
                              w1_v[h * wc:(h + 1) * wc, :],
                              preferred_element_type=jnp.float32)
        h1 = jnp.maximum(h1 + fcb_ref[0:1, :], 0.0)
        h2 = jnp.dot(h1.astype(jnp.bfloat16), w2_v[...],
                     preferred_element_type=jnp.float32) + fcb_ref[1:2, :]
        h2 = jnp.maximum(h2, 0.0)
        out = jnp.dot(h2.astype(jnp.bfloat16), w3_v[...],
                      preferred_element_type=jnp.float32) + fcb_ref[2:3, 0:OUTP]
        o_ref[0] = out                                       # unmasked 128-lane store

    return kernel


# -----------------------------------------------------------------------------
# Forward-pass builder
# -----------------------------------------------------------------------------
def make_siamese_forward(params, *, N, H, W):
    conv_raw, fc_raw = params
    # v5e/v6e (1 TensorCore): both branches in one grid step.
    # v7x (2 TensorCores): grid=(2,), "parallel", one branch per core.
    try:
        dk = jax.devices()[0].device_kind.lower()
        is_v7x = ("v7" in dk) or ("7x" in dk)
    except Exception:
        is_v7x = False
    nb_steps = 2 if is_v7x else 1
    assert (2 * N) % nb_steps == 0
    NS = (2 * N) // nb_steps
    R = H * NS

    consts, meta = _build_consts(conv_raw, N=N, H=H, W=W, NS=NS)
    w1p, w2p, w3p, fcb = _prep_fc(fc_raw, H=H, W=W)
    feat_c = CONV_DEFS[-1][1]
    feat = feat_c * H * W

    fused = pl.pallas_call(
        _make_kernel(meta),
        out_shape=jax.ShapeDtypeStruct((nb_steps, NS, OUTP), jnp.float32),
        grid=(nb_steps,),
        in_specs=[
            pl.BlockSpec((1, R, W), lambda i: (i, 0, 0)),
            pl.BlockSpec(consts.shape, lambda i: (0, 0)),
            pl.BlockSpec(fcb.shape, lambda i: (0, 0)),
            pl.BlockSpec(memory_space=pl.ANY),      # w1 (manual DMA)
            pl.BlockSpec(memory_space=pl.ANY),      # w2 (manual DMA)
            pl.BlockSpec(memory_space=pl.ANY),      # w3 (manual DMA)
        ],
        out_specs=pl.BlockSpec((1, NS, OUTP), lambda i: (i, 0, 0)),
        scratch_shapes=[
            pltpu.VMEM((feat, HID), jnp.bfloat16),
            pltpu.VMEM((HID, HID), jnp.bfloat16),
            pltpu.VMEM((HID, OUTP), jnp.bfloat16),
            pltpu.VMEM((R, W * feat_c), jnp.bfloat16),
            pltpu.SemaphoreType.DMA((3,)),
        ],
        compiler_params=pltpu.CompilerParams(dimension_semantics=("parallel",)),
    )

    @jax.jit
    def _forward(input1, input2, consts_, fcb_, w1_, w2_, w3_):
        # inputs: NCHW (N, 1, H, W), PyTorch convention.
        x = jnp.concatenate([input1, input2], axis=0)[:, 0]            # (2N, H, W)
        if nb_steps == 1:
            x = jnp.transpose(x, (1, 0, 2)).reshape(1, R, W)           # rows = (h, s)
        else:
            x = x.reshape(2, N, H, W).transpose(0, 2, 1, 3).reshape(2, R, W)
        out = fused(x, consts_, fcb_, w1_, w2_, w3_)                   # (steps, NS, 128)
        out = out.reshape(2 * N, OUTP)[:, :5]                          # real 5 outputs
        return out[:N], out[N:]

    def forward(input1, input2):
        return _forward(input1, input2, consts, fcb, w1p, w2p, w3p)

    return forward


# -----------------------------------------------------------------------------
# Deterministic synthetic parameters (PyTorch layouts)
# -----------------------------------------------------------------------------
def init_params(key, *, h=16, w=16):
    ks = iter(jax.random.split(key, 20))
    conv_raw = []
    for cin, cout in CONV_DEFS:
        wt = 0.1 * jax.random.normal(next(ks), (cout, cin, 3, 3), jnp.float32)
        bias = 0.1 * jax.random.normal(next(ks), (cout,), jnp.float32)
        gamma = 1.0 + 0.1 * jax.random.normal(next(ks), (cout,), jnp.float32)
        beta = 0.1 * jax.random.normal(next(ks), (cout,), jnp.float32)
        conv_raw.append((wt, bias, gamma, beta))
    feat = CONV_DEFS[-1][1] * h * w
    fc_raw = []
    for din, dout, sc in ((feat, 500, 0.02), (500, 500, 0.05), (500, 5, 0.05)):
        wm = sc * jax.random.normal(next(ks), (dout, din), jnp.float32)
        bb = sc * jax.random.normal(next(ks), (dout,), jnp.float32)
        fc_raw.append((wm, bb))
    return tuple(conv_raw), tuple(fc_raw)


if __name__ == "__main__":
    key = jax.random.PRNGKey(0)
    k_params, k1, k2 = jax.random.split(key, 3)

    N, C, H, W = 2, 1, 16, 16
    input1 = jax.random.normal(k1, (N, C, H, W), jnp.float32)
    input2 = jax.random.normal(k2, (N, C, H, W), jnp.float32)

    params = init_params(k_params, h=H, w=W)
    forward = make_siamese_forward(params, N=N, H=H, W=W)

    out1, out2 = forward(input1, input2)
    jax.block_until_ready((out1, out2))

    assert out1.shape == (N, 5) and out2.shape == (N, 5)
    assert out1.dtype == jnp.float32 and out2.dtype == jnp.float32
    assert bool(jnp.all(jnp.isfinite(out1))) and bool(jnp.all(jnp.isfinite(out2)))
    print("KERNEL_OK")
</pallas_src>

<mosaic_0001>
module attributes {stable_mosaic.version = 11 : i64} {
  func.func @kernel(%arg0: i32, %arg1: memref<1x64x16xf32, #tpu.memory_space<vmem>>, %arg2: memref<1209x128xf32, #tpu.memory_space<vmem>>, %arg3: memref<3x512xf32, #tpu.memory_space<vmem>>, %arg4: memref<2048x512xbf16, #tpu.memory_space<any>>, %arg5: memref<512x512xbf16, #tpu.memory_space<any>>, %arg6: memref<512x128xbf16, #tpu.memory_space<any>>, %arg7: memref<1x4x128xf32, #tpu.memory_space<vmem>>, %arg8: memref<2048x512xbf16, #tpu.memory_space<vmem>>, %arg9: memref<512x512xbf16, #tpu.memory_space<vmem>>, %arg10: memref<512x128xbf16, #tpu.memory_space<vmem>>, %arg11: memref<64x128xbf16, #tpu.memory_space<vmem>>, %arg12: memref<3x!tpu.dma_semaphore, #tpu.memory_space<semaphore_mem>>) attributes {dimension_semantics = [#tpu.dimension_semantics<parallel>], iteration_bounds = array<i64: 1>, scalar_prefetch = 0 : i64, scratch_operands = 5 : i64, tpu.core_type = #tpu.core_type<tc>, window_params = [{transform_indices = @transform_0, window_bounds = array<i64: 1, 64, 16>}, {pipeline_mode = #tpu.pipeline_mode<synchronous>, transform_indices = @transform_1, window_bounds = array<i64: 1209, 128>}, {pipeline_mode = #tpu.pipeline_mode<synchronous>, transform_indices = @transform_2, window_bounds = array<i64: 3, 512>}, {}, {}, {}, {transform_indices = @transform_6, window_bounds = array<i64: 1, 4, 128>}]} {
    %c0_i32 = arith.constant 0 : i32
    %0 = tpu.memref_slice %arg12[%c0_i32] : memref<3x!tpu.dma_semaphore, #tpu.memory_space<semaphore_mem>> -> memref<1x!tpu.dma_semaphore, #tpu.memory_space<semaphore_mem>>
    %1 = tpu.memref_squeeze %0 : memref<1x!tpu.dma_semaphore, #tpu.memory_space<semaphore_mem>> -> memref<!tpu.dma_semaphore, #tpu.memory_space<semaphore_mem>>
    tpu.enqueue_dma source(%arg4 : memref<2048x512xbf16, #tpu.memory_space<any>>) target(%arg8 : memref<2048x512xbf16, #tpu.memory_space<vmem>>) target_semaphore(%1 : memref<!tpu.dma_semaphore, #tpu.memory_space<semaphore_mem>>)
    %c1_i32 = arith.constant 1 : i32
    %2 = tpu.memref_slice %arg12[%c1_i32] : memref<3x!tpu.dma_semaphore, #tpu.memory_space<semaphore_mem>> -> memref<1x!tpu.dma_semaphore, #tpu.memory_space<semaphore_mem>>
    %3 = tpu.memref_squeeze %2 : memref<1x!tpu.dma_semaphore, #tpu.memory_space<semaphore_mem>> -> memref<!tpu.dma_semaphore, #tpu.memory_space<semaphore_mem>>
    tpu.enqueue_dma source(%arg5 : memref<512x512xbf16, #tpu.memory_space<any>>) target(%arg9 : memref<512x512xbf16, #tpu.memory_space<vmem>>) target_semaphore(%3 : memref<!tpu.dma_semaphore, #tpu.memory_space<semaphore_mem>>)
    %c2_i32 = arith.constant 2 : i32
    %4 = tpu.memref_slice %arg12[%c2_i32] : memref<3x!tpu.dma_semaphore, #tpu.memory_space<semaphore_mem>> -> memref<1x!tpu.dma_semaphore, #tpu.memory_space<semaphore_mem>>
    %5 = tpu.memref_squeeze %4 : memref<1x!tpu.dma_semaphore, #tpu.memory_space<semaphore_mem>> -> memref<!tpu.dma_semaphore, #tpu.memory_space<semaphore_mem>>
    tpu.enqueue_dma source(%arg6 : memref<512x128xbf16, #tpu.memory_space<any>>) target(%arg10 : memref<512x128xbf16, #tpu.memory_space<vmem>>) target_semaphore(%5 : memref<!tpu.dma_semaphore, #tpu.memory_space<semaphore_mem>>)
    %c0 = arith.constant 0 : index
    %c0_0 = arith.constant 0 : index
    %c0_1 = arith.constant 0 : index
    %6 = vector.load %arg1[%c0, %c0_0, %c0_1] : memref<1x64x16xf32, #tpu.memory_space<vmem>>, vector<1x64x16xf32>
    %7 = vector.shape_cast %6 : vector<1x64x16xf32> to vector<64x16xf32>
    %c192 = arith.constant 192 : index
    %c0_2 = arith.constant 0 : index
    %8 = vector.load %arg2[%c192, %c0_2] : memref<1209x128xf32, #tpu.memory_space<vmem>>, vector<64x64xf32>
    %c0_3 = arith.constant 0 : index
    %c0_4 = arith.constant 0 : index
    %9 = vector.load %arg2[%c0_3, %c0_4] : memref<1209x128xf32, #tpu.memory_space<vmem>>, vector<64x64xf32>
    %cst = arith.constant dense<0.000000e+00> : vector<64x16xf32>
    %10 = tpu.matmul %9, %7, %cst {dimension_numbers = #tpu.dot_dimension_numbers<[1], [0], [0], [1], [0, 0, 1, 1], [], []>} : vector<64x64xf32>, vector<64x16xf32>, vector<64x16xf32> -> vector<64x16xf32>
    %c256 = arith.constant 256 : index
    %c0_5 = arith.constant 0 : index
    %11 = vector.load %arg2[%c256, %c0_5] : memref<1209x128xf32, #tpu.memory_space<vmem>>, vector<16x64xf32>
    %cst_6 = arith.constant dense<0.000000e+00> : vector<64x64xf32>
    %12 = tpu.matmul %10, %11, %cst_6 {dimension_numbers = #tpu.dot_dimension_numbers<[1], [0], [0], [1], [0, 0, 1, 1], [], []>} : vector<64x16xf32>, vector<16x64xf32>, vector<64x64xf32> -> vector<64x64xf32>
    %c272 = arith.constant 272 : index
    %c0_7 = arith.constant 0 : index
    %13 = vector.load %arg2[%c272, %c0_7] : memref<1209x128xf32, #tpu.memory_space<vmem>>, vector<16x64xf32>
    %cst_8 = arith.constant dense<0.000000e+00> : vector<64x64xf32>
    %14 = tpu.matmul %7, %13, %cst_8 {dimension_numbers = #tpu.dot_dimension_numbers<[1], [0], [0], [1], [0, 0, 1, 1], [], []>} : vector<64x16xf32>, vector<16x64xf32>, vector<64x64xf32> -> vector<64x64xf32>
    %15 = arith.addf %12, %14 : vector<64x64xf32>
    %c128 = arith.constant 128 : index
    %c0_9 = arith.constant 0 : index
    %16 = vector.load %arg2[%c128, %c0_9] : memref<1209x128xf32, #tpu.memory_space<vmem>>, vector<64x64xf32>
    %cst_10 = arith.constant dense<0.000000e+00> : vector<64x16xf32>
    %17 = tpu.matmul %16, %7, %cst_10 {dimension_numbers = #tpu.dot_dimension_numbers<[1], [0], [0], [1], [0, 0, 1, 1], [], []>} : vector<64x64xf32>, vector<64x16xf32>, vector<64x16xf32> -> vector<64x16xf32>
    %c288 = arith.constant 288 : index
    %c0_11 = arith.constant 0 : index
    %18 = vector.load %arg2[%c288, %c0_11] : memref<1209x128xf32, #tpu.memory_space<vmem>>, vector<16x64xf32>
    %cst_12 = arith.constant dense<0.000000e+00> : vector<64x64xf32>
    %19 = tpu.matmul %17, %18, %cst_12 {dimension_numbers = #tpu.dot_dimension_numbers<[1], [0], [0], [1], [0, 0, 1, 1], [], []>} : vector<64x16xf32>, vector<16x64xf32>, vector<64x64xf32> -> vector<64x64xf32>
    %20 = arith.addf %15, %19 : vector<64x64xf32>
    %c368 = arith.constant 368 : index
    %c0_13 = arith.constant 0 : index
    %21 = vector.load %arg2[%c368, %c0_13] : memref<1209x128xf32, #tpu.memory_space<vmem>>, vector<3x64xf32>
    %22 = vector.extract_strided_slice %21 {offsets = [0, 0], sizes = [1, 64], strides = [1, 1]} : vector<3x64xf32> to vector<1x64xf32>
    %23 = vector.broadcast %22 : vector<1x64xf32> to vector<64x64xf32>
    %24 = arith.addf %20, %23 : vector<64x64xf32>
    %cst_14 = arith.constant 0.000000e+00 : f32
    %25 = vector.broadcast %cst_14 : f32 to vector<64x64xf32>
    %26 = arith.maximumf %24, %25 : vector<64x64xf32>
    %c304 = arith.constant 304 : index
    %c0_15 = arith.constant 0 : index
    %27 = vector.load %arg2[%c304, %c0_15] : memref<1209x128xf32, #tpu.memory_space<vmem>>, vector<64x64xf32>
    %cst_16 = arith.constant dense<0.000000e+00> : vector<64x64xf32>
    %28 = tpu.matmul %26, %27, %cst_16 {dimension_numbers = #tpu.dot_dimension_numbers<[1], [0], [0], [1], [0, 0, 1, 1], [], []>} : vector<64x64xf32>, vector<64x64xf32>, vector<64x64xf32> -> vector<64x64xf32>
    %cst_17 = arith.constant dense<0.000000e+00> : vector<64x64xf32>
    %29 = tpu.matmul %8, %28, %cst_17 {dimension_numbers = #tpu.dot_dimension_numbers<[1], [0], [0], [1], [0, 0, 1, 1], [], []>} : vector<64x64xf32>, vector<64x64xf32>, vector<64x64xf32> -> vector<64x64xf32>
    %30 = arith.mulf %26, %26 : vector<64x64xf32>
    %cst_18 = arith.constant dense<0.000000e+00> : vector<64x64xf32>
    %31 = tpu.matmul %30, %27, %cst_18 {dimension_numbers = #tpu.dot_dimension_numbers<[1], [0], [0], [1], [0, 0, 1, 1], [], []>} : vector<64x64xf32>, vector<64x64xf32>, vector<64x64xf32> -> vector<64x64xf32>
    %cst_19 = arith.constant dense<0.000000e+00> : vector<64x64xf32>
    %32 = tpu.matmul %8, %31, %cst_19 {dimension_numbers = #tpu.dot_dimension_numbers<[1], [0], [0], [1], [0, 0, 1, 1], [], []>} : vector<64x64xf32>, vector<64x64xf32>, vector<64x64xf32> -> vector<64x64xf32>
    %33 = arith.mulf %29, %29 : vector<64x64xf32>
    %34 = arith.subf %32, %33 : vector<64x64xf32>
    %cst_20 = arith.constant 0.000000e+00 : f32
    %35 = vector.broadcast %cst_20 : f32 to vector<64x64xf32>
    %36 = arith.maximumf %34, %35 : vector<64x64xf32>
    %37 = arith.subf %26, %29 : vector<64x64xf32>
    %cst_21 = arith.constant 9.99999974E-6 : f32
    %38 = vector.broadcast %cst_21 : f32 to vector<64x64xf32>
    %39 = arith.addf %36, %38 : vector<64x64xf32>
    %40 = math.rsqrt %39 : vector<64x64xf32>
    %41 = arith.mulf %37, %40 : vector<64x64xf32>
    %42 = vector.extract_strided_slice %21 {offsets = [1, 0], sizes = [1, 64], strides = [1, 1]} : vector<3x64xf32> to vector<1x64xf32>
    %43 = vector.broadcast %42 : vector<1x64xf32> to vector<64x64xf32>
    %44 = arith.mulf %41, %43 : vector<64x64xf32>
    %45 = vector.extract_strided_slice %21 {offsets = [2, 0], sizes = [1, 64], strides = [1, 1]} : vector<3x64xf32> to vector<1x64xf32>
    %46 = vector.broadcast %45 : vector<1x64xf32> to vector<64x64xf32>
    %47 = arith.addf %44, %46 : vector<64x64xf32>
    %c0_22 = arith.constant 0 : index
    %c0_23 = arith.constant 0 : index
    %48 = vector.load %arg2[%c0_22, %c0_23] : memref<1209x128xf32, #tpu.memory_space<vmem>>, vector<64x64xf32>
    %cst_24 = arith.constant dense<0.000000e+00> : vector<64x64xf32>
    %49 = tpu.matmul %48, %47, %cst_24 {dimension_numbers = #tpu.dot_dimension_numbers<[1], [0], [0], [1], [0, 0, 1, 1], [], []>} : vector<64x64xf32>, vector<64x64xf32>, vector<64x64xf32> -> vector<64x64xf32>
    %c371 = arith.constant 371 : index
    %c0_25 = arith.constant 0 : index
    %50 = vector.load %arg2[%c371, %c0_25] : memref<1209x128xf32, #tpu.memory_space<vmem>>, vector<64x128xf32>
    %cst_26 = arith.constant dense<0.000000e+00> : vector<64x128xf32>
    %51 = tpu.matmul %49, %50, %cst_26 {dimension_numbers = #tpu.dot_dimension_numbers<[1], [0], [0], [1], [0, 0, 1, 1], [], []>} : vector<64x64xf32>, vector<64x128xf32>, vector<64x128xf32> -> vector<64x128xf32>
    %c435 = arith.constant 435 : index
    %c0_27 = arith.constant 0 : index
    %52 = vector.load %arg2[%c435, %c0_27] : memref<1209x128xf32, #tpu.memory_space<vmem>>, vector<64x128xf32>
    %cst_28 = arith.constant dense<0.000000e+00> : vector<64x128xf32>
    %53 = tpu.matmul %47, %52, %cst_28 {dimension_numbers = #tpu.dot_dimension_numbers<[1], [0], [0], [1], [0, 0, 1, 1], [], []>} : vector<64x64xf32>, vector<64x128xf32>, vector<64x128xf32> -> vector<64x128xf32>
    %54 = arith.addf %51, %53 : vector<64x128xf32>
    %c128_29 = arith.constant 128 : index
    %c0_30 = arith.constant 0 : index
    %55 = vector.load %arg2[%c128_29, %c0_30] : memref<1209x128xf32, #tpu.memory_space<vmem>>, vector<64x64xf32>
    %cst_31 = arith.constant dense<0.000000e+00> : vector<64x64xf32>
    %56 = tpu.matmul %55, %47, %cst_31 {dimension_numbers = #tpu.dot_dimension_numbers<[1], [0], [0], [1], [0, 0, 1, 1], [], []>} : vector<64x64xf32>, vector<64x64xf32>, vector<64x64xf32> -> vector<64x64xf32>
    %c499 = arith.constant 499 : index
    %c0_32 = arith.constant 0 : index
    %57 = vector.load %arg2[%c499, %c0_32] : memref<1209x128xf32, #tpu.memory_space<vmem>>, vector<64x128xf32>
    %cst_33 = arith.constant dense<0.000000e+00> : vector<64x128xf32>
    %58 = tpu.matmul %56, %57, %cst_33 {dimension_numbers = #tpu.dot_dimension_numbers<[1], [0], [0], [1], [0, 0, 1, 1], [], []>} : vector<64x64xf32>, vector<64x128xf32>, vector<64x128xf32> -> vector<64x128xf32>
    %59 = arith.addf %54, %58 : vector<64x128xf32>
    %c691 = arith.constant 691 : index
    %c0_34 = arith.constant 0 : index
    %60 = vector.load %arg2[%c691, %c0_34] : memref<1209x128xf32, #tpu.memory_space<vmem>>, vector<3x128xf32>
    %61 = vector.extract_strided_slice %60 {offsets = [0, 0], sizes = [1, 128], strides = [1, 1]} : vector<3x128xf32> to vector<1x128xf32>
    %62 = vector.broadcast %61 : vector<1x128xf32> to vector<64x128xf32>
    %63 = arith.addf %59, %62 : vector<64x128xf32>
    %cst_35 = arith.constant 0.000000e+00 : f32
    %64 = vector.broadcast %cst_35 : f32 to vector<64x128xf32>
    %65 = arith.maximumf %63, %64 : vector<64x128xf32>
    %c563 = arith.constant 563 : index
    %c0_36 = arith.constant 0 : index
    %66 = vector.load %arg2[%c563, %c0_36] : memref<1209x128xf32, #tpu.memory_space<vmem>>, vector<128x128xf32>
    %cst_37 = arith.constant dense<0.000000e+00> : vector<64x128xf32>
    %67 = tpu.matmul %65, %66, %cst_37 {dimension_numbers = #tpu.dot_dimension_numbers<[1], [0], [0], [1], [0, 0, 1, 1], [], []>} : vector<64x128xf32>, vector<128x128xf32>, vector<64x128xf32> -> vector<64x128xf32>
    %cst_38 = arith.constant dense<0.000000e+00> : vector<64x128xf32>
    %68 = tpu.matmul %8, %67, %cst_38 {dimension_numbers = #tpu.dot_dimension_numbers<[1], [0], [0], [1], [0, 0, 1, 1], [], []>} : vector<64x64xf32>, vector<64x128xf32>, vector<64x128xf32> -> vector<64x128xf32>
    %69 = arith.mulf %65, %65 : vector<64x128xf32>
    %cst_39 = arith.constant dense<0.000000e+00> : vector<64x128xf32>
    %70 = tpu.matmul %69, %66, %cst_39 {dimension_numbers = #tpu.dot_dimension_numbers<[1], [0], [0], [1], [0, 0, 1, 1], [], []>} : vector<64x128xf32>, vector<128x128xf32>, vector<64x128xf32> -> vector<64x128xf32>
    %cst_40 = arith.constant dense<0.000000e+00> : vector<64x128xf32>
    %71 = tpu.matmul %8, %70, %cst_40 {dimension_numbers = #tpu.dot_dimension_numbers<[1], [0], [0], [1], [0, 0, 1, 1], [], []>} : vector<64x64xf32>, vector<64x128xf32>, vector<64x128xf32> -> vector<64x128xf32>
    %72 = arith.mulf %68, %68 : vector<64x128xf32>
    %73 = arith.subf %71, %72 : vector<64x128xf32>
    %cst_41 = arith.constant 0.000000e+00 : f32
    %74 = vector.broadcast %cst_41 : f32 to vector<64x128xf32>
    %75 = arith.maximumf %73, %74 : vector<64x128xf32>
    %76 = arith.subf %65, %68 : vector<64x128xf32>
    %cst_42 = arith.constant 9.99999974E-6 : f32
    %77 = vector.broadcast %cst_42 : f32 to vector<64x128xf32>
    %78 = arith.addf %75, %77 : vector<64x128xf32>
    %79 = math.rsqrt %78 : vector<64x128xf32>
    %80 = arith.mulf %76, %79 : vector<64x128xf32>
    %81 = vector.extract_strided_slice %60 {offsets = [1, 0], sizes = [1, 128], strides = [1, 1]} : vector<3x128xf32> to vector<1x128xf32>
    %82 = vector.broadcast %81 : vector<1x128xf32> to vector<64x128xf32>
    %83 = arith.mulf %80, %82 : vector<64x128xf32>
    %84 = vector.extract_strided_slice %60 {offsets = [2, 0], sizes = [1, 128], strides = [1, 1]} : vector<3x128xf32> to vector<1x128xf32>
    %85 = vector.broadcast %84 : vector<1x128xf32> to vector<64x128xf32>
    %86 = arith.addf %83, %85 : vector<64x128xf32>
    %c0_43 = arith.constant 0 : index
    %c0_44 = arith.constant 0 : index
    %87 = vector.load %arg2[%c0_43, %c0_44] : memref<1209x128xf32, #tpu.memory_space<vmem>>, vector<64x64xf32>
    %cst_45 = arith.constant dense<0.000000e+00> : vector<64x128xf32>
    %88 = tpu.matmul %87, %86, %cst_45 {dimension_numbers = #tpu.dot_dimension_numbers<[1], [0], [0], [1], [0, 0, 1, 1], [], []>} : vector<64x64xf32>, vector<64x128xf32>, vector<64x128xf32> -> vector<64x128xf32>
    %c694 = arith.constant 694 : index
    %c0_46 = arith.constant 0 : index
    %89 = vector.load %arg2[%c694, %c0_46] : memref<1209x128xf32, #tpu.memory_space<vmem>>, vector<128x128xf32>
    %cst_47 = arith.constant dense<0.000000e+00> : vector<64x128xf32>
    %90 = tpu.matmul %88, %89, %cst_47 {dimension_numbers = #tpu.dot_dimension_numbers<[1], [0], [0], [1], [0, 0, 1, 1], [], []>} : vector<64x128xf32>, vector<128x128xf32>, vector<64x128xf32> -> vector<64x128xf32>
    %c822 = arith.constant 822 : index
    %c0_48 = arith.constant 0 : index
    %91 = vector.load %arg2[%c822, %c0_48] : memref<1209x128xf32, #tpu.memory_space<vmem>>, vector<128x128xf32>
    %cst_49 = arith.constant dense<0.000000e+00> : vector<64x128xf32>
    %92 = tpu.matmul %86, %91, %cst_49 {dimension_numbers = #tpu.dot_dimension_numbers<[1], [0], [0], [1], [0, 0, 1, 1], [], []>} : vector<64x128xf32>, vector<128x128xf32>, vector<64x128xf32> -> vector<64x128xf32>
    %93 = arith.addf %90, %92 : vector<64x128xf32>
    %c128_50 = arith.constant 128 : index
    %c0_51 = arith.constant 0 : index
    %94 = vector.load %arg2[%c128_50, %c0_51] : memref<1209x128xf32, #tpu.memory_space<vmem>>, vector<64x64xf32>
    %cst_52 = arith.constant dense<0.000000e+00> : vector<64x128xf32>
    %95 = tpu.matmul %94, %86, %cst_52 {dimension_numbers = #tpu.dot_dimension_numbers<[1], [0], [0], [1], [0, 0, 1, 1], [], []>} : vector<64x64xf32>, vector<64x128xf32>, vector<64x128xf32> -> vector<64x128xf32>
    %c950 = arith.constant 950 : index
    %c0_53 = arith.constant 0 : index
    %96 = vector.load %arg2[%c950, %c0_53] : memref<1209x128xf32, #tpu.memory_space<vmem>>, vector<128x128xf32>
    %cst_54 = arith.constant dense<0.000000e+00> : vector<64x128xf32>
    %97 = tpu.matmul %95, %96, %cst_54 {dimension_numbers = #tpu.dot_dimension_numbers<[1], [0], [0], [1], [0, 0, 1, 1], [], []>} : vector<64x128xf32>, vector<128x128xf32>, vector<64x128xf32> -> vector<64x128xf32>
    %98 = arith.addf %93, %97 : vector<64x128xf32>
    %c1206 = arith.constant 1206 : index
    %c0_55 = arith.constant 0 : index
    %99 = vector.load %arg2[%c1206, %c0_55] : memref<1209x128xf32, #tpu.memory_space<vmem>>, vector<3x128xf32>
    %100 = vector.extract_strided_slice %99 {offsets = [0, 0], sizes = [1, 128], strides = [1, 1]} : vector<3x128xf32> to vector<1x128xf32>
    %101 = vector.broadcast %100 : vector<1x128xf32> to vector<64x128xf32>
    %102 = arith.addf %98, %101 : vector<64x128xf32>
    %cst_56 = arith.constant 0.000000e+00 : f32
    %103 = vector.broadcast %cst_56 : f32 to vector<64x128xf32>
    %104 = arith.maximumf %102, %103 : vector<64x128xf32>
    %c1078 = arith.constant 1078 : index
    %c0_57 = arith.constant 0 : index
    %105 = vector.load %arg2[%c1078, %c0_57] : memref<1209x128xf32, #tpu.memory_space<vmem>>, vector<128x128xf32>
    %cst_58 = arith.constant dense<0.000000e+00> : vector<64x128xf32>
    %106 = tpu.matmul %104, %105, %cst_58 {dimension_numbers = #tpu.dot_dimension_numbers<[1], [0], [0], [1], [0, 0, 1, 1], [], []>} : vector<64x128xf32>, vector<128x128xf32>, vector<64x128xf32> -> vector<64x128xf32>
    %cst_59 = arith.constant dense<0.000000e+00> : vector<64x128xf32>
    %107 = tpu.matmul %8, %106, %cst_59 {dimension_numbers = #tpu.dot_dimension_numbers<[1], [0], [0], [1], [0, 0, 1, 1], [], []>} : vector<64x64xf32>, vector<64x128xf32>, vector<64x128xf32> -> vector<64x128xf32>
    %108 = arith.mulf %104, %104 : vector<64x128xf32>
    %cst_60 = arith.constant dense<0.000000e+00> : vector<64x128xf32>
    %109 = tpu.matmul %108, %105, %cst_60 {dimension_numbers = #tpu.dot_dimension_numbers<[1], [0], [0], [1], [0, 0, 1, 1], [], []>} : vector<64x128xf32>, vector<128x128xf32>, vector<64x128xf32> -> vector<64x128xf32>
    %cst_61 = arith.constant dense<0.000000e+00> : vector<64x128xf32>
    %110 = tpu.matmul %8, %109, %cst_61 {dimension_numbers = #tpu.dot_dimension_numbers<[1], [0], [0], [1], [0, 0, 1, 1], [], []>} : vector<64x64xf32>, vector<64x128xf32>, vector<64x128xf32> -> vector<64x128xf32>
    %111 = arith.mulf %107, %107 : vector<64x128xf32>
    %112 = arith.subf %110, %111 : vector<64x128xf32>
    %cst_62 = arith.constant 0.000000e+00 : f32
    %113 = vector.broadcast %cst_62 : f32 to vector<64x128xf32>
    %114 = arith.maximumf %112, %113 : vector<64x128xf32>
    %115 = arith.subf %104, %107 : vector<64x128xf32>
    %cst_63 = arith.constant 9.99999974E-6 : f32
    %116 = vector.broadcast %cst_63 : f32 to vector<64x128xf32>
    %117 = arith.addf %114, %116 : vector<64x128xf32>
    %118 = math.rsqrt %117 : vector<64x128xf32>
    %119 = arith.mulf %115, %118 : vector<64x128xf32>
    %120 = vector.extract_strided_slice %99 {offsets = [1, 0], sizes = [1, 128], strides = [1, 1]} : vector<3x128xf32> to vector<1x128xf32>
    %121 = vector.broadcast %120 : vector<1x128xf32> to vector<64x128xf32>
    %122 = arith.mulf %119, %121 : vector<64x128xf32>
    %123 = vector.extract_strided_slice %99 {offsets = [2, 0], sizes = [1, 128], strides = [1, 1]} : vector<3x128xf32> to vector<1x128xf32>
    %124 = vector.broadcast %123 : vector<1x128xf32> to vector<64x128xf32>
    %125 = arith.addf %122, %124 : vector<64x128xf32>
    %126 = arith.truncf %125 : vector<64x128xf32> to vector<64x128xbf16>
    %c0_64 = arith.constant 0 : index
    %c0_65 = arith.constant 0 : index
    %127 = vector.load %arg11[%c0_64, %c0_65] : memref<64x128xbf16, #tpu.memory_space<vmem>>, vector<64x128xbf16>
    tpu.vector_store %arg11[%c0_64, %c0_65], %126 {strides = array<i32>} : memref<64x128xbf16, #tpu.memory_space<vmem>>, vector<64x128xbf16>,
    %c0_i32_66 = arith.constant 0 : i32
    %128 = tpu.memref_slice %arg12[%c0_i32_66] : memref<3x!tpu.dma_semaphore, #tpu.memory_space<semaphore_mem>> -> memref<1x!tpu.dma_semaphore, #tpu.memory_space<semaphore_mem>>
    %129 = tpu.memref_squeeze %128 : memref<1x!tpu.dma_semaphore, #tpu.memory_space<semaphore_mem>> -> memref<!tpu.dma_semaphore, #tpu.memory_space<semaphore_mem>>
    tpu.wait_dma2 semaphore(%129 : memref<!tpu.dma_semaphore, #tpu.memory_space<semaphore_mem>>) src(%arg4 : memref<2048x512xbf16, #tpu.memory_space<any>>) dst(%arg8 : memref<2048x512xbf16, #tpu.memory_space<vmem>>)
    %c1_i32_67 = arith.constant 1 : i32
    %130 = tpu.memref_slice %arg12[%c1_i32_67] : memref<3x!tpu.dma_semaphore, #tpu.memory_space<semaphore_mem>> -> memref<1x!tpu.dma_semaphore, #tpu.memory_space<semaphore_mem>>
    %131 = tpu.memref_squeeze %130 : memref<1x!tpu.dma_semaphore, #tpu.memory_space<semaphore_mem>> -> memref<!tpu.dma_semaphore, #tpu.memory_space<semaphore_mem>>
    tpu.wait_dma2 semaphore(%131 : memref<!tpu.dma_semaphore, #tpu.memory_space<semaphore_mem>>) src(%arg5 : memref<512x512xbf16, #tpu.memory_space<any>>) dst(%arg9 : memref<512x512xbf16, #tpu.memory_space<vmem>>)
    %c2_i32_68 = arith.constant 2 : i32
    %132 = tpu.memref_slice %arg12[%c2_i32_68] : memref<3x!tpu.dma_semaphore, #tpu.memory_space<semaphore_mem>> -> memref<1x!tpu.dma_semaphore, #tpu.memory_space<semaphore_mem>>
    %133 = tpu.memref_squeeze %132 : memref<1x!tpu.dma_semaphore, #tpu.memory_space<semaphore_mem>> -> memref<!tpu.dma_semaphore, #tpu.memory_space<semaphore_mem>>
    tpu.wait_dma2 semaphore(%133 : memref<!tpu.dma_semaphore, #tpu.memory_space<semaphore_mem>>) src(%arg6 : memref<512x128xbf16, #tpu.memory_space<any>>) dst(%arg10 : memref<512x128xbf16, #tpu.memory_space<vmem>>)
    %cst_69 = arith.constant 0.000000e+00 : f32
    %134 = vector.broadcast %cst_69 : f32 to vector<4x512xf32>
    %c0_70 = arith.constant 0 : index
    %c0_71 = arith.constant 0 : index
    %135 = vector.load %arg11[%c0_70, %c0_71] : memref<64x128xbf16, #tpu.memory_space<vmem>>, vector<4x128xbf16>
    %c0_72 = arith.constant 0 : index
    %c0_73 = arith.constant 0 : index
    %136 = vector.load %arg8[%c0_72, %c0_73] : memref<2048x512xbf16, #tpu.memory_space<vmem>>, vector<128x512xbf16>
    %cst_74 = arith.constant dense<0.000000e+00> : vector<4x512xf32>
    %137 = tpu.matmul %135, %136, %cst_74 {dimension_numbers = #tpu.dot_dimension_numbers<[1], [0], [0], [1], [0, 0, 1, 1], [], []>} : vector<4x128xbf16>, vector<128x512xbf16>, vector<4x512xf32> -> vector<4x512xf32>
    %138 = arith.addf %134, %137 : vector<4x512xf32>
    %c4 = arith.constant 4 : index
    %c0_75 = arith.constant 0 : index
    %139 = vector.load %arg11[%c4, %c0_75] : memref<64x128xbf16, #tpu.memory_space<vmem>>, vector<4x128xbf16>
    %c128_76 = arith.constant 128 : index
    %c0_77 = arith.constant 0 : index
    %140 = vector.load %arg8[%c128_76, %c0_77] : memref<2048x512xbf16, #tpu.memory_space<vmem>>, vector<128x512xbf16>
    %cst_78 = arith.constant dense<0.000000e+00> : vector<4x512xf32>
    %141 = tpu.matmul %139, %140, %cst_78 {dimension_numbers = #tpu.dot_dimension_numbers<[1], [0], [0], [1], [0, 0, 1, 1], [], []>} : vector<4x128xbf16>, vector<128x512xbf16>, vector<4x512xf32> -> vector<4x512xf32>
    %142 = arith.addf %138, %141 : vector<4x512xf32>
    %c8 = arith.constant 8 : index
    %c0_79 = arith.constant 0 : index
    %143 = vector.load %arg11[%c8, %c0_79] : memref<64x128xbf16, #tpu.memory_space<vmem>>, vector<4x128xbf16>
    %c256_80 = arith.constant 256 : index
    %c0_81 = arith.constant 0 : index
    %144 = vector.load %arg8[%c256_80, %c0_81] : memref<2048x512xbf16, #tpu.memory_space<vmem>>, vector<128x512xbf16>
    %cst_82 = arith.constant dense<0.000000e+00> : vector<4x512xf32>
    %145 = tpu.matmul %143, %144, %cst_82 {dimension_numbers = #tpu.dot_dimension_numbers<[1], [0], [0], [1], [0, 0, 1, 1], [], []>} : vector<4x128xbf16>, vector<128x512xbf16>, vector<4x512xf32> -> vector<4x512xf32>
    %146 = arith.addf %142, %145 : vector<4x512xf32>
    %c12 = arith.constant 12 : index
    %c0_83 = arith.constant 0 : index
    %147 = vector.load %arg11[%c12, %c0_83] : memref<64x128xbf16, #tpu.memory_space<vmem>>, vector<4x128xbf16>
    %c384 = arith.constant 384 : index
    %c0_84 = arith.constant 0 : index
    %148 = vector.load %arg8[%c384, %c0_84] : memref<2048x512xbf16, #tpu.memory_space<vmem>>, vector<128x512xbf16>
    %cst_85 = arith.constant dense<0.000000e+00> : vector<4x512xf32>
    %149 = tpu.matmul %147, %148, %cst_85 {dimension_numbers = #tpu.dot_dimension_numbers<[1], [0], [0], [1], [0, 0, 1, 1], [], []>} : vector<4x128xbf16>, vector<128x512xbf16>, vector<4x512xf32> -> vector<4x512xf32>
    %150 = arith.addf %146, %149 : vector<4x512xf32>
    %c16 = arith.constant 16 : index
    %c0_86 = arith.constant 0 : index
    %151 = vector.load %arg11[%c16, %c0_86] : memref<64x128xbf16, #tpu.memory_space<vmem>>, vector<4x128xbf16>
    %c512 = arith.constant 512 : index
    %c0_87 = arith.constant 0 : index
    %152 = vector.load %arg8[%c512, %c0_87] : memref<2048x512xbf16, #tpu.memory_space<vmem>>, vector<128x512xbf16>
    %cst_88 = arith.constant dense<0.000000e+00> : vector<4x512xf32>
    %153 = tpu.matmul %151, %152, %cst_88 {dimension_numbers = #tpu.dot_dimension_numbers<[1], [0], [0], [1], [0, 0, 1, 1], [], []>} : vector<4x128xbf16>, vector<128x512xbf16>, vector<4x512xf32> -> vector<4x512xf32>
    %154 = arith.addf %150, %153 : vector<4x512xf32>
    %c20 = arith.constant 20 : index
    %c0_89 = arith.constant 0 : index
    %155 = vector.load %arg11[%c20, %c0_89] : memref<64x128xbf16, #tpu.memory_space<vmem>>, vector<4x128xbf16>
    %c640 = arith.constant 640 : index
    %c0_90 = arith.constant 0 : index
    %156 = vector.load %arg8[%c640, %c0_90] : memref<2048x512xbf16, #tpu.memory_space<vmem>>, vector<128x512xbf16>
    %cst_91 = arith.constant dense<0.000000e+00> : vector<4x512xf32>
    %157 = tpu.matmul %155, %156, %cst_91 {dimension_numbers = #tpu.dot_dimension_numbers<[1], [0], [0], [1], [0, 0, 1, 1], [], []>} : vector<4x128xbf16>, vector<128x512xbf16>, vector<4x512xf32> -> vector<4x512xf32>
    %158 = arith.addf %154, %157 : vector<4x512xf32>
    %c24 = arith.constant 24 : index
    %c0_92 = arith.constant 0 : index
    %159 = vector.load %arg11[%c24, %c0_92] : memref<64x128xbf16, #tpu.memory_space<vmem>>, vector<4x128xbf16>
    %c768 = arith.constant 768 : index
    %c0_93 = arith.constant 0 : index
    %160 = vector.load %arg8[%c768, %c0_93] : memref<2048x512xbf16, #tpu.memory_space<vmem>>, vector<128x512xbf16>
    %cst_94 = arith.constant dense<0.000000e+00> : vector<4x512xf32>
    %161 = tpu.matmul %159, %160, %cst_94 {dimension_numbers = #tpu.dot_dimension_numbers<[1], [0], [0], [1], [0, 0, 1, 1], [], []>} : vector<4x128xbf16>, vector<128x512xbf16>, vector<4x512xf32> -> vector<4x512xf32>
    %162 = arith.addf %158, %161 : vector<4x512xf32>
    %c28 = arith.constant 28 : index
    %c0_95 = arith.constant 0 : index
    %163 = vector.load %arg11[%c28, %c0_95] : memref<64x128xbf16, #tpu.memory_space<vmem>>, vector<4x128xbf16>
    %c896 = arith.constant 896 : index
    %c0_96 = arith.constant 0 : index
    %164 = vector.load %arg8[%c896, %c0_96] : memref<2048x512xbf16, #tpu.memory_space<vmem>>, vector<128x512xbf16>
    %cst_97 = arith.constant dense<0.000000e+00> : vector<4x512xf32>
    %165 = tpu.matmul %163, %164, %cst_97 {dimension_numbers = #tpu.dot_dimension_numbers<[1], [0], [0], [1], [0, 0, 1, 1], [], []>} : vector<4x128xbf16>, vector<128x512xbf16>, vector<4x512xf32> -> vector<4x512xf32>
    %166 = arith.addf %162, %165 : vector<4x512xf32>
    %c32 = arith.constant 32 : index
    %c0_98 = arith.constant 0 : index
    %167 = vector.load %arg11[%c32, %c0_98] : memref<64x128xbf16, #tpu.memory_space<vmem>>, vector<4x128xbf16>
    %c1024 = arith.constant 1024 : index
    %c0_99 = arith.constant 0 : index
    %168 = vector.load %arg8[%c1024, %c0_99] : memref<2048x512xbf16, #tpu.memory_space<vmem>>, vector<128x512xbf16>
    %cst_100 = arith.constant dense<0.000000e+00> : vector<4x512xf32>
    %169 = tpu.matmul %167, %168, %cst_100 {dimension_numbers = #tpu.dot_dimension_numbers<[1], [0], [0], [1], [0, 0, 1, 1], [], []>} : vector<4x128xbf16>, vector<128x512xbf16>, vector<4x512xf32> -> vector<4x512xf32>
    %170 = arith.addf %166, %169 : vector<4x512xf32>
    %c36 = arith.constant 36 : index
    %c0_101 = arith.constant 0 : index
    %171 = vector.load %arg11[%c36, %c0_101] : memref<64x128xbf16, #tpu.memory_space<vmem>>, vector<4x128xbf16>
    %c1152 = arith.constant 1152 : index
    %c0_102 = arith.constant 0 : index
    %172 = vector.load %arg8[%c1152, %c0_102] : memref<2048x512xbf16, #tpu.memory_space<vmem>>, vector<128x512xbf16>
    %cst_103 = arith.constant dense<0.000000e+00> : vector<4x512xf32>
    %173 = tpu.matmul %171, %172, %cst_103 {dimension_numbers = #tpu.dot_dimension_numbers<[1], [0], [0], [1], [0, 0, 1, 1], [], []>} : vector<4x128xbf16>, vector<128x512xbf16>, vector<4x512xf32> -> vector<4x512xf32>
    %174 = arith.addf %170, %173 : vector<4x512xf32>
    %c40 = arith.constant 40 : index
    %c0_104 = arith.constant 0 : index
    %175 = vector.load %arg11[%c40, %c0_104] : memref<64x128xbf16, #tpu.memory_space<vmem>>, vector<4x128xbf16>
    %c1280 = arith.constant 1280 : index
    %c0_105 = arith.constant 0 : index
    %176 = vector.load %arg8[%c1280, %c0_105] : memref<2048x512xbf16, #tpu.memory_space<vmem>>, vector<128x512xbf16>
    %cst_106 = arith.constant dense<0.000000e+00> : vector<4x512xf32>
    %177 = tpu.matmul %175, %176, %cst_106 {dimension_numbers = #tpu.dot_dimension_numbers<[1], [0], [0], [1], [0, 0, 1, 1], [], []>} : vector<4x128xbf16>, vector<128x512xbf16>, vector<4x512xf32> -> vector<4x512xf32>
    %178 = arith.addf %174, %177 : vector<4x512xf32>
    %c44 = arith.constant 44 : index
    %c0_107 = arith.constant 0 : index
    %179 = vector.load %arg11[%c44, %c0_107] : memref<64x128xbf16, #tpu.memory_space<vmem>>, vector<4x128xbf16>
    %c1408 = arith.constant 1408 : index
    %c0_108 = arith.constant 0 : index
    %180 = vector.load %arg8[%c1408, %c0_108] : memref<2048x512xbf16, #tpu.memory_space<vmem>>, vector<128x512xbf16>
    %cst_109 = arith.constant dense<0.000000e+00> : vector<4x512xf32>
    %181 = tpu.matmul %179, %180, %cst_109 {dimension_numbers = #tpu.dot_dimension_numbers<[1], [0], [0], [1], [0, 0, 1, 1], [], []>} : vector<4x128xbf16>, vector<128x512xbf16>, vector<4x512xf32> -> vector<4x512xf32>
    %182 = arith.addf %178, %181 : vector<4x512xf32>
    %c48 = arith.constant 48 : index
    %c0_110 = arith.constant 0 : index
    %183 = vector.load %arg11[%c48, %c0_110] : memref<64x128xbf16, #tpu.memory_space<vmem>>, vector<4x128xbf16>
    %c1536 = arith.constant 1536 : index
    %c0_111 = arith.constant 0 : index
    %184 = vector.load %arg8[%c1536, %c0_111] : memref<2048x512xbf16, #tpu.memory_space<vmem>>, vector<128x512xbf16>
    %cst_112 = arith.constant dense<0.000000e+00> : vector<4x512xf32>
    %185 = tpu.matmul %183, %184, %cst_112 {dimension_numbers = #tpu.dot_dimension_numbers<[1], [0], [0], [1], [0, 0, 1, 1], [], []>} : vector<4x128xbf16>, vector<128x512xbf16>, vector<4x512xf32> -> vector<4x512xf32>
    %186 = arith.addf %182, %185 : vector<4x512xf32>
    %c52 = arith.constant 52 : index
    %c0_113 = arith.constant 0 : index
    %187 = vector.load %arg11[%c52, %c0_113] : memref<64x128xbf16, #tpu.memory_space<vmem>>, vector<4x128xbf16>
    %c1664 = arith.constant 1664 : index
    %c0_114 = arith.constant 0 : index
    %188 = vector.load %arg8[%c1664, %c0_114] : memref<2048x512xbf16, #tpu.memory_space<vmem>>, vector<128x512xbf16>
    %cst_115 = arith.constant dense<0.000000e+00> : vector<4x512xf32>
    %189 = tpu.matmul %187, %188, %cst_115 {dimension_numbers = #tpu.dot_dimension_numbers<[1], [0], [0], [1], [0, 0, 1, 1], [], []>} : vector<4x128xbf16>, vector<128x512xbf16>, vector<4x512xf32> -> vector<4x512xf32>
    %190 = arith.addf %186, %189 : vector<4x512xf32>
    %c56 = arith.constant 56 : index
    %c0_116 = arith.constant 0 : index
    %191 = vector.load %arg11[%c56, %c0_116] : memref<64x128xbf16, #tpu.memory_space<vmem>>, vector<4x128xbf16>
    %c1792 = arith.constant 1792 : index
    %c0_117 = arith.constant 0 : index
    %192 = vector.load %arg8[%c1792, %c0_117] : memref<2048x512xbf16, #tpu.memory_space<vmem>>, vector<128x512xbf16>
    %cst_118 = arith.constant dense<0.000000e+00> : vector<4x512xf32>
    %193 = tpu.matmul %191, %192, %cst_118 {dimension_numbers = #tpu.dot_dimension_numbers<[1], [0], [0], [1], [0, 0, 1, 1], [], []>} : vector<4x128xbf16>, vector<128x512xbf16>, vector<4x512xf32> -> vector<4x512xf32>
    %194 = arith.addf %190, %193 : vector<4x512xf32>
    %c60 = arith.constant 60 : index
    %c0_119 = arith.constant 0 : index
    %195 = vector.load %arg11[%c60, %c0_119] : memref<64x128xbf16, #tpu.memory_space<vmem>>, vector<4x128xbf16>
    %c1920 = arith.constant 1920 : index
    %c0_120 = arith.constant 0 : index
    %196 = vector.load %arg8[%c1920, %c0_120] : memref<2048x512xbf16, #tpu.memory_space<vmem>>, vector<128x512xbf16>
    %cst_121 = arith.constant dense<0.000000e+00> : vector<4x512xf32>
    %197 = tpu.matmul %195, %196, %cst_121 {dimension_numbers = #tpu.dot_dimension_numbers<[1], [0], [0], [1], [0, 0, 1, 1], [], []>} : vector<4x128xbf16>, vector<128x512xbf16>, vector<4x512xf32> -> vector<4x512xf32>
    %198 = arith.addf %194, %197 : vector<4x512xf32>
    %c0_122 = arith.constant 0 : index
    %c0_123 = arith.constant 0 : index
    %199 = vector.load %arg3[%c0_122, %c0_123] : memref<3x512xf32, #tpu.memory_space<vmem>>, vector<1x512xf32>
    %200 = vector.broadcast %199 : vector<1x512xf32> to vector<4x512xf32>
    %201 = arith.addf %198, %200 : vector<4x512xf32>
    %cst_124 = arith.constant 0.000000e+00 : f32
    %202 = vector.broadcast %cst_124 : f32 to vector<4x512xf32>
    %203 = arith.maximumf %201, %202 : vector<4x512xf32>
    %204 = arith.truncf %203 : vector<4x512xf32> to vector<4x512xbf16>
    %c0_125 = arith.constant 0 : index
    %c0_126 = arith.constant 0 : index
    %205 = vector.load %arg9[%c0_125, %c0_126] : memref<512x512xbf16, #tpu.memory_space<vmem>>, vector<512x512xbf16>
    %cst_127 = arith.constant dense<0.000000e+00> : vector<4x512xf32>
    %206 = tpu.matmul %204, %205, %cst_127 {dimension_numbers = #tpu.dot_dimension_numbers<[1], [0], [0], [1], [0, 0, 1, 1], [], []>} : vector<4x512xbf16>, vector<512x512xbf16>, vector<4x512xf32> -> vector<4x512xf32>
    %c1 = arith.constant 1 : index
    %c0_128 = arith.constant 0 : index
    %207 = vector.load %arg3[%c1, %c0_128] : memref<3x512xf32, #tpu.memory_space<vmem>>, vector<1x512xf32>
    %208 = vector.broadcast %207 : vector<1x512xf32> to vector<4x512xf32>
    %209 = arith.addf %206, %208 : vector<4x512xf32>
    %cst_129 = arith.constant 0.000000e+00 : f32
    %210 = vector.broadcast %cst_129 : f32 to vector<4x512xf32>
    %211 = arith.maximumf %209, %210 : vector<4x512xf32>
    %212 = arith.truncf %211 : vector<4x512xf32> to vector<4x512xbf16>
    %c0_130 = arith.constant 0 : index
    %c0_131 = arith.constant 0 : index
    %213 = vector.load %arg10[%c0_130, %c0_131] : memref<512x128xbf16, #tpu.memory_space<vmem>>, vector<512x128xbf16>
    %cst_132 = arith.constant dense<0.000000e+00> : vector<4x128xf32>
    %214 = tpu.matmul %212, %213, %cst_132 {dimension_numbers = #tpu.dot_dimension_numbers<[1], [0], [0], [1], [0, 0, 1, 1], [], []>} : vector<4x512xbf16>, vector<512x128xbf16>, vector<4x128xf32> -> vector<4x128xf32>
    %c2 = arith.constant 2 : index
    %c0_133 = arith.constant 0 : index
    %215 = vector.load %arg3[%c2, %c0_133] : memref<3x512xf32, #tpu.memory_space<vmem>>, vector<1x128xf32>
    %216 = vector.broadcast %215 : vector<1x128xf32> to vector<4x128xf32>
    %217 = arith.addf %214, %216 : vector<4x128xf32>
    %c0_134 = arith.constant 0 : index
    %c0_135 = arith.constant 0 : index
    %c0_136 = arith.constant 0 : index
    %218 = vector.load %arg7[%c0_134, %c0_135, %c0_136] : memref<1x4x128xf32, #tpu.memory_space<vmem>>, vector<1x4x128xf32>
    %219 = vector.shape_cast %218 : vector<1x4x128xf32> to vector<4x128xf32>
    %220 = vector.shape_cast %217 : vector<4x128xf32> to vector<1x4x128xf32>
    tpu.vector_store %arg7[%c0_134, %c0_135, %c0_136], %220 {strides = array<i32>} : memref<1x4x128xf32, #tpu.memory_space<vmem>>, vector<1x4x128xf32>,
    return
  }
  func.func @transform_0(%arg0: i32) -> (i32, i32, i32) {
    %c0_i32 = arith.constant 0 : i32
    %c0_i32_0 = arith.constant 0 : i32
    %c0_i32_1 = arith.constant 0 : i32
    return %arg0, %c0_i32, %c0_i32_0 : i32, i32, i32
  }
  func.func @transform_1(%arg0: i32) -> (i32, i32) {
    %c0_i32 = arith.constant 0 : i32
    %c0_i32_0 = arith.constant 0 : i32
    %c0_i32_1 = arith.constant 0 : i32
    return %c0_i32, %c0_i32_0 : i32, i32
  }
  func.func @transform_2(%arg0: i32) -> (i32, i32) {
    %c0_i32 = arith.constant 0 : i32
    %c0_i32_0 = arith.constant 0 : i32
    %c0_i32_1 = arith.constant 0 : i32
    return %c0_i32, %c0_i32_0 : i32, i32
  }
  func.func @transform_6(%arg0: i32) -> (i32, i32, i32) {
    %c0_i32 = arith.constant 0 : i32
    %c0_i32_0 = arith.constant 0 : i32
    %c0_i32_1 = arith.constant 0 : i32
    return %arg0, %c0_i32, %c0_i32_0 : i32, i32, i32
  }
}

</mosaic_0001>

<llo_original>
// kernel: _forward.1
$region0: #{_forward.1}
  #allocation0 [shape = 'u32[]', space=smem, size = 0x4, offset = 0x4, fixed_abs, tag = 'smem constant byte address 0x4 - core index']
  #allocation1 [shape = 'u32[144,128]{1,0:T(1,128)}', space=vmem, size = 0x12000, scoped, tag = 'internal scratch']
  #allocation2 [shape = 'bf16[2048,512]{1,0:T(8,128)(2,1)}', space=vmem, size = 0x200000, scoped, tag = 'scratch operand']
  #allocation3 [shape = 'bf16[512,512]{1,0:T(8,128)(2,1)}', space=vmem, size = 0x80000, scoped, tag = 'scratch operand']
  #allocation4 [shape = 'bf16[512,128]{1,0:T(8,128)(2,1)}', space=vmem, size = 0x20000, scoped, tag = 'scratch operand']
  #allocation5 [shape = 'bf16[64,128]{1,0:T(8,128)(2,1)}', space=vmem, size = 0x4000, scoped, tag = 'scratch operand']
  #allocation6 [shape = 's32[3]{0}', space=sflag, size = 0xc, scoped, tag = 'scratch operand']
  #allocation11 [shape = 's32[]', space=sflag, size = 0x4, offset = 0, fixed_abs, tag = 'sflag constant byte address 0x0 - dummy sync flag']
  #allocation12 [shape = 's32[]', space=sflag, size = 0x4, offset = 0, fixed_abs, tag = 'sflag constant byte address 0x0 - dummy sync flag']
  #allocation13 [shape = 'u32[]', space=smem, size = 0x4, offset = 0x44, fixed_abs, tag = 'smem constant byte address 0x44 - assertion arg 0']
  #allocation14 [shape = 'u32[]', space=smem, size = 0x4, offset = 0x48, fixed_abs, tag = 'smem constant byte address 0x48 - assertion arg 1']
  #allocation15 [shape = 's32[]', space=sflag, size = 0x4, offset = 0, fixed_abs, tag = 'sflag constant byte address 0x0 - dummy sync flag']
  #allocation16 [shape = 's32[]', space=sflag, size = 0x4, offset = 0, fixed_abs, tag = 'sflag constant byte address 0x0 - dummy sync flag']
  #allocation17 [shape = 's32[]', space=sflag, size = 0x4, offset = 0, fixed_abs, tag = 'sflag constant byte address 0x0 - dummy sync flag']
  #allocation18 [shape = 's32[]', space=sflag, size = 0x4, offset = 0, fixed_abs, tag = 'sflag constant byte address 0x0 - dummy sync flag']
  %s0 = inlined_call_operand.vmem [shape: f32[1,64,16], index: 0, kind: input, shape index: {}]
  %s1 = inlined_call_operand.hbm [shape: f32[1209,128], index: 1, kind: input, shape index: {}]
  %s2 = inlined_call_operand.hbm [shape: f32[3,512], index: 2, kind: input, shape index: {}]
  %s3 = inlined_call_operand.hbm [shape: bf16[2048,512], index: 3, kind: input, shape index: {}]
  %s4 = inlined_call_operand.hbm [shape: bf16[512,512], index: 4, kind: input, shape index: {}]
  %s5 = inlined_call_operand.hbm [shape: bf16[512,128], index: 5, kind: input, shape index: {}]
  %s6 = inlined_call_operand.vmem [shape: f32[1,4,128], index: 6, kind: output, shape index: {}]
  %s7 = sld [smem:[#allocation0]]
  $region42: #{_forward.1} parent=0
    _
  %s9 = ssub.s32 1, %s7
  %s10 = scalar_select 0, %s9, %s7
  $region1: #{_forward.1} parent=0
    #allocation7 [shape = 'u8[622592]{0}', space=vmem, size = 0x98000, scoped, tag = 'input window, operand 1, single buffered']
    #allocation8 [shape = 's32[1]{0}', space=sflag, size = 0x4, scoped, tag = 'scoped memory for _forward.1']
    #allocation9 [shape = 'u8[8192]{0}', space=vmem, size = 0x2000, scoped, tag = 'input window, operand 2, single buffered']
    #allocation10 [shape = 's32[1]{0}', space=sflag, size = 0x4, scoped, tag = 'scoped memory for _forward.1']
    %11 = vsyncpa [#allocation8], 0
    %12 = vsyncpa [#allocation10], 0
    // Predicated region
    $region2: #{_forward.1} parent=1 // pred_check
      _
    $region3: #{_forward.1} parent=1 // pred_check_branch
      %14 = sbr.rel (0) target = $region5
    $region4: #{_forward.1} parent=1 // pred_region
      _
    $region5: #{_forward.1} parent=1 // pred_fallthru
      _
    // Predicated region
    $region6: #{_forward.1} parent=1 // pred_check
      _
    $region7: #{_forward.1} parent=1 // pred_check_branch
      %16 = sbr.rel (0) target = $region9
    $region8: #{_forward.1} parent=1 // pred_region
      %s18 = ssub.s32 19456, 19456
      %19 = vsyncadd [#allocation8], %s18
      %s20 = sshll.u32 [#allocation7], 4
      %s21 = int_to_ptr.vmem [resolvable:$true] %s20
      %26 = dma.hbm_to_vmem [thread:$0]  %s1, 19456, %s21, [#allocation8], 128, 128, 8
    $region9: #{_forward.1} parent=1 // pred_fallthru
      _
    // Predicated region
    $region10: #{_forward.1} parent=1 // pred_check
      _
    $region11: #{_forward.1} parent=1 // pred_check_branch
      %28 = sbr.rel (0) target = $region13
    $region12: #{_forward.1} parent=1 // pred_region
      %s30 = ssub.s32 256, 256
      %31 = vsyncadd [#allocation10], %s30
      %s33 = sshll.u32 [#allocation9], 4
      %s34 = int_to_ptr.vmem [resolvable:$true] %s33
      %36 = dma.hbm_to_vmem [thread:$0]  %s2, 256, %s34, [#allocation10]
    $region13: #{_forward.1} parent=1 // pred_fallthru
      _
    // Predicated region
    $region14: #{_forward.1} parent=1 // pred_check
      _
    $region15: #{_forward.1} parent=1 // pred_check_branch
      %38 = sbr.rel (0) target = $region17
    $region16: #{_forward.1} parent=1 // pred_region
      %39 = dma.done [#allocation8], 19456
    $region17: #{_forward.1} parent=1 // pred_fallthru
      _
    // Predicated region
    $region18: #{_forward.1} parent=1 // pred_check
      _
    $region19: #{_forward.1} parent=1 // pred_check_branch
      %41 = sbr.rel (0) target = $region21
    $region20: #{_forward.1} parent=1 // pred_region
      %42 = dma.done [#allocation10], 256
    $region21: #{_forward.1} parent=1 // pred_fallthru
      _
    // Predicated region
    $region22: #{_forward.1} parent=1 // pred_check
      _
    $region23: #{_forward.1} parent=1 // pred_check_branch
      %45 = sbr.rel target = $region25
    $region24: #{_forward.1} parent=1 // pred_region
      %46 = sst [smem:[#allocation13]] [#allocation12]
      %47 = sst [smem:[#allocation14]] [#allocation11]
    $region25: #{_forward.1} parent=1 // pred_fallthru
      _
    %49 = shalt.err (0)
    %s51 = sshll.u32 [#allocation2], 4
    %s52 = int_to_ptr.vmem [resolvable:$true] %s51
    %54 = dma.hbm_to_vmem [thread:$0]  %s3, 65536, %s52, [#allocation6]
    %s55 = scalar_lea.sflag [#allocation6], 1
    // Predicated region
    $region26: #{_forward.1} parent=1 // pred_check
      _
    $region27: #{_forward.1} parent=1 // pred_check_branch
      %57 = sbr.rel target = $region29
    $region28: #{_forward.1} parent=1 // pred_region
      %58 = sst [smem:[#allocation13]] [#allocation16]
      %59 = sst [smem:[#allocation14]] [#allocation15]
    $region29: #{_forward.1} parent=1 // pred_fallthru
      _
    %61 = shalt.err (0)
    %s63 = sshll.u32 [#allocation3], 4
    %s64 = int_to_ptr.vmem [resolvable:$true] %s63
    %66 = dma.hbm_to_vmem [thread:$0]  %s4, 16384, %s64, %s55
    %s67 = scalar_lea.sflag [#allocation6], 2
    // Predicated region
    $region30: #{_forward.1} parent=1 // pred_check
      _
    $region31: #{_forward.1} parent=1 // pred_check_branch
      %69 = sbr.rel target = $region33
    $region32: #{_forward.1} parent=1 // pred_region
      %70 = sst [smem:[#allocation13]] [#allocation18]
      %71 = sst [smem:[#allocation14]] [#allocation17]
    $region33: #{_forward.1} parent=1 // pred_fallthru
      _
    %73 = shalt.err (0)
    %s75 = sshll.u32 [#allocation4], 4
    %s76 = int_to_ptr.vmem [resolvable:$true] %s75
    %78 = dma.hbm_to_vmem [thread:$0]  %s5, 4096, %s76, %s67
    %v79 = vld [vmem:[%s0] sm:$0xff]
    %v80 = vld [vmem:[%s0 + $0x8] sm:$0xff]
    %v81 = vld [vmem:[%s0 + $0x10] sm:$0xff]
    %v82 = vld [vmem:[%s0 + $0x18] sm:$0xff]
    %v83 = vld [vmem:[%s0 + $0x20] sm:$0xff]
    %v84 = vld [vmem:[%s0 + $0x28] sm:$0xff]
    %v85 = vld [vmem:[%s0 + $0x30] sm:$0xff]
    %v86 = vld [vmem:[%s0 + $0x38] sm:$0xff]
    %v87 = vld [vmem:[#allocation7 + $0xc0] sm:$0xff]
    %v88 = vld [vmem:[#allocation7 + $0xc8] sm:$0xff]
    %v89 = vld [vmem:[#allocation7 + $0xd0] sm:$0xff]
    %v90 = vld [vmem:[#allocation7 + $0xd8] sm:$0xff]
    %v91 = vld [vmem:[#allocation7 + $0xe0] sm:$0xff]
    %v92 = vld [vmem:[#allocation7 + $0xe8] sm:$0xff]
    %v93 = vld [vmem:[#allocation7 + $0xf0] sm:$0xff]
    %v94 = vld [vmem:[#allocation7 + $0xf8] sm:$0xff]
    %v95 = vld [vmem:[#allocation7] sm:$0xff]
    %v96 = vld [vmem:[#allocation7 + $0x8] sm:$0xff]
    %v97 = vld [vmem:[#allocation7 + $0x10] sm:$0xff]
    %v98 = vld [vmem:[#allocation7 + $0x18] sm:$0xff]
    %v99 = vld [vmem:[#allocation7 + $0x20] sm:$0xff]
    %v100 = vld [vmem:[#allocation7 + $0x28] sm:$0xff]
    %v101 = vld [vmem:[#allocation7 + $0x30] sm:$0xff]
    %v102 = vld [vmem:[#allocation7 + $0x38] sm:$0xff]
    %vm103 = vcmask 523264
    %v105 = vsel %vm103, %v95, 0
    %v108 = vsel %vm103, %v96, 0
    %v111 = vsel %vm103, %v97, 0
    %v114 = vsel %vm103, %v98, 0
    %v117 = vsel %vm103, %v99, 0
    %v120 = vsel %vm103, %v100, 0
    %v123 = vsel %vm103, %v101, 0
    %v126 = vsel %vm103, %v102, 0
    %128 = vmatprep.subr.mxu0 0.0
    %129 = vmatpush1.msra.mxu0 0.0
    %130 = vmatprep.subr.mxu0 0.0
    %131 = vmatpush1.msra.mxu0 0.0
    %132 = vmatprep.subr.mxu0 0.0
    %133 = vmatpush1.msra.mxu0 0.0
    %134 = vmatprep.subr.mxu0 0.0
    %135 = vmatpush1.msra.mxu0 0.0
    %136 = vmatprep.subr.mxu0 0.0
    %137 = vmatpush1.msra.mxu0 0.0
    %138 = vmatprep.subr.mxu0 0.0
    %139 = vmatpush1.msra.mxu0 0.0
    %140 = vmatprep.subr.mxu0 0.0
    %141 = vmatpush1.msra.mxu0 0.0
    %142 = vmatprep.subr.mxu0 0.0
    %143 = vmatpush1.msra.mxu0 0.0
    %144 = vmatprep.subr.mxu0 0.0
    %145 = vmatpush1.msra.mxu0 %v86
    %146 = vmatprep.subr.mxu0 0.0
    %147 = vmatpush1.msra.mxu0 %v85
    %148 = vmatprep.subr.mxu0 0.0
    %149 = vmatpush1.msra.mxu0 %v84
    %150 = vmatprep.subr.mxu0 0.0
    %151 = vmatpush1.msra.mxu0 %v83
    %152 = vmatprep.subr.mxu0 0.0
    %153 = vmatpush1.msra.mxu0 %v82
    %154 = vmatprep.subr.mxu0 0.0
    %155 = vmatpush1.msra.mxu0 %v81
    %156 = vmatprep.subr.mxu0 0.0
    %157 = vmatpush1.msra.mxu0 %v80
    %158 = vmatprep.subr.mxu0 0.0
    %159 = vmatpush1.msra.mxu0 %v79
    %160 = vmatprep.subr.mxu0 0.0
    %161 = vmatpush2.msra.mxu0 0.0
    %162 = vmatprep.subr.mxu0 0.0
    %163 = vmatpush2.msra.mxu0 0.0
    %164 = vmatprep.subr.mxu0 0.0
    %165 = vmatpush2.msra.mxu0 0.0
    %166 = vmatprep.subr.mxu0 0.0
    %167 = vmatpush2.msra.mxu0 0.0
    %168 = vmatprep.subr.mxu0 0.0
    %169 = vmatpush2.msra.mxu0 0.0
    %170 = vmatprep.subr.mxu0 0.0
    %171 = vmatpush2.msra.mxu0 0.0
    %172 = vmatprep.subr.mxu0 0.0
    %173 = vmatpush2.msra.mxu0 0.0
    %174 = vmatprep.subr.mxu0 0.0
    %175 = vmatpush2.msra.mxu0 0.0
    %176 = vmatprep.subr.mxu0 0.0
    %177 = vmatpush2.msra.mxu0 0.0
    %178 = vmatprep.subr.mxu0 0.0
    %179 = vmatpush2.msra.mxu0 0.0
    %180 = vmatprep.subr.mxu0 0.0
    %181 = vmatpush2.msra.mxu0 0.0
    %182 = vmatprep.subr.mxu0 0.0
    %183 = vmatpush2.msra.mxu0 0.0
    %184 = vmatprep.subr.mxu0 0.0
    %185 = vmatpush2.msra.mxu0 0.0
    %186 = vmatprep.subr.mxu0 0.0
    %187 = vmatpush2.msra.mxu0 0.0
    %188 = vmatprep.subr.mxu0 0.0
    %189 = vmatpush2.msra.mxu0 0.0
    %190 = vmatprep.subr.mxu0 0.0
    %191 = vmatpush2.msra.mxu0 0.0
    %192 = vmatprep.mubr.f32.mxu0 0.0
    %193 = vmatmul.mubr.f32.gmra.mxu0 %v105
    %v194 = vpop.f32.mrf.mxu0
    %v195 = vadd.f32 0.0, %v194
    %v196 = vpop.f32.mrf.mxu0
    %197 = vmatprep.mubr.f32.mxu0 0.0
    %198 = vmatmul.mubr.f32.gmra.mxu0 %v108
    %v199 = vpop.f32.mrf.mxu0
    %v200 = vadd.f32 0.0, %v199
    %v201 = vpop.f32.mrf.mxu0
    %202 = vmatprep.mubr.f32.mxu0 0.0
    %203 = vmatmul.mubr.f32.gmra.mxu0 %v111
    %v204 = vpop.f32.mrf.mxu0
    %v205 = vadd.f32 0.0, %v204
    %v206 = vpop.f32.mrf.mxu0
    %207 = vmatprep.mubr.f32.mxu0 0.0
    %208 = vmatmul.mubr.f32.gmra.mxu0 %v114
    %v209 = vpop.f32.mrf.mxu0
    %v210 = vadd.f32 0.0, %v209
    %v211 = vpop.f32.mrf.mxu0
    %212 = vmatprep.mubr.f32.mxu0 0.0
    %213 = vmatmul.mubr.f32.gmra.mxu0 %v117
    %v214 = vpop.f32.mrf.mxu0
    %v215 = vadd.f32 0.0, %v214
    %v216 = vpop.f32.mrf.mxu0
    %217 = vmatprep.mubr.f32.mxu0 0.0
    %218 = vmatmul.mubr.f32.gmra.mxu0 %v120
    %v219 = vpop.f32.mrf.mxu0
    %v220 = vadd.f32 0.0, %v219
    %v221 = vpop.f32.mrf.mxu0
    %222 = vmatprep.mubr.f32.mxu0 0.0
    %223 = vmatmul.mubr.f32.gmra.mxu0 %v123
    %v224 = vpop.f32.mrf.mxu0
    %v225 = vadd.f32 0.0, %v224
    %v226 = vpop.f32.mrf.mxu0
    %227 = vmatprep.mubr.f32.mxu0 0.0
    %228 = vmatmul.mubr.f32.gmra.mxu0 %v126
    %v229 = vpop.f32.mrf.mxu0
    %v230 = vadd.f32 0.0, %v229
    %v231 = vpop.f32.mrf.mxu0
    %232 = vdwg.mxu0
    %v233 = vld [vmem:[#allocation7 + $0x100] sm:$0xff]
    %v234 = vld [vmem:[#allocation7 + $0x108] sm:$0xff]
    %v235 = vld [vmem:[#allocation7 + $0x110] sm:$0xff]
    %v236 = vld [vmem:[#allocation7 + $0x118] sm:$0xff]
    %vm237 = vcmask 130048
    %v239 = vsel %vm237, %v79, 0
    %v242 = vsel %vm237, %v80, 0
    %v245 = vsel %vm237, %v81, 0
    %v248 = vsel %vm237, %v82, 0
    %v251 = vsel %vm237, %v83, 0
    %v254 = vsel %vm237, %v84, 0
    %v257 = vsel %vm237, %v85, 0
    %v260 = vsel %vm237, %v86, 0
    %262 = vmatprep.subr.mxu0 0.0
    %263 = vmatpush1.msra.mxu0 0.0
    %264 = vmatprep.subr.mxu0 0.0
    %265 = vmatpush1.msra.mxu0 0.0
    %266 = vmatprep.subr.mxu0 0.0
    %267 = vmatpush1.msra.mxu0 0.0
    %268 = vmatprep.subr.mxu0 0.0
    %269 = vmatpush1.msra.mxu0 0.0
    %270 = vmatprep.subr.mxu0 0.0
    %271 = vmatpush1.msra.mxu0 0.0
    %272 = vmatprep.subr.mxu0 0.0
    %273 = vmatpush1.msra.mxu0 0.0
    %274 = vmatprep.subr.mxu0 0.0
    %275 = vmatpush1.msra.mxu0 0.0
    %276 = vmatprep.subr.mxu0 0.0
    %277 = vmatpush1.msra.mxu0 0.0
    %278 = vmatprep.subr.mxu0 0.0
    %279 = vmatpush1.msra.mxu0 0.0
    %280 = vmatprep.subr.mxu0 0.0
    %281 = vmatpush1.msra.mxu0 0.0
    %282 = vmatprep.subr.mxu0 0.0
    %283 = vmatpush1.msra.mxu0 0.0
    %284 = vmatprep.subr.mxu0 0.0
    %285 = vmatpush1.msra.mxu0 0.0
    %286 = vmatprep.subr.mxu0 0.0
    %287 = vmatpush1.msra.mxu0 0.0
    %288 = vmatprep.subr.mxu0 0.0
    %289 = vmatpush1.msra.mxu0 0.0
    %290 = vmatprep.subr.mxu0 0.0
    %291 = vmatpush1.msra.mxu0 %v236
    %292 = vmatprep.subr.mxu0 0.0
    %293 = vmatpush1.msra.mxu0 %v235
    %294 = vmatprep.subr.mxu0 0.0
    %295 = vmatpush2.msra.mxu0 0.0
    %296 = vmatprep.subr.mxu0 0.0
    %297 = vmatpush2.msra.mxu0 0.0
    %298 = vmatprep.subr.mxu0 0.0
    %299 = vmatpush2.msra.mxu0 0.0
    %300 = vmatprep.subr.mxu0 0.0
    %301 = vmatpush2.msra.mxu0 0.0
    %302 = vmatprep.subr.mxu0 0.0
    %303 = vmatpush2.msra.mxu0 0.0
    %304 = vmatprep.subr.mxu0 0.0
    %305 = vmatpush2.msra.mxu0 0.0
    %306 = vmatprep.subr.mxu0 0.0
    %307 = vmatpush2.msra.mxu0 0.0
    %308 = vmatprep.subr.mxu0 0.0
    %309 = vmatpush2.msra.mxu0 0.0
    %310 = vmatprep.subr.mxu0 0.0
    %311 = vmatpush2.msra.mxu0 0.0
    %312 = vmatprep.subr.mxu0 0.0
    %313 = vmatpush2.msra.mxu0 0.0
    %314 = vmatprep.subr.mxu0 0.0
    %315 = vmatpush2.msra.mxu0 0.0
    %316 = vmatprep.subr.mxu0 0.0
    %317 = vmatpush2.msra.mxu0 0.0
    %318 = vmatprep.subr.mxu0 0.0
    %319 = vmatpush2.msra.mxu0 0.0
    %320 = vmatprep.subr.mxu0 0.0
    %321 = vmatpush2.msra.mxu0 0.0
    %322 = vmatprep.subr.mxu0 0.0
    %323 = vmatpush2.msra.mxu0 0.0
    %324 = vmatprep.subr.mxu0 0.0
    %325 = vmatpush2.msra.mxu0 0.0
    %326 = vmatprep.mubr.f32.mxu0 0.0
    %327 = vmatmul.mubr.f32.gmra.mxu0 %v239
    %v328 = vpop.f32.mrf.mxu0
    %v329 = vadd.f32 0.0, %v328
    %v330 = vpop.f32.mrf.mxu0
    %331 = vmatprep.mubr.f32.mxu0 0.0
    %332 = vmatmul.mubr.f32.gmra.mxu0 %v242
    %v333 = vpop.f32.mrf.mxu0
    %v334 = vadd.f32 0.0, %v333
    %v335 = vpop.f32.mrf.mxu0
    %336 = vmatprep.mubr.f32.mxu0 0.0
    %337 = vmatmul.mubr.f32.gmra.mxu0 %v245
    %v338 = vpop.f32.mrf.mxu0
    %v339 = vadd.f32 0.0, %v338
    %v340 = vpop.f32.mrf.mxu0
    %341 = vmatprep.mubr.f32.mxu0 0.0
    %342 = vmatmul.mubr.f32.gmra.mxu0 %v248
    %v343 = vpop.f32.mrf.mxu0
    %v344 = vadd.f32 0.0, %v343
    %v345 = vpop.f32.mrf.mxu0
    %346 = vmatprep.mubr.f32.mxu0 0.0
    %347 = vmatmul.mubr.f32.gmra.mxu0 %v251
    %v348 = vpop.f32.mrf.mxu0
    %v349 = vadd.f32 0.0, %v348
    %v350 = vpop.f32.mrf.mxu0
    %351 = vmatprep.mubr.f32.mxu0 0.0
    %352 = vmatmul.mubr.f32.gmra.mxu0 %v254
    %v353 = vpop.f32.mrf.mxu0
    %v354 = vadd.f32 0.0, %v353
    %v355 = vpop.f32.mrf.mxu0
    %356 = vmatprep.mubr.f32.mxu0 0.0
    %357 = vmatmul.mubr.f32.gmra.mxu0 %v257
    %v358 = vpop.f32.mrf.mxu0
    %v359 = vadd.f32 0.0, %v358
    %v360 = vpop.f32.mrf.mxu0
    %361 = vmatprep.mubr.f32.mxu0 0.0
    %362 = vmatmul.mubr.f32.gmra.mxu0 %v260
    %v363 = vpop.f32.mrf.mxu0
    %v364 = vadd.f32 0.0, %v363
    %v365 = vpop.f32.mrf.mxu0
    %366 = vdwg.mxu0
    %v368 = vsel %vm237, %v195, 0
    %v371 = vsel %vm237, %v200, 0
    %v374 = vsel %vm237, %v205, 0
    %v377 = vsel %vm237, %v210, 0
    %v380 = vsel %vm237, %v215, 0
    %v383 = vsel %vm237, %v220, 0
    %v386 = vsel %vm237, %v225, 0
    %v389 = vsel %vm237, %v230, 0
    %391 = vmatprep.subr.mxu0 0.0
    %392 = vmatpush1.msra.mxu0 0.0
    %393 = vmatprep.subr.mxu0 0.0
    %394 = vmatpush1.msra.mxu0 0.0
    %395 = vmatprep.subr.mxu0 0.0
    %396 = vmatpush1.msra.mxu0 0.0
    %397 = vmatprep.subr.mxu0 0.0
    %398 = vmatpush1.msra.mxu0 0.0
    %399 = vmatprep.subr.mxu0 0.0
    %400 = vmatpush1.msra.mxu0 0.0
    %401 = vmatprep.subr.mxu0 0.0
    %402 = vmatpush1.msra.mxu0 0.0
    %403 = vmatprep.subr.mxu0 0.0
    %404 = vmatpush1.msra.mxu0 0.0
    %405 = vmatprep.subr.mxu0 0.0
    %406 = vmatpush1.msra.mxu0 0.0
    %407 = vmatprep.subr.mxu0 0.0
    %408 = vmatpush1.msra.mxu0 0.0
    %409 = vmatprep.subr.mxu0 0.0
    %410 = vmatpush1.msra.mxu0 0.0
    %411 = vmatprep.subr.mxu0 0.0
    %412 = vmatpush1.msra.mxu0 0.0
    %413 = vmatprep.subr.mxu0 0.0
    %414 = vmatpush1.msra.mxu0 0.0
    %415 = vmatprep.subr.mxu0 0.0
    %416 = vmatpush1.msra.mxu0 0.0
    %417 = vmatprep.subr.mxu0 0.0
    %418 = vmatpush1.msra.mxu0 0.0
    %419 = vmatprep.subr.mxu0 0.0
    %420 = vmatpush1.msra.mxu0 %v234
    %421 = vmatprep.subr.mxu0 0.0
    %422 = vmatpush1.msra.mxu0 %v233
    %423 = vmatprep.subr.mxu0 0.0
    %424 = vmatpush2.msra.mxu0 0.0
    %425 = vmatprep.subr.mxu0 0.0
    %426 = vmatpush2.msra.mxu0 0.0
    %427 = vmatprep.subr.mxu0 0.0
    %428 = vmatpush2.msra.mxu0 0.0
    %429 = vmatprep.subr.mxu0 0.0
    %430 = vmatpush2.msra.mxu0 0.0
    %431 = vmatprep.subr.mxu0 0.0
    %432 = vmatpush2.msra.mxu0 0.0
    %433 = vmatprep.subr.mxu0 0.0
    %434 = vmatpush2.msra.mxu0 0.0
    %435 = vmatprep.subr.mxu0 0.0
    %436 = vmatpush2.msra.mxu0 0.0
    %437 = vmatprep.subr.mxu0 0.0
    %438 = vmatpush2.msra.mxu0 0.0
    %439 = vmatprep.subr.mxu0 0.0
    %440 = vmatpush2.msra.mxu0 0.0
    %441 = vmatprep.subr.mxu0 0.0
    %442 = vmatpush2.msra.mxu0 0.0
    %443 = vmatprep.subr.mxu0 0.0
    %444 = vmatpush2.msra.mxu0 0.0
    %445 = vmatprep.subr.mxu0 0.0
    %446 = vmatpush2.msra.mxu0 0.0
    %447 = vmatprep.subr.mxu0 0.0
    %448 = vmatpush2.msra.mxu0 0.0
    %449 = vmatprep.subr.mxu0 0.0
    %450 = vmatpush2.msra.mxu0 0.0
    %451 = vmatprep.subr.mxu0 0.0
    %452 = vmatpush2.msra.mxu0 0.0
    %453 = vmatprep.subr.mxu0 0.0
    %454 = vmatpush2.msra.mxu0 0.0
    %455 = vmatprep.mubr.f32.mxu0 0.0
    %456 = vmatmul.mubr.f32.gmra.mxu0 %v368
    %v457 = vpop.f32.mrf.mxu0
    %v458 = vadd.f32 %v329, %v457
    %v459 = vpop.f32.mrf.mxu0
    %460 = vmatprep.mubr.f32.mxu0 0.0
    %461 = vmatmul.mubr.f32.gmra.mxu0 %v371
    %v462 = vpop.f32.mrf.mxu0
    %v463 = vadd.f32 %v334, %v462
    %v464 = vpop.f32.mrf.mxu0
    %465 = vmatprep.mubr.f32.mxu0 0.0
    %466 = vmatmul.mubr.f32.gmra.mxu0 %v374
    %v467 = vpop.f32.mrf.mxu0
    %v468 = vadd.f32 %v339, %v467
    %v469 = vpop.f32.mrf.mxu0
    %470 = vmatprep.mubr.f32.mxu0 0.0
    %471 = vmatmul.mubr.f32.gmra.mxu0 %v377
    %v472 = vpop.f32.mrf.mxu0
    %v473 = vadd.f32 %v344, %v472
    %v474 = vpop.f32.mrf.mxu0
    %475 = vmatprep.mubr.f32.mxu0 0.0
    %476 = vmatmul.mubr.f32.gmra.mxu0 %v380
    %v477 = vpop.f32.mrf.mxu0
    %v478 = vadd.f32 %v349, %v477
    %v479 = vpop.f32.mrf.mxu0
    %480 = vmatprep.mubr.f32.mxu0 0.0
    %481 = vmatmul.mubr.f32.gmra.mxu0 %v383
    %v482 = vpop.f32.mrf.mxu0
    %v483 = vadd.f32 %v354, %v482
    %v484 = vpop.f32.mrf.mxu0
    %485 = vmatprep.mubr.f32.mxu0 0.0
    %486 = vmatmul.mubr.f32.gmra.mxu0 %v386
    %v487 = vpop.f32.mrf.mxu0
    %v488 = vadd.f32 %v359, %v487
    %v489 = vpop.f32.mrf.mxu0
    %490 = vmatprep.mubr.f32.mxu0 0.0
    %491 = vmatmul.mubr.f32.gmra.mxu0 %v389
    %v492 = vpop.f32.mrf.mxu0
    %v493 = vadd.f32 %v364, %v492
    %v494 = vpop.f32.mrf.mxu0
    %495 = vdwg.mxu0
    %v496 = vld [vmem:[#allocation7 + $0x80] sm:$0xff]
    %v497 = vld [vmem:[#allocation7 + $0x88] sm:$0xff]
    %v498 = vld [vmem:[#allocation7 + $0x90] sm:$0xff]
    %v499 = vld [vmem:[#allocation7 + $0x98] sm:$0xff]
    %v500 = vld [vmem:[#allocation7 + $0xa0] sm:$0xff]
    %v501 = vld [vmem:[#allocation7 + $0xa8] sm:$0xff]
    %v502 = vld [vmem:[#allocation7 + $0xb0] sm:$0xff]
    %v503 = vld [vmem:[#allocation7 + $0xb8] sm:$0xff]
    %v505 = vsel %vm103, %v496, 0
    %v508 = vsel %vm103, %v497, 0
    %v511 = vsel %vm103, %v498, 0
    %v514 = vsel %vm103, %v499, 0
    %v517 = vsel %vm103, %v500, 0
    %v520 = vsel %vm103, %v501, 0
    %v523 = vsel %vm103, %v502, 0
    %v526 = vsel %vm103, %v503, 0
    %528 = vmatprep.subr.mxu0 0.0
    %529 = vmatpush1.msra.mxu0 0.0
    %530 = vmatprep.subr.mxu0 0.0
    %531 = vmatpush1.msra.mxu0 0.0
    %532 = vmatprep.subr.mxu0 0.0
    %533 = vmatpush1.msra.mxu0 0.0
    %534 = vmatprep.subr.mxu0 0.0
    %535 = vmatpush1.msra.mxu0 0.0
    %536 = vmatprep.subr.mxu0 0.0
    %537 = vmatpush1.msra.mxu0 0.0
    %538 = vmatprep.subr.mxu0 0.0
    %539 = vmatpush1.msra.mxu0 0.0
    %540 = vmatprep.subr.mxu0 0.0
    %541 = vmatpush1.msra.mxu0 0.0
    %542 = vmatprep.subr.mxu0 0.0
    %543 = vmatpush1.msra.mxu0 0.0
    %544 = vmatprep.subr.mxu0 0.0
    %545 = vmatpush1.msra.mxu0 %v86
    %546 = vmatprep.subr.mxu0 0.0
    %547 = vmatpush1.msra.mxu0 %v85
    %548 = vmatprep.subr.mxu0 0.0
    %549 = vmatpush1.msra.mxu0 %v84
    %550 = vmatprep.subr.mxu0 0.0
    %551 = vmatpush1.msra.mxu0 %v83
    %552 = vmatprep.subr.mxu0 0.0
    %553 = vmatpush1.msra.mxu0 %v82
    %554 = vmatprep.subr.mxu0 0.0
    %555 = vmatpush1.msra.mxu0 %v81
    %556 = vmatprep.subr.mxu0 0.0
    %557 = vmatpush1.msra.mxu0 %v80
    %558 = vmatprep.subr.mxu0 0.0
    %559 = vmatpush1.msra.mxu0 %v79
    %560 = vmatprep.subr.mxu0 0.0
    %561 = vmatpush2.msra.mxu0 0.0
    %562 = vmatprep.subr.mxu0 0.0
    %563 = vmatpush2.msra.mxu0 0.0
    %564 = vmatprep.subr.mxu0 0.0
    %565 = vmatpush2.msra.mxu0 0.0
    %566 = vmatprep.subr.mxu0 0.0
    %567 = vmatpush2.msra.mxu0 0.0
    %568 = vmatprep.subr.mxu0 0.0
    %569 = vmatpush2.msra.mxu0 0.0
    %570 = vmatprep.subr.mxu0 0.0
    %571 = vmatpush2.msra.mxu0 0.0
    %572 = vmatprep.subr.mxu0 0.0
    %573 = vmatpush2.msra.mxu0 0.0
    %574 = vmatprep.subr.mxu0 0.0
    %575 = vmatpush2.msra.mxu0 0.0
    %576 = vmatprep.subr.mxu0 0.0
    %577 = vmatpush2.msra.mxu0 0.0
    %578 = vmatprep.subr.mxu0 0.0
    %579 = vmatpush2.msra.mxu0 0.0
    %580 = vmatprep.subr.mxu0 0.0
    %581 = vmatpush2.msra.mxu0 0.0
    %582 = vmatprep.subr.mxu0 0.0
    %583 = vmatpush2.msra.mxu0 0.0
    %584 = vmatprep.subr.mxu0 0.0
    %585 = vmatpush2.msra.mxu0 0.0
    %586 = vmatprep.subr.mxu0 0.0
    %587 = vmatpush2.msra.mxu0 0.0
    %588 = vmatprep.subr.mxu0 0.0
    %589 = vmatpush2.msra.mxu0 0.0
    %590 = vmatprep.subr.mxu0 0.0
    %591 = vmatpush2.msra.mxu0 0.0
    %592 = vmatprep.mubr.f32.mxu0 0.0
    %593 = vmatmul.mubr.f32.gmra.mxu0 %v505
    %v594 = vpop.f32.mrf.mxu0
    %v595 = vadd.f32 0.0, %v594
    %v596 = vpop.f32.mrf.mxu0
    %597 = vmatprep.mubr.f32.mxu0 0.0
    %598 = vmatmul.mubr.f32.gmra.mxu0 %v508
    %v599 = vpop.f32.mrf.mxu0
    %v600 = vadd.f32 0.0, %v599
    %v601 = vpop.f32.mrf.mxu0
    %602 = vmatprep.mubr.f32.mxu0 0.0
    %603 = vmatmul.mubr.f32.gmra.mxu0 %v511
    %v604 = vpop.f32.mrf.mxu0
    %v605 = vadd.f32 0.0, %v604
    %v606 = vpop.f32.mrf.mxu0
    %607 = vmatprep.mubr.f32.mxu0 0.0
    %608 = vmatmul.mubr.f32.gmra.mxu0 %v514
    %v609 = vpop.f32.mrf.mxu0
    %v610 = vadd.f32 0.0, %v609
    %v611 = vpop.f32.mrf.mxu0
    %612 = vmatprep.mubr.f32.mxu0 0.0
    %613 = vmatmul.mubr.f32.gmra.mxu0 %v517
    %v614 = vpop.f32.mrf.mxu0
    %v615 = vadd.f32 0.0, %v614
    %v616 = vpop.f32.mrf.mxu0
    %617 = vmatprep.mubr.f32.mxu0 0.0
    %618 = vmatmul.mubr.f32.gmra.mxu0 %v520
    %v619 = vpop.f32.mrf.mxu0
    %v620 = vadd.f32 0.0, %v619
    %v621 = vpop.f32.mrf.mxu0
    %622 = vmatprep.mubr.f32.mxu0 0.0
    %623 = vmatmul.mubr.f32.gmra.mxu0 %v523
    %v624 = vpop.f32.mrf.mxu0
    %v625 = vadd.f32 0.0, %v624
    %v626 = vpop.f32.mrf.mxu0
    %627 = vmatprep.mubr.f32.mxu0 0.0
    %628 = vmatmul.mubr.f32.gmra.mxu0 %v526
    %v629 = vpop.f32.mrf.mxu0
    %v630 = vadd.f32 0.0, %v629
    %v631 = vpop.f32.mrf.mxu0
    %632 = vdwg.mxu0
    %v633 = vld [vmem:[#allocation7 + $0x120] sm:$0xff]
    %v634 = vld [vmem:[#allocation7 + $0x128] sm:$0xff]
    %v636 = vsel %vm237, %v595, 0
    %v639 = vsel %vm237, %v600, 0
    %v642 = vsel %vm237, %v605, 0
    %v645 = vsel %vm237, %v610, 0
    %v648 = vsel %vm237, %v615, 0
    %v651 = vsel %vm237, %v620, 0
    %v654 = vsel %vm237, %v625, 0
    %v657 = vsel %vm237, %v630, 0
    %659 = vmatprep.subr.mxu0 0.0
    %660 = vmatpush1.msra.mxu0 0.0
    %661 = vmatprep.subr.mxu0 0.0
    %662 = vmatpush1.msra.mxu0 0.0
    %663 = vmatprep.subr.mxu0 0.0
    %664 = vmatpush1.msra.mxu0 0.0
    %665 = vmatprep.subr.mxu0 0.0
    %666 = vmatpush1.msra.mxu0 0.0
    %667 = vmatprep.subr.mxu0 0.0
    %668 = vmatpush1.msra.mxu0 0.0
    %669 = vmatprep.subr.mxu0 0.0
    %670 = vmatpush1.msra.mxu0 0.0
    %671 = vmatprep.subr.mxu0 0.0
    %672 = vmatpush1.msra.mxu0 0.0
    %673 = vmatprep.subr.mxu0 0.0
    %674 = vmatpush1.msra.mxu0 0.0
    %675 = vmatprep.subr.mxu0 0.0
    %676 = vmatpush1.msra.mxu0 0.0
    %677 = vmatprep.subr.mxu0 0.0
    %678 = vmatpush1.msra.mxu0 0.0
    %679 = vmatprep.subr.mxu0 0.0
    %680 = vmatpush1.msra.mxu0 0.0
    %681 = vmatprep.subr.mxu0 0.0
    %682 = vmatpush1.msra.mxu0 0.0
    %683 = vmatprep.subr.mxu0 0.0
    %684 = vmatpush1.msra.mxu0 0.0
    %685 = vmatprep.subr.mxu0 0.0
    %686 = vmatpush1.msra.mxu0 0.0
    %687 = vmatprep.subr.mxu0 0.0
    %688 = vmatpush1.msra.mxu0 %v634
    %689 = vmatprep.subr.mxu0 0.0
    %690 = vmatpush1.msra.mxu0 %v633
    %691 = vmatprep.subr.mxu0 0.0
    %692 = vmatpush2.msra.mxu0 0.0
    %693 = vmatprep.subr.mxu0 0.0
    %694 = vmatpush2.msra.mxu0 0.0
    %695 = vmatprep.subr.mxu0 0.0
    %696 = vmatpush2.msra.mxu0 0.0
    %697 = vmatprep.subr.mxu0 0.0
    %698 = vmatpush2.msra.mxu0 0.0
    %699 = vmatprep.subr.mxu0 0.0
    %700 = vmatpush2.msra.mxu0 0.0
    %701 = vmatprep.subr.mxu0 0.0
    %702 = vmatpush2.msra.mxu0 0.0
    %703 = vmatprep.subr.mxu0 0.0
    %704 = vmatpush2.msra.mxu0 0.0
    %705 = vmatprep.subr.mxu0 0.0
    %706 = vmatpush2.msra.mxu0 0.0
    %707 = vmatprep.subr.mxu0 0.0
    %708 = vmatpush2.msra.mxu0 0.0
    %709 = vmatprep.subr.mxu0 0.0
    %710 = vmatpush2.msra.mxu0 0.0
    %711 = vmatprep.subr.mxu0 0.0
    %712 = vmatpush2.msra.mxu0 0.0
    %713 = vmatprep.subr.mxu0 0.0
    %714 = vmatpush2.msra.mxu0 0.0
    %715 = vmatprep.subr.mxu0 0.0
    %716 = vmatpush2.msra.mxu0 0.0
    %717 = vmatprep.subr.mxu0 0.0
    %718 = vmatpush2.msra.mxu0 0.0
    %719 = vmatprep.subr.mxu0 0.0
    %720 = vmatpush2.msra.mxu0 0.0
    %721 = vmatprep.subr.mxu0 0.0
    %722 = vmatpush2.msra.mxu0 0.0
    %723 = vmatprep.mubr.f32.mxu0 0.0
    %724 = vmatmul.mubr.f32.gmra.mxu0 %v636
    %v725 = vpop.f32.mrf.mxu0
    %v726 = vadd.f32 0.0, %v725
    %v727 = vpop.f32.mrf.mxu0
    %728 = vmatprep.mubr.f32.mxu0 0.0
    %729 = vmatmul.mubr.f32.gmra.mxu0 %v639
    %v730 = vpop.f32.mrf.mxu0
    %v731 = vadd.f32 0.0, %v730
    %v732 = vpop.f32.mrf.mxu0
    %733 = vmatprep.mubr.f32.mxu0 0.0
    %734 = vmatmul.mubr.f32.gmra.mxu0 %v642
    %v735 = vpop.f32.mrf.mxu0
    %v736 = vadd.f32 0.0, %v735
    %v737 = vpop.f32.mrf.mxu0
    %738 = vmatprep.mubr.f32.mxu0 0.0
    %739 = vmatmul.mubr.f32.gmra.mxu0 %v645
    %v740 = vpop.f32.mrf.mxu0
    %v741 = vadd.f32 0.0, %v740
    %v742 = vpop.f32.mrf.mxu0
    %743 = vmatprep.mubr.f32.mxu0 0.0
    %744 = vmatmul.mubr.f32.gmra.mxu0 %v648
    %v745 = vpop.f32.mrf.mxu0
    %v746 = vadd.f32 0.0, %v745
    %v747 = vpop.f32.mrf.mxu0
    %748 = vmatprep.mubr.f32.mxu0 0.0
    %749 = vmatmul.mubr.f32.gmra.mxu0 %v651
    %v750 = vpop.f32.mrf.mxu0
    %v751 = vadd.f32 0.0, %v750
    %v752 = vpop.f32.mrf.mxu0
    %753 = vmatprep.mubr.f32.mxu0 0.0
    %754 = vmatmul.mubr.f32.gmra.mxu0 %v654
    %v755 = vpop.f32.mrf.mxu0
    %v756 = vadd.f32 0.0, %v755
    %v757 = vpop.f32.mrf.mxu0
    %758 = vmatprep.mubr.f32.mxu0 0.0
    %759 = vmatmul.mubr.f32.gmra.mxu0 %v657
    %v760 = vpop.f32.mrf.mxu0
    %v761 = vadd.f32 0.0, %v760
    %v762 = vpop.f32.mrf.mxu0
    %763 = vdwg.mxu0
    %v764 = vadd.f32 %v458, %v726
    %v765 = vadd.f32 %v463, %v731
    %v766 = vadd.f32 %v468, %v736
    %v767 = vadd.f32 %v473, %v741
    %v768 = vadd.f32 %v478, %v746
    %v769 = vadd.f32 %v483, %v751
    %v770 = vadd.f32 %v488, %v756
    %v771 = vadd.f32 %v493, %v761
    %v772 = vld [vmem:[#allocation7 + $0x170] sm:$0x7]
    %v773 = vlaneseq
    %v774 = vshrl.u32 %v773, 7
    %v775 = vsub.s32 0, %v774
    %v776 = vrot.slane %v772, %v775
    %v777 = vadd.f32 %v764, %v776
    %v778 = vadd.f32 %v765, %v776
    %v779 = vadd.f32 %v766, %v776
    %v780 = vadd.f32 %v767, %v776
    %v781 = vadd.f32 %v768, %v776
    %v782 = vadd.f32 %v769, %v776
    %v783 = vadd.f32 %v770, %v776
    %v784 = vadd.f32 %v771, %v776
    %v785 = vmax.f32 %v777, 0.0
    %v786 = vmax.f32 %v778, 0.0
    %v787 = vmax.f32 %v779, 0.0
    %v788 = vmax.f32 %v780, 0.0
    %v789 = vmax.f32 %v781, 0.0
    %v790 = vmax.f32 %v782, 0.0
    %v791 = vmax.f32 %v783, 0.0
    %v792 = vmax.f32 %v784, 0.0
    %v793 = vld [vmem:[#allocation7 + $0x130] sm:$0xff]
    %v794 = vld [vmem:[#allocation7 + $0x138] sm:$0xff]
    %v795 = vld [vmem:[#allocation7 + $0x140] sm:$0xff]
    %v796 = vld [vmem:[#allocation7 + $0x148] sm:$0xff]
    %v797 = vld [vmem:[#allocation7 + $0x150] sm:$0xff]
    %v798 = vld [vmem:[#allocation7 + $0x158] sm:$0xff]
    %v799 = vld [vmem:[#allocation7 + $0x160] sm:$0xff]
    %v800 = vld [vmem:[#allocation7 + $0x168] sm:$0xff]
    %v802 = vsel %vm103, %v785, 0
    %v805 = vsel %vm103, %v786, 0
    %v808 = vsel %vm103, %v787, 0
    %v811 = vsel %vm103, %v788, 0
    %v814 = vsel %vm103, %v789, 0
    %v817 = vsel %vm103, %v790, 0
    %v820 = vsel %vm103, %v791, 0
    %v823 = vsel %vm103, %v792, 0
    %825 = vmatprep.subr.mxu0 0.0
    %826 = vmatpush1.msra.mxu0 0.0
    %827 = vmatprep.subr.mxu0 0.0
    %828 = vmatpush1.msra.mxu0 0.0
    %829 = vmatprep.subr.mxu0 0.0
    %830 = vmatpush1.msra.mxu0 0.0
    %831 = vmatprep.subr.mxu0 0.0
    %832 = vmatpush1.msra.mxu0 0.0
    %833 = vmatprep.subr.mxu0 0.0
    %834 = vmatpush1.msra.mxu0 0.0
    %835 = vmatprep.subr.mxu0 0.0
    %836 = vmatpush1.msra.mxu0 0.0
    %837 = vmatprep.subr.mxu0 0.0
    %838 = vmatpush1.msra.mxu0 0.0
    %839 = vmatprep.subr.mxu0 0.0
    %840 = vmatpush1.msra.mxu0 0.0
    %841 = vmatprep.subr.mxu0 0.0
    %842 = vmatpush1.msra.mxu0 %v800
    %843 = vmatprep.subr.mxu0 0.0
    %844 = vmatpush1.msra.mxu0 %v799
    %845 = vmatprep.subr.mxu0 0.0
    %846 = vmatpush1.msra.mxu0 %v798
    %847 = vmatprep.subr.mxu0 0.0
    %848 = vmatpush1.msra.mxu0 %v797
    %849 = vmatprep.subr.mxu0 0.0
    %850 = vmatpush1.msra.mxu0 %v796
    %851 = vmatprep.subr.mxu0 0.0
    %852 = vmatpush1.msra.mxu0 %v795
    %853 = vmatprep.subr.mxu0 0.0
    %854 = vmatpush1.msra.mxu0 %v794
    %855 = vmatprep.subr.mxu0 0.0
    %856 = vmatpush1.msra.mxu0 %v793
    %857 = vmatprep.subr.mxu0 0.0
    %858 = vmatpush2.msra.mxu0 0.0
    %859 = vmatprep.subr.mxu0 0.0
    %860 = vmatpush2.msra.mxu0 0.0
    %861 = vmatprep.subr.mxu0 0.0
    %862 = vmatpush2.msra.mxu0 0.0
    %863 = vmatprep.subr.mxu0 0.0
    %864 = vmatpush2.msra.mxu0 0.0
    %865 = vmatprep.subr.mxu0 0.0
    %866 = vmatpush2.msra.mxu0 0.0
    %867 = vmatprep.subr.mxu0 0.0
    %868 = vmatpush2.msra.mxu0 0.0
    %869 = vmatprep.subr.mxu0 0.0
    %870 = vmatpush2.msra.mxu0 0.0
    %871 = vmatprep.subr.mxu0 0.0
    %872 = vmatpush2.msra.mxu0 0.0
    %873 = vmatprep.subr.mxu0 0.0
    %874 = vmatpush2.msra.mxu0 0.0
    %875 = vmatprep.subr.mxu0 0.0
    %876 = vmatpush2.msra.mxu0 0.0
    %877 = vmatprep.subr.mxu0 0.0
    %878 = vmatpush2.msra.mxu0 0.0
    %879 = vmatprep.subr.mxu0 0.0
    %880 = vmatpush2.msra.mxu0 0.0
    %881 = vmatprep.subr.mxu0 0.0
    %882 = vmatpush2.msra.mxu0 0.0
    %883 = vmatprep.subr.mxu0 0.0
    %884 = vmatpush2.msra.mxu0 0.0
    %885 = vmatprep.subr.mxu0 0.0
    %886 = vmatpush2.msra.mxu0 0.0
    %887 = vmatprep.subr.mxu0 0.0
    %888 = vmatpush2.msra.mxu0 0.0
    %889 = vmatprep.mubr.f32.mxu0 0.0
    %890 = vmatmul.mubr.f32.gmra.mxu0 %v802
    %v891 = vpop.f32.mrf.mxu0
    %v892 = vadd.f32 0.0, %v891
    %v893 = vpop.f32.mrf.mxu0
    %894 = vmatprep.mubr.f32.mxu0 0.0
    %895 = vmatmul.mubr.f32.gmra.mxu0 %v805
    %v896 = vpop.f32.mrf.mxu0
    %v897 = vadd.f32 0.0, %v896
    %v898 = vpop.f32.mrf.mxu0
    %899 = vmatprep.mubr.f32.mxu0 0.0
    %900 = vmatmul.mubr.f32.gmra.mxu0 %v808
    %v901 = vpop.f32.mrf.mxu0
    %v902 = vadd.f32 0.0, %v901
    %v903 = vpop.f32.mrf.mxu0
    %904 = vmatprep.mubr.f32.mxu0 0.0
    %905 = vmatmul.mubr.f32.gmra.mxu0 %v811
    %v906 = vpop.f32.mrf.mxu0
    %v907 = vadd.f32 0.0, %v906
    %v908 = vpop.f32.mrf.mxu0
    %909 = vmatprep.mubr.f32.mxu0 0.0
    %910 = vmatmul.mubr.f32.gmra.mxu0 %v814
    %v911 = vpop.f32.mrf.mxu0
    %v912 = vadd.f32 0.0, %v911
    %v913 = vpop.f32.mrf.mxu0
    %914 = vmatprep.mubr.f32.mxu0 0.0
    %915 = vmatmul.mubr.f32.gmra.mxu0 %v817
    %v916 = vpop.f32.mrf.mxu0
    %v917 = vadd.f32 0.0, %v916
    %v918 = vpop.f32.mrf.mxu0
    %919 = vmatprep.mubr.f32.mxu0 0.0
    %920 = vmatmul.mubr.f32.gmra.mxu0 %v820
    %v921 = vpop.f32.mrf.mxu0
    %v922 = vadd.f32 0.0, %v921
    %v923 = vpop.f32.mrf.mxu0
    %924 = vmatprep.mubr.f32.mxu0 0.0
    %925 = vmatmul.mubr.f32.gmra.mxu0 %v823
    %v926 = vpop.f32.mrf.mxu0
    %v927 = vadd.f32 0.0, %v926
    %v928 = vpop.f32.mrf.mxu0
    %929 = vdwg.mxu0
    %v931 = vsel %vm103, %v87, 0
    %v934 = vsel %vm103, %v88, 0
    %v937 = vsel %vm103, %v89, 0
    %v940 = vsel %vm103, %v90, 0
    %v943 = vsel %vm103, %v91, 0
    %v946 = vsel %vm103, %v92, 0
    %v949 = vsel %vm103, %v93, 0
    %v952 = vsel %vm103, %v94, 0
    %954 = vmatprep.subr.mxu0 0.0
    %955 = vmatpush1.msra.mxu0 0.0
    %956 = vmatprep.subr.mxu0 0.0
    %957 = vmatpush1.msra.mxu0 0.0
    %958 = vmatprep.subr.mxu0 0.0
    %959 = vmatpush1.msra.mxu0 0.0
    %960 = vmatprep.subr.mxu0 0.0
    %961 = vmatpush1.msra.mxu0 0.0
    %962 = vmatprep.subr.mxu0 0.0
    %963 = vmatpush1.msra.mxu0 0.0
    %964 = vmatprep.subr.mxu0 0.0
    %965 = vmatpush1.msra.mxu0 0.0
    %966 = vmatprep.subr.mxu0 0.0
    %967 = vmatpush1.msra.mxu0 0.0
    %968 = vmatprep.subr.mxu0 0.0
    %969 = vmatpush1.msra.mxu0 0.0
    %970 = vmatprep.subr.mxu0 0.0
    %971 = vmatpush1.msra.mxu0 %v927
    %972 = vmatprep.subr.mxu0 0.0
    %973 = vmatpush1.msra.mxu0 %v922
    %974 = vmatprep.subr.mxu0 0.0
    %975 = vmatpush1.msra.mxu0 %v917
    %976 = vmatprep.subr.mxu0 0.0
    %977 = vmatpush1.msra.mxu0 %v912
    %978 = vmatprep.subr.mxu0 0.0
    %979 = vmatpush1.msra.mxu0 %v907
    %980 = vmatprep.subr.mxu0 0.0
    %981 = vmatpush1.msra.mxu0 %v902
    %982 = vmatprep.subr.mxu0 0.0
    %983 = vmatpush1.msra.mxu0 %v897
    %984 = vmatprep.subr.mxu0 0.0
    %985 = vmatpush1.msra.mxu0 %v892
    %986 = vmatprep.subr.mxu0 0.0
    %987 = vmatpush2.msra.mxu0 0.0
    %988 = vmatprep.subr.mxu0 0.0
    %989 = vmatpush2.msra.mxu0 0.0
    %990 = vmatprep.subr.mxu0 0.0
    %991 = vmatpush2.msra.mxu0 0.0
    %992 = vmatprep.subr.mxu0 0.0
    %993 = vmatpush2.msra.mxu0 0.0
    %994 = vmatprep.subr.mxu0 0.0
    %995 = vmatpush2.msra.mxu0 0.0
    %996 = vmatprep.subr.mxu0 0.0
    %997 = vmatpush2.msra.mxu0 0.0
    %998 = vmatprep.subr.mxu0 0.0
    %999 = vmatpush2.msra.mxu0 0.0
    %1000 = vmatprep.subr.mxu0 0.0
    %1001 = vmatpush2.msra.mxu0 0.0
    %1002 = vmatprep.subr.mxu0 0.0
    %1003 = vmatpush2.msra.mxu0 0.0
    %1004 = vmatprep.subr.mxu0 0.0
    %1005 = vmatpush2.msra.mxu0 0.0
    %1006 = vmatprep.subr.mxu0 0.0
    %1007 = vmatpush2.msra.mxu0 0.0
    %1008 = vmatprep.subr.mxu0 0.0
    %1009 = vmatpush2.msra.mxu0 0.0
    %1010 = vmatprep.subr.mxu0 0.0
    %1011 = vmatpush2.msra.mxu0 0.0
    %1012 = vmatprep.subr.mxu0 0.0
    %1013 = vmatpush2.msra.mxu0 0.0
    %1014 = vmatprep.subr.mxu0 0.0
    %1015 = vmatpush2.msra.mxu0 0.0
    %1016 = vmatprep.subr.mxu0 0.0
    %1017 = vmatpush2.msra.mxu0 0.0
    %1018 = vmatprep.mubr.f32.mxu0 0.0
    %1019 = vmatmul.mubr.f32.gmra.mxu0 %v931
    %v1020 = vpop.f32.mrf.mxu0
    %v1021 = vadd.f32 0.0, %v1020
    %v1022 = vpop.f32.mrf.mxu0
    %1023 = vmatprep.mubr.f32.mxu0 0.0
    %1024 = vmatmul.mubr.f32.gmra.mxu0 %v934
    %v1025 = vpop.f32.mrf.mxu0
    %v1026 = vadd.f32 0.0, %v1025
    %v1027 = vpop.f32.mrf.mxu0
    %1028 = vmatprep.mubr.f32.mxu0 0.0
    %1029 = vmatmul.mubr.f32.gmra.mxu0 %v937
    %v1030 = vpop.f32.mrf.mxu0
    %v1031 = vadd.f32 0.0, %v1030
    %v1032 = vpop.f32.mrf.mxu0
    %1033 = vmatprep.mubr.f32.mxu0 0.0
    %1034 = vmatmul.mubr.f32.gmra.mxu0 %v940
    %v1035 = vpop.f32.mrf.mxu0
    %v1036 = vadd.f32 0.0, %v1035
    %v1037 = vpop.f32.mrf.mxu0
    %1038 = vmatprep.mubr.f32.mxu0 0.0
    %1039 = vmatmul.mubr.f32.gmra.mxu0 %v943
    %v1040 = vpop.f32.mrf.mxu0
    %v1041 = vadd.f32 0.0, %v1040
    %v1042 = vpop.f32.mrf.mxu0
    %1043 = vmatprep.mubr.f32.mxu0 0.0
    %1044 = vmatmul.mubr.f32.gmra.mxu0 %v946
    %v1045 = vpop.f32.mrf.mxu0
    %v1046 = vadd.f32 0.0, %v1045
    %v1047 = vpop.f32.mrf.mxu0
    %1048 = vmatprep.mubr.f32.mxu0 0.0
    %1049 = vmatmul.mubr.f32.gmra.mxu0 %v949
    %v1050 = vpop.f32.mrf.mxu0
    %v1051 = vadd.f32 0.0, %v1050
    %v1052 = vpop.f32.mrf.mxu0
    %1053 = vmatprep.mubr.f32.mxu0 0.0
    %1054 = vmatmul.mubr.f32.gmra.mxu0 %v952
    %v1055 = vpop.f32.mrf.mxu0
    %v1056 = vadd.f32 0.0, %v1055
    %v1057 = vpop.f32.mrf.mxu0
    %1058 = vdwg.mxu0
    %v1059 = vmul.f32 %v785, %v785
    %v1060 = vmul.f32 %v786, %v786
    %v1061 = vmul.f32 %v787, %v787
    %v1062 = vmul.f32 %v788, %v788
    %v1063 = vmul.f32 %v789, %v789
    %v1064 = vmul.f32 %v790, %v790
    %v1065 = vmul.f32 %v791, %v791
    %v1066 = vmul.f32 %v792, %v792
    %v1068 = vsel %vm103, %v1059, 0
    %v1071 = vsel %vm103, %v1060, 0
    %v1074 = vsel %vm103, %v1061, 0
    %v1077 = vsel %vm103, %v1062, 0
    %v1080 = vsel %vm103, %v1063, 0
    %v1083 = vsel %vm103, %v1064, 0
    %v1086 = vsel %vm103, %v1065, 0
    %v1089 = vsel %vm103, %v1066, 0
    %1091 = vmatprep.subr.mxu0 0.0
    %1092 = vmatpush1.msra.mxu0 0.0
    %1093 = vmatprep.subr.mxu0 0.0
    %1094 = vmatpush1.msra.mxu0 0.0
    %1095 = vmatprep.subr.mxu0 0.0
    %1096 = vmatpush1.msra.mxu0 0.0
    %1097 = vmatprep.subr.mxu0 0.0
    %1098 = vmatpush1.msra.mxu0 0.0
    %1099 = vmatprep.subr.mxu0 0.0
    %1100 = vmatpush1.msra.mxu0 0.0
    %1101 = vmatprep.subr.mxu0 0.0
    %1102 = vmatpush1.msra.mxu0 0.0
    %1103 = vmatprep.subr.mxu0 0.0
    %1104 = vmatpush1.msra.mxu0 0.0
    %1105 = vmatprep.subr.mxu0 0.0
    %1106 = vmatpush1.msra.mxu0 0.0
    %1107 = vmatprep.subr.mxu0 0.0
    %1108 = vmatpush1.msra.mxu0 %v800
    %1109 = vmatprep.subr.mxu0 0.0
    %1110 = vmatpush1.msra.mxu0 %v799
    %1111 = vmatprep.subr.mxu0 0.0
    %1112 = vmatpush1.msra.mxu0 %v798
    %1113 = vmatprep.subr.mxu0 0.0
    %1114 = vmatpush1.msra.mxu0 %v797
    %1115 = vmatprep.subr.mxu0 0.0
    %1116 = vmatpush1.msra.mxu0 %v796
    %1117 = vmatprep.subr.mxu0 0.0
    %1118 = vmatpush1.msra.mxu0 %v795
    %1119 = vmatprep.subr.mxu0 0.0
    %1120 = vmatpush1.msra.mxu0 %v794
    %1121 = vmatprep.subr.mxu0 0.0
    %1122 = vmatpush1.msra.mxu0 %v793
    %1123 = vmatprep.subr.mxu0 0.0
    %1124 = vmatpush2.msra.mxu0 0.0
    %1125 = vmatprep.subr.mxu0 0.0
    %1126 = vmatpush2.msra.mxu0 0.0
    %1127 = vmatprep.subr.mxu0 0.0
    %1128 = vmatpush2.msra.mxu0 0.0
    %1129 = vmatprep.subr.mxu0 0.0
    %1130 = vmatpush2.msra.mxu0 0.0
    %1131 = vmatprep.subr.mxu0 0.0
    %1132 = vmatpush2.msra.mxu0 0.0
    %1133 = vmatprep.subr.mxu0 0.0
    %1134 = vmatpush2.msra.mxu0 0.0
    %1135 = vmatprep.subr.mxu0 0.0
    %1136 = vmatpush2.msra.mxu0 0.0
    %1137 = vmatprep.subr.mxu0 0.0
    %1138 = vmatpush2.msra.mxu0 0.0
    %1139 = vmatprep.subr.mxu0 0.0
    %1140 = vmatpush2.msra.mxu0 0.0
    %1141 = vmatprep.subr.mxu0 0.0
    %1142 = vmatpush2.msra.mxu0 0.0
    %1143 = vmatprep.subr.mxu0 0.0
    %1144 = vmatpush2.msra.mxu0 0.0
    %1145 = vmatprep.subr.mxu0 0.0
    %1146 = vmatpush2.msra.mxu0 0.0
    %1147 = vmatprep.subr.mxu0 0.0
    %1148 = vmatpush2.msra.mxu0 0.0
    %1149 = vmatprep.subr.mxu0 0.0
    %1150 = vmatpush2.msra.mxu0 0.0
    %1151 = vmatprep.subr.mxu0 0.0
    %1152 = vmatpush2.msra.mxu0 0.0
    %1153 = vmatprep.subr.mxu0 0.0
    %1154 = vmatpush2.msra.mxu0 0.0
    %1155 = vmatprep.mubr.f32.mxu0 0.0
    %1156 = vmatmul.mubr.f32.gmra.mxu0 %v1068
    %v1157 = vpop.f32.mrf.mxu0
    %v1158 = vadd.f32 0.0, %v1157
    %v1159 = vpop.f32.mrf.mxu0
    %1160 = vmatprep.mubr.f32.mxu0 0.0
    %1161 = vmatmul.mubr.f32.gmra.mxu0 %v1071
    %v1162 = vpop.f32.mrf.mxu0
    %v1163 = vadd.f32 0.0, %v1162
    %v1164 = vpop.f32.mrf.mxu0
    %1165 = vmatprep.mubr.f32.mxu0 0.0
    %1166 = vmatmul.mubr.f32.gmra.mxu0 %v1074
    %v1167 = vpop.f32.mrf.mxu0
    %v1168 = vadd.f32 0.0, %v1167
    %v1169 = vpop.f32.mrf.mxu0
    %1170 = vmatprep.mubr.f32.mxu0 0.0
    %1171 = vmatmul.mubr.f32.gmra.mxu0 %v1077
    %v1172 = vpop.f32.mrf.mxu0
    %v1173 = vadd.f32 0.0, %v1172
    %v1174 = vpop.f32.mrf.mxu0
    %1175 = vmatprep.mubr.f32.mxu0 0.0
    %1176 = vmatmul.mubr.f32.gmra.mxu0 %v1080
    %v1177 = vpop.f32.mrf.mxu0
    %v1178 = vadd.f32 0.0, %v1177
    %v1179 = vpop.f32.mrf.mxu0
    %1180 = vmatprep.mubr.f32.mxu0 0.0
    %1181 = vmatmul.mubr.f32.gmra.mxu0 %v1083
    %v1182 = vpop.f32.mrf.mxu0
    %v1183 = vadd.f32 0.0, %v1182
    %v1184 = vpop.f32.mrf.mxu0
    %1185 = vmatprep.mubr.f32.mxu0 0.0
    %1186 = vmatmul.mubr.f32.gmra.mxu0 %v1086
    %v1187 = vpop.f32.mrf.mxu0
    %v1188 = vadd.f32 0.0, %v1187
    %v1189 = vpop.f32.mrf.mxu0
    %1190 = vmatprep.mubr.f32.mxu0 0.0
    %1191 = vmatmul.mubr.f32.gmra.mxu0 %v1089
    %v1192 = vpop.f32.mrf.mxu0
    %v1193 = vadd.f32 0.0, %v1192
    %v1194 = vpop.f32.mrf.mxu0
    %1195 = vdwg.mxu0
    %1196 = vmatprep.subr.mxu0 0.0
    %1197 = vmatpush1.msra.mxu0 0.0
    %1198 = vmatprep.subr.mxu0 0.0
    %1199 = vmatpush1.msra.mxu0 0.0
    %1200 = vmatprep.subr.mxu0 0.0
    %1201 = vmatpush1.msra.mxu0 0.0
    %1202 = vmatprep.subr.mxu0 0.0
    %1203 = vmatpush1.msra.mxu0 0.0
    %1204 = vmatprep.subr.mxu0 0.0
    %1205 = vmatpush1.msra.mxu0 0.0
    %1206 = vmatprep.subr.mxu0 0.0
    %1207 = vmatpush1.msra.mxu0 0.0
    %1208 = vmatprep.subr.mxu0 0.0
    %1209 = vmatpush1.msra.mxu0 0.0
    %1210 = vmatprep.subr.mxu0 0.0
    %1211 = vmatpush1.msra.mxu0 0.0
    %1212 = vmatprep.subr.mxu0 0.0
    %1213 = vmatpush1.msra.mxu0 %v1193
    %1214 = vmatprep.subr.mxu0 0.0
    %1215 = vmatpush1.msra.mxu0 %v1188
    %1216 = vmatprep.subr.mxu0 0.0
    %1217 = vmatpush1.msra.mxu0 %v1183
    %1218 = vmatprep.subr.mxu0 0.0
    %1219 = vmatpush1.msra.mxu0 %v1178
    %1220 = vmatprep.subr.mxu0 0.0
    %1221 = vmatpush1.msra.mxu0 %v1173
    %1222 = vmatprep.subr.mxu0 0.0
    %1223 = vmatpush1.msra.mxu0 %v1168
    %1224 = vmatprep.subr.mxu0 0.0
    %1225 = vmatpush1.msra.mxu0 %v1163
    %1226 = vmatprep.subr.mxu0 0.0
    %1227 = vmatpush1.msra.mxu0 %v1158
    %1228 = vmatprep.subr.mxu0 0.0
    %1229 = vmatpush2.msra.mxu0 0.0
    %1230 = vmatprep.subr.mxu0 0.0
    %1231 = vmatpush2.msra.mxu0 0.0
    %1232 = vmatprep.subr.mxu0 0.0
    %1233 = vmatpush2.msra.mxu0 0.0
    %1234 = vmatprep.subr.mxu0 0.0
    %1235 = vmatpush2.msra.mxu0 0.0
    %1236 = vmatprep.subr.mxu0 0.0
    %1237 = vmatpush2.msra.mxu0 0.0
    %1238 = vmatprep.subr.mxu0 0.0
    %1239 = vmatpush2.msra.mxu0 0.0
    %1240 = vmatprep.subr.mxu0 0.0
    %1241 = vmatpush2.msra.mxu0 0.0
    %1242 = vmatprep.subr.mxu0 0.0
    %1243 = vmatpush2.msra.mxu0 0.0
    %1244 = vmatprep.subr.mxu0 0.0
    %1245 = vmatpush2.msra.mxu0 0.0
    %1246 = vmatprep.subr.mxu0 0.0
    %1247 = vmatpush2.msra.mxu0 0.0
    %1248 = vmatprep.subr.mxu0 0.0
    %1249 = vmatpush2.msra.mxu0 0.0
    %1250 = vmatprep.subr.mxu0 0.0
    %1251 = vmatpush2.msra.mxu0 0.0
    %1252 = vmatprep.subr.mxu0 0.0
    %1253 = vmatpush2.msra.mxu0 0.0
    %1254 = vmatprep.subr.mxu0 0.0
    %1255 = vmatpush2.msra.mxu0 0.0
    %1256 = vmatprep.subr.mxu0 0.0
    %1257 = vmatpush2.msra.mxu0 0.0
    %1258 = vmatprep.subr.mxu0 0.0
    %1259 = vmatpush2.msra.mxu0 0.0
    %1260 = vmatprep.mubr.f32.mxu0 0.0
    %1261 = vmatmul.mubr.f32.gmra.mxu0 %v931
    %v1262 = vpop.f32.mrf.mxu0
    %v1263 = vadd.f32 0.0, %v1262
    %v1264 = vpop.f32.mrf.mxu0
    %1265 = vmatprep.mubr.f32.mxu0 0.0
    %1266 = vmatmul.mubr.f32.gmra.mxu0 %v934
    %v1267 = vpop.f32.mrf.mxu0
    %v1268 = vadd.f32 0.0, %v1267
    %v1269 = vpop.f32.mrf.mxu0
    %1270 = vmatprep.mubr.f32.mxu0 0.0
    %1271 = vmatmul.mubr.f32.gmra.mxu0 %v937
    %v1272 = vpop.f32.mrf.mxu0
    %v1273 = vadd.f32 0.0, %v1272
    %v1274 = vpop.f32.mrf.mxu0
    %1275 = vmatprep.mubr.f32.mxu0 0.0
    %1276 = vmatmul.mubr.f32.gmra.mxu0 %v940
    %v1277 = vpop.f32.mrf.mxu0
    %v1278 = vadd.f32 0.0, %v1277
    %v1279 = vpop.f32.mrf.mxu0
    %1280 = vmatprep.mubr.f32.mxu0 0.0
    %1281 = vmatmul.mubr.f32.gmra.mxu0 %v943
    %v1282 = vpop.f32.mrf.mxu0
    %v1283 = vadd.f32 0.0, %v1282
    %v1284 = vpop.f32.mrf.mxu0
    %1285 = vmatprep.mubr.f32.mxu0 0.0
    %1286 = vmatmul.mubr.f32.gmra.mxu0 %v946
    %v1287 = vpop.f32.mrf.mxu0
    %v1288 = vadd.f32 0.0, %v1287
    %v1289 = vpop.f32.mrf.mxu0
    %1290 = vmatprep.mubr.f32.mxu0 0.0
    %1291 = vmatmul.mubr.f32.gmra.mxu0 %v949
    %v1292 = vpop.f32.mrf.mxu0
    %v1293 = vadd.f32 0.0, %v1292
    %v1294 = vpop.f32.mrf.mxu0
    %1295 = vmatprep.mubr.f32.mxu0 0.0
    %1296 = vmatmul.mubr.f32.gmra.mxu0 %v952
    %v1297 = vpop.f32.mrf.mxu0
    %v1298 = vadd.f32 0.0, %v1297
    %v1299 = vpop.f32.mrf.mxu0
    %1300 = vdwg.mxu0
    %v1301 = vmul.f32 %v1021, %v1021
    %v1302 = vmul.f32 %v1026, %v1026
    %v1303 = vmul.f32 %v1031, %v1031
    %v1304 = vmul.f32 %v1036, %v1036
    %v1305 = vmul.f32 %v1041, %v1041
    %v1306 = vmul.f32 %v1046, %v1046
    %v1307 = vmul.f32 %v1051, %v1051
    %v1308 = vmul.f32 %v1056, %v1056
    %v1309 = vsub.f32 %v1263, %v1301
    %v1310 = vsub.f32 %v1268, %v1302
    %v1311 = vsub.f32 %v1273, %v1303
    %v1312 = vsub.f32 %v1278, %v1304
    %v1313 = vsub.f32 %v1283, %v1305
    %v1314 = vsub.f32 %v1288, %v1306
    %v1315 = vsub.f32 %v1293, %v1307
    %v1316 = vsub.f32 %v1298, %v1308
    %v1317 = vmax.f32 %v1309, 0.0
    %v1318 = vmax.f32 %v1310, 0.0
    %v1319 = vmax.f32 %v1311, 0.0
    %v1320 = vmax.f32 %v1312, 0.0
    %v1321 = vmax.f32 %v1313, 0.0
    %v1322 = vmax.f32 %v1314, 0.0
    %v1323 = vmax.f32 %v1315, 0.0
    %v1324 = vmax.f32 %v1316, 0.0
    %v1325 = vsub.f32 %v785, %v1021
    %v1326 = vsub.f32 %v786, %v1026
    %v1327 = vsub.f32 %v787, %v1031
    %v1328 = vsub.f32 %v788, %v1036
    %v1329 = vsub.f32 %v789, %v1041
    %v1330 = vsub.f32 %v790, %v1046
    %v1331 = vsub.f32 %v791, %v1051
    %v1332 = vsub.f32 %v792, %v1056
    %v1333 = vadd.f32 %v1317, 1e-05
    %v1334 = vadd.f32 %v1318, 1e-05
    %v1335 = vadd.f32 %v1319, 1e-05
    %v1336 = vadd.f32 %v1320, 1e-05
    %v1337 = vadd.f32 %v1321, 1e-05
    %v1338 = vadd.f32 %v1322, 1e-05
    %v1339 = vadd.f32 %v1323, 1e-05
    %v1340 = vadd.f32 %v1324, 1e-05
    %v1341 = vrsqrt.pop %v1333
    %v1342 = vrsqrt.pop %v1334
    %v1343 = vrsqrt.pop %v1335
    %v1344 = vrsqrt.pop %v1336
    %v1345 = vrsqrt.pop %v1337
    %v1346 = vrsqrt.pop %v1338
    %v1347 = vrsqrt.pop %v1339
    %v1348 = vrsqrt.pop %v1340
    %v1349 = vmul.f32 %v1325, %v1341
    %v1350 = vmul.f32 %v1326, %v1342
    %v1351 = vmul.f32 %v1327, %v1343
    %v1352 = vmul.f32 %v1328, %v1344
    %v1353 = vmul.f32 %v1329, %v1345
    %v1354 = vmul.f32 %v1330, %v1346
    %v1355 = vmul.f32 %v1331, %v1347
    %v1356 = vmul.f32 %v1332, %v1348
    %v1357 = vlaneseq
    %v1358 = vshrl.u32 %v1357, 7
    %v1359 = vsub.s32 1, %v1358
    %v1360 = vrot.slane %v772, %v1359
    %v1361 = vmul.f32 %v1349, %v1360
    %v1362 = vmul.f32 %v1350, %v1360
    %v1363 = vmul.f32 %v1351, %v1360
    %v1364 = vmul.f32 %v1352, %v1360
    %v1365 = vmul.f32 %v1353, %v1360
    %v1366 = vmul.f32 %v1354, %v1360
    %v1367 = vmul.f32 %v1355, %v1360
    %v1368 = vmul.f32 %v1356, %v1360
    %v1369 = vlaneseq
    %v1370 = vshrl.u32 %v1369, 7
    %v1371 = vsub.s32 2, %v1370
    %v1372 = vrot.slane %v772, %v1371
    %v1373 = vadd.f32 %v1361, %v1372
    %v1374 = vadd.f32 %v1362, %v1372
    %v1375 = vadd.f32 %v1363, %v1372
    %v1376 = vadd.f32 %v1364, %v1372
    %v1377 = vadd.f32 %v1365, %v1372
    %v1378 = vadd.f32 %v1366, %v1372
    %v1379 = vadd.f32 %v1367, %v1372
    %v1380 = vadd.f32 %v1368, %v1372
    %1381 = vmatprep.subr.mxu0 0.0
    %1382 = vmatpush1.msra.mxu0 0.0
    %1383 = vmatprep.subr.mxu0 0.0
    %1384 = vmatpush1.msra.mxu0 0.0
    %1385 = vmatprep.subr.mxu0 0.0
    %1386 = vmatpush1.msra.mxu0 0.0
    %1387 = vmatprep.subr.mxu0 0.0
    %1388 = vmatpush1.msra.mxu0 0.0
    %1389 = vmatprep.subr.mxu0 0.0
    %1390 = vmatpush1.msra.mxu0 0.0
    %1391 = vmatprep.subr.mxu0 0.0
    %1392 = vmatpush1.msra.mxu0 0.0
    %1393 = vmatprep.subr.mxu0 0.0
    %1394 = vmatpush1.msra.mxu0 0.0
    %1395 = vmatprep.subr.mxu0 0.0
    %1396 = vmatpush1.msra.mxu0 0.0
    %1397 = vmatprep.subr.mxu0 0.0
    %1398 = vmatpush1.msra.mxu0 %v1380
    %1399 = vmatprep.subr.mxu0 0.0
    %1400 = vmatpush1.msra.mxu0 %v1379
    %1401 = vmatprep.subr.mxu0 0.0
    %1402 = vmatpush1.msra.mxu0 %v1378
    %1403 = vmatprep.subr.mxu0 0.0
    %1404 = vmatpush1.msra.mxu0 %v1377
    %1405 = vmatprep.subr.mxu0 0.0
    %1406 = vmatpush1.msra.mxu0 %v1376
    %1407 = vmatprep.subr.mxu0 0.0
    %1408 = vmatpush1.msra.mxu0 %v1375
    %1409 = vmatprep.subr.mxu0 0.0
    %1410 = vmatpush1.msra.mxu0 %v1374
    %1411 = vmatprep.subr.mxu0 0.0
    %1412 = vmatpush1.msra.mxu0 %v1373
    %1413 = vmatprep.subr.mxu0 0.0
    %1414 = vmatpush2.msra.mxu0 0.0
    %1415 = vmatprep.subr.mxu0 0.0
    %1416 = vmatpush2.msra.mxu0 0.0
    %1417 = vmatprep.subr.mxu0 0.0
    %1418 = vmatpush2.msra.mxu0 0.0
    %1419 = vmatprep.subr.mxu0 0.0
    %1420 = vmatpush2.msra.mxu0 0.0
    %1421 = vmatprep.subr.mxu0 0.0
    %1422 = vmatpush2.msra.mxu0 0.0
    %1423 = vmatprep.subr.mxu0 0.0
    %1424 = vmatpush2.msra.mxu0 0.0
    %1425 = vmatprep.subr.mxu0 0.0
    %1426 = vmatpush2.msra.mxu0 0.0
    %1427 = vmatprep.subr.mxu0 0.0
    %1428 = vmatpush2.msra.mxu0 0.0
    %1429 = vmatprep.subr.mxu0 0.0
    %1430 = vmatpush2.msra.mxu0 0.0
    %1431 = vmatprep.subr.mxu0 0.0
    %1432 = vmatpush2.msra.mxu0 0.0
    %1433 = vmatprep.subr.mxu0 0.0
    %1434 = vmatpush2.msra.mxu0 0.0
    %1435 = vmatprep.subr.mxu0 0.0
    %1436 = vmatpush2.msra.mxu0 0.0
    %1437 = vmatprep.subr.mxu0 0.0
    %1438 = vmatpush2.msra.mxu0 0.0
    %1439 = vmatprep.subr.mxu0 0.0
    %1440 = vmatpush2.msra.mxu0 0.0
    %1441 = vmatprep.subr.mxu0 0.0
    %1442 = vmatpush2.msra.mxu0 0.0
    %1443 = vmatprep.subr.mxu0 0.0
    %1444 = vmatpush2.msra.mxu0 0.0
    %1445 = vmatprep.mubr.f32.mxu0 0.0
    %1446 = vmatmul.mubr.f32.gmra.mxu0 %v105
    %v1447 = vpop.f32.mrf.mxu0
    %v1448 = vadd.f32 0.0, %v1447
    %v1449 = vpop.f32.mrf.mxu0
    %1450 = vmatprep.mubr.f32.mxu0 0.0
    %1451 = vmatmul.mubr.f32.gmra.mxu0 %v108
    %v1452 = vpop.f32.mrf.mxu0
    %v1453 = vadd.f32 0.0, %v1452
    %v1454 = vpop.f32.mrf.mxu0
    %1455 = vmatprep.mubr.f32.mxu0 0.0
    %1456 = vmatmul.mubr.f32.gmra.mxu0 %v111
    %v1457 = vpop.f32.mrf.mxu0
    %v1458 = vadd.f32 0.0, %v1457
    %v1459 = vpop.f32.mrf.mxu0
    %1460 = vmatprep.mubr.f32.mxu0 0.0
    %1461 = vmatmul.mubr.f32.gmra.mxu0 %v114
    %v1462 = vpop.f32.mrf.mxu0
    %v1463 = vadd.f32 0.0, %v1462
    %v1464 = vpop.f32.mrf.mxu0
    %1465 = vmatprep.mubr.f32.mxu0 0.0
    %1466 = vmatmul.mubr.f32.gmra.mxu0 %v117
    %v1467 = vpop.f32.mrf.mxu0
    %v1468 = vadd.f32 0.0, %v1467
    %v1469 = vpop.f32.mrf.mxu0
    %1470 = vmatprep.mubr.f32.mxu0 0.0
    %1471 = vmatmul.mubr.f32.gmra.mxu0 %v120
    %v1472 = vpop.f32.mrf.mxu0
    %v1473 = vadd.f32 0.0, %v1472
    %v1474 = vpop.f32.mrf.mxu0
    %1475 = vmatprep.mubr.f32.mxu0 0.0
    %1476 = vmatmul.mubr.f32.gmra.mxu0 %v123
    %v1477 = vpop.f32.mrf.mxu0
    %v1478 = vadd.f32 0.0, %v1477
    %v1479 = vpop.f32.mrf.mxu0
    %1480 = vmatprep.mubr.f32.mxu0 0.0
    %1481 = vmatmul.mubr.f32.gmra.mxu0 %v126
    %v1482 = vpop.f32.mrf.mxu0
    %v1483 = vadd.f32 0.0, %v1482
    %v1484 = vpop.f32.mrf.mxu0
    %1485 = vdwg.mxu0
    %v1486 = vld [vmem:[#allocation7 + $0x173] sm:$0xff]
    %v1487 = vld [vmem:[#allocation7 + $0x17b] sm:$0xff]
    %v1488 = vld [vmem:[#allocation7 + $0x183] sm:$0xff]
    %v1489 = vld [vmem:[#allocation7 + $0x18b] sm:$0xff]
    %v1490 = vld [vmem:[#allocation7 + $0x193] sm:$0xff]
    %v1491 = vld [vmem:[#allocation7 + $0x19b] sm:$0xff]
    %v1492 = vld [vmem:[#allocation7 + $0x1a3] sm:$0xff]
    %v1493 = vld [vmem:[#allocation7 + $0x1ab] sm:$0xff]
    %v1494 = vld [vmem:[#allocation7 + $0x1b3] sm:$0xff]
    %v1495 = vld [vmem:[#allocation7 + $0x1bb] sm:$0xff]
    %v1496 = vld [vmem:[#allocation7 + $0x1c3] sm:$0xff]
    %v1497 = vld [vmem:[#allocation7 + $0x1cb] sm:$0xff]
    %v1498 = vld [vmem:[#allocation7 + $0x1d3] sm:$0xff]
    %v1499 = vld [vmem:[#allocation7 + $0x1db] sm:$0xff]
    %v1500 = vld [vmem:[#allocation7 + $0x1e3] sm:$0xff]
    %v1501 = vld [vmem:[#allocation7 + $0x1eb] sm:$0xff]
    %v1503 = vsel %vm103, %v1373, 0
    %v1506 = vsel %vm103, %v1374, 0
    %v1509 = vsel %vm103, %v1375, 0
    %v1512 = vsel %vm103, %v1376, 0
    %v1515 = vsel %vm103, %v1377, 0
    %v1518 = vsel %vm103, %v1378, 0
    %v1521 = vsel %vm103, %v1379, 0
    %v1524 = vsel %vm103, %v1380, 0
    %1526 = vmatprep.subr.mxu0 0.0
    %1527 = vmatpush1.msra.mxu0 0.0
    %1528 = vmatprep.subr.mxu0 0.0
    %1529 = vmatpush1.msra.mxu0 0.0
    %1530 = vmatprep.subr.mxu0 0.0
    %1531 = vmatpush1.msra.mxu0 0.0
    %1532 = vmatprep.subr.mxu0 0.0
    %1533 = vmatpush1.msra.mxu0 0.0
    %1534 = vmatprep.subr.mxu0 0.0
    %1535 = vmatpush1.msra.mxu0 0.0
    %1536 = vmatprep.subr.mxu0 0.0
    %1537 = vmatpush1.msra.mxu0 0.0
    %1538 = vmatprep.subr.mxu0 0.0
    %1539 = vmatpush1.msra.mxu0 0.0
    %1540 = vmatprep.subr.mxu0 0.0
    %1541 = vmatpush1.msra.mxu0 0.0
    %1542 = vmatprep.subr.mxu0 0.0
    %1543 = vmatpush1.msra.mxu0 %v1501
    %1544 = vmatprep.subr.mxu0 0.0
    %1545 = vmatpush1.msra.mxu0 %v1500
    %1546 = vmatprep.subr.mxu0 0.0
    %1547 = vmatpush1.msra.mxu0 %v1499
    %1548 = vmatprep.subr.mxu0 0.0
    %1549 = vmatpush1.msra.mxu0 %v1498
    %1550 = vmatprep.subr.mxu0 0.0
    %1551 = vmatpush1.msra.mxu0 %v1497
    %1552 = vmatprep.subr.mxu0 0.0
    %1553 = vmatpush1.msra.mxu0 %v1496
    %1554 = vmatprep.subr.mxu0 0.0
    %1555 = vmatpush1.msra.mxu0 %v1495
    %1556 = vmatprep.subr.mxu0 0.0
    %1557 = vmatpush1.msra.mxu0 %v1494
    %1558 = vmatprep.subr.mxu0 0.0
    %1559 = vmatpush2.msra.mxu0 0.0
    %1560 = vmatprep.subr.mxu0 0.0
    %1561 = vmatpush2.msra.mxu0 0.0
    %1562 = vmatprep.subr.mxu0 0.0
    %1563 = vmatpush2.msra.mxu0 0.0
    %1564 = vmatprep.subr.mxu0 0.0
    %1565 = vmatpush2.msra.mxu0 0.0
    %1566 = vmatprep.subr.mxu0 0.0
    %1567 = vmatpush2.msra.mxu0 0.0
    %1568 = vmatprep.subr.mxu0 0.0
    %1569 = vmatpush2.msra.mxu0 0.0
    %1570 = vmatprep.subr.mxu0 0.0
    %1571 = vmatpush2.msra.mxu0 0.0
    %1572 = vmatprep.subr.mxu0 0.0
    %1573 = vmatpush2.msra.mxu0 0.0
    %1574 = vmatprep.subr.mxu0 0.0
    %1575 = vmatpush2.msra.mxu0 0.0
    %1576 = vmatprep.subr.mxu0 0.0
    %1577 = vmatpush2.msra.mxu0 0.0
    %1578 = vmatprep.subr.mxu0 0.0
    %1579 = vmatpush2.msra.mxu0 0.0
    %1580 = vmatprep.subr.mxu0 0.0
    %1581 = vmatpush2.msra.mxu0 0.0
    %1582 = vmatprep.subr.mxu0 0.0
    %1583 = vmatpush2.msra.mxu0 0.0
    %1584 = vmatprep.subr.mxu0 0.0
    %1585 = vmatpush2.msra.mxu0 0.0
    %1586 = vmatprep.subr.mxu0 0.0
    %1587 = vmatpush2.msra.mxu0 0.0
    %1588 = vmatprep.subr.mxu0 0.0
    %1589 = vmatpush2.msra.mxu0 0.0
    %1590 = vmatprep.mubr.f32.mxu0 0.0
    %1591 = vmatmul.mubr.f32.gmra.mxu0 %v1503
    %v1592 = vpop.f32.mrf.mxu0
    %v1593 = vadd.f32 0.0, %v1592
    %v1594 = vpop.f32.mrf.mxu0
    %1595 = vmatprep.mubr.f32.mxu0 0.0
    %1596 = vmatmul.mubr.f32.gmra.mxu0 %v1506
    %v1597 = vpop.f32.mrf.mxu0
    %v1598 = vadd.f32 0.0, %v1597
    %v1599 = vpop.f32.mrf.mxu0
    %1600 = vmatprep.mubr.f32.mxu0 0.0
    %1601 = vmatmul.mubr.f32.gmra.mxu0 %v1509
    %v1602 = vpop.f32.mrf.mxu0
    %v1603 = vadd.f32 0.0, %v1602
    %v1604 = vpop.f32.mrf.mxu0
    %1605 = vmatprep.mubr.f32.mxu0 0.0
    %1606 = vmatmul.mubr.f32.gmra.mxu0 %v1512
    %v1607 = vpop.f32.mrf.mxu0
    %v1608 = vadd.f32 0.0, %v1607
    %v1609 = vpop.f32.mrf.mxu0
    %1610 = vmatprep.mubr.f32.mxu0 0.0
    %1611 = vmatmul.mubr.f32.gmra.mxu0 %v1515
    %v1612 = vpop.f32.mrf.mxu0
    %v1613 = vadd.f32 0.0, %v1612
    %v1614 = vpop.f32.mrf.mxu0
    %1615 = vmatprep.mubr.f32.mxu0 0.0
    %1616 = vmatmul.mubr.f32.gmra.mxu0 %v1518
    %v1617 = vpop.f32.mrf.mxu0
    %v1618 = vadd.f32 0.0, %v1617
    %v1619 = vpop.f32.mrf.mxu0
    %1620 = vmatprep.mubr.f32.mxu0 0.0
    %1621 = vmatmul.mubr.f32.gmra.mxu0 %v1521
    %v1622 = vpop.f32.mrf.mxu0
    %v1623 = vadd.f32 0.0, %v1622
    %v1624 = vpop.f32.mrf.mxu0
    %1625 = vmatprep.mubr.f32.mxu0 0.0
    %1626 = vmatmul.mubr.f32.gmra.mxu0 %v1524
    %v1627 = vpop.f32.mrf.mxu0
    %v1628 = vadd.f32 0.0, %v1627
    %v1629 = vpop.f32.mrf.mxu0
    %1630 = vdwg.mxu0
    %v1632 = vsel %vm103, %v1448, 0
    %v1635 = vsel %vm103, %v1453, 0
    %v1638 = vsel %vm103, %v1458, 0
    %v1641 = vsel %vm103, %v1463, 0
    %v1644 = vsel %vm103, %v1468, 0
    %v1647 = vsel %vm103, %v1473, 0
    %v1650 = vsel %vm103, %v1478, 0
    %v1653 = vsel %vm103, %v1483, 0
    %1655 = vmatprep.subr.mxu0 0.0
    %1656 = vmatpush1.msra.mxu0 0.0
    %1657 = vmatprep.subr.mxu0 0.0
    %1658 = vmatpush1.msra.mxu0 0.0
    %1659 = vmatprep.subr.mxu0 0.0
    %1660 = vmatpush1.msra.mxu0 0.0
    %1661 = vmatprep.subr.mxu0 0.0
    %1662 = vmatpush1.msra.mxu0 0.0
    %1663 = vmatprep.subr.mxu0 0.0
    %1664 = vmatpush1.msra.mxu0 0.0
    %1665 = vmatprep.subr.mxu0 0.0
    %1666 = vmatpush1.msra.mxu0 0.0
    %1667 = vmatprep.subr.mxu0 0.0
    %1668 = vmatpush1.msra.mxu0 0.0
    %1669 = vmatprep.subr.mxu0 0.0
    %1670 = vmatpush1.msra.mxu0 0.0
    %1671 = vmatprep.subr.mxu0 0.0
    %1672 = vmatpush1.msra.mxu0 %v1493
    %1673 = vmatprep.subr.mxu0 0.0
    %1674 = vmatpush1.msra.mxu0 %v1492
    %1675 = vmatprep.subr.mxu0 0.0
    %1676 = vmatpush1.msra.mxu0 %v1491
    %1677 = vmatprep.subr.mxu0 0.0
    %1678 = vmatpush1.msra.mxu0 %v1490
    %1679 = vmatprep.subr.mxu0 0.0
    %1680 = vmatpush1.msra.mxu0 %v1489
    %1681 = vmatprep.subr.mxu0 0.0
    %1682 = vmatpush1.msra.mxu0 %v1488
    %1683 = vmatprep.subr.mxu0 0.0
    %1684 = vmatpush1.msra.mxu0 %v1487
    %1685 = vmatprep.subr.mxu0 0.0
    %1686 = vmatpush1.msra.mxu0 %v1486
    %1687 = vmatprep.subr.mxu0 0.0
    %1688 = vmatpush2.msra.mxu0 0.0
    %1689 = vmatprep.subr.mxu0 0.0
    %1690 = vmatpush2.msra.mxu0 0.0
    %1691 = vmatprep.subr.mxu0 0.0
    %1692 = vmatpush2.msra.mxu0 0.0
    %1693 = vmatprep.subr.mxu0 0.0
    %1694 = vmatpush2.msra.mxu0 0.0
    %1695 = vmatprep.subr.mxu0 0.0
    %1696 = vmatpush2.msra.mxu0 0.0
    %1697 = vmatprep.subr.mxu0 0.0
    %1698 = vmatpush2.msra.mxu0 0.0
    %1699 = vmatprep.subr.mxu0 0.0
    %1700 = vmatpush2.msra.mxu0 0.0
    %1701 = vmatprep.subr.mxu0 0.0
    %1702 = vmatpush2.msra.mxu0 0.0
    %1703 = vmatprep.subr.mxu0 0.0
    %1704 = vmatpush2.msra.mxu0 0.0
    %1705 = vmatprep.subr.mxu0 0.0
    %1706 = vmatpush2.msra.mxu0 0.0
    %1707 = vmatprep.subr.mxu0 0.0
    %1708 = vmatpush2.msra.mxu0 0.0
    %1709 = vmatprep.subr.mxu0 0.0
    %1710 = vmatpush2.msra.mxu0 0.0
    %1711 = vmatprep.subr.mxu0 0.0
    %1712 = vmatpush2.msra.mxu0 0.0
    %1713 = vmatprep.subr.mxu0 0.0
    %1714 = vmatpush2.msra.mxu0 0.0
    %1715 = vmatprep.subr.mxu0 0.0
    %1716 = vmatpush2.msra.mxu0 0.0
    %1717 = vmatprep.subr.mxu0 0.0
    %1718 = vmatpush2.msra.mxu0 0.0
    %1719 = vmatprep.mubr.f32.mxu0 0.0
    %1720 = vmatmul.mubr.f32.gmra.mxu0 %v1632
    %v1721 = vpop.f32.mrf.mxu0
    %v1722 = vadd.f32 %v1593, %v1721
    %v1723 = vpop.f32.mrf.mxu0
    %1724 = vmatprep.mubr.f32.mxu0 0.0
    %1725 = vmatmul.mubr.f32.gmra.mxu0 %v1635
    %v1726 = vpop.f32.mrf.mxu0
    %v1727 = vadd.f32 %v1598, %v1726
    %v1728 = vpop.f32.mrf.mxu0
    %1729 = vmatprep.mubr.f32.mxu0 0.0
    %1730 = vmatmul.mubr.f32.gmra.mxu0 %v1638
    %v1731 = vpop.f32.mrf.mxu0
    %v1732 = vadd.f32 %v1603, %v1731
    %v1733 = vpop.f32.mrf.mxu0
    %1734 = vmatprep.mubr.f32.mxu0 0.0
    %1735 = vmatmul.mubr.f32.gmra.mxu0 %v1641
    %v1736 = vpop.f32.mrf.mxu0
    %v1737 = vadd.f32 %v1608, %v1736
    %v1738 = vpop.f32.mrf.mxu0
    %1739 = vmatprep.mubr.f32.mxu0 0.0
    %1740 = vmatmul.mubr.f32.gmra.mxu0 %v1644
    %v1741 = vpop.f32.mrf.mxu0
    %v1742 = vadd.f32 %v1613, %v1741
    %v1743 = vpop.f32.mrf.mxu0
    %1744 = vmatprep.mubr.f32.mxu0 0.0
    %1745 = vmatmul.mubr.f32.gmra.mxu0 %v1647
    %v1746 = vpop.f32.mrf.mxu0
    %v1747 = vadd.f32 %v1618, %v1746
    %v1748 = vpop.f32.mrf.mxu0
    %1749 = vmatprep.mubr.f32.mxu0 0.0
    %1750 = vmatmul.mubr.f32.gmra.mxu0 %v1650
    %v1751 = vpop.f32.mrf.mxu0
    %v1752 = vadd.f32 %v1623, %v1751
    %v1753 = vpop.f32.mrf.mxu0
    %1754 = vmatprep.mubr.f32.mxu0 0.0
    %1755 = vmatmul.mubr.f32.gmra.mxu0 %v1653
    %v1756 = vpop.f32.mrf.mxu0
    %v1757 = vadd.f32 %v1628, %v1756
    %v1758 = vpop.f32.mrf.mxu0
    %1759 = vdwg.mxu0
    %1760 = vmatprep.subr.mxu0 0.0
    %1761 = vmatpush1.msra.mxu0 0.0
    %1762 = vmatprep.subr.mxu0 0.0
    %1763 = vmatpush1.msra.mxu0 0.0
    %1764 = vmatprep.subr.mxu0 0.0
    %1765 = vmatpush1.msra.mxu0 0.0
    %1766 = vmatprep.subr.mxu0 0.0
    %1767 = vmatpush1.msra.mxu0 0.0
    %1768 = vmatprep.subr.mxu0 0.0
    %1769 = vmatpush1.msra.mxu0 0.0
    %1770 = vmatprep.subr.mxu0 0.0
    %1771 = vmatpush1.msra.mxu0 0.0
    %1772 = vmatprep.subr.mxu0 0.0
    %1773 = vmatpush1.msra.mxu0 0.0
    %1774 = vmatprep.subr.mxu0 0.0
    %1775 = vmatpush1.msra.mxu0 0.0
    %1776 = vmatprep.subr.mxu0 0.0
    %1777 = vmatpush1.msra.mxu0 %v1380
    %1778 = vmatprep.subr.mxu0 0.0
    %1779 = vmatpush1.msra.mxu0 %v1379
    %1780 = vmatprep.subr.mxu0 0.0
    %1781 = vmatpush1.msra.mxu0 %v1378
    %1782 = vmatprep.subr.mxu0 0.0
    %1783 = vmatpush1.msra.mxu0 %v1377
    %1784 = vmatprep.subr.mxu0 0.0
    %1785 = vmatpush1.msra.mxu0 %v1376
    %1786 = vmatprep.subr.mxu0 0.0
    %1787 = vmatpush1.msra.mxu0 %v1375
    %1788 = vmatprep.subr.mxu0 0.0
    %1789 = vmatpush1.msra.mxu0 %v1374
    %1790 = vmatprep.subr.mxu0 0.0
    %1791 = vmatpush1.msra.mxu0 %v1373
    %1792 = vmatprep.subr.mxu0 0.0
    %1793 = vmatpush2.msra.mxu0 0.0
    %1794 = vmatprep.subr.mxu0 0.0
    %1795 = vmatpush2.msra.mxu0 0.0
    %1796 = vmatprep.subr.mxu0 0.0
    %1797 = vmatpush2.msra.mxu0 0.0
    %1798 = vmatprep.subr.mxu0 0.0
    %1799 = vmatpush2.msra.mxu0 0.0
    %1800 = vmatprep.subr.mxu0 0.0
    %1801 = vmatpush2.msra.mxu0 0.0
    %1802 = vmatprep.subr.mxu0 0.0
    %1803 = vmatpush2.msra.mxu0 0.0
    %1804 = vmatprep.subr.mxu0 0.0
    %1805 = vmatpush2.msra.mxu0 0.0
    %1806 = vmatprep.subr.mxu0 0.0
    %1807 = vmatpush2.msra.mxu0 0.0
    %1808 = vmatprep.subr.mxu0 0.0
    %1809 = vmatpush2.msra.mxu0 0.0
    %1810 = vmatprep.subr.mxu0 0.0
    %1811 = vmatpush2.msra.mxu0 0.0
    %1812 = vmatprep.subr.mxu0 0.0
    %1813 = vmatpush2.msra.mxu0 0.0
    %1814 = vmatprep.subr.mxu0 0.0
    %1815 = vmatpush2.msra.mxu0 0.0
    %1816 = vmatprep.subr.mxu0 0.0
    %1817 = vmatpush2.msra.mxu0 0.0
    %1818 = vmatprep.subr.mxu0 0.0
    %1819 = vmatpush2.msra.mxu0 0.0
    %1820 = vmatprep.subr.mxu0 0.0
    %1821 = vmatpush2.msra.mxu0 0.0
    %1822 = vmatprep.subr.mxu0 0.0
    %1823 = vmatpush2.msra.mxu0 0.0
    %1824 = vmatprep.mubr.f32.mxu0 0.0
    %1825 = vmatmul.mubr.f32.gmra.mxu0 %v505
    %v1826 = vpop.f32.mrf.mxu0
    %v1827 = vadd.f32 0.0, %v1826
    %v1828 = vpop.f32.mrf.mxu0
    %1829 = vmatprep.mubr.f32.mxu0 0.0
    %1830 = vmatmul.mubr.f32.gmra.mxu0 %v508
    %v1831 = vpop.f32.mrf.mxu0
    %v1832 = vadd.f32 0.0, %v1831
    %v1833 = vpop.f32.mrf.mxu0
    %1834 = vmatprep.mubr.f32.mxu0 0.0
    %1835 = vmatmul.mubr.f32.gmra.mxu0 %v511
    %v1836 = vpop.f32.mrf.mxu0
    %v1837 = vadd.f32 0.0, %v1836
    %v1838 = vpop.f32.mrf.mxu0
    %1839 = vmatprep.mubr.f32.mxu0 0.0
    %1840 = vmatmul.mubr.f32.gmra.mxu0 %v514
    %v1841 = vpop.f32.mrf.mxu0
    %v1842 = vadd.f32 0.0, %v1841
    %v1843 = vpop.f32.mrf.mxu0
    %1844 = vmatprep.mubr.f32.mxu0 0.0
    %1845 = vmatmul.mubr.f32.gmra.mxu0 %v517
    %v1846 = vpop.f32.mrf.mxu0
    %v1847 = vadd.f32 0.0, %v1846
    %v1848 = vpop.f32.mrf.mxu0
    %1849 = vmatprep.mubr.f32.mxu0 0.0
    %1850 = vmatmul.mubr.f32.gmra.mxu0 %v520
    %v1851 = vpop.f32.mrf.mxu0
    %v1852 = vadd.f32 0.0, %v1851
    %v1853 = vpop.f32.mrf.mxu0
    %1854 = vmatprep.mubr.f32.mxu0 0.0
    %1855 = vmatmul.mubr.f32.gmra.mxu0 %v523
    %v1856 = vpop.f32.mrf.mxu0
    %v1857 = vadd.f32 0.0, %v1856
    %v1858 = vpop.f32.mrf.mxu0
    %1859 = vmatprep.mubr.f32.mxu0 0.0
    %1860 = vmatmul.mubr.f32.gmra.mxu0 %v526
    %v1861 = vpop.f32.mrf.mxu0
    %v1862 = vadd.f32 0.0, %v1861
    %v1863 = vpop.f32.mrf.mxu0
    %1864 = vdwg.mxu0
    %v1865 = vld [vmem:[#allocation7 + $0x1f3] sm:$0xff]
    %v1866 = vld [vmem:[#allocation7 + $0x1fb] sm:$0xff]
    %v1867 = vld [vmem:[#allocation7 + $0x203] sm:$0xff]
    %v1868 = vld [vmem:[#allocation7 + $0x20b] sm:$0xff]
    %v1869 = vld [vmem:[#allocation7 + $0x213] sm:$0xff]
    %v1870 = vld [vmem:[#allocation7 + $0x21b] sm:$0xff]
    %v1871 = vld [vmem:[#allocation7 + $0x223] sm:$0xff]
    %v1872 = vld [vmem:[#allocation7 + $0x22b] sm:$0xff]
    %v1874 = vsel %vm103, %v1827, 0
    %v1877 = vsel %vm103, %v1832, 0
    %v1880 = vsel %vm103, %v1837, 0
    %v1883 = vsel %vm103, %v1842, 0
    %v1886 = vsel %vm103, %v1847, 0
    %v1889 = vsel %vm103, %v1852, 0
    %v1892 = vsel %vm103, %v1857, 0
    %v1895 = vsel %vm103, %v1862, 0
    %1897 = vmatprep.subr.mxu0 0.0
    %1898 = vmatpush1.msra.mxu0 0.0
    %1899 = vmatprep.subr.mxu0 0.0
    %1900 = vmatpush1.msra.mxu0 0.0
    %1901 = vmatprep.subr.mxu0 0.0
    %1902 = vmatpush1.msra.mxu0 0.0
    %1903 = vmatprep.subr.mxu0 0.0
    %1904 = vmatpush1.msra.mxu0 0.0
    %1905 = vmatprep.subr.mxu0 0.0
    %1906 = vmatpush1.msra.mxu0 0.0
    %1907 = vmatprep.subr.mxu0 0.0
    %1908 = vmatpush1.msra.mxu0 0.0
    %1909 = vmatprep.subr.mxu0 0.0
    %1910 = vmatpush1.msra.mxu0 0.0
    %1911 = vmatprep.subr.mxu0 0.0
    %1912 = vmatpush1.msra.mxu0 0.0
    %1913 = vmatprep.subr.mxu0 0.0
    %1914 = vmatpush1.msra.mxu0 %v1872
    %1915 = vmatprep.subr.mxu0 0.0
    %1916 = vmatpush1.msra.mxu0 %v1871
    %1917 = vmatprep.subr.mxu0 0.0
    %1918 = vmatpush1.msra.mxu0 %v1870
    %1919 = vmatprep.subr.mxu0 0.0
    %1920 = vmatpush1.msra.mxu0 %v1869
    %1921 = vmatprep.subr.mxu0 0.0
    %1922 = vmatpush1.msra.mxu0 %v1868
    %1923 = vmatprep.subr.mxu0 0.0
    %1924 = vmatpush1.msra.mxu0 %v1867
    %1925 = vmatprep.subr.mxu0 0.0
    %1926 = vmatpush1.msra.mxu0 %v1866
    %1927 = vmatprep.subr.mxu0 0.0
    %1928 = vmatpush1.msra.mxu0 %v1865
    %1929 = vmatprep.subr.mxu0 0.0
    %1930 = vmatpush2.msra.mxu0 0.0
    %1931 = vmatprep.subr.mxu0 0.0
    %1932 = vmatpush2.msra.mxu0 0.0
    %1933 = vmatprep.subr.mxu0 0.0
    %1934 = vmatpush2.msra.mxu0 0.0
    %1935 = vmatprep.subr.mxu0 0.0
    %1936 = vmatpush2.msra.mxu0 0.0
    %1937 = vmatprep.subr.mxu0 0.0
    %1938 = vmatpush2.msra.mxu0 0.0
    %1939 = vmatprep.subr.mxu0 0.0
    %1940 = vmatpush2.msra.mxu0 0.0
    %1941 = vmatprep.subr.mxu0 0.0
    %1942 = vmatpush2.msra.mxu0 0.0
    %1943 = vmatprep.subr.mxu0 0.0
    %1944 = vmatpush2.msra.mxu0 0.0
    %1945 = vmatprep.subr.mxu0 0.0
    %1946 = vmatpush2.msra.mxu0 0.0
    %1947 = vmatprep.subr.mxu0 0.0
    %1948 = vmatpush2.msra.mxu0 0.0
    %1949 = vmatprep.subr.mxu0 0.0
    %1950 = vmatpush2.msra.mxu0 0.0
    %1951 = vmatprep.subr.mxu0 0.0
    %1952 = vmatpush2.msra.mxu0 0.0
    %1953 = vmatprep.subr.mxu0 0.0
    %1954 = vmatpush2.msra.mxu0 0.0
    %1955 = vmatprep.subr.mxu0 0.0
    %1956 = vmatpush2.msra.mxu0 0.0
    %1957 = vmatprep.subr.mxu0 0.0
    %1958 = vmatpush2.msra.mxu0 0.0
    %1959 = vmatprep.subr.mxu0 0.0
    %1960 = vmatpush2.msra.mxu0 0.0
    %1961 = vmatprep.mubr.f32.mxu0 0.0
    %1962 = vmatmul.mubr.f32.gmra.mxu0 %v1874
    %v1963 = vpop.f32.mrf.mxu0
    %v1964 = vadd.f32 0.0, %v1963
    %v1965 = vpop.f32.mrf.mxu0
    %1966 = vmatprep.mubr.f32.mxu0 0.0
    %1967 = vmatmul.mubr.f32.gmra.mxu0 %v1877
    %v1968 = vpop.f32.mrf.mxu0
    %v1969 = vadd.f32 0.0, %v1968
    %v1970 = vpop.f32.mrf.mxu0
    %1971 = vmatprep.mubr.f32.mxu0 0.0
    %1972 = vmatmul.mubr.f32.gmra.mxu0 %v1880
    %v1973 = vpop.f32.mrf.mxu0
    %v1974 = vadd.f32 0.0, %v1973
    %v1975 = vpop.f32.mrf.mxu0
    %1976 = vmatprep.mubr.f32.mxu0 0.0
    %1977 = vmatmul.mubr.f32.gmra.mxu0 %v1883
    %v1978 = vpop.f32.mrf.mxu0
    %v1979 = vadd.f32 0.0, %v1978
    %v1980 = vpop.f32.mrf.mxu0
    %1981 = vmatprep.mubr.f32.mxu0 0.0
    %1982 = vmatmul.mubr.f32.gmra.mxu0 %v1886
    %v1983 = vpop.f32.mrf.mxu0
    %v1984 = vadd.f32 0.0, %v1983
    %v1985 = vpop.f32.mrf.mxu0
    %1986 = vmatprep.mubr.f32.mxu0 0.0
    %1987 = vmatmul.mubr.f32.gmra.mxu0 %v1889
    %v1988 = vpop.f32.mrf.mxu0
    %v1989 = vadd.f32 0.0, %v1988
    %v1990 = vpop.f32.mrf.mxu0
    %1991 = vmatprep.mubr.f32.mxu0 0.0
    %1992 = vmatmul.mubr.f32.gmra.mxu0 %v1892
    %v1993 = vpop.f32.mrf.mxu0
    %v1994 = vadd.f32 0.0, %v1993
    %v1995 = vpop.f32.mrf.mxu0
    %1996 = vmatprep.mubr.f32.mxu0 0.0
    %1997 = vmatmul.mubr.f32.gmra.mxu0 %v1895
    %v1998 = vpop.f32.mrf.mxu0
    %v1999 = vadd.f32 0.0, %v1998
    %v2000 = vpop.f32.mrf.mxu0
    %2001 = vdwg.mxu0
    %v2002 = vadd.f32 %v1722, %v1964
    %v2003 = vadd.f32 %v1727, %v1969
    %v2004 = vadd.f32 %v1732, %v1974
    %v2005 = vadd.f32 %v1737, %v1979
    %v2006 = vadd.f32 %v1742, %v1984
    %v2007 = vadd.f32 %v1747, %v1989
    %v2008 = vadd.f32 %v1752, %v1994
    %v2009 = vadd.f32 %v1757, %v1999
    %v2010 = vld [vmem:[#allocation7 + $0x2b3] sm:$0x7]
    %v2011 = vlaneseq
    %v2012 = vshrl.u32 %v2011, 7
    %v2013 = vsub.s32 0, %v2012
    %v2014 = vrot.slane %v2010, %v2013
    %v2015 = vadd.f32 %v2002, %v2014
    %v2016 = vadd.f32 %v2003, %v2014
    %v2017 = vadd.f32 %v2004, %v2014
    %v2018 = vadd.f32 %v2005, %v2014
    %v2019 = vadd.f32 %v2006, %v2014
    %v2020 = vadd.f32 %v2007, %v2014
    %v2021 = vadd.f32 %v2008, %v2014
    %v2022 = vadd.f32 %v2009, %v2014
    %v2023 = vmax.f32 %v2015, 0.0
    %v2024 = vmax.f32 %v2016, 0.0
    %v2025 = vmax.f32 %v2017, 0.0
    %v2026 = vmax.f32 %v2018, 0.0
    %v2027 = vmax.f32 %v2019, 0.0
    %v2028 = vmax.f32 %v2020, 0.0
    %v2029 = vmax.f32 %v2021, 0.0
    %v2030 = vmax.f32 %v2022, 0.0
    %v2031 = vld [vmem:[#allocation7 + $0x233] sm:$0xff]
    %v2032 = vld [vmem:[#allocation7 + $0x23b] sm:$0xff]
    %v2033 = vld [vmem:[#allocation7 + $0x243] sm:$0xff]
    %v2034 = vld [vmem:[#allocation7 + $0x24b] sm:$0xff]
    %v2035 = vld [vmem:[#allocation7 + $0x253] sm:$0xff]
    %v2036 = vld [vmem:[#allocation7 + $0x25b] sm:$0xff]
    %v2037 = vld [vmem:[#allocation7 + $0x263] sm:$0xff]
    %v2038 = vld [vmem:[#allocation7 + $0x26b] sm:$0xff]
    %v2039 = vld [vmem:[#allocation7 + $0x273] sm:$0xff]
    %v2040 = vld [vmem:[#allocation7 + $0x27b] sm:$0xff]
    %v2041 = vld [vmem:[#allocation7 + $0x283] sm:$0xff]
    %v2042 = vld [vmem:[#allocation7 + $0x28b] sm:$0xff]
    %v2043 = vld [vmem:[#allocation7 + $0x293] sm:$0xff]
    %v2044 = vld [vmem:[#allocation7 + $0x29b] sm:$0xff]
    %v2045 = vld [vmem:[#allocation7 + $0x2a3] sm:$0xff]
    %v2046 = vld [vmem:[#allocation7 + $0x2ab] sm:$0xff]
    %2047 = vmatprep.subr.mxu0 0.0
    %2048 = vmatpush1.msra.mxu0 %v2046
    %2049 = vmatprep.subr.mxu0 0.0
    %2050 = vmatpush1.msra.mxu0 %v2045
    %2051 = vmatprep.subr.mxu0 0.0
    %2052 = vmatpush1.msra.mxu0 %v2044
    %2053 = vmatprep.subr.mxu0 0.0
    %2054 = vmatpush1.msra.mxu0 %v2043
    %2055 = vmatprep.subr.mxu0 0.0
    %2056 = vmatpush1.msra.mxu0 %v2042
    %2057 = vmatprep.subr.mxu0 0.0
    %2058 = vmatpush1.msra.mxu0 %v2041
    %2059 = vmatprep.subr.mxu0 0.0
    %2060 = vmatpush1.msra.mxu0 %v2040
    %2061 = vmatprep.subr.mxu0 0.0
    %2062 = vmatpush1.msra.mxu0 %v2039
    %2063 = vmatprep.subr.mxu0 0.0
    %2064 = vmatpush1.msra.mxu0 %v2038
    %2065 = vmatprep.subr.mxu0 0.0
    %2066 = vmatpush1.msra.mxu0 %v2037
    %2067 = vmatprep.subr.mxu0 0.0
    %2068 = vmatpush1.msra.mxu0 %v2036
    %2069 = vmatprep.subr.mxu0 0.0
    %2070 = vmatpush1.msra.mxu0 %v2035
    %2071 = vmatprep.subr.mxu0 0.0
    %2072 = vmatpush1.msra.mxu0 %v2034
    %2073 = vmatprep.subr.mxu0 0.0
    %2074 = vmatpush1.msra.mxu0 %v2033
    %2075 = vmatprep.subr.mxu0 0.0
    %2076 = vmatpush1.msra.mxu0 %v2032
    %2077 = vmatprep.subr.mxu0 0.0
    %2078 = vmatpush1.msra.mxu0 %v2031
    %2079 = vmatprep.subr.mxu0 0.0
    %2080 = vmatpush2.msra.mxu0 0.0
    %2081 = vmatprep.subr.mxu0 0.0
    %2082 = vmatpush2.msra.mxu0 0.0
    %2083 = vmatprep.subr.mxu0 0.0
    %2084 = vmatpush2.msra.mxu0 0.0
    %2085 = vmatprep.subr.mxu0 0.0
    %2086 = vmatpush2.msra.mxu0 0.0
    %2087 = vmatprep.subr.mxu0 0.0
    %2088 = vmatpush2.msra.mxu0 0.0
    %2089 = vmatprep.subr.mxu0 0.0
    %2090 = vmatpush2.msra.mxu0 0.0
    %2091 = vmatprep.subr.mxu0 0.0
    %2092 = vmatpush2.msra.mxu0 0.0
    %2093 = vmatprep.subr.mxu0 0.0
    %2094 = vmatpush2.msra.mxu0 0.0
    %2095 = vmatprep.subr.mxu0 0.0
    %2096 = vmatpush2.msra.mxu0 0.0
    %2097 = vmatprep.subr.mxu0 0.0
    %2098 = vmatpush2.msra.mxu0 0.0
    %2099 = vmatprep.subr.mxu0 0.0
    %2100 = vmatpush2.msra.mxu0 0.0
    %2101 = vmatprep.subr.mxu0 0.0
    %2102 = vmatpush2.msra.mxu0 0.0
    %2103 = vmatprep.subr.mxu0 0.0
    %2104 = vmatpush2.msra.mxu0 0.0
    %2105 = vmatprep.subr.mxu0 0.0
    %2106 = vmatpush2.msra.mxu0 0.0
    %2107 = vmatprep.subr.mxu0 0.0
    %2108 = vmatpush2.msra.mxu0 0.0
    %2109 = vmatprep.subr.mxu0 0.0
    %2110 = vmatpush2.msra.mxu0 0.0
    %2111 = vmatprep.mubr.f32.mxu0 0.0
    %2112 = vmatmul.mubr.f32.gmra.mxu0 %v2023
    %v2113 = vpop.f32.mrf.mxu0
    %v2114 = vadd.f32 0.0, %v2113
    %v2115 = vpop.f32.mrf.mxu0
    %2116 = vmatprep.mubr.f32.mxu0 0.0
    %2117 = vmatmul.mubr.f32.gmra.mxu0 %v2024
    %v2118 = vpop.f32.mrf.mxu0
    %v2119 = vadd.f32 0.0, %v2118
    %v2120 = vpop.f32.mrf.mxu0
    %2121 = vmatprep.mubr.f32.mxu0 0.0
    %2122 = vmatmul.mubr.f32.gmra.mxu0 %v2025
    %v2123 = vpop.f32.mrf.mxu0
    %v2124 = vadd.f32 0.0, %v2123
    %v2125 = vpop.f32.mrf.mxu0
    %2126 = vmatprep.mubr.f32.mxu0 0.0
    %2127 = vmatmul.mubr.f32.gmra.mxu0 %v2026
    %v2128 = vpop.f32.mrf.mxu0
    %v2129 = vadd.f32 0.0, %v2128
    %v2130 = vpop.f32.mrf.mxu0
    %2131 = vmatprep.mubr.f32.mxu0 0.0
    %2132 = vmatmul.mubr.f32.gmra.mxu0 %v2027
    %v2133 = vpop.f32.mrf.mxu0
    %v2134 = vadd.f32 0.0, %v2133
    %v2135 = vpop.f32.mrf.mxu0
    %2136 = vmatprep.mubr.f32.mxu0 0.0
    %2137 = vmatmul.mubr.f32.gmra.mxu0 %v2028
    %v2138 = vpop.f32.mrf.mxu0
    %v2139 = vadd.f32 0.0, %v2138
    %v2140 = vpop.f32.mrf.mxu0
    %2141 = vmatprep.mubr.f32.mxu0 0.0
    %2142 = vmatmul.mubr.f32.gmra.mxu0 %v2029
    %v2143 = vpop.f32.mrf.mxu0
    %v2144 = vadd.f32 0.0, %v2143
    %v2145 = vpop.f32.mrf.mxu0
    %2146 = vmatprep.mubr.f32.mxu0 0.0
    %2147 = vmatmul.mubr.f32.gmra.mxu0 %v2030
    %v2148 = vpop.f32.mrf.mxu0
    %v2149 = vadd.f32 0.0, %v2148
    %v2150 = vpop.f32.mrf.mxu0
    %2151 = vdwg.mxu0
    %2152 = vmatprep.subr.mxu0 0.0
    %2153 = vmatpush1.msra.mxu0 0.0
    %2154 = vmatprep.subr.mxu0 0.0
    %2155 = vmatpush1.msra.mxu0 0.0
    %2156 = vmatprep.subr.mxu0 0.0
    %2157 = vmatpush1.msra.mxu0 0.0
    %2158 = vmatprep.subr.mxu0 0.0
    %2159 = vmatpush1.msra.mxu0 0.0
    %2160 = vmatprep.subr.mxu0 0.0
    %2161 = vmatpush1.msra.mxu0 0.0
    %2162 = vmatprep.subr.mxu0 0.0
    %2163 = vmatpush1.msra.mxu0 0.0
    %2164 = vmatprep.subr.mxu0 0.0
    %2165 = vmatpush1.msra.mxu0 0.0
    %2166 = vmatprep.subr.mxu0 0.0
    %2167 = vmatpush1.msra.mxu0 0.0
    %2168 = vmatprep.subr.mxu0 0.0
    %2169 = vmatpush1.msra.mxu0 %v2149
    %2170 = vmatprep.subr.mxu0 0.0
    %2171 = vmatpush1.msra.mxu0 %v2144
    %2172 = vmatprep.subr.mxu0 0.0
    %2173 = vmatpush1.msra.mxu0 %v2139
    %2174 = vmatprep.subr.mxu0 0.0
    %2175 = vmatpush1.msra.mxu0 %v2134
    %2176 = vmatprep.subr.mxu0 0.0
    %2177 = vmatpush1.msra.mxu0 %v2129
    %2178 = vmatprep.subr.mxu0 0.0
    %2179 = vmatpush1.msra.mxu0 %v2124
    %2180 = vmatprep.subr.mxu0 0.0
    %2181 = vmatpush1.msra.mxu0 %v2119
    %2182 = vmatprep.subr.mxu0 0.0
    %2183 = vmatpush1.msra.mxu0 %v2114
    %2184 = vmatprep.subr.mxu0 0.0
    %2185 = vmatpush2.msra.mxu0 0.0
    %2186 = vmatprep.subr.mxu0 0.0
    %2187 = vmatpush2.msra.mxu0 0.0
    %2188 = vmatprep.subr.mxu0 0.0
    %2189 = vmatpush2.msra.mxu0 0.0
    %2190 = vmatprep.subr.mxu0 0.0
    %2191 = vmatpush2.msra.mxu0 0.0
    %2192 = vmatprep.subr.mxu0 0.0
    %2193 = vmatpush2.msra.mxu0 0.0
    %2194 = vmatprep.subr.mxu0 0.0
    %2195 = vmatpush2.msra.mxu0 0.0
    %2196 = vmatprep.subr.mxu0 0.0
    %2197 = vmatpush2.msra.mxu0 0.0
    %2198 = vmatprep.subr.mxu0 0.0
    %2199 = vmatpush2.msra.mxu0 0.0
    %2200 = vmatprep.subr.mxu0 0.0
    %2201 = vmatpush2.msra.mxu0 0.0
    %2202 = vmatprep.subr.mxu0 0.0
    %2203 = vmatpush2.msra.mxu0 0.0
    %2204 = vmatprep.subr.mxu0 0.0
    %2205 = vmatpush2.msra.mxu0 0.0
    %2206 = vmatprep.subr.mxu0 0.0
    %2207 = vmatpush2.msra.mxu0 0.0
    %2208 = vmatprep.subr.mxu0 0.0
    %2209 = vmatpush2.msra.mxu0 0.0
    %2210 = vmatprep.subr.mxu0 0.0
    %2211 = vmatpush2.msra.mxu0 0.0
    %2212 = vmatprep.subr.mxu0 0.0
    %2213 = vmatpush2.msra.mxu0 0.0
    %2214 = vmatprep.subr.mxu0 0.0
    %2215 = vmatpush2.msra.mxu0 0.0
    %2216 = vmatprep.mubr.f32.mxu0 0.0
    %2217 = vmatmul.mubr.f32.gmra.mxu0 %v931
    %v2218 = vpop.f32.mrf.mxu0
    %v2219 = vadd.f32 0.0, %v2218
    %v2220 = vpop.f32.mrf.mxu0
    %2221 = vmatprep.mubr.f32.mxu0 0.0
    %2222 = vmatmul.mubr.f32.gmra.mxu0 %v934
    %v2223 = vpop.f32.mrf.mxu0
    %v2224 = vadd.f32 0.0, %v2223
    %v2225 = vpop.f32.mrf.mxu0
    %2226 = vmatprep.mubr.f32.mxu0 0.0
    %2227 = vmatmul.mubr.f32.gmra.mxu0 %v937
    %v2228 = vpop.f32.mrf.mxu0
    %v2229 = vadd.f32 0.0, %v2228
    %v2230 = vpop.f32.mrf.mxu0
    %2231 = vmatprep.mubr.f32.mxu0 0.0
    %2232 = vmatmul.mubr.f32.gmra.mxu0 %v940
    %v2233 = vpop.f32.mrf.mxu0
    %v2234 = vadd.f32 0.0, %v2233
    %v2235 = vpop.f32.mrf.mxu0
    %2236 = vmatprep.mubr.f32.mxu0 0.0
    %2237 = vmatmul.mubr.f32.gmra.mxu0 %v943
    %v2238 = vpop.f32.mrf.mxu0
    %v2239 = vadd.f32 0.0, %v2238
    %v2240 = vpop.f32.mrf.mxu0
    %2241 = vmatprep.mubr.f32.mxu0 0.0
    %2242 = vmatmul.mubr.f32.gmra.mxu0 %v946
    %v2243 = vpop.f32.mrf.mxu0
    %v2244 = vadd.f32 0.0, %v2243
    %v2245 = vpop.f32.mrf.mxu0
    %2246 = vmatprep.mubr.f32.mxu0 0.0
    %2247 = vmatmul.mubr.f32.gmra.mxu0 %v949
    %v2248 = vpop.f32.mrf.mxu0
    %v2249 = vadd.f32 0.0, %v2248
    %v2250 = vpop.f32.mrf.mxu0
    %2251 = vmatprep.mubr.f32.mxu0 0.0
    %2252 = vmatmul.mubr.f32.gmra.mxu0 %v952
    %v2253 = vpop.f32.mrf.mxu0
    %v2254 = vadd.f32 0.0, %v2253
    %v2255 = vpop.f32.mrf.mxu0
    %2256 = vdwg.mxu0
    %v2257 = vmul.f32 %v2023, %v2023
    %v2258 = vmul.f32 %v2024, %v2024
    %v2259 = vmul.f32 %v2025, %v2025
    %v2260 = vmul.f32 %v2026, %v2026
    %v2261 = vmul.f32 %v2027, %v2027
    %v2262 = vmul.f32 %v2028, %v2028
    %v2263 = vmul.f32 %v2029, %v2029
    %v2264 = vmul.f32 %v2030, %v2030
    %2265 = vmatprep.subr.mxu0 0.0
    %2266 = vmatpush1.msra.mxu0 %v2046
    %2267 = vmatprep.subr.mxu0 0.0
    %2268 = vmatpush1.msra.mxu0 %v2045
    %2269 = vmatprep.subr.mxu0 0.0
    %2270 = vmatpush1.msra.mxu0 %v2044
    %2271 = vmatprep.subr.mxu0 0.0
    %2272 = vmatpush1.msra.mxu0 %v2043
    %2273 = vmatprep.subr.mxu0 0.0
    %2274 = vmatpush1.msra.mxu0 %v2042
    %2275 = vmatprep.subr.mxu0 0.0
    %2276 = vmatpush1.msra.mxu0 %v2041
    %2277 = vmatprep.subr.mxu0 0.0
    %2278 = vmatpush1.msra.mxu0 %v2040
    %2279 = vmatprep.subr.mxu0 0.0
    %2280 = vmatpush1.msra.mxu0 %v2039
    %2281 = vmatprep.subr.mxu0 0.0
    %2282 = vmatpush1.msra.mxu0 %v2038
    %2283 = vmatprep.subr.mxu0 0.0
    %2284 = vmatpush1.msra.mxu0 %v2037
    %2285 = vmatprep.subr.mxu0 0.0
    %2286 = vmatpush1.msra.mxu0 %v2036
    %2287 = vmatprep.subr.mxu0 0.0
    %2288 = vmatpush1.msra.mxu0 %v2035
    %2289 = vmatprep.subr.mxu0 0.0
    %2290 = vmatpush1.msra.mxu0 %v2034
    %2291 = vmatprep.subr.mxu0 0.0
    %2292 = vmatpush1.msra.mxu0 %v2033
    %2293 = vmatprep.subr.mxu0 0.0
    %2294 = vmatpush1.msra.mxu0 %v2032
    %2295 = vmatprep.subr.mxu0 0.0
    %2296 = vmatpush1.msra.mxu0 %v2031
    %2297 = vmatprep.subr.mxu0 0.0
    %2298 = vmatpush2.msra.mxu0 0.0
    %2299 = vmatprep.subr.mxu0 0.0
    %2300 = vmatpush2.msra.mxu0 0.0
    %2301 = vmatprep.subr.mxu0 0.0
    %2302 = vmatpush2.msra.mxu0 0.0
    %2303 = vmatprep.subr.mxu0 0.0
    %2304 = vmatpush2.msra.mxu0 0.0
    %2305 = vmatprep.subr.mxu0 0.0
    %2306 = vmatpush2.msra.mxu0 0.0
    %2307 = vmatprep.subr.mxu0 0.0
    %2308 = vmatpush2.msra.mxu0 0.0
    %2309 = vmatprep.subr.mxu0 0.0
    %2310 = vmatpush2.msra.mxu0 0.0
    %2311 = vmatprep.subr.mxu0 0.0
    %2312 = vmatpush2.msra.mxu0 0.0
    %2313 = vmatprep.subr.mxu0 0.0
    %2314 = vmatpush2.msra.mxu0 0.0
    %2315 = vmatprep.subr.mxu0 0.0
    %2316 = vmatpush2.msra.mxu0 0.0
    %2317 = vmatprep.subr.mxu0 0.0
    %2318 = vmatpush2.msra.mxu0 0.0
    %2319 = vmatprep.subr.mxu0 0.0
    %2320 = vmatpush2.msra.mxu0 0.0
    %2321 = vmatprep.subr.mxu0 0.0
    %2322 = vmatpush2.msra.mxu0 0.0
    %2323 = vmatprep.subr.mxu0 0.0
    %2324 = vmatpush2.msra.mxu0 0.0
    %2325 = vmatprep.subr.mxu0 0.0
    %2326 = vmatpush2.msra.mxu0 0.0
    %2327 = vmatprep.subr.mxu0 0.0
    %2328 = vmatpush2.msra.mxu0 0.0
    %2329 = vmatprep.mubr.f32.mxu0 0.0
    %2330 = vmatmul.mubr.f32.gmra.mxu0 %v2257
    %v2331 = vpop.f32.mrf.mxu0
    %v2332 = vadd.f32 0.0, %v2331
    %v2333 = vpop.f32.mrf.mxu0
    %2334 = vmatprep.mubr.f32.mxu0 0.0
    %2335 = vmatmul.mubr.f32.gmra.mxu0 %v2258
    %v2336 = vpop.f32.mrf.mxu0
    %v2337 = vadd.f32 0.0, %v2336
    %v2338 = vpop.f32.mrf.mxu0
    %2339 = vmatprep.mubr.f32.mxu0 0.0
    %2340 = vmatmul.mubr.f32.gmra.mxu0 %v2259
    %v2341 = vpop.f32.mrf.mxu0
    %v2342 = vadd.f32 0.0, %v2341
    %v2343 = vpop.f32.mrf.mxu0
    %2344 = vmatprep.mubr.f32.mxu0 0.0
    %2345 = vmatmul.mubr.f32.gmra.mxu0 %v2260
    %v2346 = vpop.f32.mrf.mxu0
    %v2347 = vadd.f32 0.0, %v2346
    %v2348 = vpop.f32.mrf.mxu0
    %2349 = vmatprep.mubr.f32.mxu0 0.0
    %2350 = vmatmul.mubr.f32.gmra.mxu0 %v2261
    %v2351 = vpop.f32.mrf.mxu0
    %v2352 = vadd.f32 0.0, %v2351
    %v2353 = vpop.f32.mrf.mxu0
    %2354 = vmatprep.mubr.f32.mxu0 0.0
    %2355 = vmatmul.mubr.f32.gmra.mxu0 %v2262
    %v2356 = vpop.f32.mrf.mxu0
    %v2357 = vadd.f32 0.0, %v2356
    %v2358 = vpop.f32.mrf.mxu0
    %2359 = vmatprep.mubr.f32.mxu0 0.0
    %2360 = vmatmul.mubr.f32.gmra.mxu0 %v2263
    %v2361 = vpop.f32.mrf.mxu0
    %v2362 = vadd.f32 0.0, %v2361
    %v2363 = vpop.f32.mrf.mxu0
    %2364 = vmatprep.mubr.f32.mxu0 0.0
    %2365 = vmatmul.mubr.f32.gmra.mxu0 %v2264
    %v2366 = vpop.f32.mrf.mxu0
    %v2367 = vadd.f32 0.0, %v2366
    %v2368 = vpop.f32.mrf.mxu0
    %2369 = vdwg.mxu0
    %2370 = vmatprep.subr.mxu0 0.0
    %2371 = vmatpush1.msra.mxu0 0.0
    %2372 = vmatprep.subr.mxu0 0.0
    %2373 = vmatpush1.msra.mxu0 0.0
    %2374 = vmatprep.subr.mxu0 0.0
    %2375 = vmatpush1.msra.mxu0 0.0
    %2376 = vmatprep.subr.mxu0 0.0
    %2377 = vmatpush1.msra.mxu0 0.0
    %2378 = vmatprep.subr.mxu0 0.0
    %2379 = vmatpush1.msra.mxu0 0.0
    %2380 = vmatprep.subr.mxu0 0.0
    %2381 = vmatpush1.msra.mxu0 0.0
    %2382 = vmatprep.subr.mxu0 0.0
    %2383 = vmatpush1.msra.mxu0 0.0
    %2384 = vmatprep.subr.mxu0 0.0
    %2385 = vmatpush1.msra.mxu0 0.0
    %2386 = vmatprep.subr.mxu0 0.0
    %2387 = vmatpush1.msra.mxu0 %v2367
    %2388 = vmatprep.subr.mxu0 0.0
    %2389 = vmatpush1.msra.mxu0 %v2362
    %2390 = vmatprep.subr.mxu0 0.0
    %2391 = vmatpush1.msra.mxu0 %v2357
    %2392 = vmatprep.subr.mxu0 0.0
    %2393 = vmatpush1.msra.mxu0 %v2352
    %2394 = vmatprep.subr.mxu0 0.0
    %2395 = vmatpush1.msra.mxu0 %v2347
    %2396 = vmatprep.subr.mxu0 0.0
    %2397 = vmatpush1.msra.mxu0 %v2342
    %2398 = vmatprep.subr.mxu0 0.0
    %2399 = vmatpush1.msra.mxu0 %v2337
    %2400 = vmatprep.subr.mxu0 0.0
    %2401 = vmatpush1.msra.mxu0 %v2332
    %2402 = vmatprep.subr.mxu0 0.0
    %2403 = vmatpush2.msra.mxu0 0.0
    %2404 = vmatprep.subr.mxu0 0.0
    %2405 = vmatpush2.msra.mxu0 0.0
    %2406 = vmatprep.subr.mxu0 0.0
    %2407 = vmatpush2.msra.mxu0 0.0
    %2408 = vmatprep.subr.mxu0 0.0
    %2409 = vmatpush2.msra.mxu0 0.0
    %2410 = vmatprep.subr.mxu0 0.0
    %2411 = vmatpush2.msra.mxu0 0.0
    %2412 = vmatprep.subr.mxu0 0.0
    %2413 = vmatpush2.msra.mxu0 0.0
    %2414 = vmatprep.subr.mxu0 0.0
    %2415 = vmatpush2.msra.mxu0 0.0
    %2416 = vmatprep.subr.mxu0 0.0
    %2417 = vmatpush2.msra.mxu0 0.0
    %2418 = vmatprep.subr.mxu0 0.0
    %2419 = vmatpush2.msra.mxu0 0.0
    %2420 = vmatprep.subr.mxu0 0.0
    %2421 = vmatpush2.msra.mxu0 0.0
    %2422 = vmatprep.subr.mxu0 0.0
    %2423 = vmatpush2.msra.mxu0 0.0
    %2424 = vmatprep.subr.mxu0 0.0
    %2425 = vmatpush2.msra.mxu0 0.0
    %2426 = vmatprep.subr.mxu0 0.0
    %2427 = vmatpush2.msra.mxu0 0.0
    %2428 = vmatprep.subr.mxu0 0.0
    %2429 = vmatpush2.msra.mxu0 0.0
    %2430 = vmatprep.subr.mxu0 0.0
    %2431 = vmatpush2.msra.mxu0 0.0
    %2432 = vmatprep.subr.mxu0 0.0
    %2433 = vmatpush2.msra.mxu0 0.0
    %2434 = vmatprep.mubr.f32.mxu0 0.0
    %2435 = vmatmul.mubr.f32.gmra.mxu0 %v931
    %v2436 = vpop.f32.mrf.mxu0
    %v2437 = vadd.f32 0.0, %v2436
    %v2438 = vpop.f32.mrf.mxu0
    %2439 = vmatprep.mubr.f32.mxu0 0.0
    %2440 = vmatmul.mubr.f32.gmra.mxu0 %v934
    %v2441 = vpop.f32.mrf.mxu0
    %v2442 = vadd.f32 0.0, %v2441
    %v2443 = vpop.f32.mrf.mxu0
    %2444 = vmatprep.mubr.f32.mxu0 0.0
    %2445 = vmatmul.mubr.f32.gmra.mxu0 %v937
    %v2446 = vpop.f32.mrf.mxu0
    %v2447 = vadd.f32 0.0, %v2446
    %v2448 = vpop.f32.mrf.mxu0
    %2449 = vmatprep.mubr.f32.mxu0 0.0
    %2450 = vmatmul.mubr.f32.gmra.mxu0 %v940
    %v2451 = vpop.f32.mrf.mxu0
    %v2452 = vadd.f32 0.0, %v2451
    %v2453 = vpop.f32.mrf.mxu0
    %2454 = vmatprep.mubr.f32.mxu0 0.0
    %2455 = vmatmul.mubr.f32.gmra.mxu0 %v943
    %v2456 = vpop.f32.mrf.mxu0
    %v2457 = vadd.f32 0.0, %v2456
    %v2458 = vpop.f32.mrf.mxu0
    %2459 = vmatprep.mubr.f32.mxu0 0.0
    %2460 = vmatmul.mubr.f32.gmra.mxu0 %v946
    %v2461 = vpop.f32.mrf.mxu0
    %v2462 = vadd.f32 0.0, %v2461
    %v2463 = vpop.f32.mrf.mxu0
    %2464 = vmatprep.mubr.f32.mxu0 0.0
    %2465 = vmatmul.mubr.f32.gmra.mxu0 %v949
    %v2466 = vpop.f32.mrf.mxu0
    %v2467 = vadd.f32 0.0, %v2466
    %v2468 = vpop.f32.mrf.mxu0
    %2469 = vmatprep.mubr.f32.mxu0 0.0
    %2470 = vmatmul.mubr.f32.gmra.mxu0 %v952
    %v2471 = vpop.f32.mrf.mxu0
    %v2472 = vadd.f32 0.0, %v2471
    %v2473 = vpop.f32.mrf.mxu0
    %2474 = vdwg.mxu0
    %v2475 = vmul.f32 %v2219, %v2219
    %v2476 = vmul.f32 %v2224, %v2224
    %v2477 = vmul.f32 %v2229, %v2229
    %v2478 = vmul.f32 %v2234, %v2234
    %v2479 = vmul.f32 %v2239, %v2239
    %v2480 = vmul.f32 %v2244, %v2244
    %v2481 = vmul.f32 %v2249, %v2249
    %v2482 = vmul.f32 %v2254, %v2254
    %v2483 = vsub.f32 %v2437, %v2475
    %v2484 = vsub.f32 %v2442, %v2476
    %v2485 = vsub.f32 %v2447, %v2477
    %v2486 = vsub.f32 %v2452, %v2478
    %v2487 = vsub.f32 %v2457, %v2479
    %v2488 = vsub.f32 %v2462, %v2480
    %v2489 = vsub.f32 %v2467, %v2481
    %v2490 = vsub.f32 %v2472, %v2482
    %v2491 = vmax.f32 %v2483, 0.0
    %v2492 = vmax.f32 %v2484, 0.0
    %v2493 = vmax.f32 %v2485, 0.0
    %v2494 = vmax.f32 %v2486, 0.0
    %v2495 = vmax.f32 %v2487, 0.0
    %v2496 = vmax.f32 %v2488, 0.0
    %v2497 = vmax.f32 %v2489, 0.0
    %v2498 = vmax.f32 %v2490, 0.0
    %v2499 = vsub.f32 %v2023, %v2219
    %v2500 = vsub.f32 %v2024, %v2224
    %v2501 = vsub.f32 %v2025, %v2229
    %v2502 = vsub.f32 %v2026, %v2234
    %v2503 = vsub.f32 %v2027, %v2239
    %v2504 = vsub.f32 %v2028, %v2244
    %v2505 = vsub.f32 %v2029, %v2249
    %v2506 = vsub.f32 %v2030, %v2254
    %v2507 = vadd.f32 %v2491, 1e-05
    %v2508 = vadd.f32 %v2492, 1e-05
    %v2509 = vadd.f32 %v2493, 1e-05
    %v2510 = vadd.f32 %v2494, 1e-05
    %v2511 = vadd.f32 %v2495, 1e-05
    %v2512 = vadd.f32 %v2496, 1e-05
    %v2513 = vadd.f32 %v2497, 1e-05
    %v2514 = vadd.f32 %v2498, 1e-05
    %v2515 = vrsqrt.pop %v2507
    %v2516 = vrsqrt.pop %v2508
    %v2517 = vrsqrt.pop %v2509
    %v2518 = vrsqrt.pop %v2510
    %v2519 = vrsqrt.pop %v2511
    %v2520 = vrsqrt.pop %v2512
    %v2521 = vrsqrt.pop %v2513
    %v2522 = vrsqrt.pop %v2514
    %v2523 = vmul.f32 %v2499, %v2515
    %v2524 = vmul.f32 %v2500, %v2516
    %v2525 = vmul.f32 %v2501, %v2517
    %v2526 = vmul.f32 %v2502, %v2518
    %v2527 = vmul.f32 %v2503, %v2519
    %v2528 = vmul.f32 %v2504, %v2520
    %v2529 = vmul.f32 %v2505, %v2521
    %v2530 = vmul.f32 %v2506, %v2522
    %v2531 = vlaneseq
    %v2532 = vshrl.u32 %v2531, 7
    %v2533 = vsub.s32 1, %v2532
    %v2534 = vrot.slane %v2010, %v2533
    %v2535 = vmul.f32 %v2523, %v2534
    %v2536 = vmul.f32 %v2524, %v2534
    %v2537 = vmul.f32 %v2525, %v2534
    %v2538 = vmul.f32 %v2526, %v2534
    %v2539 = vmul.f32 %v2527, %v2534
    %v2540 = vmul.f32 %v2528, %v2534
    %v2541 = vmul.f32 %v2529, %v2534
    %v2542 = vmul.f32 %v2530, %v2534
    %v2543 = vlaneseq
    %v2544 = vshrl.u32 %v2543, 7
    %v2545 = vsub.s32 2, %v2544
    %v2546 = vrot.slane %v2010, %v2545
    %v2547 = vadd.f32 %v2535, %v2546
    %v2548 = vadd.f32 %v2536, %v2546
    %v2549 = vadd.f32 %v2537, %v2546
    %v2550 = vadd.f32 %v2538, %v2546
    %v2551 = vadd.f32 %v2539, %v2546
    %v2552 = vadd.f32 %v2540, %v2546
    %v2553 = vadd.f32 %v2541, %v2546
    %v2554 = vadd.f32 %v2542, %v2546
    %2555 = vmatprep.subr.mxu0 0.0
    %2556 = vmatpush1.msra.mxu0 0.0
    %2557 = vmatprep.subr.mxu0 0.0
    %2558 = vmatpush1.msra.mxu0 0.0
    %2559 = vmatprep.subr.mxu0 0.0
    %2560 = vmatpush1.msra.mxu0 0.0
    %2561 = vmatprep.subr.mxu0 0.0
    %2562 = vmatpush1.msra.mxu0 0.0
    %2563 = vmatprep.subr.mxu0 0.0
    %2564 = vmatpush1.msra.mxu0 0.0
    %2565 = vmatprep.subr.mxu0 0.0
    %2566 = vmatpush1.msra.mxu0 0.0
    %2567 = vmatprep.subr.mxu0 0.0
    %2568 = vmatpush1.msra.mxu0 0.0
    %2569 = vmatprep.subr.mxu0 0.0
    %2570 = vmatpush1.msra.mxu0 0.0
    %2571 = vmatprep.subr.mxu0 0.0
    %2572 = vmatpush1.msra.mxu0 %v2554
    %2573 = vmatprep.subr.mxu0 0.0
    %2574 = vmatpush1.msra.mxu0 %v2553
    %2575 = vmatprep.subr.mxu0 0.0
    %2576 = vmatpush1.msra.mxu0 %v2552
    %2577 = vmatprep.subr.mxu0 0.0
    %2578 = vmatpush1.msra.mxu0 %v2551
    %2579 = vmatprep.subr.mxu0 0.0
    %2580 = vmatpush1.msra.mxu0 %v2550
    %2581 = vmatprep.subr.mxu0 0.0
    %2582 = vmatpush1.msra.mxu0 %v2549
    %2583 = vmatprep.subr.mxu0 0.0
    %2584 = vmatpush1.msra.mxu0 %v2548
    %2585 = vmatprep.subr.mxu0 0.0
    %2586 = vmatpush1.msra.mxu0 %v2547
    %2587 = vmatprep.subr.mxu0 0.0
    %2588 = vmatpush2.msra.mxu0 0.0
    %2589 = vmatprep.subr.mxu0 0.0
    %2590 = vmatpush2.msra.mxu0 0.0
    %2591 = vmatprep.subr.mxu0 0.0
    %2592 = vmatpush2.msra.mxu0 0.0
    %2593 = vmatprep.subr.mxu0 0.0
    %2594 = vmatpush2.msra.mxu0 0.0
    %2595 = vmatprep.subr.mxu0 0.0
    %2596 = vmatpush2.msra.mxu0 0.0
    %2597 = vmatprep.subr.mxu0 0.0
    %2598 = vmatpush2.msra.mxu0 0.0
    %2599 = vmatprep.subr.mxu0 0.0
    %2600 = vmatpush2.msra.mxu0 0.0
    %2601 = vmatprep.subr.mxu0 0.0
    %2602 = vmatpush2.msra.mxu0 0.0
    %2603 = vmatprep.subr.mxu0 0.0
    %2604 = vmatpush2.msra.mxu0 0.0
    %2605 = vmatprep.subr.mxu0 0.0
    %2606 = vmatpush2.msra.mxu0 0.0
    %2607 = vmatprep.subr.mxu0 0.0
    %2608 = vmatpush2.msra.mxu0 0.0
    %2609 = vmatprep.subr.mxu0 0.0
    %2610 = vmatpush2.msra.mxu0 0.0
    %2611 = vmatprep.subr.mxu0 0.0
    %2612 = vmatpush2.msra.mxu0 0.0
    %2613 = vmatprep.subr.mxu0 0.0
    %2614 = vmatpush2.msra.mxu0 0.0
    %2615 = vmatprep.subr.mxu0 0.0
    %2616 = vmatpush2.msra.mxu0 0.0
    %2617 = vmatprep.subr.mxu0 0.0
    %2618 = vmatpush2.msra.mxu0 0.0
    %2619 = vmatprep.mubr.f32.mxu0 0.0
    %2620 = vmatmul.mubr.f32.gmra.mxu0 %v105
    %v2621 = vpop.f32.mrf.mxu0
    %v2622 = vadd.f32 0.0, %v2621
    %v2623 = vpop.f32.mrf.mxu0
    %2624 = vmatprep.mubr.f32.mxu0 0.0
    %2625 = vmatmul.mubr.f32.gmra.mxu0 %v108
    %v2626 = vpop.f32.mrf.mxu0
    %v2627 = vadd.f32 0.0, %v2626
    %v2628 = vpop.f32.mrf.mxu0
    %2629 = vmatprep.mubr.f32.mxu0 0.0
    %2630 = vmatmul.mubr.f32.gmra.mxu0 %v111
    %v2631 = vpop.f32.mrf.mxu0
    %v2632 = vadd.f32 0.0, %v2631
    %v2633 = vpop.f32.mrf.mxu0
    %2634 = vmatprep.mubr.f32.mxu0 0.0
    %2635 = vmatmul.mubr.f32.gmra.mxu0 %v114
    %v2636 = vpop.f32.mrf.mxu0
    %v2637 = vadd.f32 0.0, %v2636
    %v2638 = vpop.f32.mrf.mxu0
    %2639 = vmatprep.mubr.f32.mxu0 0.0
    %2640 = vmatmul.mubr.f32.gmra.mxu0 %v117
    %v2641 = vpop.f32.mrf.mxu0
    %v2642 = vadd.f32 0.0, %v2641
    %v2643 = vpop.f32.mrf.mxu0
    %2644 = vmatprep.mubr.f32.mxu0 0.0
    %2645 = vmatmul.mubr.f32.gmra.mxu0 %v120
    %v2646 = vpop.f32.mrf.mxu0
    %v2647 = vadd.f32 0.0, %v2646
    %v2648 = vpop.f32.mrf.mxu0
    %2649 = vmatprep.mubr.f32.mxu0 0.0
    %2650 = vmatmul.mubr.f32.gmra.mxu0 %v123
    %v2651 = vpop.f32.mrf.mxu0
    %v2652 = vadd.f32 0.0, %v2651
    %v2653 = vpop.f32.mrf.mxu0
    %2654 = vmatprep.mubr.f32.mxu0 0.0
    %2655 = vmatmul.mubr.f32.gmra.mxu0 %v126
    %v2656 = vpop.f32.mrf.mxu0
    %v2657 = vadd.f32 0.0, %v2656
    %v2658 = vpop.f32.mrf.mxu0
    %2659 = vdwg.mxu0
    %v2660 = vld [vmem:[#allocation7 + $0x2b6] sm:$0xff]
    %v2661 = vld [vmem:[#allocation7 + $0x2be] sm:$0xff]
    %v2662 = vld [vmem:[#allocation7 + $0x2c6] sm:$0xff]
    %v2663 = vld [vmem:[#allocation7 + $0x2ce] sm:$0xff]
    %v2664 = vld [vmem:[#allocation7 + $0x2d6] sm:$0xff]
    %v2665 = vld [vmem:[#allocation7 + $0x2de] sm:$0xff]
    %v2666 = vld [vmem:[#allocation7 + $0x2e6] sm:$0xff]
    %v2667 = vld [vmem:[#allocation7 + $0x2ee] sm:$0xff]
    %v2668 = vld [vmem:[#allocation7 + $0x2f6] sm:$0xff]
    %v2669 = vld [vmem:[#allocation7 + $0x2fe] sm:$0xff]
    %v2670 = vld [vmem:[#allocation7 + $0x306] sm:$0xff]
    %v2671 = vld [vmem:[#allocation7 + $0x30e] sm:$0xff]
    %v2672 = vld [vmem:[#allocation7 + $0x316] sm:$0xff]
    %v2673 = vld [vmem:[#allocation7 + $0x31e] sm:$0xff]
    %v2674 = vld [vmem:[#allocation7 + $0x326] sm:$0xff]
    %v2675 = vld [vmem:[#allocation7 + $0x32e] sm:$0xff]
    %v2676 = vld [vmem:[#allocation7 + $0x336] sm:$0xff]
    %v2677 = vld [vmem:[#allocation7 + $0x33e] sm:$0xff]
    %v2678 = vld [vmem:[#allocation7 + $0x346] sm:$0xff]
    %v2679 = vld [vmem:[#allocation7 + $0x34e] sm:$0xff]
    %v2680 = vld [vmem:[#allocation7 + $0x356] sm:$0xff]
    %v2681 = vld [vmem:[#allocation7 + $0x35e] sm:$0xff]
    %v2682 = vld [vmem:[#allocation7 + $0x366] sm:$0xff]
    %v2683 = vld [vmem:[#allocation7 + $0x36e] sm:$0xff]
    %v2684 = vld [vmem:[#allocation7 + $0x376] sm:$0xff]
    %v2685 = vld [vmem:[#allocation7 + $0x37e] sm:$0xff]
    %v2686 = vld [vmem:[#allocation7 + $0x386] sm:$0xff]
    %v2687 = vld [vmem:[#allocation7 + $0x38e] sm:$0xff]
    %v2688 = vld [vmem:[#allocation7 + $0x396] sm:$0xff]
    %v2689 = vld [vmem:[#allocation7 + $0x39e] sm:$0xff]
    %v2690 = vld [vmem:[#allocation7 + $0x3a6] sm:$0xff]
    %v2691 = vld [vmem:[#allocation7 + $0x3ae] sm:$0xff]
    %2692 = vmatprep.subr.mxu0 0.0
    %2693 = vmatpush1.msra.mxu0 %v2691
    %2694 = vmatprep.subr.mxu0 0.0
    %2695 = vmatpush1.msra.mxu0 %v2690
    %2696 = vmatprep.subr.mxu0 0.0
    %2697 = vmatpush1.msra.mxu0 %v2689
    %2698 = vmatprep.subr.mxu0 0.0
    %2699 = vmatpush1.msra.mxu0 %v2688
    %2700 = vmatprep.subr.mxu0 0.0
    %2701 = vmatpush1.msra.mxu0 %v2687
    %2702 = vmatprep.subr.mxu0 0.0
    %2703 = vmatpush1.msra.mxu0 %v2686
    %2704 = vmatprep.subr.mxu0 0.0
    %2705 = vmatpush1.msra.mxu0 %v2685
    %2706 = vmatprep.subr.mxu0 0.0
    %2707 = vmatpush1.msra.mxu0 %v2684
    %2708 = vmatprep.subr.mxu0 0.0
    %2709 = vmatpush1.msra.mxu0 %v2683
    %2710 = vmatprep.subr.mxu0 0.0
    %2711 = vmatpush1.msra.mxu0 %v2682
    %2712 = vmatprep.subr.mxu0 0.0
    %2713 = vmatpush1.msra.mxu0 %v2681
    %2714 = vmatprep.subr.mxu0 0.0
    %2715 = vmatpush1.msra.mxu0 %v2680
    %2716 = vmatprep.subr.mxu0 0.0
    %2717 = vmatpush1.msra.mxu0 %v2679
    %2718 = vmatprep.subr.mxu0 0.0
    %2719 = vmatpush1.msra.mxu0 %v2678
    %2720 = vmatprep.subr.mxu0 0.0
    %2721 = vmatpush1.msra.mxu0 %v2677
    %2722 = vmatprep.subr.mxu0 0.0
    %2723 = vmatpush1.msra.mxu0 %v2676
    %2724 = vmatprep.subr.mxu0 0.0
    %2725 = vmatpush2.msra.mxu0 0.0
    %2726 = vmatprep.subr.mxu0 0.0
    %2727 = vmatpush2.msra.mxu0 0.0
    %2728 = vmatprep.subr.mxu0 0.0
    %2729 = vmatpush2.msra.mxu0 0.0
    %2730 = vmatprep.subr.mxu0 0.0
    %2731 = vmatpush2.msra.mxu0 0.0
    %2732 = vmatprep.subr.mxu0 0.0
    %2733 = vmatpush2.msra.mxu0 0.0
    %2734 = vmatprep.subr.mxu0 0.0
    %2735 = vmatpush2.msra.mxu0 0.0
    %2736 = vmatprep.subr.mxu0 0.0
    %2737 = vmatpush2.msra.mxu0 0.0
    %2738 = vmatprep.subr.mxu0 0.0
    %2739 = vmatpush2.msra.mxu0 0.0
    %2740 = vmatprep.subr.mxu0 0.0
    %2741 = vmatpush2.msra.mxu0 0.0
    %2742 = vmatprep.subr.mxu0 0.0
    %2743 = vmatpush2.msra.mxu0 0.0
    %2744 = vmatprep.subr.mxu0 0.0
    %2745 = vmatpush2.msra.mxu0 0.0
    %2746 = vmatprep.subr.mxu0 0.0
    %2747 = vmatpush2.msra.mxu0 0.0
    %2748 = vmatprep.subr.mxu0 0.0
    %2749 = vmatpush2.msra.mxu0 0.0
    %2750 = vmatprep.subr.mxu0 0.0
    %2751 = vmatpush2.msra.mxu0 0.0
    %2752 = vmatprep.subr.mxu0 0.0
    %2753 = vmatpush2.msra.mxu0 0.0
    %2754 = vmatprep.subr.mxu0 0.0
    %2755 = vmatpush2.msra.mxu0 0.0
    %2756 = vmatprep.mubr.f32.mxu0 0.0
    %2757 = vmatmul.mubr.f32.gmra.mxu0 %v2547
    %v2758 = vpop.f32.mrf.mxu0
    %v2759 = vadd.f32 0.0, %v2758
    %v2760 = vpop.f32.mrf.mxu0
    %2761 = vmatprep.mubr.f32.mxu0 0.0
    %2762 = vmatmul.mubr.f32.gmra.mxu0 %v2548
    %v2763 = vpop.f32.mrf.mxu0
    %v2764 = vadd.f32 0.0, %v2763
    %v2765 = vpop.f32.mrf.mxu0
    %2766 = vmatprep.mubr.f32.mxu0 0.0
    %2767 = vmatmul.mubr.f32.gmra.mxu0 %v2549
    %v2768 = vpop.f32.mrf.mxu0
    %v2769 = vadd.f32 0.0, %v2768
    %v2770 = vpop.f32.mrf.mxu0
    %2771 = vmatprep.mubr.f32.mxu0 0.0
    %2772 = vmatmul.mubr.f32.gmra.mxu0 %v2550
    %v2773 = vpop.f32.mrf.mxu0
    %v2774 = vadd.f32 0.0, %v2773
    %v2775 = vpop.f32.mrf.mxu0
    %2776 = vmatprep.mubr.f32.mxu0 0.0
    %2777 = vmatmul.mubr.f32.gmra.mxu0 %v2551
    %v2778 = vpop.f32.mrf.mxu0
    %v2779 = vadd.f32 0.0, %v2778
    %v2780 = vpop.f32.mrf.mxu0
    %2781 = vmatprep.mubr.f32.mxu0 0.0
    %2782 = vmatmul.mubr.f32.gmra.mxu0 %v2552
    %v2783 = vpop.f32.mrf.mxu0
    %v2784 = vadd.f32 0.0, %v2783
    %v2785 = vpop.f32.mrf.mxu0
    %2786 = vmatprep.mubr.f32.mxu0 0.0
    %2787 = vmatmul.mubr.f32.gmra.mxu0 %v2553
    %v2788 = vpop.f32.mrf.mxu0
    %v2789 = vadd.f32 0.0, %v2788
    %v2790 = vpop.f32.mrf.mxu0
    %2791 = vmatprep.mubr.f32.mxu0 0.0
    %2792 = vmatmul.mubr.f32.gmra.mxu0 %v2554
    %v2793 = vpop.f32.mrf.mxu0
    %v2794 = vadd.f32 0.0, %v2793
    %v2795 = vpop.f32.mrf.mxu0
    %2796 = vdwg.mxu0
    %2797 = vmatprep.subr.mxu0 0.0
    %2798 = vmatpush1.msra.mxu0 %v2675
    %2799 = vmatprep.subr.mxu0 0.0
    %2800 = vmatpush1.msra.mxu0 %v2674
    %2801 = vmatprep.subr.mxu0 0.0
    %2802 = vmatpush1.msra.mxu0 %v2673
    %2803 = vmatprep.subr.mxu0 0.0
    %2804 = vmatpush1.msra.mxu0 %v2672
    %2805 = vmatprep.subr.mxu0 0.0
    %2806 = vmatpush1.msra.mxu0 %v2671
    %2807 = vmatprep.subr.mxu0 0.0
    %2808 = vmatpush1.msra.mxu0 %v2670
    %2809 = vmatprep.subr.mxu0 0.0
    %2810 = vmatpush1.msra.mxu0 %v2669
    %2811 = vmatprep.subr.mxu0 0.0
    %2812 = vmatpush1.msra.mxu0 %v2668
    %2813 = vmatprep.subr.mxu0 0.0
    %2814 = vmatpush1.msra.mxu0 %v2667
    %2815 = vmatprep.subr.mxu0 0.0
    %2816 = vmatpush1.msra.mxu0 %v2666
    %2817 = vmatprep.subr.mxu0 0.0
    %2818 = vmatpush1.msra.mxu0 %v2665
    %2819 = vmatprep.subr.mxu0 0.0
    %2820 = vmatpush1.msra.mxu0 %v2664
    %2821 = vmatprep.subr.mxu0 0.0
    %2822 = vmatpush1.msra.mxu0 %v2663
    %2823 = vmatprep.subr.mxu0 0.0
    %2824 = vmatpush1.msra.mxu0 %v2662
    %2825 = vmatprep.subr.mxu0 0.0
    %2826 = vmatpush1.msra.mxu0 %v2661
    %2827 = vmatprep.subr.mxu0 0.0
    %2828 = vmatpush1.msra.mxu0 %v2660
    %2829 = vmatprep.subr.mxu0 0.0
    %2830 = vmatpush2.msra.mxu0 0.0
    %2831 = vmatprep.subr.mxu0 0.0
    %2832 = vmatpush2.msra.mxu0 0.0
    %2833 = vmatprep.subr.mxu0 0.0
    %2834 = vmatpush2.msra.mxu0 0.0
    %2835 = vmatprep.subr.mxu0 0.0
    %2836 = vmatpush2.msra.mxu0 0.0
    %2837 = vmatprep.subr.mxu0 0.0
    %2838 = vmatpush2.msra.mxu0 0.0
    %2839 = vmatprep.subr.mxu0 0.0
    %2840 = vmatpush2.msra.mxu0 0.0
    %2841 = vmatprep.subr.mxu0 0.0
    %2842 = vmatpush2.msra.mxu0 0.0
    %2843 = vmatprep.subr.mxu0 0.0
    %2844 = vmatpush2.msra.mxu0 0.0
    %2845 = vmatprep.subr.mxu0 0.0
    %2846 = vmatpush2.msra.mxu0 0.0
    %2847 = vmatprep.subr.mxu0 0.0
    %2848 = vmatpush2.msra.mxu0 0.0
    %2849 = vmatprep.subr.mxu0 0.0
    %2850 = vmatpush2.msra.mxu0 0.0
    %2851 = vmatprep.subr.mxu0 0.0
    %2852 = vmatpush2.msra.mxu0 0.0
    %2853 = vmatprep.subr.mxu0 0.0
    %2854 = vmatpush2.msra.mxu0 0.0
    %2855 = vmatprep.subr.mxu0 0.0
    %2856 = vmatpush2.msra.mxu0 0.0
    %2857 = vmatprep.subr.mxu0 0.0
    %2858 = vmatpush2.msra.mxu0 0.0
    %2859 = vmatprep.subr.mxu0 0.0
    %2860 = vmatpush2.msra.mxu0 0.0
    %2861 = vmatprep.mubr.f32.mxu0 0.0
    %2862 = vmatmul.mubr.f32.gmra.mxu0 %v2622
    %v2863 = vpop.f32.mrf.mxu0
    %v2864 = vadd.f32 %v2759, %v2863
    %v2865 = vpop.f32.mrf.mxu0
    %2866 = vmatprep.mubr.f32.mxu0 0.0
    %2867 = vmatmul.mubr.f32.gmra.mxu0 %v2627
    %v2868 = vpop.f32.mrf.mxu0
    %v2869 = vadd.f32 %v2764, %v2868
    %v2870 = vpop.f32.mrf.mxu0
    %2871 = vmatprep.mubr.f32.mxu0 0.0
    %2872 = vmatmul.mubr.f32.gmra.mxu0 %v2632
    %v2873 = vpop.f32.mrf.mxu0
    %v2874 = vadd.f32 %v2769, %v2873
    %v2875 = vpop.f32.mrf.mxu0
    %2876 = vmatprep.mubr.f32.mxu0 0.0
    %2877 = vmatmul.mubr.f32.gmra.mxu0 %v2637
    %v2878 = vpop.f32.mrf.mxu0
    %v2879 = vadd.f32 %v2774, %v2878
    %v2880 = vpop.f32.mrf.mxu0
    %2881 = vmatprep.mubr.f32.mxu0 0.0
    %2882 = vmatmul.mubr.f32.gmra.mxu0 %v2642
    %v2883 = vpop.f32.mrf.mxu0
    %v2884 = vadd.f32 %v2779, %v2883
    %v2885 = vpop.f32.mrf.mxu0
    %2886 = vmatprep.mubr.f32.mxu0 0.0
    %2887 = vmatmul.mubr.f32.gmra.mxu0 %v2647
    %v2888 = vpop.f32.mrf.mxu0
    %v2889 = vadd.f32 %v2784, %v2888
    %v2890 = vpop.f32.mrf.mxu0
    %2891 = vmatprep.mubr.f32.mxu0 0.0
    %2892 = vmatmul.mubr.f32.gmra.mxu0 %v2652
    %v2893 = vpop.f32.mrf.mxu0
    %v2894 = vadd.f32 %v2789, %v2893
    %v2895 = vpop.f32.mrf.mxu0
    %2896 = vmatprep.mubr.f32.mxu0 0.0
    %2897 = vmatmul.mubr.f32.gmra.mxu0 %v2657
    %v2898 = vpop.f32.mrf.mxu0
    %v2899 = vadd.f32 %v2794, %v2898
    %v2900 = vpop.f32.mrf.mxu0
    %2901 = vdwg.mxu0
    %2902 = vmatprep.subr.mxu0 0.0
    %2903 = vmatpush1.msra.mxu0 0.0
    %2904 = vmatprep.subr.mxu0 0.0
    %2905 = vmatpush1.msra.mxu0 0.0
    %2906 = vmatprep.subr.mxu0 0.0
    %2907 = vmatpush1.msra.mxu0 0.0
    %2908 = vmatprep.subr.mxu0 0.0
    %2909 = vmatpush1.msra.mxu0 0.0
    %2910 = vmatprep.subr.mxu0 0.0
    %2911 = vmatpush1.msra.mxu0 0.0
    %2912 = vmatprep.subr.mxu0 0.0
    %2913 = vmatpush1.msra.mxu0 0.0
    %2914 = vmatprep.subr.mxu0 0.0
    %2915 = vmatpush1.msra.mxu0 0.0
    %2916 = vmatprep.subr.mxu0 0.0
    %2917 = vmatpush1.msra.mxu0 0.0
    %2918 = vmatprep.subr.mxu0 0.0
    %2919 = vmatpush1.msra.mxu0 %v2554
    %2920 = vmatprep.subr.mxu0 0.0
    %2921 = vmatpush1.msra.mxu0 %v2553
    %2922 = vmatprep.subr.mxu0 0.0
    %2923 = vmatpush1.msra.mxu0 %v2552
    %2924 = vmatprep.subr.mxu0 0.0
    %2925 = vmatpush1.msra.mxu0 %v2551
    %2926 = vmatprep.subr.mxu0 0.0
    %2927 = vmatpush1.msra.mxu0 %v2550
    %2928 = vmatprep.subr.mxu0 0.0
    %2929 = vmatpush1.msra.mxu0 %v2549
    %2930 = vmatprep.subr.mxu0 0.0
    %2931 = vmatpush1.msra.mxu0 %v2548
    %2932 = vmatprep.subr.mxu0 0.0
    %2933 = vmatpush1.msra.mxu0 %v2547
    %2934 = vmatprep.subr.mxu0 0.0
    %2935 = vmatpush2.msra.mxu0 0.0
    %2936 = vmatprep.subr.mxu0 0.0
    %2937 = vmatpush2.msra.mxu0 0.0
    %2938 = vmatprep.subr.mxu0 0.0
    %2939 = vmatpush2.msra.mxu0 0.0
    %2940 = vmatprep.subr.mxu0 0.0
    %2941 = vmatpush2.msra.mxu0 0.0
    %2942 = vmatprep.subr.mxu0 0.0
    %2943 = vmatpush2.msra.mxu0 0.0
    %2944 = vmatprep.subr.mxu0 0.0
    %2945 = vmatpush2.msra.mxu0 0.0
    %2946 = vmatprep.subr.mxu0 0.0
    %2947 = vmatpush2.msra.mxu0 0.0
    %2948 = vmatprep.subr.mxu0 0.0
    %2949 = vmatpush2.msra.mxu0 0.0
    %2950 = vmatprep.subr.mxu0 0.0
    %2951 = vmatpush2.msra.mxu0 0.0
    %2952 = vmatprep.subr.mxu0 0.0
    %2953 = vmatpush2.msra.mxu0 0.0
    %2954 = vmatprep.subr.mxu0 0.0
    %2955 = vmatpush2.msra.mxu0 0.0
    %2956 = vmatprep.subr.mxu0 0.0
    %2957 = vmatpush2.msra.mxu0 0.0
    %2958 = vmatprep.subr.mxu0 0.0
    %2959 = vmatpush2.msra.mxu0 0.0
    %2960 = vmatprep.subr.mxu0 0.0
    %2961 = vmatpush2.msra.mxu0 0.0
    %2962 = vmatprep.subr.mxu0 0.0
    %2963 = vmatpush2.msra.mxu0 0.0
    %2964 = vmatprep.subr.mxu0 0.0
    %2965 = vmatpush2.msra.mxu0 0.0
    %2966 = vmatprep.mubr.f32.mxu0 0.0
    %2967 = vmatmul.mubr.f32.gmra.mxu0 %v505
    %v2968 = vpop.f32.mrf.mxu0
    %v2969 = vadd.f32 0.0, %v2968
    %v2970 = vpop.f32.mrf.mxu0
    %2971 = vmatprep.mubr.f32.mxu0 0.0
    %2972 = vmatmul.mubr.f32.gmra.mxu0 %v508
    %v2973 = vpop.f32.mrf.mxu0
    %v2974 = vadd.f32 0.0, %v2973
    %v2975 = vpop.f32.mrf.mxu0
    %2976 = vmatprep.mubr.f32.mxu0 0.0
    %2977 = vmatmul.mubr.f32.gmra.mxu0 %v511
    %v2978 = vpop.f32.mrf.mxu0
    %v2979 = vadd.f32 0.0, %v2978
    %v2980 = vpop.f32.mrf.mxu0
    %2981 = vmatprep.mubr.f32.mxu0 0.0
    %2982 = vmatmul.mubr.f32.gmra.mxu0 %v514
    %v2983 = vpop.f32.mrf.mxu0
    %v2984 = vadd.f32 0.0, %v2983
    %v2985 = vpop.f32.mrf.mxu0
    %2986 = vmatprep.mubr.f32.mxu0 0.0
    %2987 = vmatmul.mubr.f32.gmra.mxu0 %v517
    %v2988 = vpop.f32.mrf.mxu0
    %v2989 = vadd.f32 0.0, %v2988
    %v2990 = vpop.f32.mrf.mxu0
    %2991 = vmatprep.mubr.f32.mxu0 0.0
    %2992 = vmatmul.mubr.f32.gmra.mxu0 %v520
    %v2993 = vpop.f32.mrf.mxu0
    %v2994 = vadd.f32 0.0, %v2993
    %v2995 = vpop.f32.mrf.mxu0
    %2996 = vmatprep.mubr.f32.mxu0 0.0
    %2997 = vmatmul.mubr.f32.gmra.mxu0 %v523
    %v2998 = vpop.f32.mrf.mxu0
    %v2999 = vadd.f32 0.0, %v2998
    %v3000 = vpop.f32.mrf.mxu0
    %3001 = vmatprep.mubr.f32.mxu0 0.0
    %3002 = vmatmul.mubr.f32.gmra.mxu0 %v526
    %v3003 = vpop.f32.mrf.mxu0
    %v3004 = vadd.f32 0.0, %v3003
    %v3005 = vpop.f32.mrf.mxu0
    %3006 = vdwg.mxu0
    %v3007 = vld [vmem:[#allocation7 + $0x3b6] sm:$0xff]
    %v3008 = vld [vmem:[#allocation7 + $0x3be] sm:$0xff]
    %v3009 = vld [vmem:[#allocation7 + $0x3c6] sm:$0xff]
    %v3010 = vld [vmem:[#allocation7 + $0x3ce] sm:$0xff]
    %v3011 = vld [vmem:[#allocation7 + $0x3d6] sm:$0xff]
    %v3012 = vld [vmem:[#allocation7 + $0x3de] sm:$0xff]
    %v3013 = vld [vmem:[#allocation7 + $0x3e6] sm:$0xff]
    %v3014 = vld [vmem:[#allocation7 + $0x3ee] sm:$0xff]
    %v3015 = vld [vmem:[#allocation7 + $0x3f6] sm:$0xff]
    %v3016 = vld [vmem:[#allocation7 + $0x3fe] sm:$0xff]
    %v3017 = vld [vmem:[#allocation7 + $0x406] sm:$0xff]
    %v3018 = vld [vmem:[#allocation7 + $0x40e] sm:$0xff]
    %v3019 = vld [vmem:[#allocation7 + $0x416] sm:$0xff]
    %v3020 = vld [vmem:[#allocation7 + $0x41e] sm:$0xff]
    %v3021 = vld [vmem:[#allocation7 + $0x426] sm:$0xff]
    %v3022 = vld [vmem:[#allocation7 + $0x42e] sm:$0xff]
    %3023 = vmatprep.subr.mxu0 0.0
    %3024 = vmatpush1.msra.mxu0 %v3022
    %3025 = vmatprep.subr.mxu0 0.0
    %3026 = vmatpush1.msra.mxu0 %v3021
    %3027 = vmatprep.subr.mxu0 0.0
    %3028 = vmatpush1.msra.mxu0 %v3020
    %3029 = vmatprep.subr.mxu0 0.0
    %3030 = vmatpush1.msra.mxu0 %v3019
    %3031 = vmatprep.subr.mxu0 0.0
    %3032 = vmatpush1.msra.mxu0 %v3018
    %3033 = vmatprep.subr.mxu0 0.0
    %3034 = vmatpush1.msra.mxu0 %v3017
    %3035 = vmatprep.subr.mxu0 0.0
    %3036 = vmatpush1.msra.mxu0 %v3016
    %3037 = vmatprep.subr.mxu0 0.0
    %3038 = vmatpush1.msra.mxu0 %v3015
    %3039 = vmatprep.subr.mxu0 0.0
    %3040 = vmatpush1.msra.mxu0 %v3014
    %3041 = vmatprep.subr.mxu0 0.0
    %3042 = vmatpush1.msra.mxu0 %v3013
    %3043 = vmatprep.subr.mxu0 0.0
    %3044 = vmatpush1.msra.mxu0 %v3012
    %3045 = vmatprep.subr.mxu0 0.0
    %3046 = vmatpush1.msra.mxu0 %v3011
    %3047 = vmatprep.subr.mxu0 0.0
    %3048 = vmatpush1.msra.mxu0 %v3010
    %3049 = vmatprep.subr.mxu0 0.0
    %3050 = vmatpush1.msra.mxu0 %v3009
    %3051 = vmatprep.subr.mxu0 0.0
    %3052 = vmatpush1.msra.mxu0 %v3008
    %3053 = vmatprep.subr.mxu0 0.0
    %3054 = vmatpush1.msra.mxu0 %v3007
    %3055 = vmatprep.subr.mxu0 0.0
    %3056 = vmatpush2.msra.mxu0 0.0
    %3057 = vmatprep.subr.mxu0 0.0
    %3058 = vmatpush2.msra.mxu0 0.0
    %3059 = vmatprep.subr.mxu0 0.0
    %3060 = vmatpush2.msra.mxu0 0.0
    %3061 = vmatprep.subr.mxu0 0.0
    %3062 = vmatpush2.msra.mxu0 0.0
    %3063 = vmatprep.subr.mxu0 0.0
    %3064 = vmatpush2.msra.mxu0 0.0
    %3065 = vmatprep.subr.mxu0 0.0
    %3066 = vmatpush2.msra.mxu0 0.0
    %3067 = vmatprep.subr.mxu0 0.0
    %3068 = vmatpush2.msra.mxu0 0.0
    %3069 = vmatprep.subr.mxu0 0.0
    %3070 = vmatpush2.msra.mxu0 0.0
    %3071 = vmatprep.subr.mxu0 0.0
    %3072 = vmatpush2.msra.mxu0 0.0
    %3073 = vmatprep.subr.mxu0 0.0
    %3074 = vmatpush2.msra.mxu0 0.0
    %3075 = vmatprep.subr.mxu0 0.0
    %3076 = vmatpush2.msra.mxu0 0.0
    %3077 = vmatprep.subr.mxu0 0.0
    %3078 = vmatpush2.msra.mxu0 0.0
    %3079 = vmatprep.subr.mxu0 0.0
    %3080 = vmatpush2.msra.mxu0 0.0
    %3081 = vmatprep.subr.mxu0 0.0
    %3082 = vmatpush2.msra.mxu0 0.0
    %3083 = vmatprep.subr.mxu0 0.0
    %3084 = vmatpush2.msra.mxu0 0.0
    %3085 = vmatprep.subr.mxu0 0.0
    %3086 = vmatpush2.msra.mxu0 0.0
    %3087 = vmatprep.mubr.f32.mxu0 0.0
    %3088 = vmatmul.mubr.f32.gmra.mxu0 %v2969
    %v3089 = vpop.f32.mrf.mxu0
    %v3090 = vadd.f32 0.0, %v3089
    %v3091 = vpop.f32.mrf.mxu0
    %3092 = vmatprep.mubr.f32.mxu0 0.0
    %3093 = vmatmul.mubr.f32.gmra.mxu0 %v2974
    %v3094 = vpop.f32.mrf.mxu0
    %v3095 = vadd.f32 0.0, %v3094
    %v3096 = vpop.f32.mrf.mxu0
    %3097 = vmatprep.mubr.f32.mxu0 0.0
    %3098 = vmatmul.mubr.f32.gmra.mxu0 %v2979
    %v3099 = vpop.f32.mrf.mxu0
    %v3100 = vadd.f32 0.0, %v3099
    %v3101 = vpop.f32.mrf.mxu0
    %3102 = vmatprep.mubr.f32.mxu0 0.0
    %3103 = vmatmul.mubr.f32.gmra.mxu0 %v2984
    %v3104 = vpop.f32.mrf.mxu0
    %v3105 = vadd.f32 0.0, %v3104
    %v3106 = vpop.f32.mrf.mxu0
    %3107 = vmatprep.mubr.f32.mxu0 0.0
    %3108 = vmatmul.mubr.f32.gmra.mxu0 %v2989
    %v3109 = vpop.f32.mrf.mxu0
    %v3110 = vadd.f32 0.0, %v3109
    %v3111 = vpop.f32.mrf.mxu0
    %3112 = vmatprep.mubr.f32.mxu0 0.0
    %3113 = vmatmul.mubr.f32.gmra.mxu0 %v2994
    %v3114 = vpop.f32.mrf.mxu0
    %v3115 = vadd.f32 0.0, %v3114
    %v3116 = vpop.f32.mrf.mxu0
    %3117 = vmatprep.mubr.f32.mxu0 0.0
    %3118 = vmatmul.mubr.f32.gmra.mxu0 %v2999
    %v3119 = vpop.f32.mrf.mxu0
    %v3120 = vadd.f32 0.0, %v3119
    %v3121 = vpop.f32.mrf.mxu0
    %3122 = vmatprep.mubr.f32.mxu0 0.0
    %3123 = vmatmul.mubr.f32.gmra.mxu0 %v3004
    %v3124 = vpop.f32.mrf.mxu0
    %v3125 = vadd.f32 0.0, %v3124
    %v3126 = vpop.f32.mrf.mxu0
    %3127 = vdwg.mxu0
    %v3128 = vadd.f32 %v2864, %v3090
    %v3129 = vadd.f32 %v2869, %v3095
    %v3130 = vadd.f32 %v2874, %v3100
    %v3131 = vadd.f32 %v2879, %v3105
    %v3132 = vadd.f32 %v2884, %v3110
    %v3133 = vadd.f32 %v2889, %v3115
    %v3134 = vadd.f32 %v2894, %v3120
    %v3135 = vadd.f32 %v2899, %v3125
    %v3136 = vld [vmem:[#allocation7 + $0x4b6] sm:$0x7]
    %v3137 = vlaneseq
    %v3138 = vshrl.u32 %v3137, 7
    %v3139 = vsub.s32 0, %v3138
    %v3140 = vrot.slane %v3136, %v3139
    %v3141 = vadd.f32 %v3128, %v3140
    %v3142 = vadd.f32 %v3129, %v3140
    %v3143 = vadd.f32 %v3130, %v3140
    %v3144 = vadd.f32 %v3131, %v3140
    %v3145 = vadd.f32 %v3132, %v3140
    %v3146 = vadd.f32 %v3133, %v3140
    %v3147 = vadd.f32 %v3134, %v3140
    %v3148 = vadd.f32 %v3135, %v3140
    %v3149 = vmax.f32 %v3141, 0.0
    %v3150 = vmax.f32 %v3142, 0.0
    %v3151 = vmax.f32 %v3143, 0.0
    %v3152 = vmax.f32 %v3144, 0.0
    %v3153 = vmax.f32 %v3145, 0.0
    %v3154 = vmax.f32 %v3146, 0.0
    %v3155 = vmax.f32 %v3147, 0.0
    %v3156 = vmax.f32 %v3148, 0.0
    %v3157 = vld [vmem:[#allocation7 + $0x436] sm:$0xff]
    %v3158 = vld [vmem:[#allocation7 + $0x43e] sm:$0xff]
    %v3159 = vld [vmem:[#allocation7 + $0x446] sm:$0xff]
    %v3160 = vld [vmem:[#allocation7 + $0x44e] sm:$0xff]
    %v3161 = vld [vmem:[#allocation7 + $0x456] sm:$0xff]
    %v3162 = vld [vmem:[#allocation7 + $0x45e] sm:$0xff]
    %v3163 = vld [vmem:[#allocation7 + $0x466] sm:$0xff]
    %v3164 = vld [vmem:[#allocation7 + $0x46e] sm:$0xff]
    %v3165 = vld [vmem:[#allocation7 + $0x476] sm:$0xff]
    %v3166 = vld [vmem:[#allocation7 + $0x47e] sm:$0xff]
    %v3167 = vld [vmem:[#allocation7 + $0x486] sm:$0xff]
    %v3168 = vld [vmem:[#allocation7 + $0x48e] sm:$0xff]
    %v3169 = vld [vmem:[#allocation7 + $0x496] sm:$0xff]
    %v3170 = vld [vmem:[#allocation7 + $0x49e] sm:$0xff]
    %v3171 = vld [vmem:[#allocation7 + $0x4a6] sm:$0xff]
    %v3172 = vld [vmem:[#allocation7 + $0x4ae] sm:$0xff]
    %3173 = vmatprep.subr.mxu0 0.0
    %3174 = vmatpush1.msra.mxu0 %v3172
    %3175 = vmatprep.subr.mxu0 0.0
    %3176 = vmatpush1.msra.mxu0 %v3171
    %3177 = vmatprep.subr.mxu0 0.0
    %3178 = vmatpush1.msra.mxu0 %v3170
    %3179 = vmatprep.subr.mxu0 0.0
    %3180 = vmatpush1.msra.mxu0 %v3169
    %3181 = vmatprep.subr.mxu0 0.0
    %3182 = vmatpush1.msra.mxu0 %v3168
    %3183 = vmatprep.subr.mxu0 0.0
    %3184 = vmatpush1.msra.mxu0 %v3167
    %3185 = vmatprep.subr.mxu0 0.0
    %3186 = vmatpush1.msra.mxu0 %v3166
    %3187 = vmatprep.subr.mxu0 0.0
    %3188 = vmatpush1.msra.mxu0 %v3165
    %3189 = vmatprep.subr.mxu0 0.0
    %3190 = vmatpush1.msra.mxu0 %v3164
    %3191 = vmatprep.subr.mxu0 0.0
    %3192 = vmatpush1.msra.mxu0 %v3163
    %3193 = vmatprep.subr.mxu0 0.0
    %3194 = vmatpush1.msra.mxu0 %v3162
    %3195 = vmatprep.subr.mxu0 0.0
    %3196 = vmatpush1.msra.mxu0 %v3161
    %3197 = vmatprep.subr.mxu0 0.0
    %3198 = vmatpush1.msra.mxu0 %v3160
    %3199 = vmatprep.subr.mxu0 0.0
    %3200 = vmatpush1.msra.mxu0 %v3159
    %3201 = vmatprep.subr.mxu0 0.0
    %3202 = vmatpush1.msra.mxu0 %v3158
    %3203 = vmatprep.subr.mxu0 0.0
    %3204 = vmatpush1.msra.mxu0 %v3157
    %3205 = vmatprep.subr.mxu0 0.0
    %3206 = vmatpush2.msra.mxu0 0.0
    %3207 = vmatprep.subr.mxu0 0.0
    %3208 = vmatpush2.msra.mxu0 0.0
    %3209 = vmatprep.subr.mxu0 0.0
    %3210 = vmatpush2.msra.mxu0 0.0
    %3211 = vmatprep.subr.mxu0 0.0
    %3212 = vmatpush2.msra.mxu0 0.0
    %3213 = vmatprep.subr.mxu0 0.0
    %3214 = vmatpush2.msra.mxu0 0.0
    %3215 = vmatprep.subr.mxu0 0.0
    %3216 = vmatpush2.msra.mxu0 0.0
    %3217 = vmatprep.subr.mxu0 0.0
    %3218 = vmatpush2.msra.mxu0 0.0
    %3219 = vmatprep.subr.mxu0 0.0
    %3220 = vmatpush2.msra.mxu0 0.0
    %3221 = vmatprep.subr.mxu0 0.0
    %3222 = vmatpush2.msra.mxu0 0.0
    %3223 = vmatprep.subr.mxu0 0.0
    %3224 = vmatpush2.msra.mxu0 0.0
    %3225 = vmatprep.subr.mxu0 0.0
    %3226 = vmatpush2.msra.mxu0 0.0
    %3227 = vmatprep.subr.mxu0 0.0
    %3228 = vmatpush2.msra.mxu0 0.0
    %3229 = vmatprep.subr.mxu0 0.0
    %3230 = vmatpush2.msra.mxu0 0.0
    %3231 = vmatprep.subr.mxu0 0.0
    %3232 = vmatpush2.msra.mxu0 0.0
    %3233 = vmatprep.subr.mxu0 0.0
    %3234 = vmatpush2.msra.mxu0 0.0
    %3235 = vmatprep.subr.mxu0 0.0
    %3236 = vmatpush2.msra.mxu0 0.0
    %3237 = vmatprep.mubr.f32.mxu0 0.0
    %3238 = vmatmul.mubr.f32.gmra.mxu0 %v3149
    %v3239 = vpop.f32.mrf.mxu0
    %v3240 = vadd.f32 0.0, %v3239
    %v3241 = vpop.f32.mrf.mxu0
    %3242 = vmatprep.mubr.f32.mxu0 0.0
    %3243 = vmatmul.mubr.f32.gmra.mxu0 %v3150
    %v3244 = vpop.f32.mrf.mxu0
    %v3245 = vadd.f32 0.0, %v3244
    %v3246 = vpop.f32.mrf.mxu0
    %3247 = vmatprep.mubr.f32.mxu0 0.0
    %3248 = vmatmul.mubr.f32.gmra.mxu0 %v3151
    %v3249 = vpop.f32.mrf.mxu0
    %v3250 = vadd.f32 0.0, %v3249
    %v3251 = vpop.f32.mrf.mxu0
    %3252 = vmatprep.mubr.f32.mxu0 0.0
    %3253 = vmatmul.mubr.f32.gmra.mxu0 %v3152
    %v3254 = vpop.f32.mrf.mxu0
    %v3255 = vadd.f32 0.0, %v3254
    %v3256 = vpop.f32.mrf.mxu0
    %3257 = vmatprep.mubr.f32.mxu0 0.0
    %3258 = vmatmul.mubr.f32.gmra.mxu0 %v3153
    %v3259 = vpop.f32.mrf.mxu0
    %v3260 = vadd.f32 0.0, %v3259
    %v3261 = vpop.f32.mrf.mxu0
    %3262 = vmatprep.mubr.f32.mxu0 0.0
    %3263 = vmatmul.mubr.f32.gmra.mxu0 %v3154
    %v3264 = vpop.f32.mrf.mxu0
    %v3265 = vadd.f32 0.0, %v3264
    %v3266 = vpop.f32.mrf.mxu0
    %3267 = vmatprep.mubr.f32.mxu0 0.0
    %3268 = vmatmul.mubr.f32.gmra.mxu0 %v3155
    %v3269 = vpop.f32.mrf.mxu0
    %v3270 = vadd.f32 0.0, %v3269
    %v3271 = vpop.f32.mrf.mxu0
    %3272 = vmatprep.mubr.f32.mxu0 0.0
    %3273 = vmatmul.mubr.f32.gmra.mxu0 %v3156
    %v3274 = vpop.f32.mrf.mxu0
    %v3275 = vadd.f32 0.0, %v3274
    %v3276 = vpop.f32.mrf.mxu0
    %3277 = vdwg.mxu0
    %3278 = vmatprep.subr.mxu0 0.0
    %3279 = vmatpush1.msra.mxu0 0.0
    %3280 = vmatprep.subr.mxu0 0.0
    %3281 = vmatpush1.msra.mxu0 0.0
    %3282 = vmatprep.subr.mxu0 0.0
    %3283 = vmatpush1.msra.mxu0 0.0
    %3284 = vmatprep.subr.mxu0 0.0
    %3285 = vmatpush1.msra.mxu0 0.0
    %3286 = vmatprep.subr.mxu0 0.0
    %3287 = vmatpush1.msra.mxu0 0.0
    %3288 = vmatprep.subr.mxu0 0.0
    %3289 = vmatpush1.msra.mxu0 0.0
    %3290 = vmatprep.subr.mxu0 0.0
    %3291 = vmatpush1.msra.mxu0 0.0
    %3292 = vmatprep.subr.mxu0 0.0
    %3293 = vmatpush1.msra.mxu0 0.0
    %3294 = vmatprep.subr.mxu0 0.0
    %3295 = vmatpush1.msra.mxu0 %v3275
    %3296 = vmatprep.subr.mxu0 0.0
    %3297 = vmatpush1.msra.mxu0 %v3270
    %3298 = vmatprep.subr.mxu0 0.0
    %3299 = vmatpush1.msra.mxu0 %v3265
    %3300 = vmatprep.subr.mxu0 0.0
    %3301 = vmatpush1.msra.mxu0 %v3260
    %3302 = vmatprep.subr.mxu0 0.0
    %3303 = vmatpush1.msra.mxu0 %v3255
    %3304 = vmatprep.subr.mxu0 0.0
    %3305 = vmatpush1.msra.mxu0 %v3250
    %3306 = vmatprep.subr.mxu0 0.0
    %3307 = vmatpush1.msra.mxu0 %v3245
    %3308 = vmatprep.subr.mxu0 0.0
    %3309 = vmatpush1.msra.mxu0 %v3240
    %3310 = vmatprep.subr.mxu0 0.0
    %3311 = vmatpush2.msra.mxu0 0.0
    %3312 = vmatprep.subr.mxu0 0.0
    %3313 = vmatpush2.msra.mxu0 0.0
    %3314 = vmatprep.subr.mxu0 0.0
    %3315 = vmatpush2.msra.mxu0 0.0
    %3316 = vmatprep.subr.mxu0 0.0
    %3317 = vmatpush2.msra.mxu0 0.0
    %3318 = vmatprep.subr.mxu0 0.0
    %3319 = vmatpush2.msra.mxu0 0.0
    %3320 = vmatprep.subr.mxu0 0.0
    %3321 = vmatpush2.msra.mxu0 0.0
    %3322 = vmatprep.subr.mxu0 0.0
    %3323 = vmatpush2.msra.mxu0 0.0
    %3324 = vmatprep.subr.mxu0 0.0
    %3325 = vmatpush2.msra.mxu0 0.0
    %3326 = vmatprep.subr.mxu0 0.0
    %3327 = vmatpush2.msra.mxu0 0.0
    %3328 = vmatprep.subr.mxu0 0.0
    %3329 = vmatpush2.msra.mxu0 0.0
    %3330 = vmatprep.subr.mxu0 0.0
    %3331 = vmatpush2.msra.mxu0 0.0
    %3332 = vmatprep.subr.mxu0 0.0
    %3333 = vmatpush2.msra.mxu0 0.0
    %3334 = vmatprep.subr.mxu0 0.0
    %3335 = vmatpush2.msra.mxu0 0.0
    %3336 = vmatprep.subr.mxu0 0.0
    %3337 = vmatpush2.msra.mxu0 0.0
    %3338 = vmatprep.subr.mxu0 0.0
    %3339 = vmatpush2.msra.mxu0 0.0
    %3340 = vmatprep.subr.mxu0 0.0
    %3341 = vmatpush2.msra.mxu0 0.0
    %3342 = vmatprep.mubr.f32.mxu0 0.0
    %3343 = vmatmul.mubr.f32.gmra.mxu0 %v931
    %v3344 = vpop.f32.mrf.mxu0
    %v3345 = vadd.f32 0.0, %v3344
    %v3346 = vpop.f32.mrf.mxu0
    %3347 = vmatprep.mubr.f32.mxu0 0.0
    %3348 = vmatmul.mubr.f32.gmra.mxu0 %v934
    %v3349 = vpop.f32.mrf.mxu0
    %v3350 = vadd.f32 0.0, %v3349
    %v3351 = vpop.f32.mrf.mxu0
    %3352 = vmatprep.mubr.f32.mxu0 0.0
    %3353 = vmatmul.mubr.f32.gmra.mxu0 %v937
    %v3354 = vpop.f32.mrf.mxu0
    %v3355 = vadd.f32 0.0, %v3354
    %v3356 = vpop.f32.mrf.mxu0
    %3357 = vmatprep.mubr.f32.mxu0 0.0
    %3358 = vmatmul.mubr.f32.gmra.mxu0 %v940
    %v3359 = vpop.f32.mrf.mxu0
    %v3360 = vadd.f32 0.0, %v3359
    %v3361 = vpop.f32.mrf.mxu0
    %3362 = vmatprep.mubr.f32.mxu0 0.0
    %3363 = vmatmul.mubr.f32.gmra.mxu0 %v943
    %v3364 = vpop.f32.mrf.mxu0
    %v3365 = vadd.f32 0.0, %v3364
    %v3366 = vpop.f32.mrf.mxu0
    %3367 = vmatprep.mubr.f32.mxu0 0.0
    %3368 = vmatmul.mubr.f32.gmra.mxu0 %v946
    %v3369 = vpop.f32.mrf.mxu0
    %v3370 = vadd.f32 0.0, %v3369
    %v3371 = vpop.f32.mrf.mxu0
    %3372 = vmatprep.mubr.f32.mxu0 0.0
    %3373 = vmatmul.mubr.f32.gmra.mxu0 %v949
    %v3374 = vpop.f32.mrf.mxu0
    %v3375 = vadd.f32 0.0, %v3374
    %v3376 = vpop.f32.mrf.mxu0
    %3377 = vmatprep.mubr.f32.mxu0 0.0
    %3378 = vmatmul.mubr.f32.gmra.mxu0 %v952
    %v3379 = vpop.f32.mrf.mxu0
    %v3380 = vadd.f32 0.0, %v3379
    %v3381 = vpop.f32.mrf.mxu0
    %3382 = vdwg.mxu0
    %v3383 = vmul.f32 %v3149, %v3149
    %v3384 = vmul.f32 %v3150, %v3150
    %v3385 = vmul.f32 %v3151, %v3151
    %v3386 = vmul.f32 %v3152, %v3152
    %v3387 = vmul.f32 %v3153, %v3153
    %v3388 = vmul.f32 %v3154, %v3154
    %v3389 = vmul.f32 %v3155, %v3155
    %v3390 = vmul.f32 %v3156, %v3156
    %3391 = vmatprep.subr.mxu0 0.0
    %3392 = vmatpush1.msra.mxu0 %v3172
    %3393 = vmatprep.subr.mxu0 0.0
    %3394 = vmatpush1.msra.mxu0 %v3171
    %3395 = vmatprep.subr.mxu0 0.0
    %3396 = vmatpush1.msra.mxu0 %v3170
    %3397 = vmatprep.subr.mxu0 0.0
    %3398 = vmatpush1.msra.mxu0 %v3169
    %3399 = vmatprep.subr.mxu0 0.0
    %3400 = vmatpush1.msra.mxu0 %v3168
    %3401 = vmatprep.subr.mxu0 0.0
    %3402 = vmatpush1.msra.mxu0 %v3167
    %3403 = vmatprep.subr.mxu0 0.0
    %3404 = vmatpush1.msra.mxu0 %v3166
    %3405 = vmatprep.subr.mxu0 0.0
    %3406 = vmatpush1.msra.mxu0 %v3165
    %3407 = vmatprep.subr.mxu0 0.0
    %3408 = vmatpush1.msra.mxu0 %v3164
    %3409 = vmatprep.subr.mxu0 0.0
    %3410 = vmatpush1.msra.mxu0 %v3163
    %3411 = vmatprep.subr.mxu0 0.0
    %3412 = vmatpush1.msra.mxu0 %v3162
    %3413 = vmatprep.subr.mxu0 0.0
    %3414 = vmatpush1.msra.mxu0 %v3161
    %3415 = vmatprep.subr.mxu0 0.0
    %3416 = vmatpush1.msra.mxu0 %v3160
    %3417 = vmatprep.subr.mxu0 0.0
    %3418 = vmatpush1.msra.mxu0 %v3159
    %3419 = vmatprep.subr.mxu0 0.0
    %3420 = vmatpush1.msra.mxu0 %v3158
    %3421 = vmatprep.subr.mxu0 0.0
    %3422 = vmatpush1.msra.mxu0 %v3157
    %3423 = vmatprep.subr.mxu0 0.0
    %3424 = vmatpush2.msra.mxu0 0.0
    %3425 = vmatprep.subr.mxu0 0.0
    %3426 = vmatpush2.msra.mxu0 0.0
    %3427 = vmatprep.subr.mxu0 0.0
    %3428 = vmatpush2.msra.mxu0 0.0
    %3429 = vmatprep.subr.mxu0 0.0
    %3430 = vmatpush2.msra.mxu0 0.0
    %3431 = vmatprep.subr.mxu0 0.0
    %3432 = vmatpush2.msra.mxu0 0.0
    %3433 = vmatprep.subr.mxu0 0.0
    %3434 = vmatpush2.msra.mxu0 0.0
    %3435 = vmatprep.subr.mxu0 0.0
    %3436 = vmatpush2.msra.mxu0 0.0
    %3437 = vmatprep.subr.mxu0 0.0
    %3438 = vmatpush2.msra.mxu0 0.0
    %3439 = vmatprep.subr.mxu0 0.0
    %3440 = vmatpush2.msra.mxu0 0.0
    %3441 = vmatprep.subr.mxu0 0.0
    %3442 = vmatpush2.msra.mxu0 0.0
    %3443 = vmatprep.subr.mxu0 0.0
    %3444 = vmatpush2.msra.mxu0 0.0
    %3445 = vmatprep.subr.mxu0 0.0
    %3446 = vmatpush2.msra.mxu0 0.0
    %3447 = vmatprep.subr.mxu0 0.0
    %3448 = vmatpush2.msra.mxu0 0.0
    %3449 = vmatprep.subr.mxu0 0.0
    %3450 = vmatpush2.msra.mxu0 0.0
    %3451 = vmatprep.subr.mxu0 0.0
    %3452 = vmatpush2.msra.mxu0 0.0
    %3453 = vmatprep.subr.mxu0 0.0
    %3454 = vmatpush2.msra.mxu0 0.0
    %3455 = vmatprep.mubr.f32.mxu0 0.0
    %3456 = vmatmul.mubr.f32.gmra.mxu0 %v3383
    %v3457 = vpop.f32.mrf.mxu0
    %v3458 = vadd.f32 0.0, %v3457
    %v3459 = vpop.f32.mrf.mxu0
    %3460 = vmatprep.mubr.f32.mxu0 0.0
    %3461 = vmatmul.mubr.f32.gmra.mxu0 %v3384
    %v3462 = vpop.f32.mrf.mxu0
    %v3463 = vadd.f32 0.0, %v3462
    %v3464 = vpop.f32.mrf.mxu0
    %3465 = vmatprep.mubr.f32.mxu0 0.0
    %3466 = vmatmul.mubr.f32.gmra.mxu0 %v3385
    %v3467 = vpop.f32.mrf.mxu0
    %v3468 = vadd.f32 0.0, %v3467
    %v3469 = vpop.f32.mrf.mxu0
    %3470 = vmatprep.mubr.f32.mxu0 0.0
    %3471 = vmatmul.mubr.f32.gmra.mxu0 %v3386
    %v3472 = vpop.f32.mrf.mxu0
    %v3473 = vadd.f32 0.0, %v3472
    %v3474 = vpop.f32.mrf.mxu0
    %3475 = vmatprep.mubr.f32.mxu0 0.0
    %3476 = vmatmul.mubr.f32.gmra.mxu0 %v3387
    %v3477 = vpop.f32.mrf.mxu0
    %v3478 = vadd.f32 0.0, %v3477
    %v3479 = vpop.f32.mrf.mxu0
    %3480 = vmatprep.mubr.f32.mxu0 0.0
    %3481 = vmatmul.mubr.f32.gmra.mxu0 %v3388
    %v3482 = vpop.f32.mrf.mxu0
    %v3483 = vadd.f32 0.0, %v3482
    %v3484 = vpop.f32.mrf.mxu0
    %3485 = vmatprep.mubr.f32.mxu0 0.0
    %3486 = vmatmul.mubr.f32.gmra.mxu0 %v3389
    %v3487 = vpop.f32.mrf.mxu0
    %v3488 = vadd.f32 0.0, %v3487
    %v3489 = vpop.f32.mrf.mxu0
    %3490 = vmatprep.mubr.f32.mxu0 0.0
    %3491 = vmatmul.mubr.f32.gmra.mxu0 %v3390
    %v3492 = vpop.f32.mrf.mxu0
    %v3493 = vadd.f32 0.0, %v3492
    %v3494 = vpop.f32.mrf.mxu0
    %3495 = vdwg.mxu0
    %3496 = vmatprep.subr.mxu0 0.0
    %3497 = vmatpush1.msra.mxu0 0.0
    %3498 = vmatprep.subr.mxu0 0.0
    %3499 = vmatpush1.msra.mxu0 0.0
    %3500 = vmatprep.subr.mxu0 0.0
    %3501 = vmatpush1.msra.mxu0 0.0
    %3502 = vmatprep.subr.mxu0 0.0
    %3503 = vmatpush1.msra.mxu0 0.0
    %3504 = vmatprep.subr.mxu0 0.0
    %3505 = vmatpush1.msra.mxu0 0.0
    %3506 = vmatprep.subr.mxu0 0.0
    %3507 = vmatpush1.msra.mxu0 0.0
    %3508 = vmatprep.subr.mxu0 0.0
    %3509 = vmatpush1.msra.mxu0 0.0
    %3510 = vmatprep.subr.mxu0 0.0
    %3511 = vmatpush1.msra.mxu0 0.0
    %3512 = vmatprep.subr.mxu0 0.0
    %3513 = vmatpush1.msra.mxu0 %v3493
    %3514 = vmatprep.subr.mxu0 0.0
    %3515 = vmatpush1.msra.mxu0 %v3488
    %3516 = vmatprep.subr.mxu0 0.0
    %3517 = vmatpush1.msra.mxu0 %v3483
    %3518 = vmatprep.subr.mxu0 0.0
    %3519 = vmatpush1.msra.mxu0 %v3478
    %3520 = vmatprep.subr.mxu0 0.0
    %3521 = vmatpush1.msra.mxu0 %v3473
    %3522 = vmatprep.subr.mxu0 0.0
    %3523 = vmatpush1.msra.mxu0 %v3468
    %3524 = vmatprep.subr.mxu0 0.0
    %3525 = vmatpush1.msra.mxu0 %v3463
    %3526 = vmatprep.subr.mxu0 0.0
    %3527 = vmatpush1.msra.mxu0 %v3458
    %3528 = vmatprep.subr.mxu0 0.0
    %3529 = vmatpush2.msra.mxu0 0.0
    %3530 = vmatprep.subr.mxu0 0.0
    %3531 = vmatpush2.msra.mxu0 0.0
    %3532 = vmatprep.subr.mxu0 0.0
    %3533 = vmatpush2.msra.mxu0 0.0
    %3534 = vmatprep.subr.mxu0 0.0
    %3535 = vmatpush2.msra.mxu0 0.0
    %3536 = vmatprep.subr.mxu0 0.0
    %3537 = vmatpush2.msra.mxu0 0.0
    %3538 = vmatprep.subr.mxu0 0.0
    %3539 = vmatpush2.msra.mxu0 0.0
    %3540 = vmatprep.subr.mxu0 0.0
    %3541 = vmatpush2.msra.mxu0 0.0
    %3542 = vmatprep.subr.mxu0 0.0
    %3543 = vmatpush2.msra.mxu0 0.0
    %3544 = vmatprep.subr.mxu0 0.0
    %3545 = vmatpush2.msra.mxu0 0.0
    %3546 = vmatprep.subr.mxu0 0.0
    %3547 = vmatpush2.msra.mxu0 0.0
    %3548 = vmatprep.subr.mxu0 0.0
    %3549 = vmatpush2.msra.mxu0 0.0
    %3550 = vmatprep.subr.mxu0 0.0
    %3551 = vmatpush2.msra.mxu0 0.0
    %3552 = vmatprep.subr.mxu0 0.0
    %3553 = vmatpush2.msra.mxu0 0.0
    %3554 = vmatprep.subr.mxu0 0.0
    %3555 = vmatpush2.msra.mxu0 0.0
    %3556 = vmatprep.subr.mxu0 0.0
    %3557 = vmatpush2.msra.mxu0 0.0
    %3558 = vmatprep.subr.mxu0 0.0
    %3559 = vmatpush2.msra.mxu0 0.0
    %3560 = vmatprep.mubr.f32.mxu0 0.0
    %3561 = vmatmul.mubr.f32.gmra.mxu0 %v931
    %v3562 = vpop.f32.mrf.mxu0
    %v3563 = vadd.f32 0.0, %v3562
    %v3564 = vpop.f32.mrf.mxu0
    %3565 = vmatprep.mubr.f32.mxu0 0.0
    %3566 = vmatmul.mubr.f32.gmra.mxu0 %v934
    %v3567 = vpop.f32.mrf.mxu0
    %v3568 = vadd.f32 0.0, %v3567
    %v3569 = vpop.f32.mrf.mxu0
    %3570 = vmatprep.mubr.f32.mxu0 0.0
    %3571 = vmatmul.mubr.f32.gmra.mxu0 %v937
    %v3572 = vpop.f32.mrf.mxu0
    %v3573 = vadd.f32 0.0, %v3572
    %v3574 = vpop.f32.mrf.mxu0
    %3575 = vmatprep.mubr.f32.mxu0 0.0
    %3576 = vmatmul.mubr.f32.gmra.mxu0 %v940
    %v3577 = vpop.f32.mrf.mxu0
    %v3578 = vadd.f32 0.0, %v3577
    %v3579 = vpop.f32.mrf.mxu0
    %3580 = vmatprep.mubr.f32.mxu0 0.0
    %3581 = vmatmul.mubr.f32.gmra.mxu0 %v943
    %v3582 = vpop.f32.mrf.mxu0
    %v3583 = vadd.f32 0.0, %v3582
    %v3584 = vpop.f32.mrf.mxu0
    %3585 = vmatprep.mubr.f32.mxu0 0.0
    %3586 = vmatmul.mubr.f32.gmra.mxu0 %v946
    %v3587 = vpop.f32.mrf.mxu0
    %v3588 = vadd.f32 0.0, %v3587
    %v3589 = vpop.f32.mrf.mxu0
    %3590 = vmatprep.mubr.f32.mxu0 0.0
    %3591 = vmatmul.mubr.f32.gmra.mxu0 %v949
    %v3592 = vpop.f32.mrf.mxu0
    %v3593 = vadd.f32 0.0, %v3592
    %v3594 = vpop.f32.mrf.mxu0
    %3595 = vmatprep.mubr.f32.mxu0 0.0
    %3596 = vmatmul.mubr.f32.gmra.mxu0 %v952
    %v3597 = vpop.f32.mrf.mxu0
    %v3598 = vadd.f32 0.0, %v3597
    %v3599 = vpop.f32.mrf.mxu0
    %3600 = vdwg.mxu0
    %v3601 = vmul.f32 %v3345, %v3345
    %v3602 = vmul.f32 %v3350, %v3350
    %v3603 = vmul.f32 %v3355, %v3355
    %v3604 = vmul.f32 %v3360, %v3360
    %v3605 = vmul.f32 %v3365, %v3365
    %v3606 = vmul.f32 %v3370, %v3370
    %v3607 = vmul.f32 %v3375, %v3375
    %v3608 = vmul.f32 %v3380, %v3380
    %v3609 = vsub.f32 %v3563, %v3601
    %v3610 = vsub.f32 %v3568, %v3602
    %v3611 = vsub.f32 %v3573, %v3603
    %v3612 = vsub.f32 %v3578, %v3604
    %v3613 = vsub.f32 %v3583, %v3605
    %v3614 = vsub.f32 %v3588, %v3606
    %v3615 = vsub.f32 %v3593, %v3607
    %v3616 = vsub.f32 %v3598, %v3608
    %v3617 = vmax.f32 %v3609, 0.0
    %v3618 = vmax.f32 %v3610, 0.0
    %v3619 = vmax.f32 %v3611, 0.0
    %v3620 = vmax.f32 %v3612, 0.0
    %v3621 = vmax.f32 %v3613, 0.0
    %v3622 = vmax.f32 %v3614, 0.0
    %v3623 = vmax.f32 %v3615, 0.0
    %v3624 = vmax.f32 %v3616, 0.0
    %v3625 = vsub.f32 %v3149, %v3345
    %v3626 = vsub.f32 %v3150, %v3350
    %v3627 = vsub.f32 %v3151, %v3355
    %v3628 = vsub.f32 %v3152, %v3360
    %v3629 = vsub.f32 %v3153, %v3365
    %v3630 = vsub.f32 %v3154, %v3370
    %v3631 = vsub.f32 %v3155, %v3375
    %v3632 = vsub.f32 %v3156, %v3380
    %v3633 = vadd.f32 %v3617, 1e-05
    %v3634 = vadd.f32 %v3618, 1e-05
    %v3635 = vadd.f32 %v3619, 1e-05
    %v3636 = vadd.f32 %v3620, 1e-05
    %v3637 = vadd.f32 %v3621, 1e-05
    %v3638 = vadd.f32 %v3622, 1e-05
    %v3639 = vadd.f32 %v3623, 1e-05
    %v3640 = vadd.f32 %v3624, 1e-05
    %v3641 = vrsqrt.pop %v3633
    %v3642 = vrsqrt.pop %v3634
    %v3643 = vrsqrt.pop %v3635
    %v3644 = vrsqrt.pop %v3636
    %v3645 = vrsqrt.pop %v3637
    %v3646 = vrsqrt.pop %v3638
    %v3647 = vrsqrt.pop %v3639
    %v3648 = vrsqrt.pop %v3640
    %v3649 = vmul.f32 %v3625, %v3641
    %v3650 = vmul.f32 %v3626, %v3642
    %v3651 = vmul.f32 %v3627, %v3643
    %v3652 = vmul.f32 %v3628, %v3644
    %v3653 = vmul.f32 %v3629, %v3645
    %v3654 = vmul.f32 %v3630, %v3646
    %v3655 = vmul.f32 %v3631, %v3647
    %v3656 = vmul.f32 %v3632, %v3648
    %v3657 = vlaneseq
    %v3658 = vshrl.u32 %v3657, 7
    %v3659 = vsub.s32 1, %v3658
    %v3660 = vrot.slane %v3136, %v3659
    %v3661 = vmul.f32 %v3649, %v3660
    %v3662 = vmul.f32 %v3650, %v3660
    %v3663 = vmul.f32 %v3651, %v3660
    %v3664 = vmul.f32 %v3652, %v3660
    %v3665 = vmul.f32 %v3653, %v3660
    %v3666 = vmul.f32 %v3654, %v3660
    %v3667 = vmul.f32 %v3655, %v3660
    %v3668 = vmul.f32 %v3656, %v3660
    %v3669 = vlaneseq
    %v3670 = vshrl.u32 %v3669, 7
    %v3671 = vsub.s32 2, %v3670
    %v3672 = vrot.slane %v3136, %v3671
    %v3673 = vadd.f32 %v3661, %v3672
    %v3674 = vadd.f32 %v3662, %v3672
    %v3675 = vadd.f32 %v3663, %v3672
    %v3676 = vadd.f32 %v3664, %v3672
    %v3677 = vadd.f32 %v3665, %v3672
    %v3678 = vadd.f32 %v3666, %v3672
    %v3679 = vadd.f32 %v3667, %v3672
    %v3680 = vadd.f32 %v3668, %v3672
    %v3681 = vpack.c.bf16 %v3674, %v3673
    %v3682 = vpack.c.bf16 %v3676, %v3675
    %v3683 = vpack.c.bf16 %v3678, %v3677
    %v3684 = vpack.c.bf16 %v3680, %v3679
    %v3689 = vunpack.c.l.b16 %v3681
    %v3690 = vunpack.c.h.b16 %v3681
    %v3691 = vunpack.c.l.b16 %v3682
    %v3692 = vunpack.c.h.b16 %v3682
    %v3693 = vunpack.c.l.b16 %v3683
    %v3694 = vunpack.c.h.b16 %v3683
    %v3695 = vunpack.c.l.b16 %v3684
    %v3696 = vunpack.c.h.b16 %v3684
    %v3697 = vpack.c.b16 %v3689, %v3689
    %v3698 = vpack.c.b16 %v3690, %v3690
    %v3699 = vpack.c.b16 %v3691, %v3691
    %v3700 = vpack.c.b16 %v3692, %v3692
    %v3701 = vpack.c.b16 %v3693, %v3693
    %v3702 = vpack.c.b16 %v3694, %v3694
    %v3703 = vpack.c.b16 %v3695, %v3695
    %v3704 = vpack.c.b16 %v3696, %v3696
    %3713 = vst [vmem:[#allocation5] sm:$0xf] %v3697
    %3714 = vst [vmem:[#allocation5 + $0x4] sm:$0xf] %v3698
    %3715 = vst [vmem:[#allocation5 + $0x8] sm:$0xf] %v3699
    %3716 = vst [vmem:[#allocation5 + $0xc] sm:$0xf] %v3700
    %3717 = vst [vmem:[#allocation5 + $0x10] sm:$0xf] %v3701
    %3718 = vst [vmem:[#allocation5 + $0x14] sm:$0xf] %v3702
    %3719 = vst [vmem:[#allocation5 + $0x18] sm:$0xf] %v3703
    %3720 = vst [vmem:[#allocation5 + $0x1c] sm:$0xf] %v3704
    %s3721 = smul.u32 4, 256
    %s3722 = smul.u32 %s3721, 4
    %s3723 = sshll.u32 %s3722, 4
    %3724 = dma.done [#allocation6], %s3723
    %s3725 = smul.u32 4, 64
    %s3726 = smul.u32 %s3725, 4
    %s3727 = sshll.u32 %s3726, 4
    %3728 = dma.done %s55, %s3727
    %s3729 = smul.u32 %s3725, 1
    %s3730 = sshll.u32 %s3729, 4
    %3731 = dma.done %s67, %s3730
    %v3732 = vld [vmem:[#allocation5] sm:$0x3]
    %v3733 = vld [vmem:[#allocation2] sm:$0xff]
    %v3734 = vld [vmem:[#allocation2 + $0x8] sm:$0xff]
    %v3735 = vld [vmem:[#allocation2 + $0x10] sm:$0xff]
    %v3736 = vld [vmem:[#allocation2 + $0x18] sm:$0xff]
    %v3737 = vld [vmem:[#allocation2 + $0x20] sm:$0xff]
    %v3738 = vld [vmem:[#allocation2 + $0x28] sm:$0xff]
    %v3739 = vld [vmem:[#allocation2 + $0x30] sm:$0xff]
    %v3740 = vld [vmem:[#allocation2 + $0x38] sm:$0xff]
    %v3741 = vld [vmem:[#allocation2 + $0x40] sm:$0xff]
    %v3742 = vld [vmem:[#allocation2 + $0x48] sm:$0xff]
    %v3743 = vld [vmem:[#allocation2 + $0x50] sm:$0xff]
    %v3744 = vld [vmem:[#allocation2 + $0x58] sm:$0xff]
    %v3745 = vld [vmem:[#allocation2 + $0x60] sm:$0xff]
    %v3746 = vld [vmem:[#allocation2 + $0x68] sm:$0xff]
    %v3747 = vld [vmem:[#allocation2 + $0x70] sm:$0xff]
    %v3748 = vld [vmem:[#allocation2 + $0x78] sm:$0xff]
    %v3749 = vld [vmem:[#allocation2 + $0x80] sm:$0xff]
    %v3750 = vld [vmem:[#allocation2 + $0x88] sm:$0xff]
    %v3751 = vld [vmem:[#allocation2 + $0x90] sm:$0xff]
    %v3752 = vld [vmem:[#allocation2 + $0x98] sm:$0xff]
    %v3753 = vld [vmem:[#allocation2 + $0xa0] sm:$0xff]
    %v3754 = vld [vmem:[#allocation2 + $0xa8] sm:$0xff]
    %v3755 = vld [vmem:[#allocation2 + $0xb0] sm:$0xff]
    %v3756 = vld [vmem:[#allocation2 + $0xb8] sm:$0xff]
    %v3757 = vld [vmem:[#allocation2 + $0xc0] sm:$0xff]
    %v3758 = vld [vmem:[#allocation2 + $0xc8] sm:$0xff]
    %v3759 = vld [vmem:[#allocation2 + $0xd0] sm:$0xff]
    %v3760 = vld [vmem:[#allocation2 + $0xd8] sm:$0xff]
    %v3761 = vld [vmem:[#allocation2 + $0xe0] sm:$0xff]
    %v3762 = vld [vmem:[#allocation2 + $0xe8] sm:$0xff]
    %v3763 = vld [vmem:[#allocation2 + $0xf0] sm:$0xff]
    %v3764 = vld [vmem:[#allocation2 + $0xf8] sm:$0xff]
    %v3765 = vld [vmem:[#allocation5] sm:$0xc]
    %v3766 = vld [vmem:[#allocation2 + $0x100] sm:$0xff]
    %v3767 = vld [vmem:[#allocation2 + $0x108] sm:$0xff]
    %v3768 = vld [vmem:[#allocation2 + $0x110] sm:$0xff]
    %v3769 = vld [vmem:[#allocation2 + $0x118] sm:$0xff]
    %v3770 = vld [vmem:[#allocation2 + $0x120] sm:$0xff]
    %v3771 = vld [vmem:[#allocation2 + $0x128] sm:$0xff]
    %v3772 = vld [vmem:[#allocation2 + $0x130] sm:$0xff]
    %v3773 = vld [vmem:[#allocation2 + $0x138] sm:$0xff]
    %v3774 = vld [vmem:[#allocation2 + $0x140] sm:$0xff]
    %v3775 = vld [vmem:[#allocation2 + $0x148] sm:$0xff]
    %v3776 = vld [vmem:[#allocation2 + $0x150] sm:$0xff]
    %v3777 = vld [vmem:[#allocation2 + $0x158] sm:$0xff]
    %v3778 = vld [vmem:[#allocation2 + $0x160] sm:$0xff]
    %v3779 = vld [vmem:[#allocation2 + $0x168] sm:$0xff]
    %v3780 = vld [vmem:[#allocation2 + $0x170] sm:$0xff]
    %v3781 = vld [vmem:[#allocation2 + $0x178] sm:$0xff]
    %v3782 = vld [vmem:[#allocation2 + $0x180] sm:$0xff]
    %v3783 = vld [vmem:[#allocation2 + $0x188] sm:$0xff]
    %v3784 = vld [vmem:[#allocation2 + $0x190] sm:$0xff]
    %v3785 = vld [vmem:[#allocation2 + $0x198] sm:$0xff]
    %v3786 = vld [vmem:[#allocation2 + $0x1a0] sm:$0xff]
    %v3787 = vld [vmem:[#allocation2 + $0x1a8] sm:$0xff]
    %v3788 = vld [vmem:[#allocation2 + $0x1b0] sm:$0xff]
    %v3789 = vld [vmem:[#allocation2 + $0x1b8] sm:$0xff]
    %v3790 = vld [vmem:[#allocation2 + $0x1c0] sm:$0xff]
    %v3791 = vld [vmem:[#allocation2 + $0x1c8] sm:$0xff]
    %v3792 = vld [vmem:[#allocation2 + $0x1d0] sm:$0xff]
    %v3793 = vld [vmem:[#allocation2 + $0x1d8] sm:$0xff]
    %v3794 = vld [vmem:[#allocation2 + $0x1e0] sm:$0xff]
    %v3795 = vld [vmem:[#allocation2 + $0x1e8] sm:$0xff]
    %v3796 = vld [vmem:[#allocation2 + $0x1f0] sm:$0xff]
    %v3797 = vld [vmem:[#allocation2 + $0x1f8] sm:$0xff]
    %v3799 = vunpack.c.l.b16 %v3765
    %v3800 = vpack.c.b16 %v3799, %v3799
    %v3801 = vrot.slane %v3800, 2
    %v3835 = vunpack.c.l.b16 %v3766
    %v3836 = vunpack.c.h.b16 %v3766
    %v3837 = vunpack.c.l.b16 %v3767
    %v3838 = vunpack.c.h.b16 %v3767
    %v3839 = vunpack.c.l.b16 %v3768
    %v3840 = vunpack.c.h.b16 %v3768
    %v3841 = vunpack.c.l.b16 %v3769
    %v3842 = vunpack.c.h.b16 %v3769
    %v3843 = vunpack.c.l.b16 %v3770
    %v3844 = vunpack.c.h.b16 %v3770
    %v3845 = vunpack.c.l.b16 %v3771
    %v3846 = vunpack.c.h.b16 %v3771
    %v3847 = vunpack.c.l.b16 %v3772
    %v3848 = vunpack.c.h.b16 %v3772
    %v3849 = vunpack.c.l.b16 %v3773
    %v3850 = vunpack.c.h.b16 %v3773
    %v3851 = vunpack.c.l.b16 %v3774
    %v3852 = vunpack.c.h.b16 %v3774
    %v3853 = vunpack.c.l.b16 %v3775
    %v3854 = vunpack.c.h.b16 %v3775
    %v3855 = vunpack.c.l.b16 %v3776
    %v3856 = vunpack.c.h.b16 %v3776
    %v3857 = vunpack.c.l.b16 %v3777
    %v3858 = vunpack.c.h.b16 %v3777
    %v3859 = vunpack.c.l.b16 %v3778
    %v3860 = vunpack.c.h.b16 %v3778
    %v3861 = vunpack.c.l.b16 %v3779
    %v3862 = vunpack.c.h.b16 %v3779
    %v3863 = vunpack.c.l.b16 %v3780
    %v3864 = vunpack.c.h.b16 %v3780
    %v3865 = vunpack.c.l.b16 %v3781
    %v3866 = vunpack.c.h.b16 %v3781
    %v3867 = vunpack.c.l.b16 %v3782
    %v3868 = vunpack.c.h.b16 %v3782
    %v3869 = vunpack.c.l.b16 %v3783
    %v3870 = vunpack.c.h.b16 %v3783
    %v3871 = vunpack.c.l.b16 %v3784
    %v3872 = vunpack.c.h.b16 %v3784
    %v3873 = vunpack.c.l.b16 %v3785
    %v3874 = vunpack.c.h.b16 %v3785
    %v3875 = vunpack.c.l.b16 %v3786
    %v3876 = vunpack.c.h.b16 %v3786
    %v3877 = vunpack.c.l.b16 %v3787
    %v3878 = vunpack.c.h.b16 %v3787
    %v3879 = vunpack.c.l.b16 %v3788
    %v3880 = vunpack.c.h.b16 %v3788
    %v3881 = vunpack.c.l.b16 %v3789
    %v3882 = vunpack.c.h.b16 %v3789
    %v3883 = vunpack.c.l.b16 %v3790
    %v3884 = vunpack.c.h.b16 %v3790
    %v3885 = vunpack.c.l.b16 %v3791
    %v3886 = vunpack.c.h.b16 %v3791
    %v3887 = vunpack.c.l.b16 %v3792
    %v3888 = vunpack.c.h.b16 %v3792
    %v3889 = vunpack.c.l.b16 %v3793
    %v3890 = vunpack.c.h.b16 %v3793
    %v3891 = vunpack.c.l.b16 %v3794
    %v3892 = vunpack.c.h.b16 %v3794
    %v3893 = vunpack.c.l.b16 %v3795
    %v3894 = vunpack.c.h.b16 %v3795
    %v3895 = vunpack.c.l.b16 %v3796
    %v3896 = vunpack.c.h.b16 %v3796
    %v3897 = vunpack.c.l.b16 %v3797
    %v3898 = vunpack.c.h.b16 %v3797
    %v3899 = vpack.c.b16 %v3839, %v3835
    %v3900 = vpack.c.b16 %v3840, %v3836
    %v3901 = vpack.c.b16 %v3841, %v3837
    %v3902 = vpack.c.b16 %v3842, %v3838
    %v3903 = vpack.c.b16 %v3847, %v3843
    %v3904 = vpack.c.b16 %v3848, %v3844
    %v3905 = vpack.c.b16 %v3849, %v3845
    %v3906 = vpack.c.b16 %v3850, %v3846
    %v3907 = vpack.c.b16 %v3855, %v3851
    %v3908 = vpack.c.b16 %v3856, %v3852
    %v3909 = vpack.c.b16 %v3857, %v3853
    %v3910 = vpack.c.b16 %v3858, %v3854
    %v3911 = vpack.c.b16 %v3863, %v3859
    %v3912 = vpack.c.b16 %v3864, %v3860
    %v3913 = vpack.c.b16 %v3865, %v3861
    %v3914 = vpack.c.b16 %v3866, %v3862
    %v3915 = vpack.c.b16 %v3871, %v3867
    %v3916 = vpack.c.b16 %v3872, %v3868
    %v3917 = vpack.c.b16 %v3873, %v3869
    %v3918 = vpack.c.b16 %v3874, %v3870
    %v3919 = vpack.c.b16 %v3879, %v3875
    %v3920 = vpack.c.b16 %v3880, %v3876
    %v3921 = vpack.c.b16 %v3881, %v3877
    %v3922 = vpack.c.b16 %v3882, %v3878
    %v3923 = vpack.c.b16 %v3887, %v3883
    %v3924 = vpack.c.b16 %v3888, %v3884
    %v3925 = vpack.c.b16 %v3889, %v3885
    %v3926 = vpack.c.b16 %v3890, %v3886
    %v3927 = vpack.c.b16 %v3895, %v3891
    %v3928 = vpack.c.b16 %v3896, %v3892
    %v3929 = vpack.c.b16 %v3897, %v3893
    %v3930 = vpack.c.b16 %v3898, %v3894
    %3963 = vmatprep.subr.bf16.mxu0 %v3928
    %3964 = vmatpush1.bf16.msra.mxu0 %v3927
    %3965 = vmatprep.subr.bf16.mxu0 %v3924
    %3966 = vmatpush1.bf16.msra.mxu0 %v3923
    %3967 = vmatprep.subr.bf16.mxu0 %v3920
    %3968 = vmatpush1.bf16.msra.mxu0 %v3919
    %3969 = vmatprep.subr.bf16.mxu0 %v3916
    %3970 = vmatpush1.bf16.msra.mxu0 %v3915
    %3971 = vmatprep.subr.bf16.mxu0 %v3912
    %3972 = vmatpush1.bf16.msra.mxu0 %v3911
    %3973 = vmatprep.subr.bf16.mxu0 %v3908
    %3974 = vmatpush1.bf16.msra.mxu0 %v3907
    %3975 = vmatprep.subr.bf16.mxu0 %v3904
    %3976 = vmatpush1.bf16.msra.mxu0 %v3903
    %3977 = vmatprep.subr.bf16.mxu0 %v3900
    %3978 = vmatpush1.bf16.msra.mxu0 %v3899
    %3979 = vmatprep.subr.bf16.mxu0 0
    %3980 = vmatpush2.bf16.msra.mxu0 0
    %3981 = vmatprep.subr.bf16.mxu0 0
    %3982 = vmatpush2.bf16.msra.mxu0 0
    %3983 = vmatprep.subr.bf16.mxu0 0
    %3984 = vmatpush2.bf16.msra.mxu0 0
    %3985 = vmatprep.subr.bf16.mxu0 0
    %3986 = vmatpush2.bf16.msra.mxu0 0
    %3987 = vmatprep.subr.bf16.mxu0 0
    %3988 = vmatpush2.bf16.msra.mxu0 0
    %3989 = vmatprep.subr.bf16.mxu0 0
    %3990 = vmatpush2.bf16.msra.mxu0 0
    %3991 = vmatprep.subr.bf16.mxu0 0
    %3992 = vmatpush2.bf16.msra.mxu0 0
    %3993 = vmatprep.subr.bf16.mxu0 0
    %3994 = vmatpush2.bf16.msra.mxu0 0
    %3995 = vmatprep.mubr.bf16.mxu0 0
    %3996 = vmatmul.mubr.bf16.gmra.mxu0 %v3801
    %v3997 = vpop.f32.mrf.mxu0
    %v3998 = vadd.f32 0.0, %v3997
    %v3999 = vpop.f32.mrf.mxu0
    %v4000 = vadd.f32 0.0, %v3999
    %v4001 = vpop.f32.mrf.mxu0
    %v4002 = vpop.f32.mrf.mxu0
    %4003 = vdwg.mxu0
    %4004 = vmatprep.subr.bf16.mxu0 %v3930
    %4005 = vmatpush1.bf16.msra.mxu0 %v3929
    %4006 = vmatprep.subr.bf16.mxu0 %v3926
    %4007 = vmatpush1.bf16.msra.mxu0 %v3925
    %4008 = vmatprep.subr.bf16.mxu0 %v3922
    %4009 = vmatpush1.bf16.msra.mxu0 %v3921
    %4010 = vmatprep.subr.bf16.mxu0 %v3918
    %4011 = vmatpush1.bf16.msra.mxu0 %v3917
    %4012 = vmatprep.subr.bf16.mxu0 %v3914
    %4013 = vmatpush1.bf16.msra.mxu0 %v3913
    %4014 = vmatprep.subr.bf16.mxu0 %v3910
    %4015 = vmatpush1.bf16.msra.mxu0 %v3909
    %4016 = vmatprep.subr.bf16.mxu0 %v3906
    %4017 = vmatpush1.bf16.msra.mxu0 %v3905
    %4018 = vmatprep.subr.bf16.mxu0 %v3902
    %4019 = vmatpush1.bf16.msra.mxu0 %v3901
    %4020 = vmatprep.subr.bf16.mxu0 0
    %4021 = vmatpush2.bf16.msra.mxu0 0
    %4022 = vmatprep.subr.bf16.mxu0 0
    %4023 = vmatpush2.bf16.msra.mxu0 0
    %4024 = vmatprep.subr.bf16.mxu0 0
    %4025 = vmatpush2.bf16.msra.mxu0 0
    %4026 = vmatprep.subr.bf16.mxu0 0
    %4027 = vmatpush2.bf16.msra.mxu0 0
    %4028 = vmatprep.subr.bf16.mxu0 0
    %4029 = vmatpush2.bf16.msra.mxu0 0
    %4030 = vmatprep.subr.bf16.mxu0 0
    %4031 = vmatpush2.bf16.msra.mxu0 0
    %4032 = vmatprep.subr.bf16.mxu0 0
    %4033 = vmatpush2.bf16.msra.mxu0 0
    %4034 = vmatprep.subr.bf16.mxu0 0
    %4035 = vmatpush2.bf16.msra.mxu0 0
    %4036 = vmatprep.mubr.bf16.mxu0 0
    %4037 = vmatmul.mubr.bf16.gmra.mxu0 %v3801
    %v4038 = vpop.f32.mrf.mxu0
    %v4039 = vadd.f32 0.0, %v4038
    %v4040 = vpop.f32.mrf.mxu0
    %v4041 = vadd.f32 0.0, %v4040
    %v4042 = vpop.f32.mrf.mxu0
    %v4043 = vpop.f32.mrf.mxu0
    %4044 = vdwg.mxu0
    %v4077 = vunpack.c.l.b16 %v3733
    %v4078 = vunpack.c.h.b16 %v3733
    %v4079 = vunpack.c.l.b16 %v3734
    %v4080 = vunpack.c.h.b16 %v3734
    %v4081 = vunpack.c.l.b16 %v3735
    %v4082 = vunpack.c.h.b16 %v3735
    %v4083 = vunpack.c.l.b16 %v3736
    %v4084 = vunpack.c.h.b16 %v3736
    %v4085 = vunpack.c.l.b16 %v3737
    %v4086 = vunpack.c.h.b16 %v3737
    %v4087 = vunpack.c.l.b16 %v3738
    %v4088 = vunpack.c.h.b16 %v3738
    %v4089 = vunpack.c.l.b16 %v3739
    %v4090 = vunpack.c.h.b16 %v3739
    %v4091 = vunpack.c.l.b16 %v3740
    %v4092 = vunpack.c.h.b16 %v3740
    %v4093 = vunpack.c.l.b16 %v3741
    %v4094 = vunpack.c.h.b16 %v3741
    %v4095 = vunpack.c.l.b16 %v3742
    %v4096 = vunpack.c.h.b16 %v3742
    %v4097 = vunpack.c.l.b16 %v3743
    %v4098 = vunpack.c.h.b16 %v3743
    %v4099 = vunpack.c.l.b16 %v3744
    %v4100 = vunpack.c.h.b16 %v3744
    %v4101 = vunpack.c.l.b16 %v3745
    %v4102 = vunpack.c.h.b16 %v3745
    %v4103 = vunpack.c.l.b16 %v3746
    %v4104 = vunpack.c.h.b16 %v3746
    %v4105 = vunpack.c.l.b16 %v3747
    %v4106 = vunpack.c.h.b16 %v3747
    %v4107 = vunpack.c.l.b16 %v3748
    %v4108 = vunpack.c.h.b16 %v3748
    %v4109 = vunpack.c.l.b16 %v3749
    %v4110 = vunpack.c.h.b16 %v3749
    %v4111 = vunpack.c.l.b16 %v3750
    %v4112 = vunpack.c.h.b16 %v3750
    %v4113 = vunpack.c.l.b16 %v3751
    %v4114 = vunpack.c.h.b16 %v3751
    %v4115 = vunpack.c.l.b16 %v3752
    %v4116 = vunpack.c.h.b16 %v3752
    %v4117 = vunpack.c.l.b16 %v3753
    %v4118 = vunpack.c.h.b16 %v3753
    %v4119 = vunpack.c.l.b16 %v3754
    %v4120 = vunpack.c.h.b16 %v3754
    %v4121 = vunpack.c.l.b16 %v3755
    %v4122 = vunpack.c.h.b16 %v3755
    %v4123 = vunpack.c.l.b16 %v3756
    %v4124 = vunpack.c.h.b16 %v3756
    %v4125 = vunpack.c.l.b16 %v3757
    %v4126 = vunpack.c.h.b16 %v3757
    %v4127 = vunpack.c.l.b16 %v3758
    %v4128 = vunpack.c.h.b16 %v3758
    %v4129 = vunpack.c.l.b16 %v3759
    %v4130 = vunpack.c.h.b16 %v3759
    %v4131 = vunpack.c.l.b16 %v3760
    %v4132 = vunpack.c.h.b16 %v3760
    %v4133 = vunpack.c.l.b16 %v3761
    %v4134 = vunpack.c.h.b16 %v3761
    %v4135 = vunpack.c.l.b16 %v3762
    %v4136 = vunpack.c.h.b16 %v3762
    %v4137 = vunpack.c.l.b16 %v3763
    %v4138 = vunpack.c.h.b16 %v3763
    %v4139 = vunpack.c.l.b16 %v3764
    %v4140 = vunpack.c.h.b16 %v3764
    %v4141 = vpack.c.b16 %v4081, %v4077
    %v4142 = vpack.c.b16 %v4082, %v4078
    %v4143 = vpack.c.b16 %v4083, %v4079
    %v4144 = vpack.c.b16 %v4084, %v4080
    %v4145 = vpack.c.b16 %v4089, %v4085
    %v4146 = vpack.c.b16 %v4090, %v4086
    %v4147 = vpack.c.b16 %v4091, %v4087
    %v4148 = vpack.c.b16 %v4092, %v4088
    %v4149 = vpack.c.b16 %v4097, %v4093
    %v4150 = vpack.c.b16 %v4098, %v4094
    %v4151 = vpack.c.b16 %v4099, %v4095
    %v4152 = vpack.c.b16 %v4100, %v4096
    %v4153 = vpack.c.b16 %v4105, %v4101
    %v4154 = vpack.c.b16 %v4106, %v4102
    %v4155 = vpack.c.b16 %v4107, %v4103
    %v4156 = vpack.c.b16 %v4108, %v4104
    %v4157 = vpack.c.b16 %v4113, %v4109
    %v4158 = vpack.c.b16 %v4114, %v4110
    %v4159 = vpack.c.b16 %v4115, %v4111
    %v4160 = vpack.c.b16 %v4116, %v4112
    %v4161 = vpack.c.b16 %v4121, %v4117
    %v4162 = vpack.c.b16 %v4122, %v4118
    %v4163 = vpack.c.b16 %v4123, %v4119
    %v4164 = vpack.c.b16 %v4124, %v4120
    %v4165 = vpack.c.b16 %v4129, %v4125
    %v4166 = vpack.c.b16 %v4130, %v4126
    %v4167 = vpack.c.b16 %v4131, %v4127
    %v4168 = vpack.c.b16 %v4132, %v4128
    %v4169 = vpack.c.b16 %v4137, %v4133
    %v4170 = vpack.c.b16 %v4138, %v4134
    %v4171 = vpack.c.b16 %v4139, %v4135
    %v4172 = vpack.c.b16 %v4140, %v4136
    %4205 = vmatprep.subr.bf16.mxu0 %v4170
    %4206 = vmatpush1.bf16.msra.mxu0 %v4169
    %4207 = vmatprep.subr.bf16.mxu0 %v4166
    %4208 = vmatpush1.bf16.msra.mxu0 %v4165
    %4209 = vmatprep.subr.bf16.mxu0 %v4162
    %4210 = vmatpush1.bf16.msra.mxu0 %v4161
    %4211 = vmatprep.subr.bf16.mxu0 %v4158
    %4212 = vmatpush1.bf16.msra.mxu0 %v4157
    %4213 = vmatprep.subr.bf16.mxu0 %v4154
    %4214 = vmatpush1.bf16.msra.mxu0 %v4153
    %4215 = vmatprep.subr.bf16.mxu0 %v4150
    %4216 = vmatpush1.bf16.msra.mxu0 %v4149
    %4217 = vmatprep.subr.bf16.mxu0 %v4146
    %4218 = vmatpush1.bf16.msra.mxu0 %v4145
    %4219 = vmatprep.subr.bf16.mxu0 %v4142
    %4220 = vmatpush1.bf16.msra.mxu0 %v4141
    %4221 = vmatprep.subr.bf16.mxu0 0
    %4222 = vmatpush2.bf16.msra.mxu0 0
    %4223 = vmatprep.subr.bf16.mxu0 0
    %4224 = vmatpush2.bf16.msra.mxu0 0
    %4225 = vmatprep.subr.bf16.mxu0 0
    %4226 = vmatpush2.bf16.msra.mxu0 0
    %4227 = vmatprep.subr.bf16.mxu0 0
    %4228 = vmatpush2.bf16.msra.mxu0 0
    %4229 = vmatprep.subr.bf16.mxu0 0
    %4230 = vmatpush2.bf16.msra.mxu0 0
    %4231 = vmatprep.subr.bf16.mxu0 0
    %4232 = vmatpush2.bf16.msra.mxu0 0
    %4233 = vmatprep.subr.bf16.mxu0 0
    %4234 = vmatpush2.bf16.msra.mxu0 0
    %4235 = vmatprep.subr.bf16.mxu0 0
    %4236 = vmatpush2.bf16.msra.mxu0 0
    %4237 = vmatprep.mubr.bf16.mxu0 0
    %4238 = vmatmul.mubr.bf16.gmra.mxu0 %v3732
    %v4239 = vpop.f32.mrf.mxu0
    %v4240 = vadd.f32 %v3998, %v4239
    %v4241 = vpop.f32.mrf.mxu0
    %v4242 = vadd.f32 %v4000, %v4241
    %v4243 = vpop.f32.mrf.mxu0
    %v4244 = vpop.f32.mrf.mxu0
    %4245 = vdwg.mxu0
    %4246 = vmatprep.subr.bf16.mxu0 %v4172
    %4247 = vmatpush1.bf16.msra.mxu0 %v4171
    %4248 = vmatprep.subr.bf16.mxu0 %v4168
    %4249 = vmatpush1.bf16.msra.mxu0 %v4167
    %4250 = vmatprep.subr.bf16.mxu0 %v4164
    %4251 = vmatpush1.bf16.msra.mxu0 %v4163
    %4252 = vmatprep.subr.bf16.mxu0 %v4160
    %4253 = vmatpush1.bf16.msra.mxu0 %v4159
    %4254 = vmatprep.subr.bf16.mxu0 %v4156
    %4255 = vmatpush1.bf16.msra.mxu0 %v4155
    %4256 = vmatprep.subr.bf16.mxu0 %v4152
    %4257 = vmatpush1.bf16.msra.mxu0 %v4151
    %4258 = vmatprep.subr.bf16.mxu0 %v4148
    %4259 = vmatpush1.bf16.msra.mxu0 %v4147
    %4260 = vmatprep.subr.bf16.mxu0 %v4144
    %4261 = vmatpush1.bf16.msra.mxu0 %v4143
    %4262 = vmatprep.subr.bf16.mxu0 0
    %4263 = vmatpush2.bf16.msra.mxu0 0
    %4264 = vmatprep.subr.bf16.mxu0 0
    %4265 = vmatpush2.bf16.msra.mxu0 0
    %4266 = vmatprep.subr.bf16.mxu0 0
    %4267 = vmatpush2.bf16.msra.mxu0 0
    %4268 = vmatprep.subr.bf16.mxu0 0
    %4269 = vmatpush2.bf16.msra.mxu0 0
    %4270 = vmatprep.subr.bf16.mxu0 0
    %4271 = vmatpush2.bf16.msra.mxu0 0
    %4272 = vmatprep.subr.bf16.mxu0 0
    %4273 = vmatpush2.bf16.msra.mxu0 0
    %4274 = vmatprep.subr.bf16.mxu0 0
    %4275 = vmatpush2.bf16.msra.mxu0 0
    %4276 = vmatprep.subr.bf16.mxu0 0
    %4277 = vmatpush2.bf16.msra.mxu0 0
    %4278 = vmatprep.mubr.bf16.mxu0 0
    %4279 = vmatmul.mubr.bf16.gmra.mxu0 %v3732
    %v4280 = vpop.f32.mrf.mxu0
    %v4281 = vadd.f32 %v4039, %v4280
    %v4282 = vpop.f32.mrf.mxu0
    %v4283 = vadd.f32 %v4041, %v4282
    %v4284 = vpop.f32.mrf.mxu0
    %v4285 = vpop.f32.mrf.mxu0
    %4286 = vdwg.mxu0
    %v4287 = vld [vmem:[#allocation5 + $0x4] sm:$0x3]
    %v4288 = vld [vmem:[#allocation2 + $0x200] sm:$0xff]
    %v4289 = vld [vmem:[#allocation2 + $0x208] sm:$0xff]
    %v4290 = vld [vmem:[#allocation2 + $0x210] sm:$0xff]
    %v4291 = vld [vmem:[#allocation2 + $0x218] sm:$0xff]
    %v4292 = vld [vmem:[#allocation2 + $0x220] sm:$0xff]
    %v4293 = vld [vmem:[#allocation2 + $0x228] sm:$0xff]
    %v4294 = vld [vmem:[#allocation2 + $0x230] sm:$0xff]
    %v4295 = vld [vmem:[#allocation2 + $0x238] sm:$0xff]
    %v4296 = vld [vmem:[#allocation2 + $0x240] sm:$0xff]
    %v4297 = vld [vmem:[#allocation2 + $0x248] sm:$0xff]
    %v4298 = vld [vmem:[#allocation2 + $0x250] sm:$0xff]
    %v4299 = vld [vmem:[#allocation2 + $0x258] sm:$0xff]
    %v4300 = vld [vmem:[#allocation2 + $0x260] sm:$0xff]
    %v4301 = vld [vmem:[#allocation2 + $0x268] sm:$0xff]
    %v4302 = vld [vmem:[#allocation2 + $0x270] sm:$0xff]
    %v4303 = vld [vmem:[#allocation2 + $0x278] sm:$0xff]
    %v4304 = vld [vmem:[#allocation2 + $0x280] sm:$0xff]
    %v4305 = vld [vmem:[#allocation2 + $0x288] sm:$0xff]
    %v4306 = vld [vmem:[#allocation2 + $0x290] sm:$0xff]
    %v4307 = vld [vmem:[#allocation2 + $0x298] sm:$0xff]
    %v4308 = vld [vmem:[#allocation2 + $0x2a0] sm:$0xff]
    %v4309 = vld [vmem:[#allocation2 + $0x2a8] sm:$0xff]
    %v4310 = vld [vmem:[#allocation2 + $0x2b0] sm:$0xff]
    %v4311 = vld [vmem:[#allocation2 + $0x2b8] sm:$0xff]
    %v4312 = vld [vmem:[#allocation2 + $0x2c0] sm:$0xff]
    %v4313 = vld [vmem:[#allocation2 + $0x2c8] sm:$0xff]
    %v4314 = vld [vmem:[#allocation2 + $0x2d0] sm:$0xff]
    %v4315 = vld [vmem:[#allocation2 + $0x2d8] sm:$0xff]
    %v4316 = vld [vmem:[#allocation2 + $0x2e0] sm:$0xff]
    %v4317 = vld [vmem:[#allocation2 + $0x2e8] sm:$0xff]
    %v4318 = vld [vmem:[#allocation2 + $0x2f0] sm:$0xff]
    %v4319 = vld [vmem:[#allocation2 + $0x2f8] sm:$0xff]
    %v4352 = vunpack.c.l.b16 %v4288
    %v4353 = vunpack.c.h.b16 %v4288
    %v4354 = vunpack.c.l.b16 %v4289
    %v4355 = vunpack.c.h.b16 %v4289
    %v4356 = vunpack.c.l.b16 %v4290
    %v4357 = vunpack.c.h.b16 %v4290
    %v4358 = vunpack.c.l.b16 %v4291
    %v4359 = vunpack.c.h.b16 %v4291
    %v4360 = vunpack.c.l.b16 %v4292
    %v4361 = vunpack.c.h.b16 %v4292
    %v4362 = vunpack.c.l.b16 %v4293
    %v4363 = vunpack.c.h.b16 %v4293
    %v4364 = vunpack.c.l.b16 %v4294
    %v4365 = vunpack.c.h.b16 %v4294
    %v4366 = vunpack.c.l.b16 %v4295
    %v4367 = vunpack.c.h.b16 %v4295
    %v4368 = vunpack.c.l.b16 %v4296
    %v4369 = vunpack.c.h.b16 %v4296
    %v4370 = vunpack.c.l.b16 %v4297
    %v4371 = vunpack.c.h.b16 %v4297
    %v4372 = vunpack.c.l.b16 %v4298
    %v4373 = vunpack.c.h.b16 %v4298
    %v4374 = vunpack.c.l.b16 %v4299
    %v4375 = vunpack.c.h.b16 %v4299
    %v4376 = vunpack.c.l.b16 %v4300
    %v4377 = vunpack.c.h.b16 %v4300
    %v4378 = vunpack.c.l.b16 %v4301
    %v4379 = vunpack.c.h.b16 %v4301
    %v4380 = vunpack.c.l.b16 %v4302
    %v4381 = vunpack.c.h.b16 %v4302
    %v4382 = vunpack.c.l.b16 %v4303
    %v4383 = vunpack.c.h.b16 %v4303
    %v4384 = vunpack.c.l.b16 %v4304
    %v4385 = vunpack.c.h.b16 %v4304
    %v4386 = vunpack.c.l.b16 %v4305
    %v4387 = vunpack.c.h.b16 %v4305
    %v4388 = vunpack.c.l.b16 %v4306
    %v4389 = vunpack.c.h.b16 %v4306
    %v4390 = vunpack.c.l.b16 %v4307
    %v4391 = vunpack.c.h.b16 %v4307
    %v4392 = vunpack.c.l.b16 %v4308
    %v4393 = vunpack.c.h.b16 %v4308
    %v4394 = vunpack.c.l.b16 %v4309
    %v4395 = vunpack.c.h.b16 %v4309
    %v4396 = vunpack.c.l.b16 %v4310
    %v4397 = vunpack.c.h.b16 %v4310
    %v4398 = vunpack.c.l.b16 %v4311
    %v4399 = vunpack.c.h.b16 %v4311
    %v4400 = vunpack.c.l.b16 %v4312
    %v4401 = vunpack.c.h.b16 %v4312
    %v4402 = vunpack.c.l.b16 %v4313
    %v4403 = vunpack.c.h.b16 %v4313
    %v4404 = vunpack.c.l.b16 %v4314
    %v4405 = vunpack.c.h.b16 %v4314
    %v4406 = vunpack.c.l.b16 %v4315
    %v4407 = vunpack.c.h.b16 %v4315
    %v4408 = vunpack.c.l.b16 %v4316
    %v4409 = vunpack.c.h.b16 %v4316
    %v4410 = vunpack.c.l.b16 %v4317
    %v4411 = vunpack.c.h.b16 %v4317
    %v4412 = vunpack.c.l.b16 %v4318
    %v4413 = vunpack.c.h.b16 %v4318
    %v4414 = vunpack.c.l.b16 %v4319
    %v4415 = vunpack.c.h.b16 %v4319
    %v4416 = vpack.c.b16 %v4356, %v4352
    %v4417 = vpack.c.b16 %v4357, %v4353
    %v4418 = vpack.c.b16 %v4358, %v4354
    %v4419 = vpack.c.b16 %v4359, %v4355
    %v4420 = vpack.c.b16 %v4364, %v4360
    %v4421 = vpack.c.b16 %v4365, %v4361
    %v4422 = vpack.c.b16 %v4366, %v4362
    %v4423 = vpack.c.b16 %v4367, %v4363
    %v4424 = vpack.c.b16 %v4372, %v4368
    %v4425 = vpack.c.b16 %v4373, %v4369
    %v4426 = vpack.c.b16 %v4374, %v4370
    %v4427 = vpack.c.b16 %v4375, %v4371
    %v4428 = vpack.c.b16 %v4380, %v4376
    %v4429 = vpack.c.b16 %v4381, %v4377
    %v4430 = vpack.c.b16 %v4382, %v4378
    %v4431 = vpack.c.b16 %v4383, %v4379
    %v4432 = vpack.c.b16 %v4388, %v4384
    %v4433 = vpack.c.b16 %v4389, %v4385
    %v4434 = vpack.c.b16 %v4390, %v4386
    %v4435 = vpack.c.b16 %v4391, %v4387
    %v4436 = vpack.c.b16 %v4396, %v4392
    %v4437 = vpack.c.b16 %v4397, %v4393
    %v4438 = vpack.c.b16 %v4398, %v4394
    %v4439 = vpack.c.b16 %v4399, %v4395
    %v4440 = vpack.c.b16 %v4404, %v4400
    %v4441 = vpack.c.b16 %v4405, %v4401
    %v4442 = vpack.c.b16 %v4406, %v4402
    %v4443 = vpack.c.b16 %v4407, %v4403
    %v4444 = vpack.c.b16 %v4412, %v4408
    %v4445 = vpack.c.b16 %v4413, %v4409
    %v4446 = vpack.c.b16 %v4414, %v4410
    %v4447 = vpack.c.b16 %v4415, %v4411
    %4480 = vmatprep.subr.bf16.mxu0 %v4445
    %4481 = vmatpush1.bf16.msra.mxu0 %v4444
    %4482 = vmatprep.subr.bf16.mxu0 %v4441
    %4483 = vmatpush1.bf16.msra.mxu0 %v4440
    %4484 = vmatprep.subr.bf16.mxu0 %v4437
    %4485 = vmatpush1.bf16.msra.mxu0 %v4436
    %4486 = vmatprep.subr.bf16.mxu0 %v4433
    %4487 = vmatpush1.bf16.msra.mxu0 %v4432
    %4488 = vmatprep.subr.bf16.mxu0 %v4429
    %4489 = vmatpush1.bf16.msra.mxu0 %v4428
    %4490 = vmatprep.subr.bf16.mxu0 %v4425
    %4491 = vmatpush1.bf16.msra.mxu0 %v4424
    %4492 = vmatprep.subr.bf16.mxu0 %v4421
    %4493 = vmatpush1.bf16.msra.mxu0 %v4420
    %4494 = vmatprep.subr.bf16.mxu0 %v4417
    %4495 = vmatpush1.bf16.msra.mxu0 %v4416
    %4496 = vmatprep.subr.bf16.mxu0 0
    %4497 = vmatpush2.bf16.msra.mxu0 0
    %4498 = vmatprep.subr.bf16.mxu0 0
    %4499 = vmatpush2.bf16.msra.mxu0 0
    %4500 = vmatprep.subr.bf16.mxu0 0
    %4501 = vmatpush2.bf16.msra.mxu0 0
    %4502 = vmatprep.subr.bf16.mxu0 0
    %4503 = vmatpush2.bf16.msra.mxu0 0
    %4504 = vmatprep.subr.bf16.mxu0 0
    %4505 = vmatpush2.bf16.msra.mxu0 0
    %4506 = vmatprep.subr.bf16.mxu0 0
    %4507 = vmatpush2.bf16.msra.mxu0 0
    %4508 = vmatprep.subr.bf16.mxu0 0
    %4509 = vmatpush2.bf16.msra.mxu0 0
    %4510 = vmatprep.subr.bf16.mxu0 0
    %4511 = vmatpush2.bf16.msra.mxu0 0
    %4512 = vmatprep.mubr.bf16.mxu0 0
    %4513 = vmatmul.mubr.bf16.gmra.mxu0 %v4287
    %v4514 = vpop.f32.mrf.mxu0
    %v4515 = vadd.f32 0.0, %v4514
    %v4516 = vpop.f32.mrf.mxu0
    %v4517 = vadd.f32 0.0, %v4516
    %v4518 = vpop.f32.mrf.mxu0
    %v4519 = vpop.f32.mrf.mxu0
    %4520 = vdwg.mxu0
    %4521 = vmatprep.subr.bf16.mxu0 %v4447
    %4522 = vmatpush1.bf16.msra.mxu0 %v4446
    %4523 = vmatprep.subr.bf16.mxu0 %v4443
    %4524 = vmatpush1.bf16.msra.mxu0 %v4442
    %4525 = vmatprep.subr.bf16.mxu0 %v4439
    %4526 = vmatpush1.bf16.msra.mxu0 %v4438
    %4527 = vmatprep.subr.bf16.mxu0 %v4435
    %4528 = vmatpush1.bf16.msra.mxu0 %v4434
    %4529 = vmatprep.subr.bf16.mxu0 %v4431
    %4530 = vmatpush1.bf16.msra.mxu0 %v4430
    %4531 = vmatprep.subr.bf16.mxu0 %v4427
    %4532 = vmatpush1.bf16.msra.mxu0 %v4426
    %4533 = vmatprep.subr.bf16.mxu0 %v4423
    %4534 = vmatpush1.bf16.msra.mxu0 %v4422
    %4535 = vmatprep.subr.bf16.mxu0 %v4419
    %4536 = vmatpush1.bf16.msra.mxu0 %v4418
    %4537 = vmatprep.subr.bf16.mxu0 0
    %4538 = vmatpush2.bf16.msra.mxu0 0
    %4539 = vmatprep.subr.bf16.mxu0 0
    %4540 = vmatpush2.bf16.msra.mxu0 0
    %4541 = vmatprep.subr.bf16.mxu0 0
    %4542 = vmatpush2.bf16.msra.mxu0 0
    %4543 = vmatprep.subr.bf16.mxu0 0
    %4544 = vmatpush2.bf16.msra.mxu0 0
    %4545 = vmatprep.subr.bf16.mxu0 0
    %4546 = vmatpush2.bf16.msra.mxu0 0
    %4547 = vmatprep.subr.bf16.mxu0 0
    %4548 = vmatpush2.bf16.msra.mxu0 0
    %4549 = vmatprep.subr.bf16.mxu0 0
    %4550 = vmatpush2.bf16.msra.mxu0 0
    %4551 = vmatprep.subr.bf16.mxu0 0
    %4552 = vmatpush2.bf16.msra.mxu0 0
    %4553 = vmatprep.mubr.bf16.mxu0 0
    %4554 = vmatmul.mubr.bf16.gmra.mxu0 %v4287
    %v4555 = vpop.f32.mrf.mxu0
    %v4556 = vadd.f32 0.0, %v4555
    %v4557 = vpop.f32.mrf.mxu0
    %v4558 = vadd.f32 0.0, %v4557
    %v4559 = vpop.f32.mrf.mxu0
    %v4560 = vpop.f32.mrf.mxu0
    %4561 = vdwg.mxu0
    %v4562 = vadd.f32 %v4240, %v4515
    %v4563 = vadd.f32 %v4242, %v4517
    %v4564 = vadd.f32 %v4281, %v4556
    %v4565 = vadd.f32 %v4283, %v4558
    %v4566 = vld [vmem:[#allocation5 + $0x4] sm:$0xc]
    %v4567 = vld [vmem:[#allocation2 + $0x300] sm:$0xff]
    %v4568 = vld [vmem:[#allocation2 + $0x308] sm:$0xff]
    %v4569 = vld [vmem:[#allocation2 + $0x310] sm:$0xff]
    %v4570 = vld [vmem:[#allocation2 + $0x318] sm:$0xff]
    %v4571 = vld [vmem:[#allocation2 + $0x320] sm:$0xff]
    %v4572 = vld [vmem:[#allocation2 + $0x328] sm:$0xff]
    %v4573 = vld [vmem:[#allocation2 + $0x330] sm:$0xff]
    %v4574 = vld [vmem:[#allocation2 + $0x338] sm:$0xff]
    %v4575 = vld [vmem:[#allocation2 + $0x340] sm:$0xff]
    %v4576 = vld [vmem:[#allocation2 + $0x348] sm:$0xff]
    %v4577 = vld [vmem:[#allocation2 + $0x350] sm:$0xff]
    %v4578 = vld [vmem:[#allocation2 + $0x358] sm:$0xff]
    %v4579 = vld [vmem:[#allocation2 + $0x360] sm:$0xff]
    %v4580 = vld [vmem:[#allocation2 + $0x368] sm:$0xff]
    %v4581 = vld [vmem:[#allocation2 + $0x370] sm:$0xff]
    %v4582 = vld [vmem:[#allocation2 + $0x378] sm:$0xff]
    %v4583 = vld [vmem:[#allocation2 + $0x380] sm:$0xff]
    %v4584 = vld [vmem:[#allocation2 + $0x388] sm:$0xff]
    %v4585 = vld [vmem:[#allocation2 + $0x390] sm:$0xff]
    %v4586 = vld [vmem:[#allocation2 + $0x398] sm:$0xff]
    %v4587 = vld [vmem:[#allocation2 + $0x3a0] sm:$0xff]
    %v4588 = vld [vmem:[#allocation2 + $0x3a8] sm:$0xff]
    %v4589 = vld [vmem:[#allocation2 + $0x3b0] sm:$0xff]
    %v4590 = vld [vmem:[#allocation2 + $0x3b8] sm:$0xff]
    %v4591 = vld [vmem:[#allocation2 + $0x3c0] sm:$0xff]
    %v4592 = vld [vmem:[#allocation2 + $0x3c8] sm:$0xff]
    %v4593 = vld [vmem:[#allocation2 + $0x3d0] sm:$0xff]
    %v4594 = vld [vmem:[#allocation2 + $0x3d8] sm:$0xff]
    %v4595 = vld [vmem:[#allocation2 + $0x3e0] sm:$0xff]
    %v4596 = vld [vmem:[#allocation2 + $0x3e8] sm:$0xff]
    %v4597 = vld [vmem:[#allocation2 + $0x3f0] sm:$0xff]
    %v4598 = vld [vmem:[#allocation2 + $0x3f8] sm:$0xff]
    %v4600 = vunpack.c.l.b16 %v4566
    %v4601 = vpack.c.b16 %v4600, %v4600
    %v4602 = vrot.slane %v4601, 2
    %v4636 = vunpack.c.l.b16 %v4567
    %v4637 = vunpack.c.h.b16 %v4567
    %v4638 = vunpack.c.l.b16 %v4568
    %v4639 = vunpack.c.h.b16 %v4568
    %v4640 = vunpack.c.l.b16 %v4569
    %v4641 = vunpack.c.h.b16 %v4569
    %v4642 = vunpack.c.l.b16 %v4570
    %v4643 = vunpack.c.h.b16 %v4570
    %v4644 = vunpack.c.l.b16 %v4571
    %v4645 = vunpack.c.h.b16 %v4571
    %v4646 = vunpack.c.l.b16 %v4572
    %v4647 = vunpack.c.h.b16 %v4572
    %v4648 = vunpack.c.l.b16 %v4573
    %v4649 = vunpack.c.h.b16 %v4573
    %v4650 = vunpack.c.l.b16 %v4574
    %v4651 = vunpack.c.h.b16 %v4574
    %v4652 = vunpack.c.l.b16 %v4575
    %v4653 = vunpack.c.h.b16 %v4575
    %v4654 = vunpack.c.l.b16 %v4576
    %v4655 = vunpack.c.h.b16 %v4576
    %v4656 = vunpack.c.l.b16 %v4577
    %v4657 = vunpack.c.h.b16 %v4577
    %v4658 = vunpack.c.l.b16 %v4578
    %v4659 = vunpack.c.h.b16 %v4578
    %v4660 = vunpack.c.l.b16 %v4579
    %v4661 = vunpack.c.h.b16 %v4579
    %v4662 = vunpack.c.l.b16 %v4580
    %v4663 = vunpack.c.h.b16 %v4580
    %v4664 = vunpack.c.l.b16 %v4581
    %v4665 = vunpack.c.h.b16 %v4581
    %v4666 = vunpack.c.l.b16 %v4582
    %v4667 = vunpack.c.h.b16 %v4582
    %v4668 = vunpack.c.l.b16 %v4583
    %v4669 = vunpack.c.h.b16 %v4583
    %v4670 = vunpack.c.l.b16 %v4584
    %v4671 = vunpack.c.h.b16 %v4584
    %v4672 = vunpack.c.l.b16 %v4585
    %v4673 = vunpack.c.h.b16 %v4585
    %v4674 = vunpack.c.l.b16 %v4586
    %v4675 = vunpack.c.h.b16 %v4586
    %v4676 = vunpack.c.l.b16 %v4587
    %v4677 = vunpack.c.h.b16 %v4587
    %v4678 = vunpack.c.l.b16 %v4588
    %v4679 = vunpack.c.h.b16 %v4588
    %v4680 = vunpack.c.l.b16 %v4589
    %v4681 = vunpack.c.h.b16 %v4589
    %v4682 = vunpack.c.l.b16 %v4590
    %v4683 = vunpack.c.h.b16 %v4590
    %v4684 = vunpack.c.l.b16 %v4591
    %v4685 = vunpack.c.h.b16 %v4591
    %v4686 = vunpack.c.l.b16 %v4592
    %v4687 = vunpack.c.h.b16 %v4592
    %v4688 = vunpack.c.l.b16 %v4593
    %v4689 = vunpack.c.h.b16 %v4593
    %v4690 = vunpack.c.l.b16 %v4594
    %v4691 = vunpack.c.h.b16 %v4594
    %v4692 = vunpack.c.l.b16 %v4595
    %v4693 = vunpack.c.h.b16 %v4595
    %v4694 = vunpack.c.l.b16 %v4596
    %v4695 = vunpack.c.h.b16 %v4596
    %v4696 = vunpack.c.l.b16 %v4597
    %v4697 = vunpack.c.h.b16 %v4597
    %v4698 = vunpack.c.l.b16 %v4598
    %v4699 = vunpack.c.h.b16 %v4598
    %v4700 = vpack.c.b16 %v4640, %v4636
    %v4701 = vpack.c.b16 %v4641, %v4637
    %v4702 = vpack.c.b16 %v4642, %v4638
    %v4703 = vpack.c.b16 %v4643, %v4639
    %v4704 = vpack.c.b16 %v4648, %v4644
    %v4705 = vpack.c.b16 %v4649, %v4645
    %v4706 = vpack.c.b16 %v4650, %v4646
    %v4707 = vpack.c.b16 %v4651, %v4647
    %v4708 = vpack.c.b16 %v4656, %v4652
    %v4709 = vpack.c.b16 %v4657, %v4653
    %v4710 = vpack.c.b16 %v4658, %v4654
    %v4711 = vpack.c.b16 %v4659, %v4655
    %v4712 = vpack.c.b16 %v4664, %v4660
    %v4713 = vpack.c.b16 %v4665, %v4661
    %v4714 = vpack.c.b16 %v4666, %v4662
    %v4715 = vpack.c.b16 %v4667, %v4663
    %v4716 = vpack.c.b16 %v4672, %v4668
    %v4717 = vpack.c.b16 %v4673, %v4669
    %v4718 = vpack.c.b16 %v4674, %v4670
    %v4719 = vpack.c.b16 %v4675, %v4671
    %v4720 = vpack.c.b16 %v4680, %v4676
    %v4721 = vpack.c.b16 %v4681, %v4677
    %v4722 = vpack.c.b16 %v4682, %v4678
    %v4723 = vpack.c.b16 %v4683, %v4679
    %v4724 = vpack.c.b16 %v4688, %v4684
    %v4725 = vpack.c.b16 %v4689, %v4685
    %v4726 = vpack.c.b16 %v4690, %v4686
    %v4727 = vpack.c.b16 %v4691, %v4687
    %v4728 = vpack.c.b16 %v4696, %v4692
    %v4729 = vpack.c.b16 %v4697, %v4693
    %v4730 = vpack.c.b16 %v4698, %v4694
    %v4731 = vpack.c.b16 %v4699, %v4695
    %4764 = vmatprep.subr.bf16.mxu0 %v4729
    %4765 = vmatpush1.bf16.msra.mxu0 %v4728
    %4766 = vmatprep.subr.bf16.mxu0 %v4725
    %4767 = vmatpush1.bf16.msra.mxu0 %v4724
    %4768 = vmatprep.subr.bf16.mxu0 %v4721
    %4769 = vmatpush1.bf16.msra.mxu0 %v4720
    %4770 = vmatprep.subr.bf16.mxu0 %v4717
    %4771 = vmatpush1.bf16.msra.mxu0 %v4716
    %4772 = vmatprep.subr.bf16.mxu0 %v4713
    %4773 = vmatpush1.bf16.msra.mxu0 %v4712
    %4774 = vmatprep.subr.bf16.mxu0 %v4709
    %4775 = vmatpush1.bf16.msra.mxu0 %v4708
    %4776 = vmatprep.subr.bf16.mxu0 %v4705
    %4777 = vmatpush1.bf16.msra.mxu0 %v4704
    %4778 = vmatprep.subr.bf16.mxu0 %v4701
    %4779 = vmatpush1.bf16.msra.mxu0 %v4700
    %4780 = vmatprep.subr.bf16.mxu0 0
    %4781 = vmatpush2.bf16.msra.mxu0 0
    %4782 = vmatprep.subr.bf16.mxu0 0
    %4783 = vmatpush2.bf16.msra.mxu0 0
    %4784 = vmatprep.subr.bf16.mxu0 0
    %4785 = vmatpush2.bf16.msra.mxu0 0
    %4786 = vmatprep.subr.bf16.mxu0 0
    %4787 = vmatpush2.bf16.msra.mxu0 0
    %4788 = vmatprep.subr.bf16.mxu0 0
    %4789 = vmatpush2.bf16.msra.mxu0 0
    %4790 = vmatprep.subr.bf16.mxu0 0
    %4791 = vmatpush2.bf16.msra.mxu0 0
    %4792 = vmatprep.subr.bf16.mxu0 0
    %4793 = vmatpush2.bf16.msra.mxu0 0
    %4794 = vmatprep.subr.bf16.mxu0 0
    %4795 = vmatpush2.bf16.msra.mxu0 0
    %4796 = vmatprep.mubr.bf16.mxu0 0
    %4797 = vmatmul.mubr.bf16.gmra.mxu0 %v4602
    %v4798 = vpop.f32.mrf.mxu0
    %v4799 = vadd.f32 0.0, %v4798
    %v4800 = vpop.f32.mrf.mxu0
    %v4801 = vadd.f32 0.0, %v4800
    %v4802 = vpop.f32.mrf.mxu0
    %v4803 = vpop.f32.mrf.mxu0
    %4804 = vdwg.mxu0
    %4805 = vmatprep.subr.bf16.mxu0 %v4731
    %4806 = vmatpush1.bf16.msra.mxu0 %v4730
    %4807 = vmatprep.subr.bf16.mxu0 %v4727
    %4808 = vmatpush1.bf16.msra.mxu0 %v4726
    %4809 = vmatprep.subr.bf16.mxu0 %v4723
    %4810 = vmatpush1.bf16.msra.mxu0 %v4722
    %4811 = vmatprep.subr.bf16.mxu0 %v4719
    %4812 = vmatpush1.bf16.msra.mxu0 %v4718
    %4813 = vmatprep.subr.bf16.mxu0 %v4715
    %4814 = vmatpush1.bf16.msra.mxu0 %v4714
    %4815 = vmatprep.subr.bf16.mxu0 %v4711
    %4816 = vmatpush1.bf16.msra.mxu0 %v4710
    %4817 = vmatprep.subr.bf16.mxu0 %v4707
    %4818 = vmatpush1.bf16.msra.mxu0 %v4706
    %4819 = vmatprep.subr.bf16.mxu0 %v4703
    %4820 = vmatpush1.bf16.msra.mxu0 %v4702
    %4821 = vmatprep.subr.bf16.mxu0 0
    %4822 = vmatpush2.bf16.msra.mxu0 0
    %4823 = vmatprep.subr.bf16.mxu0 0
    %4824 = vmatpush2.bf16.msra.mxu0 0
    %4825 = vmatprep.subr.bf16.mxu0 0
    %4826 = vmatpush2.bf16.msra.mxu0 0
    %4827 = vmatprep.subr.bf16.mxu0 0
    %4828 = vmatpush2.bf16.msra.mxu0 0
    %4829 = vmatprep.subr.bf16.mxu0 0
    %4830 = vmatpush2.bf16.msra.mxu0 0
    %4831 = vmatprep.subr.bf16.mxu0 0
    %4832 = vmatpush2.bf16.msra.mxu0 0
    %4833 = vmatprep.subr.bf16.mxu0 0
    %4834 = vmatpush2.bf16.msra.mxu0 0
    %4835 = vmatprep.subr.bf16.mxu0 0
    %4836 = vmatpush2.bf16.msra.mxu0 0
    %4837 = vmatprep.mubr.bf16.mxu0 0
    %4838 = vmatmul.mubr.bf16.gmra.mxu0 %v4602
    %v4839 = vpop.f32.mrf.mxu0
    %v4840 = vadd.f32 0.0, %v4839
    %v4841 = vpop.f32.mrf.mxu0
    %v4842 = vadd.f32 0.0, %v4841
    %v4843 = vpop.f32.mrf.mxu0
    %v4844 = vpop.f32.mrf.mxu0
    %4845 = vdwg.mxu0
    %v4846 = vadd.f32 %v4562, %v4799
    %v4847 = vadd.f32 %v4563, %v4801
    %v4848 = vadd.f32 %v4564, %v4840
    %v4849 = vadd.f32 %v4565, %v4842
    %v4850 = vld [vmem:[#allocation5 + $0x8] sm:$0x3]
    %v4851 = vld [vmem:[#allocation2 + $0x400] sm:$0xff]
    %v4852 = vld [vmem:[#allocation2 + $0x408] sm:$0xff]
    %v4853 = vld [vmem:[#allocation2 + $0x410] sm:$0xff]
    %v4854 = vld [vmem:[#allocation2 + $0x418] sm:$0xff]
    %v4855 = vld [vmem:[#allocation2 + $0x420] sm:$0xff]
    %v4856 = vld [vmem:[#allocation2 + $0x428] sm:$0xff]
    %v4857 = vld [vmem:[#allocation2 + $0x430] sm:$0xff]
    %v4858 = vld [vmem:[#allocation2 + $0x438] sm:$0xff]
    %v4859 = vld [vmem:[#allocation2 + $0x440] sm:$0xff]
    %v4860 = vld [vmem:[#allocation2 + $0x448] sm:$0xff]
    %v4861 = vld [vmem:[#allocation2 + $0x450] sm:$0xff]
    %v4862 = vld [vmem:[#allocation2 + $0x458] sm:$0xff]
    %v4863 = vld [vmem:[#allocation2 + $0x460] sm:$0xff]
    %v4864 = vld [vmem:[#allocation2 + $0x468] sm:$0xff]
    %v4865 = vld [vmem:[#allocation2 + $0x470] sm:$0xff]
    %v4866 = vld [vmem:[#allocation2 + $0x478] sm:$0xff]
    %v4867 = vld [vmem:[#allocation2 + $0x480] sm:$0xff]
    %v4868 = vld [vmem:[#allocation2 + $0x488] sm:$0xff]
    %v4869 = vld [vmem:[#allocation2 + $0x490] sm:$0xff]
    %v4870 = vld [vmem:[#allocation2 + $0x498] sm:$0xff]
    %v4871 = vld [vmem:[#allocation2 + $0x4a0] sm:$0xff]
    %v4872 = vld [vmem:[#allocation2 + $0x4a8] sm:$0xff]
    %v4873 = vld [vmem:[#allocation2 + $0x4b0] sm:$0xff]
    %v4874 = vld [vmem:[#allocation2 + $0x4b8] sm:$0xff]
    %v4875 = vld [vmem:[#allocation2 + $0x4c0] sm:$0xff]
    %v4876 = vld [vmem:[#allocation2 + $0x4c8] sm:$0xff]
    %v4877 = vld [vmem:[#allocation2 + $0x4d0] sm:$0xff]
    %v4878 = vld [vmem:[#allocation2 + $0x4d8] sm:$0xff]
    %v4879 = vld [vmem:[#allocation2 + $0x4e0] sm:$0xff]
    %v4880 = vld [vmem:[#allocation2 + $0x4e8] sm:$0xff]
    %v4881 = vld [vmem:[#allocation2 + $0x4f0] sm:$0xff]
    %v4882 = vld [vmem:[#allocation2 + $0x4f8] sm:$0xff]
    %v4915 = vunpack.c.l.b16 %v4851
    %v4916 = vunpack.c.h.b16 %v4851
    %v4917 = vunpack.c.l.b16 %v4852
    %v4918 = vunpack.c.h.b16 %v4852
    %v4919 = vunpack.c.l.b16 %v4853
    %v4920 = vunpack.c.h.b16 %v4853
    %v4921 = vunpack.c.l.b16 %v4854
    %v4922 = vunpack.c.h.b16 %v4854
    %v4923 = vunpack.c.l.b16 %v4855
    %v4924 = vunpack.c.h.b16 %v4855
    %v4925 = vunpack.c.l.b16 %v4856
    %v4926 = vunpack.c.h.b16 %v4856
    %v4927 = vunpack.c.l.b16 %v4857
    %v4928 = vunpack.c.h.b16 %v4857
    %v4929 = vunpack.c.l.b16 %v4858
    %v4930 = vunpack.c.h.b16 %v4858
    %v4931 = vunpack.c.l.b16 %v4859
    %v4932 = vunpack.c.h.b16 %v4859
    %v4933 = vunpack.c.l.b16 %v4860
    %v4934 = vunpack.c.h.b16 %v4860
    %v4935 = vunpack.c.l.b16 %v4861
    %v4936 = vunpack.c.h.b16 %v4861
    %v4937 = vunpack.c.l.b16 %v4862
    %v4938 = vunpack.c.h.b16 %v4862
    %v4939 = vunpack.c.l.b16 %v4863
    %v4940 = vunpack.c.h.b16 %v4863
    %v4941 = vunpack.c.l.b16 %v4864
    %v4942 = vunpack.c.h.b16 %v4864
    %v4943 = vunpack.c.l.b16 %v4865
    %v4944 = vunpack.c.h.b16 %v4865
    %v4945 = vunpack.c.l.b16 %v4866
    %v4946 = vunpack.c.h.b16 %v4866
    %v4947 = vunpack.c.l.b16 %v4867
    %v4948 = vunpack.c.h.b16 %v4867
    %v4949 = vunpack.c.l.b16 %v4868
    %v4950 = vunpack.c.h.b16 %v4868
    %v4951 = vunpack.c.l.b16 %v4869
    %v4952 = vunpack.c.h.b16 %v4869
    %v4953 = vunpack.c.l.b16 %v4870
    %v4954 = vunpack.c.h.b16 %v4870
    %v4955 = vunpack.c.l.b16 %v4871
    %v4956 = vunpack.c.h.b16 %v4871
    %v4957 = vunpack.c.l.b16 %v4872
    %v4958 = vunpack.c.h.b16 %v4872
    %v4959 = vunpack.c.l.b16 %v4873
    %v4960 = vunpack.c.h.b16 %v4873
    %v4961 = vunpack.c.l.b16 %v4874
    %v4962 = vunpack.c.h.b16 %v4874
    %v4963 = vunpack.c.l.b16 %v4875
    %v4964 = vunpack.c.h.b16 %v4875
    %v4965 = vunpack.c.l.b16 %v4876
    %v4966 = vunpack.c.h.b16 %v4876
    %v4967 = vunpack.c.l.b16 %v4877
    %v4968 = vunpack.c.h.b16 %v4877
    %v4969 = vunpack.c.l.b16 %v4878
    %v4970 = vunpack.c.h.b16 %v4878
    %v4971 = vunpack.c.l.b16 %v4879
    %v4972 = vunpack.c.h.b16 %v4879
    %v4973 = vunpack.c.l.b16 %v4880
    %v4974 = vunpack.c.h.b16 %v4880
    %v4975 = vunpack.c.l.b16 %v4881
    %v4976 = vunpack.c.h.b16 %v4881
    %v4977 = vunpack.c.l.b16 %v4882
    %v4978 = vunpack.c.h.b16 %v4882
    %v4979 = vpack.c.b16 %v4919, %v4915
    %v4980 = vpack.c.b16 %v4920, %v4916
    %v4981 = vpack.c.b16 %v4921, %v4917
    %v4982 = vpack.c.b16 %v4922, %v4918
    %v4983 = vpack.c.b16 %v4927, %v4923
    %v4984 = vpack.c.b16 %v4928, %v4924
    %v4985 = vpack.c.b16 %v4929, %v4925
    %v4986 = vpack.c.b16 %v4930, %v4926
    %v4987 = vpack.c.b16 %v4935, %v4931
    %v4988 = vpack.c.b16 %v4936, %v4932
    %v4989 = vpack.c.b16 %v4937, %v4933
    %v4990 = vpack.c.b16 %v4938, %v4934
    %v4991 = vpack.c.b16 %v4943, %v4939
    %v4992 = vpack.c.b16 %v4944, %v4940
    %v4993 = vpack.c.b16 %v4945, %v4941
    %v4994 = vpack.c.b16 %v4946, %v4942
    %v4995 = vpack.c.b16 %v4951, %v4947
    %v4996 = vpack.c.b16 %v4952, %v4948
    %v4997 = vpack.c.b16 %v4953, %v4949
    %v4998 = vpack.c.b16 %v4954, %v4950
    %v4999 = vpack.c.b16 %v4959, %v4955
    %v5000 = vpack.c.b16 %v4960, %v4956
    %v5001 = vpack.c.b16 %v4961, %v4957
    %v5002 = vpack.c.b16 %v4962, %v4958
    %v5003 = vpack.c.b16 %v4967, %v4963
    %v5004 = vpack.c.b16 %v4968, %v4964
    %v5005 = vpack.c.b16 %v4969, %v4965
    %v5006 = vpack.c.b16 %v4970, %v4966
    %v5007 = vpack.c.b16 %v4975, %v4971
    %v5008 = vpack.c.b16 %v4976, %v4972
    %v5009 = vpack.c.b16 %v4977, %v4973
    %v5010 = vpack.c.b16 %v4978, %v4974
    %5043 = vmatprep.subr.bf16.mxu0 %v5008
    %5044 = vmatpush1.bf16.msra.mxu0 %v5007
    %5045 = vmatprep.subr.bf16.mxu0 %v5004
    %5046 = vmatpush1.bf16.msra.mxu0 %v5003
    %5047 = vmatprep.subr.bf16.mxu0 %v5000
    %5048 = vmatpush1.bf16.msra.mxu0 %v4999
    %5049 = vmatprep.subr.bf16.mxu0 %v4996
    %5050 = vmatpush1.bf16.msra.mxu0 %v4995
    %5051 = vmatprep.subr.bf16.mxu0 %v4992
    %5052 = vmatpush1.bf16.msra.mxu0 %v4991
    %5053 = vmatprep.subr.bf16.mxu0 %v4988
    %5054 = vmatpush1.bf16.msra.mxu0 %v4987
    %5055 = vmatprep.subr.bf16.mxu0 %v4984
    %5056 = vmatpush1.bf16.msra.mxu0 %v4983
    %5057 = vmatprep.subr.bf16.mxu0 %v4980
    %5058 = vmatpush1.bf16.msra.mxu0 %v4979
    %5059 = vmatprep.subr.bf16.mxu0 0
    %5060 = vmatpush2.bf16.msra.mxu0 0
    %5061 = vmatprep.subr.bf16.mxu0 0
    %5062 = vmatpush2.bf16.msra.mxu0 0
    %5063 = vmatprep.subr.bf16.mxu0 0
    %5064 = vmatpush2.bf16.msra.mxu0 0
    %5065 = vmatprep.subr.bf16.mxu0 0
    %5066 = vmatpush2.bf16.msra.mxu0 0
    %5067 = vmatprep.subr.bf16.mxu0 0
    %5068 = vmatpush2.bf16.msra.mxu0 0
    %5069 = vmatprep.subr.bf16.mxu0 0
    %5070 = vmatpush2.bf16.msra.mxu0 0
    %5071 = vmatprep.subr.bf16.mxu0 0
    %5072 = vmatpush2.bf16.msra.mxu0 0
    %5073 = vmatprep.subr.bf16.mxu0 0
    %5074 = vmatpush2.bf16.msra.mxu0 0
    %5075 = vmatprep.mubr.bf16.mxu0 0
    %5076 = vmatmul.mubr.bf16.gmra.mxu0 %v4850
    %v5077 = vpop.f32.mrf.mxu0
    %v5078 = vadd.f32 0.0, %v5077
    %v5079 = vpop.f32.mrf.mxu0
    %v5080 = vadd.f32 0.0, %v5079
    %v5081 = vpop.f32.mrf.mxu0
    %v5082 = vpop.f32.mrf.mxu0
    %5083 = vdwg.mxu0
    %5084 = vmatprep.subr.bf16.mxu0 %v5010
    %5085 = vmatpush1.bf16.msra.mxu0 %v5009
    %5086 = vmatprep.subr.bf16.mxu0 %v5006
    %5087 = vmatpush1.bf16.msra.mxu0 %v5005
    %5088 = vmatprep.subr.bf16.mxu0 %v5002
    %5089 = vmatpush1.bf16.msra.mxu0 %v5001
    %5090 = vmatprep.subr.bf16.mxu0 %v4998
    %5091 = vmatpush1.bf16.msra.mxu0 %v4997
    %5092 = vmatprep.subr.bf16.mxu0 %v4994
    %5093 = vmatpush1.bf16.msra.mxu0 %v4993
    %5094 = vmatprep.subr.bf16.mxu0 %v4990
    %5095 = vmatpush1.bf16.msra.mxu0 %v4989
    %5096 = vmatprep.subr.bf16.mxu0 %v4986
    %5097 = vmatpush1.bf16.msra.mxu0 %v4985
    %5098 = vmatprep.subr.bf16.mxu0 %v4982
    %5099 = vmatpush1.bf16.msra.mxu0 %v4981
    %5100 = vmatprep.subr.bf16.mxu0 0
    %5101 = vmatpush2.bf16.msra.mxu0 0
    %5102 = vmatprep.subr.bf16.mxu0 0
    %5103 = vmatpush2.bf16.msra.mxu0 0
    %5104 = vmatprep.subr.bf16.mxu0 0
    %5105 = vmatpush2.bf16.msra.mxu0 0
    %5106 = vmatprep.subr.bf16.mxu0 0
    %5107 = vmatpush2.bf16.msra.mxu0 0
    %5108 = vmatprep.subr.bf16.mxu0 0
    %5109 = vmatpush2.bf16.msra.mxu0 0
    %5110 = vmatprep.subr.bf16.mxu0 0
    %5111 = vmatpush2.bf16.msra.mxu0 0
    %5112 = vmatprep.subr.bf16.mxu0 0
    %5113 = vmatpush2.bf16.msra.mxu0 0
    %5114 = vmatprep.subr.bf16.mxu0 0
    %5115 = vmatpush2.bf16.msra.mxu0 0
    %5116 = vmatprep.mubr.bf16.mxu0 0
    %5117 = vmatmul.mubr.bf16.gmra.mxu0 %v4850
    %v5118 = vpop.f32.mrf.mxu0
    %v5119 = vadd.f32 0.0, %v5118
    %v5120 = vpop.f32.mrf.mxu0
    %v5121 = vadd.f32 0.0, %v5120
    %v5122 = vpop.f32.mrf.mxu0
    %v5123 = vpop.f32.mrf.mxu0
    %5124 = vdwg.mxu0
    %v5125 = vadd.f32 %v4846, %v5078
    %v5126 = vadd.f32 %v4847, %v5080
    %v5127 = vadd.f32 %v4848, %v5119
    %v5128 = vadd.f32 %v4849, %v5121
    %v5129 = vld [vmem:[#allocation5 + $0x8] sm:$0xc]
    %v5130 = vld [vmem:[#allocation2 + $0x500] sm:$0xff]
    %v5131 = vld [vmem:[#allocation2 + $0x508] sm:$0xff]
    %v5132 = vld [vmem:[#allocation2 + $0x510] sm:$0xff]
    %v5133 = vld [vmem:[#allocation2 + $0x518] sm:$0xff]
    %v5134 = vld [vmem:[#allocation2 + $0x520] sm:$0xff]
    %v5135 = vld [vmem:[#allocation2 + $0x528] sm:$0xff]
    %v5136 = vld [vmem:[#allocation2 + $0x530] sm:$0xff]
    %v5137 = vld [vmem:[#allocation2 + $0x538] sm:$0xff]
    %v5138 = vld [vmem:[#allocation2 + $0x540] sm:$0xff]
    %v5139 = vld [vmem:[#allocation2 + $0x548] sm:$0xff]
    %v5140 = vld [vmem:[#allocation2 + $0x550] sm:$0xff]
    %v5141 = vld [vmem:[#allocation2 + $0x558] sm:$0xff]
    %v5142 = vld [vmem:[#allocation2 + $0x560] sm:$0xff]
    %v5143 = vld [vmem:[#allocation2 + $0x568] sm:$0xff]
    %v5144 = vld [vmem:[#allocation2 + $0x570] sm:$0xff]
    %v5145 = vld [vmem:[#allocation2 + $0x578] sm:$0xff]
    %v5146 = vld [vmem:[#allocation2 + $0x580] sm:$0xff]
    %v5147 = vld [vmem:[#allocation2 + $0x588] sm:$0xff]
    %v5148 = vld [vmem:[#allocation2 + $0x590] sm:$0xff]
    %v5149 = vld [vmem:[#allocation2 + $0x598] sm:$0xff]
    %v5150 = vld [vmem:[#allocation2 + $0x5a0] sm:$0xff]
    %v5151 = vld [vmem:[#allocation2 + $0x5a8] sm:$0xff]
    %v5152 = vld [vmem:[#allocation2 + $0x5b0] sm:$0xff]
    %v5153 = vld [vmem:[#allocation2 + $0x5b8] sm:$0xff]
    %v5154 = vld [vmem:[#allocation2 + $0x5c0] sm:$0xff]
    %v5155 = vld [vmem:[#allocation2 + $0x5c8] sm:$0xff]
    %v5156 = vld [vmem:[#allocation2 + $0x5d0] sm:$0xff]
    %v5157 = vld [vmem:[#allocation2 + $0x5d8] sm:$0xff]
    %v5158 = vld [vmem:[#allocation2 + $0x5e0] sm:$0xff]
    %v5159 = vld [vmem:[#allocation2 + $0x5e8] sm:$0xff]
    %v5160 = vld [vmem:[#allocation2 + $0x5f0] sm:$0xff]
    %v5161 = vld [vmem:[#allocation2 + $0x5f8] sm:$0xff]
    %v5163 = vunpack.c.l.b16 %v5129
    %v5164 = vpack.c.b16 %v5163, %v5163
    %v5165 = vrot.slane %v5164, 2
    %v5199 = vunpack.c.l.b16 %v5130
    %v5200 = vunpack.c.h.b16 %v5130
    %v5201 = vunpack.c.l.b16 %v5131
    %v5202 = vunpack.c.h.b16 %v5131
    %v5203 = vunpack.c.l.b16 %v5132
    %v5204 = vunpack.c.h.b16 %v5132
    %v5205 = vunpack.c.l.b16 %v5133
    %v5206 = vunpack.c.h.b16 %v5133
    %v5207 = vunpack.c.l.b16 %v5134
    %v5208 = vunpack.c.h.b16 %v5134
    %v5209 = vunpack.c.l.b16 %v5135
    %v5210 = vunpack.c.h.b16 %v5135
    %v5211 = vunpack.c.l.b16 %v5136
    %v5212 = vunpack.c.h.b16 %v5136
    %v5213 = vunpack.c.l.b16 %v5137
    %v5214 = vunpack.c.h.b16 %v5137
    %v5215 = vunpack.c.l.b16 %v5138
    %v5216 = vunpack.c.h.b16 %v5138
    %v5217 = vunpack.c.l.b16 %v5139
    %v5218 = vunpack.c.h.b16 %v5139
    %v5219 = vunpack.c.l.b16 %v5140
    %v5220 = vunpack.c.h.b16 %v5140
    %v5221 = vunpack.c.l.b16 %v5141
    %v5222 = vunpack.c.h.b16 %v5141
    %v5223 = vunpack.c.l.b16 %v5142
    %v5224 = vunpack.c.h.b16 %v5142
    %v5225 = vunpack.c.l.b16 %v5143
    %v5226 = vunpack.c.h.b16 %v5143
    %v5227 = vunpack.c.l.b16 %v5144
    %v5228 = vunpack.c.h.b16 %v5144
    %v5229 = vunpack.c.l.b16 %v5145
    %v5230 = vunpack.c.h.b16 %v5145
    %v5231 = vunpack.c.l.b16 %v5146
    %v5232 = vunpack.c.h.b16 %v5146
    %v5233 = vunpack.c.l.b16 %v5147
    %v5234 = vunpack.c.h.b16 %v5147
    %v5235 = vunpack.c.l.b16 %v5148
    %v5236 = vunpack.c.h.b16 %v5148
    %v5237 = vunpack.c.l.b16 %v5149
    %v5238 = vunpack.c.h.b16 %v5149
    %v5239 = vunpack.c.l.b16 %v5150
    %v5240 = vunpack.c.h.b16 %v5150
    %v5241 = vunpack.c.l.b16 %v5151
    %v5242 = vunpack.c.h.b16 %v5151
    %v5243 = vunpack.c.l.b16 %v5152
    %v5244 = vunpack.c.h.b16 %v5152
    %v5245 = vunpack.c.l.b16 %v5153
    %v5246 = vunpack.c.h.b16 %v5153
    %v5247 = vunpack.c.l.b16 %v5154
    %v5248 = vunpack.c.h.b16 %v5154
    %v5249 = vunpack.c.l.b16 %v5155
    %v5250 = vunpack.c.h.b16 %v5155
    %v5251 = vunpack.c.l.b16 %v5156
    %v5252 = vunpack.c.h.b16 %v5156
    %v5253 = vunpack.c.l.b16 %v5157
    %v5254 = vunpack.c.h.b16 %v5157
    %v5255 = vunpack.c.l.b16 %v5158
    %v5256 = vunpack.c.h.b16 %v5158
    %v5257 = vunpack.c.l.b16 %v5159
    %v5258 = vunpack.c.h.b16 %v5159
    %v5259 = vunpack.c.l.b16 %v5160
    %v5260 = vunpack.c.h.b16 %v5160
    %v5261 = vunpack.c.l.b16 %v5161
    %v5262 = vunpack.c.h.b16 %v5161
    %v5263 = vpack.c.b16 %v5203, %v5199
    %v5264 = vpack.c.b16 %v5204, %v5200
    %v5265 = vpack.c.b16 %v5205, %v5201
    %v5266 = vpack.c.b16 %v5206, %v5202
    %v5267 = vpack.c.b16 %v5211, %v5207
    %v5268 = vpack.c.b16 %v5212, %v5208
    %v5269 = vpack.c.b16 %v5213, %v5209
    %v5270 = vpack.c.b16 %v5214, %v5210
    %v5271 = vpack.c.b16 %v5219, %v5215
    %v5272 = vpack.c.b16 %v5220, %v5216
    %v5273 = vpack.c.b16 %v5221, %v5217
    %v5274 = vpack.c.b16 %v5222, %v5218
    %v5275 = vpack.c.b16 %v5227, %v5223
    %v5276 = vpack.c.b16 %v5228, %v5224
    %v5277 = vpack.c.b16 %v5229, %v5225
    %v5278 = vpack.c.b16 %v5230, %v5226
    %v5279 = vpack.c.b16 %v5235, %v5231
    %v5280 = vpack.c.b16 %v5236, %v5232
    %v5281 = vpack.c.b16 %v5237, %v5233
    %v5282 = vpack.c.b16 %v5238, %v5234
    %v5283 = vpack.c.b16 %v5243, %v5239
    %v5284 = vpack.c.b16 %v5244, %v5240
    %v5285 = vpack.c.b16 %v5245, %v5241
    %v5286 = vpack.c.b16 %v5246, %v5242
    %v5287 = vpack.c.b16 %v5251, %v5247
    %v5288 = vpack.c.b16 %v5252, %v5248
    %v5289 = vpack.c.b16 %v5253, %v5249
    %v5290 = vpack.c.b16 %v5254, %v5250
    %v5291 = vpack.c.b16 %v5259, %v5255
    %v5292 = vpack.c.b16 %v5260, %v5256
    %v5293 = vpack.c.b16 %v5261, %v5257
    %v5294 = vpack.c.b16 %v5262, %v5258
    %5327 = vmatprep.subr.bf16.mxu0 %v5292
    %5328 = vmatpush1.bf16.msra.mxu0 %v5291
    %5329 = vmatprep.subr.bf16.mxu0 %v5288
    %5330 = vmatpush1.bf16.msra.mxu0 %v5287
    %5331 = vmatprep.subr.bf16.mxu0 %v5284
    %5332 = vmatpush1.bf16.msra.mxu0 %v5283
    %5333 = vmatprep.subr.bf16.mxu0 %v5280
    %5334 = vmatpush1.bf16.msra.mxu0 %v5279
    %5335 = vmatprep.subr.bf16.mxu0 %v5276
    %5336 = vmatpush1.bf16.msra.mxu0 %v5275
    %5337 = vmatprep.subr.bf16.mxu0 %v5272
    %5338 = vmatpush1.bf16.msra.mxu0 %v5271
    %5339 = vmatprep.subr.bf16.mxu0 %v5268
    %5340 = vmatpush1.bf16.msra.mxu0 %v5267
    %5341 = vmatprep.subr.bf16.mxu0 %v5264
    %5342 = vmatpush1.bf16.msra.mxu0 %v5263
    %5343 = vmatprep.subr.bf16.mxu0 0
    %5344 = vmatpush2.bf16.msra.mxu0 0
    %5345 = vmatprep.subr.bf16.mxu0 0
    %5346 = vmatpush2.bf16.msra.mxu0 0
    %5347 = vmatprep.subr.bf16.mxu0 0
    %5348 = vmatpush2.bf16.msra.mxu0 0
    %5349 = vmatprep.subr.bf16.mxu0 0
    %5350 = vmatpush2.bf16.msra.mxu0 0
    %5351 = vmatprep.subr.bf16.mxu0 0
    %5352 = vmatpush2.bf16.msra.mxu0 0
    %5353 = vmatprep.subr.bf16.mxu0 0
    %5354 = vmatpush2.bf16.msra.mxu0 0
    %5355 = vmatprep.subr.bf16.mxu0 0
    %5356 = vmatpush2.bf16.msra.mxu0 0
    %5357 = vmatprep.subr.bf16.mxu0 0
    %5358 = vmatpush2.bf16.msra.mxu0 0
    %5359 = vmatprep.mubr.bf16.mxu0 0
    %5360 = vmatmul.mubr.bf16.gmra.mxu0 %v5165
    %v5361 = vpop.f32.mrf.mxu0
    %v5362 = vadd.f32 0.0, %v5361
    %v5363 = vpop.f32.mrf.mxu0
    %v5364 = vadd.f32 0.0, %v5363
    %v5365 = vpop.f32.mrf.mxu0
    %v5366 = vpop.f32.mrf.mxu0
    %5367 = vdwg.mxu0
    %5368 = vmatprep.subr.bf16.mxu0 %v5294
    %5369 = vmatpush1.bf16.msra.mxu0 %v5293
    %5370 = vmatprep.subr.bf16.mxu0 %v5290
    %5371 = vmatpush1.bf16.msra.mxu0 %v5289
    %5372 = vmatprep.subr.bf16.mxu0 %v5286
    %5373 = vmatpush1.bf16.msra.mxu0 %v5285
    %5374 = vmatprep.subr.bf16.mxu0 %v5282
    %5375 = vmatpush1.bf16.msra.mxu0 %v5281
    %5376 = vmatprep.subr.bf16.mxu0 %v5278
    %5377 = vmatpush1.bf16.msra.mxu0 %v5277
    %5378 = vmatprep.subr.bf16.mxu0 %v5274
    %5379 = vmatpush1.bf16.msra.mxu0 %v5273
    %5380 = vmatprep.subr.bf16.mxu0 %v5270
    %5381 = vmatpush1.bf16.msra.mxu0 %v5269
    %5382 = vmatprep.subr.bf16.mxu0 %v5266
    %5383 = vmatpush1.bf16.msra.mxu0 %v5265
    %5384 = vmatprep.subr.bf16.mxu0 0
    %5385 = vmatpush2.bf16.msra.mxu0 0
    %5386 = vmatprep.subr.bf16.mxu0 0
    %5387 = vmatpush2.bf16.msra.mxu0 0
    %5388 = vmatprep.subr.bf16.mxu0 0
    %5389 = vmatpush2.bf16.msra.mxu0 0
    %5390 = vmatprep.subr.bf16.mxu0 0
    %5391 = vmatpush2.bf16.msra.mxu0 0
    %5392 = vmatprep.subr.bf16.mxu0 0
    %5393 = vmatpush2.bf16.msra.mxu0 0
    %5394 = vmatprep.subr.bf16.mxu0 0
    %5395 = vmatpush2.bf16.msra.mxu0 0
    %5396 = vmatprep.subr.bf16.mxu0 0
    %5397 = vmatpush2.bf16.msra.mxu0 0
    %5398 = vmatprep.subr.bf16.mxu0 0
    %5399 = vmatpush2.bf16.msra.mxu0 0
    %5400 = vmatprep.mubr.bf16.mxu0 0
    %5401 = vmatmul.mubr.bf16.gmra.mxu0 %v5165
    %v5402 = vpop.f32.mrf.mxu0
    %v5403 = vadd.f32 0.0, %v5402
    %v5404 = vpop.f32.mrf.mxu0
    %v5405 = vadd.f32 0.0, %v5404
    %v5406 = vpop.f32.mrf.mxu0
    %v5407 = vpop.f32.mrf.mxu0
    %5408 = vdwg.mxu0
    %v5409 = vadd.f32 %v5125, %v5362
    %v5410 = vadd.f32 %v5126, %v5364
    %v5411 = vadd.f32 %v5127, %v5403
    %v5412 = vadd.f32 %v5128, %v5405
    %v5413 = vld [vmem:[#allocation5 + $0xc] sm:$0x3]
    %v5414 = vld [vmem:[#allocation2 + $0x600] sm:$0xff]
    %v5415 = vld [vmem:[#allocation2 + $0x608] sm:$0xff]
    %v5416 = vld [vmem:[#allocation2 + $0x610] sm:$0xff]
    %v5417 = vld [vmem:[#allocation2 + $0x618] sm:$0xff]
    %v5418 = vld [vmem:[#allocation2 + $0x620] sm:$0xff]
    %v5419 = vld [vmem:[#allocation2 + $0x628] sm:$0xff]
    %v5420 = vld [vmem:[#allocation2 + $0x630] sm:$0xff]
    %v5421 = vld [vmem:[#allocation2 + $0x638] sm:$0xff]
    %v5422 = vld [vmem:[#allocation2 + $0x640] sm:$0xff]
    %v5423 = vld [vmem:[#allocation2 + $0x648] sm:$0xff]
    %v5424 = vld [vmem:[#allocation2 + $0x650] sm:$0xff]
    %v5425 = vld [vmem:[#allocation2 + $0x658] sm:$0xff]
    %v5426 = vld [vmem:[#allocation2 + $0x660] sm:$0xff]
    %v5427 = vld [vmem:[#allocation2 + $0x668] sm:$0xff]
    %v5428 = vld [vmem:[#allocation2 + $0x670] sm:$0xff]
    %v5429 = vld [vmem:[#allocation2 + $0x678] sm:$0xff]
    %v5430 = vld [vmem:[#allocation2 + $0x680] sm:$0xff]
    %v5431 = vld [vmem:[#allocation2 + $0x688] sm:$0xff]
    %v5432 = vld [vmem:[#allocation2 + $0x690] sm:$0xff]
    %v5433 = vld [vmem:[#allocation2 + $0x698] sm:$0xff]
    %v5434 = vld [vmem:[#allocation2 + $0x6a0] sm:$0xff]
    %v5435 = vld [vmem:[#allocation2 + $0x6a8] sm:$0xff]
    %v5436 = vld [vmem:[#allocation2 + $0x6b0] sm:$0xff]
    %v5437 = vld [vmem:[#allocation2 + $0x6b8] sm:$0xff]
    %v5438 = vld [vmem:[#allocation2 + $0x6c0] sm:$0xff]
    %v5439 = vld [vmem:[#allocation2 + $0x6c8] sm:$0xff]
    %v5440 = vld [vmem:[#allocation2 + $0x6d0] sm:$0xff]
    %v5441 = vld [vmem:[#allocation2 + $0x6d8] sm:$0xff]
    %v5442 = vld [vmem:[#allocation2 + $0x6e0] sm:$0xff]
    %v5443 = vld [vmem:[#allocation2 + $0x6e8] sm:$0xff]
    %v5444 = vld [vmem:[#allocation2 + $0x6f0] sm:$0xff]
    %v5445 = vld [vmem:[#allocation2 + $0x6f8] sm:$0xff]
    %v5478 = vunpack.c.l.b16 %v5414
    %v5479 = vunpack.c.h.b16 %v5414
    %v5480 = vunpack.c.l.b16 %v5415
    %v5481 = vunpack.c.h.b16 %v5415
    %v5482 = vunpack.c.l.b16 %v5416
    %v5483 = vunpack.c.h.b16 %v5416
    %v5484 = vunpack.c.l.b16 %v5417
    %v5485 = vunpack.c.h.b16 %v5417
    %v5486 = vunpack.c.l.b16 %v5418
    %v5487 = vunpack.c.h.b16 %v5418
    %v5488 = vunpack.c.l.b16 %v5419
    %v5489 = vunpack.c.h.b16 %v5419
    %v5490 = vunpack.c.l.b16 %v5420
    %v5491 = vunpack.c.h.b16 %v5420
    %v5492 = vunpack.c.l.b16 %v5421
    %v5493 = vunpack.c.h.b16 %v5421
    %v5494 = vunpack.c.l.b16 %v5422
    %v5495 = vunpack.c.h.b16 %v5422
    %v5496 = vunpack.c.l.b16 %v5423
    %v5497 = vunpack.c.h.b16 %v5423
    %v5498 = vunpack.c.l.b16 %v5424
    %v5499 = vunpack.c.h.b16 %v5424
    %v5500 = vunpack.c.l.b16 %v5425
    %v5501 = vunpack.c.h.b16 %v5425
    %v5502 = vunpack.c.l.b16 %v5426
    %v5503 = vunpack.c.h.b16 %v5426
    %v5504 = vunpack.c.l.b16 %v5427
    %v5505 = vunpack.c.h.b16 %v5427
    %v5506 = vunpack.c.l.b16 %v5428
    %v5507 = vunpack.c.h.b16 %v5428
    %v5508 = vunpack.c.l.b16 %v5429
    %v5509 = vunpack.c.h.b16 %v5429
    %v5510 = vunpack.c.l.b16 %v5430
    %v5511 = vunpack.c.h.b16 %v5430
    %v5512 = vunpack.c.l.b16 %v5431
    %v5513 = vunpack.c.h.b16 %v5431
    %v5514 = vunpack.c.l.b16 %v5432
    %v5515 = vunpack.c.h.b16 %v5432
    %v5516 = vunpack.c.l.b16 %v5433
    %v5517 = vunpack.c.h.b16 %v5433
    %v5518 = vunpack.c.l.b16 %v5434
    %v5519 = vunpack.c.h.b16 %v5434
    %v5520 = vunpack.c.l.b16 %v5435
    %v5521 = vunpack.c.h.b16 %v5435
    %v5522 = vunpack.c.l.b16 %v5436
    %v5523 = vunpack.c.h.b16 %v5436
    %v5524 = vunpack.c.l.b16 %v5437
    %v5525 = vunpack.c.h.b16 %v5437
    %v5526 = vunpack.c.l.b16 %v5438
    %v5527 = vunpack.c.h.b16 %v5438
    %v5528 = vunpack.c.l.b16 %v5439
    %v5529 = vunpack.c.h.b16 %v5439
    %v5530 = vunpack.c.l.b16 %v5440
    %v5531 = vunpack.c.h.b16 %v5440
    %v5532 = vunpack.c.l.b16 %v5441
    %v5533 = vunpack.c.h.b16 %v5441
    %v5534 = vunpack.c.l.b16 %v5442
    %v5535 = vunpack.c.h.b16 %v5442
    %v5536 = vunpack.c.l.b16 %v5443
    %v5537 = vunpack.c.h.b16 %v5443
    %v5538 = vunpack.c.l.b16 %v5444
    %v5539 = vunpack.c.h.b16 %v5444
    %v5540 = vunpack.c.l.b16 %v5445
    %v5541 = vunpack.c.h.b16 %v5445
    %v5542 = vpack.c.b16 %v5482, %v5478
    %v5543 = vpack.c.b16 %v5483, %v5479
    %v5544 = vpack.c.b16 %v5484, %v5480
    %v5545 = vpack.c.b16 %v5485, %v5481
    %v5546 = vpack.c.b16 %v5490, %v5486
    %v5547 = vpack.c.b16 %v5491, %v5487
    %v5548 = vpack.c.b16 %v5492, %v5488
    %v5549 = vpack.c.b16 %v5493, %v5489
    %v5550 = vpack.c.b16 %v5498, %v5494
    %v5551 = vpack.c.b16 %v5499, %v5495
    %v5552 = vpack.c.b16 %v5500, %v5496
    %v5553 = vpack.c.b16 %v5501, %v5497
    %v5554 = vpack.c.b16 %v5506, %v5502
    %v5555 = vpack.c.b16 %v5507, %v5503
    %v5556 = vpack.c.b16 %v5508, %v5504
    %v5557 = vpack.c.b16 %v5509, %v5505
    %v5558 = vpack.c.b16 %v5514, %v5510
    %v5559 = vpack.c.b16 %v5515, %v5511
    %v5560 = vpack.c.b16 %v5516, %v5512
    %v5561 = vpack.c.b16 %v5517, %v5513
    %v5562 = vpack.c.b16 %v5522, %v5518
    %v5563 = vpack.c.b16 %v5523, %v5519
    %v5564 = vpack.c.b16 %v5524, %v5520
    %v5565 = vpack.c.b16 %v5525, %v5521
    %v5566 = vpack.c.b16 %v5530, %v5526
    %v5567 = vpack.c.b16 %v5531, %v5527
    %v5568 = vpack.c.b16 %v5532, %v5528
    %v5569 = vpack.c.b16 %v5533, %v5529
    %v5570 = vpack.c.b16 %v5538, %v5534
    %v5571 = vpack.c.b16 %v5539, %v5535
    %v5572 = vpack.c.b16 %v5540, %v5536
    %v5573 = vpack.c.b16 %v5541, %v5537
    %5606 = vmatprep.subr.bf16.mxu0 %v5571
    %5607 = vmatpush1.bf16.msra.mxu0 %v5570
    %5608 = vmatprep.subr.bf16.mxu0 %v5567
    %5609 = vmatpush1.bf16.msra.mxu0 %v5566
    %5610 = vmatprep.subr.bf16.mxu0 %v5563
    %5611 = vmatpush1.bf16.msra.mxu0 %v5562
    %5612 = vmatprep.subr.bf16.mxu0 %v5559
    %5613 = vmatpush1.bf16.msra.mxu0 %v5558
    %5614 = vmatprep.subr.bf16.mxu0 %v5555
    %5615 = vmatpush1.bf16.msra.mxu0 %v5554
    %5616 = vmatprep.subr.bf16.mxu0 %v5551
    %5617 = vmatpush1.bf16.msra.mxu0 %v5550
    %5618 = vmatprep.subr.bf16.mxu0 %v5547
    %5619 = vmatpush1.bf16.msra.mxu0 %v5546
    %5620 = vmatprep.subr.bf16.mxu0 %v5543
    %5621 = vmatpush1.bf16.msra.mxu0 %v5542
    %5622 = vmatprep.subr.bf16.mxu0 0
    %5623 = vmatpush2.bf16.msra.mxu0 0
    %5624 = vmatprep.subr.bf16.mxu0 0
    %5625 = vmatpush2.bf16.msra.mxu0 0
    %5626 = vmatprep.subr.bf16.mxu0 0
    %5627 = vmatpush2.bf16.msra.mxu0 0
    %5628 = vmatprep.subr.bf16.mxu0 0
    %5629 = vmatpush2.bf16.msra.mxu0 0
    %5630 = vmatprep.subr.bf16.mxu0 0
    %5631 = vmatpush2.bf16.msra.mxu0 0
    %5632 = vmatprep.subr.bf16.mxu0 0
    %5633 = vmatpush2.bf16.msra.mxu0 0
    %5634 = vmatprep.subr.bf16.mxu0 0
    %5635 = vmatpush2.bf16.msra.mxu0 0
    %5636 = vmatprep.subr.bf16.mxu0 0
    %5637 = vmatpush2.bf16.msra.mxu0 0
    %5638 = vmatprep.mubr.bf16.mxu0 0
    %5639 = vmatmul.mubr.bf16.gmra.mxu0 %v5413
    %v5640 = vpop.f32.mrf.mxu0
    %v5641 = vadd.f32 0.0, %v5640
    %v5642 = vpop.f32.mrf.mxu0
    %v5643 = vadd.f32 0.0, %v5642
    %v5644 = vpop.f32.mrf.mxu0
    %v5645 = vpop.f32.mrf.mxu0
    %5646 = vdwg.mxu0
    %5647 = vmatprep.subr.bf16.mxu0 %v5573
    %5648 = vmatpush1.bf16.msra.mxu0 %v5572
    %5649 = vmatprep.subr.bf16.mxu0 %v5569
    %5650 = vmatpush1.bf16.msra.mxu0 %v5568
    %5651 = vmatprep.subr.bf16.mxu0 %v5565
    %5652 = vmatpush1.bf16.msra.mxu0 %v5564
    %5653 = vmatprep.subr.bf16.mxu0 %v5561
    %5654 = vmatpush1.bf16.msra.mxu0 %v5560
    %5655 = vmatprep.subr.bf16.mxu0 %v5557
    %5656 = vmatpush1.bf16.msra.mxu0 %v5556
    %5657 = vmatprep.subr.bf16.mxu0 %v5553
    %5658 = vmatpush1.bf16.msra.mxu0 %v5552
    %5659 = vmatprep.subr.bf16.mxu0 %v5549
    %5660 = vmatpush1.bf16.msra.mxu0 %v5548
    %5661 = vmatprep.subr.bf16.mxu0 %v5545
    %5662 = vmatpush1.bf16.msra.mxu0 %v5544
    %5663 = vmatprep.subr.bf16.mxu0 0
    %5664 = vmatpush2.bf16.msra.mxu0 0
    %5665 = vmatprep.subr.bf16.mxu0 0
    %5666 = vmatpush2.bf16.msra.mxu0 0
    %5667 = vmatprep.subr.bf16.mxu0 0
    %5668 = vmatpush2.bf16.msra.mxu0 0
    %5669 = vmatprep.subr.bf16.mxu0 0
    %5670 = vmatpush2.bf16.msra.mxu0 0
    %5671 = vmatprep.subr.bf16.mxu0 0
    %5672 = vmatpush2.bf16.msra.mxu0 0
    %5673 = vmatprep.subr.bf16.mxu0 0
    %5674 = vmatpush2.bf16.msra.mxu0 0
    %5675 = vmatprep.subr.bf16.mxu0 0
    %5676 = vmatpush2.bf16.msra.mxu0 0
    %5677 = vmatprep.subr.bf16.mxu0 0
    %5678 = vmatpush2.bf16.msra.mxu0 0
    %5679 = vmatprep.mubr.bf16.mxu0 0
    %5680 = vmatmul.mubr.bf16.gmra.mxu0 %v5413
    %v5681 = vpop.f32.mrf.mxu0
    %v5682 = vadd.f32 0.0, %v5681
    %v5683 = vpop.f32.mrf.mxu0
    %v5684 = vadd.f32 0.0, %v5683
    %v5685 = vpop.f32.mrf.mxu0
    %v5686 = vpop.f32.mrf.mxu0
    %5687 = vdwg.mxu0
    %v5688 = vadd.f32 %v5409, %v5641
    %v5689 = vadd.f32 %v5410, %v5643
    %v5690 = vadd.f32 %v5411, %v5682
    %v5691 = vadd.f32 %v5412, %v5684
    %v5692 = vld [vmem:[#allocation5 + $0xc] sm:$0xc]
    %v5693 = vld [vmem:[#allocation2 + $0x700] sm:$0xff]
    %v5694 = vld [vmem:[#allocation2 + $0x708] sm:$0xff]
    %v5695 = vld [vmem:[#allocation2 + $0x710] sm:$0xff]
    %v5696 = vld [vmem:[#allocation2 + $0x718] sm:$0xff]
    %v5697 = vld [vmem:[#allocation2 + $0x720] sm:$0xff]
    %v5698 = vld [vmem:[#allocation2 + $0x728] sm:$0xff]
    %v5699 = vld [vmem:[#allocation2 + $0x730] sm:$0xff]
    %v5700 = vld [vmem:[#allocation2 + $0x738] sm:$0xff]
    %v5701 = vld [vmem:[#allocation2 + $0x740] sm:$0xff]
    %v5702 = vld [vmem:[#allocation2 + $0x748] sm:$0xff]
    %v5703 = vld [vmem:[#allocation2 + $0x750] sm:$0xff]
    %v5704 = vld [vmem:[#allocation2 + $0x758] sm:$0xff]
    %v5705 = vld [vmem:[#allocation2 + $0x760] sm:$0xff]
    %v5706 = vld [vmem:[#allocation2 + $0x768] sm:$0xff]
    %v5707 = vld [vmem:[#allocation2 + $0x770] sm:$0xff]
    %v5708 = vld [vmem:[#allocation2 + $0x778] sm:$0xff]
    %v5709 = vld [vmem:[#allocation2 + $0x780] sm:$0xff]
    %v5710 = vld [vmem:[#allocation2 + $0x788] sm:$0xff]
    %v5711 = vld [vmem:[#allocation2 + $0x790] sm:$0xff]
    %v5712 = vld [vmem:[#allocation2 + $0x798] sm:$0xff]
    %v5713 = vld [vmem:[#allocation2 + $0x7a0] sm:$0xff]
    %v5714 = vld [vmem:[#allocation2 + $0x7a8] sm:$0xff]
    %v5715 = vld [vmem:[#allocation2 + $0x7b0] sm:$0xff]
    %v5716 = vld [vmem:[#allocation2 + $0x7b8] sm:$0xff]
    %v5717 = vld [vmem:[#allocation2 + $0x7c0] sm:$0xff]
    %v5718 = vld [vmem:[#allocation2 + $0x7c8] sm:$0xff]
    %v5719 = vld [vmem:[#allocation2 + $0x7d0] sm:$0xff]
    %v5720 = vld [vmem:[#allocation2 + $0x7d8] sm:$0xff]
    %v5721 = vld [vmem:[#allocation2 + $0x7e0] sm:$0xff]
    %v5722 = vld [vmem:[#allocation2 + $0x7e8] sm:$0xff]
    %v5723 = vld [vmem:[#allocation2 + $0x7f0] sm:$0xff]
    %v5724 = vld [vmem:[#allocation2 + $0x7f8] sm:$0xff]
    %v5726 = vunpack.c.l.b16 %v5692
    %v5727 = vpack.c.b16 %v5726, %v5726
    %v5728 = vrot.slane %v5727, 2
    %v5762 = vunpack.c.l.b16 %v5693
    %v5763 = vunpack.c.h.b16 %v5693
    %v5764 = vunpack.c.l.b16 %v5694
    %v5765 = vunpack.c.h.b16 %v5694
    %v5766 = vunpack.c.l.b16 %v5695
    %v5767 = vunpack.c.h.b16 %v5695
    %v5768 = vunpack.c.l.b16 %v5696
    %v5769 = vunpack.c.h.b16 %v5696
    %v5770 = vunpack.c.l.b16 %v5697
    %v5771 = vunpack.c.h.b16 %v5697
    %v5772 = vunpack.c.l.b16 %v5698
    %v5773 = vunpack.c.h.b16 %v5698
    %v5774 = vunpack.c.l.b16 %v5699
    %v5775 = vunpack.c.h.b16 %v5699
    %v5776 = vunpack.c.l.b16 %v5700
    %v5777 = vunpack.c.h.b16 %v5700
    %v5778 = vunpack.c.l.b16 %v5701
    %v5779 = vunpack.c.h.b16 %v5701
    %v5780 = vunpack.c.l.b16 %v5702
    %v5781 = vunpack.c.h.b16 %v5702
    %v5782 = vunpack.c.l.b16 %v5703
    %v5783 = vunpack.c.h.b16 %v5703
    %v5784 = vunpack.c.l.b16 %v5704
    %v5785 = vunpack.c.h.b16 %v5704
    %v5786 = vunpack.c.l.b16 %v5705
    %v5787 = vunpack.c.h.b16 %v5705
    %v5788 = vunpack.c.l.b16 %v5706
    %v5789 = vunpack.c.h.b16 %v5706
    %v5790 = vunpack.c.l.b16 %v5707
    %v5791 = vunpack.c.h.b16 %v5707
    %v5792 = vunpack.c.l.b16 %v5708
    %v5793 = vunpack.c.h.b16 %v5708
    %v5794 = vunpack.c.l.b16 %v5709
    %v5795 = vunpack.c.h.b16 %v5709
    %v5796 = vunpack.c.l.b16 %v5710
    %v5797 = vunpack.c.h.b16 %v5710
    %v5798 = vunpack.c.l.b16 %v5711
    %v5799 = vunpack.c.h.b16 %v5711
    %v5800 = vunpack.c.l.b16 %v5712
    %v5801 = vunpack.c.h.b16 %v5712
    %v5802 = vunpack.c.l.b16 %v5713
    %v5803 = vunpack.c.h.b16 %v5713
    %v5804 = vunpack.c.l.b16 %v5714
    %v5805 = vunpack.c.h.b16 %v5714
    %v5806 = vunpack.c.l.b16 %v5715
    %v5807 = vunpack.c.h.b16 %v5715
    %v5808 = vunpack.c.l.b16 %v5716
    %v5809 = vunpack.c.h.b16 %v5716
    %v5810 = vunpack.c.l.b16 %v5717
    %v5811 = vunpack.c.h.b16 %v5717
    %v5812 = vunpack.c.l.b16 %v5718
    %v5813 = vunpack.c.h.b16 %v5718
    %v5814 = vunpack.c.l.b16 %v5719
    %v5815 = vunpack.c.h.b16 %v5719
    %v5816 = vunpack.c.l.b16 %v5720
    %v5817 = vunpack.c.h.b16 %v5720
    %v5818 = vunpack.c.l.b16 %v5721
    %v5819 = vunpack.c.h.b16 %v5721
    %v5820 = vunpack.c.l.b16 %v5722
    %v5821 = vunpack.c.h.b16 %v5722
    %v5822 = vunpack.c.l.b16 %v5723
    %v5823 = vunpack.c.h.b16 %v5723
    %v5824 = vunpack.c.l.b16 %v5724
    %v5825 = vunpack.c.h.b16 %v5724
    %v5826 = vpack.c.b16 %v5766, %v5762
    %v5827 = vpack.c.b16 %v5767, %v5763
    %v5828 = vpack.c.b16 %v5768, %v5764
    %v5829 = vpack.c.b16 %v5769, %v5765
    %v5830 = vpack.c.b16 %v5774, %v5770
    %v5831 = vpack.c.b16 %v5775, %v5771
    %v5832 = vpack.c.b16 %v5776, %v5772
    %v5833 = vpack.c.b16 %v5777, %v5773
    %v5834 = vpack.c.b16 %v5782, %v5778
    %v5835 = vpack.c.b16 %v5783, %v5779
    %v5836 = vpack.c.b16 %v5784, %v5780
    %v5837 = vpack.c.b16 %v5785, %v5781
    %v5838 = vpack.c.b16 %v5790, %v5786
    %v5839 = vpack.c.b16 %v5791, %v5787
    %v5840 = vpack.c.b16 %v5792, %v5788
    %v5841 = vpack.c.b16 %v5793, %v5789
    %v5842 = vpack.c.b16 %v5798, %v5794
    %v5843 = vpack.c.b16 %v5799, %v5795
    %v5844 = vpack.c.b16 %v5800, %v5796
    %v5845 = vpack.c.b16 %v5801, %v5797
    %v5846 = vpack.c.b16 %v5806, %v5802
    %v5847 = vpack.c.b16 %v5807, %v5803
    %v5848 = vpack.c.b16 %v5808, %v5804
    %v5849 = vpack.c.b16 %v5809, %v5805
    %v5850 = vpack.c.b16 %v5814, %v5810
    %v5851 = vpack.c.b16 %v5815, %v5811
    %v5852 = vpack.c.b16 %v5816, %v5812
    %v5853 = vpack.c.b16 %v5817, %v5813
    %v5854 = vpack.c.b16 %v5822, %v5818
    %v5855 = vpack.c.b16 %v5823, %v5819
    %v5856 = vpack.c.b16 %v5824, %v5820
    %v5857 = vpack.c.b16 %v5825, %v5821
    %5890 = vmatprep.subr.bf16.mxu0 %v5855
    %5891 = vmatpush1.bf16.msra.mxu0 %v5854
    %5892 = vmatprep.subr.bf16.mxu0 %v5851
    %5893 = vmatpush1.bf16.msra.mxu0 %v5850
    %5894 = vmatprep.subr.bf16.mxu0 %v5847
    %5895 = vmatpush1.bf16.msra.mxu0 %v5846
    %5896 = vmatprep.subr.bf16.mxu0 %v5843
    %5897 = vmatpush1.bf16.msra.mxu0 %v5842
    %5898 = vmatprep.subr.bf16.mxu0 %v5839
    %5899 = vmatpush1.bf16.msra.mxu0 %v5838
    %5900 = vmatprep.subr.bf16.mxu0 %v5835
    %5901 = vmatpush1.bf16.msra.mxu0 %v5834
    %5902 = vmatprep.subr.bf16.mxu0 %v5831
    %5903 = vmatpush1.bf16.msra.mxu0 %v5830
    %5904 = vmatprep.subr.bf16.mxu0 %v5827
    %5905 = vmatpush1.bf16.msra.mxu0 %v5826
    %5906 = vmatprep.subr.bf16.mxu0 0
    %5907 = vmatpush2.bf16.msra.mxu0 0
    %5908 = vmatprep.subr.bf16.mxu0 0
    %5909 = vmatpush2.bf16.msra.mxu0 0
    %5910 = vmatprep.subr.bf16.mxu0 0
    %5911 = vmatpush2.bf16.msra.mxu0 0
    %5912 = vmatprep.subr.bf16.mxu0 0
    %5913 = vmatpush2.bf16.msra.mxu0 0
    %5914 = vmatprep.subr.bf16.mxu0 0
    %5915 = vmatpush2.bf16.msra.mxu0 0
    %5916 = vmatprep.subr.bf16.mxu0 0
    %5917 = vmatpush2.bf16.msra.mxu0 0
    %5918 = vmatprep.subr.bf16.mxu0 0
    %5919 = vmatpush2.bf16.msra.mxu0 0
    %5920 = vmatprep.subr.bf16.mxu0 0
    %5921 = vmatpush2.bf16.msra.mxu0 0
    %5922 = vmatprep.mubr.bf16.mxu0 0
    %5923 = vmatmul.mubr.bf16.gmra.mxu0 %v5728
    %v5924 = vpop.f32.mrf.mxu0
    %v5925 = vadd.f32 0.0, %v5924
    %v5926 = vpop.f32.mrf.mxu0
    %v5927 = vadd.f32 0.0, %v5926
    %v5928 = vpop.f32.mrf.mxu0
    %v5929 = vpop.f32.mrf.mxu0
    %5930 = vdwg.mxu0
    %5931 = vmatprep.subr.bf16.mxu0 %v5857
    %5932 = vmatpush1.bf16.msra.mxu0 %v5856
    %5933 = vmatprep.subr.bf16.mxu0 %v5853
    %5934 = vmatpush1.bf16.msra.mxu0 %v5852
    %5935 = vmatprep.subr.bf16.mxu0 %v5849
    %5936 = vmatpush1.bf16.msra.mxu0 %v5848
    %5937 = vmatprep.subr.bf16.mxu0 %v5845
    %5938 = vmatpush1.bf16.msra.mxu0 %v5844
    %5939 = vmatprep.subr.bf16.mxu0 %v5841
    %5940 = vmatpush1.bf16.msra.mxu0 %v5840
    %5941 = vmatprep.subr.bf16.mxu0 %v5837
    %5942 = vmatpush1.bf16.msra.mxu0 %v5836
    %5943 = vmatprep.subr.bf16.mxu0 %v5833
    %5944 = vmatpush1.bf16.msra.mxu0 %v5832
    %5945 = vmatprep.subr.bf16.mxu0 %v5829
    %5946 = vmatpush1.bf16.msra.mxu0 %v5828
    %5947 = vmatprep.subr.bf16.mxu0 0
    %5948 = vmatpush2.bf16.msra.mxu0 0
    %5949 = vmatprep.subr.bf16.mxu0 0
    %5950 = vmatpush2.bf16.msra.mxu0 0
    %5951 = vmatprep.subr.bf16.mxu0 0
    %5952 = vmatpush2.bf16.msra.mxu0 0
    %5953 = vmatprep.subr.bf16.mxu0 0
    %5954 = vmatpush2.bf16.msra.mxu0 0
    %5955 = vmatprep.subr.bf16.mxu0 0
    %5956 = vmatpush2.bf16.msra.mxu0 0
    %5957 = vmatprep.subr.bf16.mxu0 0
    %5958 = vmatpush2.bf16.msra.mxu0 0
    %5959 = vmatprep.subr.bf16.mxu0 0
    %5960 = vmatpush2.bf16.msra.mxu0 0
    %5961 = vmatprep.subr.bf16.mxu0 0
    %5962 = vmatpush2.bf16.msra.mxu0 0
    %5963 = vmatprep.mubr.bf16.mxu0 0
    %5964 = vmatmul.mubr.bf16.gmra.mxu0 %v5728
    %v5965 = vpop.f32.mrf.mxu0
    %v5966 = vadd.f32 0.0, %v5965
    %v5967 = vpop.f32.mrf.mxu0
    %v5968 = vadd.f32 0.0, %v5967
    %v5969 = vpop.f32.mrf.mxu0
    %v5970 = vpop.f32.mrf.mxu0
    %5971 = vdwg.mxu0
    %v5972 = vadd.f32 %v5688, %v5925
    %v5973 = vadd.f32 %v5689, %v5927
    %v5974 = vadd.f32 %v5690, %v5966
    %v5975 = vadd.f32 %v5691, %v5968
    %v5976 = vld [vmem:[#allocation5 + $0x10] sm:$0x3]
    %v5977 = vld [vmem:[#allocation2 + $0x800] sm:$0xff]
    %v5978 = vld [vmem:[#allocation2 + $0x808] sm:$0xff]
    %v5979 = vld [vmem:[#allocation2 + $0x810] sm:$0xff]
    %v5980 = vld [vmem:[#allocation2 + $0x818] sm:$0xff]
    %v5981 = vld [vmem:[#allocation2 + $0x820] sm:$0xff]
    %v5982 = vld [vmem:[#allocation2 + $0x828] sm:$0xff]
    %v5983 = vld [vmem:[#allocation2 + $0x830] sm:$0xff]
    %v5984 = vld [vmem:[#allocation2 + $0x838] sm:$0xff]
    %v5985 = vld [vmem:[#allocation2 + $0x840] sm:$0xff]
    %v5986 = vld [vmem:[#allocation2 + $0x848] sm:$0xff]
    %v5987 = vld [vmem:[#allocation2 + $0x850] sm:$0xff]
    %v5988 = vld [vmem:[#allocation2 + $0x858] sm:$0xff]
    %v5989 = vld [vmem:[#allocation2 + $0x860] sm:$0xff]
    %v5990 = vld [vmem:[#allocation2 + $0x868] sm:$0xff]
    %v5991 = vld [vmem:[#allocation2 + $0x870] sm:$0xff]
    %v5992 = vld [vmem:[#allocation2 + $0x878] sm:$0xff]
    %v5993 = vld [vmem:[#allocation2 + $0x880] sm:$0xff]
    %v5994 = vld [vmem:[#allocation2 + $0x888] sm:$0xff]
    %v5995 = vld [vmem:[#allocation2 + $0x890] sm:$0xff]
    %v5996 = vld [vmem:[#allocation2 + $0x898] sm:$0xff]
    %v5997 = vld [vmem:[#allocation2 + $0x8a0] sm:$0xff]
    %v5998 = vld [vmem:[#allocation2 + $0x8a8] sm:$0xff]
    %v5999 = vld [vmem:[#allocation2 + $0x8b0] sm:$0xff]
    %v6000 = vld [vmem:[#allocation2 + $0x8b8] sm:$0xff]
    %v6001 = vld [vmem:[#allocation2 + $0x8c0] sm:$0xff]
    %v6002 = vld [vmem:[#allocation2 + $0x8c8] sm:$0xff]
    %v6003 = vld [vmem:[#allocation2 + $0x8d0] sm:$0xff]
    %v6004 = vld [vmem:[#allocation2 + $0x8d8] sm:$0xff]
    %v6005 = vld [vmem:[#allocation2 + $0x8e0] sm:$0xff]
    %v6006 = vld [vmem:[#allocation2 + $0x8e8] sm:$0xff]
    %v6007 = vld [vmem:[#allocation2 + $0x8f0] sm:$0xff]
    %v6008 = vld [vmem:[#allocation2 + $0x8f8] sm:$0xff]
    %v6041 = vunpack.c.l.b16 %v5977
    %v6042 = vunpack.c.h.b16 %v5977
    %v6043 = vunpack.c.l.b16 %v5978
    %v6044 = vunpack.c.h.b16 %v5978
    %v6045 = vunpack.c.l.b16 %v5979
    %v6046 = vunpack.c.h.b16 %v5979
    %v6047 = vunpack.c.l.b16 %v5980
    %v6048 = vunpack.c.h.b16 %v5980
    %v6049 = vunpack.c.l.b16 %v5981
    %v6050 = vunpack.c.h.b16 %v5981
    %v6051 = vunpack.c.l.b16 %v5982
    %v6052 = vunpack.c.h.b16 %v5982
    %v6053 = vunpack.c.l.b16 %v5983
    %v6054 = vunpack.c.h.b16 %v5983
    %v6055 = vunpack.c.l.b16 %v5984
    %v6056 = vunpack.c.h.b16 %v5984
    %v6057 = vunpack.c.l.b16 %v5985
    %v6058 = vunpack.c.h.b16 %v5985
    %v6059 = vunpack.c.l.b16 %v5986
    %v6060 = vunpack.c.h.b16 %v5986
    %v6061 = vunpack.c.l.b16 %v5987
    %v6062 = vunpack.c.h.b16 %v5987
    %v6063 = vunpack.c.l.b16 %v5988
    %v6064 = vunpack.c.h.b16 %v5988
    %v6065 = vunpack.c.l.b16 %v5989
    %v6066 = vunpack.c.h.b16 %v5989
    %v6067 = vunpack.c.l.b16 %v5990
    %v6068 = vunpack.c.h.b16 %v5990
    %v6069 = vunpack.c.l.b16 %v5991
    %v6070 = vunpack.c.h.b16 %v5991
    %v6071 = vunpack.c.l.b16 %v5992
    %v6072 = vunpack.c.h.b16 %v5992
    %v6073 = vunpack.c.l.b16 %v5993
    %v6074 = vunpack.c.h.b16 %v5993
    %v6075 = vunpack.c.l.b16 %v5994
    %v6076 = vunpack.c.h.b16 %v5994
    %v6077 = vunpack.c.l.b16 %v5995
    %v6078 = vunpack.c.h.b16 %v5995
    %v6079 = vunpack.c.l.b16 %v5996
    %v6080 = vunpack.c.h.b16 %v5996
    %v6081 = vunpack.c.l.b16 %v5997
    %v6082 = vunpack.c.h.b16 %v5997
    %v6083 = vunpack.c.l.b16 %v5998
    %v6084 = vunpack.c.h.b16 %v5998
    %v6085 = vunpack.c.l.b16 %v5999
    %v6086 = vunpack.c.h.b16 %v5999
    %v6087 = vunpack.c.l.b16 %v6000
    %v6088 = vunpack.c.h.b16 %v6000
    %v6089 = vunpack.c.l.b16 %v6001
    %v6090 = vunpack.c.h.b16 %v6001
    %v6091 = vunpack.c.l.b16 %v6002
    %v6092 = vunpack.c.h.b16 %v6002
    %v6093 = vunpack.c.l.b16 %v6003
    %v6094 = vunpack.c.h.b16 %v6003
    %v6095 = vunpack.c.l.b16 %v6004
    %v6096 = vunpack.c.h.b16 %v6004
    %v6097 = vunpack.c.l.b16 %v6005
    %v6098 = vunpack.c.h.b16 %v6005
    %v6099 = vunpack.c.l.b16 %v6006
    %v6100 = vunpack.c.h.b16 %v6006
    %v6101 = vunpack.c.l.b16 %v6007
    %v6102 = vunpack.c.h.b16 %v6007
    %v6103 = vunpack.c.l.b16 %v6008
    %v6104 = vunpack.c.h.b16 %v6008
    %v6105 = vpack.c.b16 %v6045, %v6041
    %v6106 = vpack.c.b16 %v6046, %v6042
    %v6107 = vpack.c.b16 %v6047, %v6043
    %v6108 = vpack.c.b16 %v6048, %v6044
    %v6109 = vpack.c.b16 %v6053, %v6049
    %v6110 = vpack.c.b16 %v6054, %v6050
    %v6111 = vpack.c.b16 %v6055, %v6051
    %v6112 = vpack.c.b16 %v6056, %v6052
    %v6113 = vpack.c.b16 %v6061, %v6057
    %v6114 = vpack.c.b16 %v6062, %v6058
    %v6115 = vpack.c.b16 %v6063, %v6059
    %v6116 = vpack.c.b16 %v6064, %v6060
    %v6117 = vpack.c.b16 %v6069, %v6065
    %v6118 = vpack.c.b16 %v6070, %v6066
    %v6119 = vpack.c.b16 %v6071, %v6067
    %v6120 = vpack.c.b16 %v6072, %v6068
    %v6121 = vpack.c.b16 %v6077, %v6073
    %v6122 = vpack.c.b16 %v6078, %v6074
    %v6123 = vpack.c.b16 %v6079, %v6075
    %v6124 = vpack.c.b16 %v6080, %v6076
    %v6125 = vpack.c.b16 %v6085, %v6081
    %v6126 = vpack.c.b16 %v6086, %v6082
    %v6127 = vpack.c.b16 %v6087, %v6083
    %v6128 = vpack.c.b16 %v6088, %v6084
    %v6129 = vpack.c.b16 %v6093, %v6089
    %v6130 = vpack.c.b16 %v6094, %v6090
    %v6131 = vpack.c.b16 %v6095, %v6091
    %v6132 = vpack.c.b16 %v6096, %v6092
    %v6133 = vpack.c.b16 %v6101, %v6097
    %v6134 = vpack.c.b16 %v6102, %v6098
    %v6135 = vpack.c.b16 %v6103, %v6099
    %v6136 = vpack.c.b16 %v6104, %v6100
    %6169 = vmatprep.subr.bf16.mxu0 %v6134
    %6170 = vmatpush1.bf16.msra.mxu0 %v6133
    %6171 = vmatprep.subr.bf16.mxu0 %v6130
    %6172 = vmatpush1.bf16.msra.mxu0 %v6129
    %6173 = vmatprep.subr.bf16.mxu0 %v6126
    %6174 = vmatpush1.bf16.msra.mxu0 %v6125
    %6175 = vmatprep.subr.bf16.mxu0 %v6122
    %6176 = vmatpush1.bf16.msra.mxu0 %v6121
    %6177 = vmatprep.subr.bf16.mxu0 %v6118
    %6178 = vmatpush1.bf16.msra.mxu0 %v6117
    %6179 = vmatprep.subr.bf16.mxu0 %v6114
    %6180 = vmatpush1.bf16.msra.mxu0 %v6113
    %6181 = vmatprep.subr.bf16.mxu0 %v6110
    %6182 = vmatpush1.bf16.msra.mxu0 %v6109
    %6183 = vmatprep.subr.bf16.mxu0 %v6106
    %6184 = vmatpush1.bf16.msra.mxu0 %v6105
    %6185 = vmatprep.subr.bf16.mxu0 0
    %6186 = vmatpush2.bf16.msra.mxu0 0
    %6187 = vmatprep.subr.bf16.mxu0 0
    %6188 = vmatpush2.bf16.msra.mxu0 0
    %6189 = vmatprep.subr.bf16.mxu0 0
    %6190 = vmatpush2.bf16.msra.mxu0 0
    %6191 = vmatprep.subr.bf16.mxu0 0
    %6192 = vmatpush2.bf16.msra.mxu0 0
    %6193 = vmatprep.subr.bf16.mxu0 0
    %6194 = vmatpush2.bf16.msra.mxu0 0
    %6195 = vmatprep.subr.bf16.mxu0 0
    %6196 = vmatpush2.bf16.msra.mxu0 0
    %6197 = vmatprep.subr.bf16.mxu0 0
    %6198 = vmatpush2.bf16.msra.mxu0 0
    %6199 = vmatprep.subr.bf16.mxu0 0
    %6200 = vmatpush2.bf16.msra.mxu0 0
    %6201 = vmatprep.mubr.bf16.mxu0 0
    %6202 = vmatmul.mubr.bf16.gmra.mxu0 %v5976
    %v6203 = vpop.f32.mrf.mxu0
    %v6204 = vadd.f32 0.0, %v6203
    %v6205 = vpop.f32.mrf.mxu0
    %v6206 = vadd.f32 0.0, %v6205
    %v6207 = vpop.f32.mrf.mxu0
    %v6208 = vpop.f32.mrf.mxu0
    %6209 = vdwg.mxu0
    %6210 = vmatprep.subr.bf16.mxu0 %v6136
    %6211 = vmatpush1.bf16.msra.mxu0 %v6135
    %6212 = vmatprep.subr.bf16.mxu0 %v6132
    %6213 = vmatpush1.bf16.msra.mxu0 %v6131
    %6214 = vmatprep.subr.bf16.mxu0 %v6128
    %6215 = vmatpush1.bf16.msra.mxu0 %v6127
    %6216 = vmatprep.subr.bf16.mxu0 %v6124
    %6217 = vmatpush1.bf16.msra.mxu0 %v6123
    %6218 = vmatprep.subr.bf16.mxu0 %v6120
    %6219 = vmatpush1.bf16.msra.mxu0 %v6119
    %6220 = vmatprep.subr.bf16.mxu0 %v6116
    %6221 = vmatpush1.bf16.msra.mxu0 %v6115
    %6222 = vmatprep.subr.bf16.mxu0 %v6112
    %6223 = vmatpush1.bf16.msra.mxu0 %v6111
    %6224 = vmatprep.subr.bf16.mxu0 %v6108
    %6225 = vmatpush1.bf16.msra.mxu0 %v6107
    %6226 = vmatprep.subr.bf16.mxu0 0
    %6227 = vmatpush2.bf16.msra.mxu0 0
    %6228 = vmatprep.subr.bf16.mxu0 0
    %6229 = vmatpush2.bf16.msra.mxu0 0
    %6230 = vmatprep.subr.bf16.mxu0 0
    %6231 = vmatpush2.bf16.msra.mxu0 0
    %6232 = vmatprep.subr.bf16.mxu0 0
    %6233 = vmatpush2.bf16.msra.mxu0 0
    %6234 = vmatprep.subr.bf16.mxu0 0
    %6235 = vmatpush2.bf16.msra.mxu0 0
    %6236 = vmatprep.subr.bf16.mxu0 0
    %6237 = vmatpush2.bf16.msra.mxu0 0
    %6238 = vmatprep.subr.bf16.mxu0 0
    %6239 = vmatpush2.bf16.msra.mxu0 0
    %6240 = vmatprep.subr.bf16.mxu0 0
    %6241 = vmatpush2.bf16.msra.mxu0 0
    %6242 = vmatprep.mubr.bf16.mxu0 0
    %6243 = vmatmul.mubr.bf16.gmra.mxu0 %v5976
    %v6244 = vpop.f32.mrf.mxu0
    %v6245 = vadd.f32 0.0, %v6244
    %v6246 = vpop.f32.mrf.mxu0
    %v6247 = vadd.f32 0.0, %v6246
    %v6248 = vpop.f32.mrf.mxu0
    %v6249 = vpop.f32.mrf.mxu0
    %6250 = vdwg.mxu0
    %v6251 = vadd.f32 %v5972, %v6204
    %v6252 = vadd.f32 %v5973, %v6206
    %v6253 = vadd.f32 %v5974, %v6245
    %v6254 = vadd.f32 %v5975, %v6247
    %v6255 = vld [vmem:[#allocation5 + $0x10] sm:$0xc]
    %v6256 = vld [vmem:[#allocation2 + $0x900] sm:$0xff]
    %v6257 = vld [vmem:[#allocation2 + $0x908] sm:$0xff]
    %v6258 = vld [vmem:[#allocation2 + $0x910] sm:$0xff]
    %v6259 = vld [vmem:[#allocation2 + $0x918] sm:$0xff]
    %v6260 = vld [vmem:[#allocation2 + $0x920] sm:$0xff]
    %v6261 = vld [vmem:[#allocation2 + $0x928] sm:$0xff]
    %v6262 = vld [vmem:[#allocation2 + $0x930] sm:$0xff]
    %v6263 = vld [vmem:[#allocation2 + $0x938] sm:$0xff]
    %v6264 = vld [vmem:[#allocation2 + $0x940] sm:$0xff]
    %v6265 = vld [vmem:[#allocation2 + $0x948] sm:$0xff]
    %v6266 = vld [vmem:[#allocation2 + $0x950] sm:$0xff]
    %v6267 = vld [vmem:[#allocation2 + $0x958] sm:$0xff]
    %v6268 = vld [vmem:[#allocation2 + $0x960] sm:$0xff]
    %v6269 = vld [vmem:[#allocation2 + $0x968] sm:$0xff]
    %v6270 = vld [vmem:[#allocation2 + $0x970] sm:$0xff]
    %v6271 = vld [vmem:[#allocation2 + $0x978] sm:$0xff]
    %v6272 = vld [vmem:[#allocation2 + $0x980] sm:$0xff]
    %v6273 = vld [vmem:[#allocation2 + $0x988] sm:$0xff]
    %v6274 = vld [vmem:[#allocation2 + $0x990] sm:$0xff]
    %v6275 = vld [vmem:[#allocation2 + $0x998] sm:$0xff]
    %v6276 = vld [vmem:[#allocation2 + $0x9a0] sm:$0xff]
    %v6277 = vld [vmem:[#allocation2 + $0x9a8] sm:$0xff]
    %v6278 = vld [vmem:[#allocation2 + $0x9b0] sm:$0xff]
    %v6279 = vld [vmem:[#allocation2 + $0x9b8] sm:$0xff]
    %v6280 = vld [vmem:[#allocation2 + $0x9c0] sm:$0xff]
    %v6281 = vld [vmem:[#allocation2 + $0x9c8] sm:$0xff]
    %v6282 = vld [vmem:[#allocation2 + $0x9d0] sm:$0xff]
    %v6283 = vld [vmem:[#allocation2 + $0x9d8] sm:$0xff]
    %v6284 = vld [vmem:[#allocation2 + $0x9e0] sm:$0xff]
    %v6285 = vld [vmem:[#allocation2 + $0x9e8] sm:$0xff]
    %v6286 = vld [vmem:[#allocation2 + $0x9f0] sm:$0xff]
    %v6287 = vld [vmem:[#allocation2 + $0x9f8] sm:$0xff]
    %v6289 = vunpack.c.l.b16 %v6255
    %v6290 = vpack.c.b16 %v6289, %v6289
    %v6291 = vrot.slane %v6290, 2
    %v6325 = vunpack.c.l.b16 %v6256
    %v6326 = vunpack.c.h.b16 %v6256
    %v6327 = vunpack.c.l.b16 %v6257
    %v6328 = vunpack.c.h.b16 %v6257
    %v6329 = vunpack.c.l.b16 %v6258
    %v6330 = vunpack.c.h.b16 %v6258
    %v6331 = vunpack.c.l.b16 %v6259
    %v6332 = vunpack.c.h.b16 %v6259
    %v6333 = vunpack.c.l.b16 %v6260
    %v6334 = vunpack.c.h.b16 %v6260
    %v6335 = vunpack.c.l.b16 %v6261
    %v6336 = vunpack.c.h.b16 %v6261
    %v6337 = vunpack.c.l.b16 %v6262
    %v6338 = vunpack.c.h.b16 %v6262
    %v6339 = vunpack.c.l.b16 %v6263
    %v6340 = vunpack.c.h.b16 %v6263
    %v6341 = vunpack.c.l.b16 %v6264
    %v6342 = vunpack.c.h.b16 %v6264
    %v6343 = vunpack.c.l.b16 %v6265
    %v6344 = vunpack.c.h.b16 %v6265
    %v6345 = vunpack.c.l.b16 %v6266
    %v6346 = vunpack.c.h.b16 %v6266
    %v6347 = vunpack.c.l.b16 %v6267
    %v6348 = vunpack.c.h.b16 %v6267
    %v6349 = vunpack.c.l.b16 %v6268
    %v6350 = vunpack.c.h.b16 %v6268
    %v6351 = vunpack.c.l.b16 %v6269
    %v6352 = vunpack.c.h.b16 %v6269
    %v6353 = vunpack.c.l.b16 %v6270
    %v6354 = vunpack.c.h.b16 %v6270
    %v6355 = vunpack.c.l.b16 %v6271
    %v6356 = vunpack.c.h.b16 %v6271
    %v6357 = vunpack.c.l.b16 %v6272
    %v6358 = vunpack.c.h.b16 %v6272
    %v6359 = vunpack.c.l.b16 %v6273
    %v6360 = vunpack.c.h.b16 %v6273
    %v6361 = vunpack.c.l.b16 %v6274
    %v6362 = vunpack.c.h.b16 %v6274
    %v6363 = vunpack.c.l.b16 %v6275
    %v6364 = vunpack.c.h.b16 %v6275
    %v6365 = vunpack.c.l.b16 %v6276
    %v6366 = vunpack.c.h.b16 %v6276
    %v6367 = vunpack.c.l.b16 %v6277
    %v6368 = vunpack.c.h.b16 %v6277
    %v6369 = vunpack.c.l.b16 %v6278
    %v6370 = vunpack.c.h.b16 %v6278
    %v6371 = vunpack.c.l.b16 %v6279
    %v6372 = vunpack.c.h.b16 %v6279
    %v6373 = vunpack.c.l.b16 %v6280
    %v6374 = vunpack.c.h.b16 %v6280
    %v6375 = vunpack.c.l.b16 %v6281
    %v6376 = vunpack.c.h.b16 %v6281
    %v6377 = vunpack.c.l.b16 %v6282
    %v6378 = vunpack.c.h.b16 %v6282
    %v6379 = vunpack.c.l.b16 %v6283
    %v6380 = vunpack.c.h.b16 %v6283
    %v6381 = vunpack.c.l.b16 %v6284
    %v6382 = vunpack.c.h.b16 %v6284
    %v6383 = vunpack.c.l.b16 %v6285
    %v6384 = vunpack.c.h.b16 %v6285
    %v6385 = vunpack.c.l.b16 %v6286
    %v6386 = vunpack.c.h.b16 %v6286
    %v6387 = vunpack.c.l.b16 %v6287
    %v6388 = vunpack.c.h.b16 %v6287
    %v6389 = vpack.c.b16 %v6329, %v6325
    %v6390 = vpack.c.b16 %v6330, %v6326
    %v6391 = vpack.c.b16 %v6331, %v6327
    %v6392 = vpack.c.b16 %v6332, %v6328
    %v6393 = vpack.c.b16 %v6337, %v6333
    %v6394 = vpack.c.b16 %v6338, %v6334
    %v6395 = vpack.c.b16 %v6339, %v6335
    %v6396 = vpack.c.b16 %v6340, %v6336
    %v6397 = vpack.c.b16 %v6345, %v6341
    %v6398 = vpack.c.b16 %v6346, %v6342
    %v6399 = vpack.c.b16 %v6347, %v6343
    %v6400 = vpack.c.b16 %v6348, %v6344
    %v6401 = vpack.c.b16 %v6353, %v6349
    %v6402 = vpack.c.b16 %v6354, %v6350
    %v6403 = vpack.c.b16 %v6355, %v6351
    %v6404 = vpack.c.b16 %v6356, %v6352
    %v6405 = vpack.c.b16 %v6361, %v6357
    %v6406 = vpack.c.b16 %v6362, %v6358
    %v6407 = vpack.c.b16 %v6363, %v6359
    %v6408 = vpack.c.b16 %v6364, %v6360
    %v6409 = vpack.c.b16 %v6369, %v6365
    %v6410 = vpack.c.b16 %v6370, %v6366
    %v6411 = vpack.c.b16 %v6371, %v6367
    %v6412 = vpack.c.b16 %v6372, %v6368
    %v6413 = vpack.c.b16 %v6377, %v6373
    %v6414 = vpack.c.b16 %v6378, %v6374
    %v6415 = vpack.c.b16 %v6379, %v6375
    %v6416 = vpack.c.b16 %v6380, %v6376
    %v6417 = vpack.c.b16 %v6385, %v6381
    %v6418 = vpack.c.b16 %v6386, %v6382
    %v6419 = vpack.c.b16 %v6387, %v6383
    %v6420 = vpack.c.b16 %v6388, %v6384
    %6453 = vmatprep.subr.bf16.mxu0 %v6418
    %6454 = vmatpush1.bf16.msra.mxu0 %v6417
    %6455 = vmatprep.subr.bf16.mxu0 %v6414
    %6456 = vmatpush1.bf16.msra.mxu0 %v6413
    %6457 = vmatprep.subr.bf16.mxu0 %v6410
    %6458 = vmatpush1.bf16.msra.mxu0 %v6409
    %6459 = vmatprep.subr.bf16.mxu0 %v6406
    %6460 = vmatpush1.bf16.msra.mxu0 %v6405
    %6461 = vmatprep.subr.bf16.mxu0 %v6402
    %6462 = vmatpush1.bf16.msra.mxu0 %v6401
    %6463 = vmatprep.subr.bf16.mxu0 %v6398
    %6464 = vmatpush1.bf16.msra.mxu0 %v6397
    %6465 = vmatprep.subr.bf16.mxu0 %v6394
    %6466 = vmatpush1.bf16.msra.mxu0 %v6393
    %6467 = vmatprep.subr.bf16.mxu0 %v6390
    %6468 = vmatpush1.bf16.msra.mxu0 %v6389
    %6469 = vmatprep.subr.bf16.mxu0 0
    %6470 = vmatpush2.bf16.msra.mxu0 0
    %6471 = vmatprep.subr.bf16.mxu0 0
    %6472 = vmatpush2.bf16.msra.mxu0 0
    %6473 = vmatprep.subr.bf16.mxu0 0
    %6474 = vmatpush2.bf16.msra.mxu0 0
    %6475 = vmatprep.subr.bf16.mxu0 0
    %6476 = vmatpush2.bf16.msra.mxu0 0
    %6477 = vmatprep.subr.bf16.mxu0 0
    %6478 = vmatpush2.bf16.msra.mxu0 0
    %6479 = vmatprep.subr.bf16.mxu0 0
    %6480 = vmatpush2.bf16.msra.mxu0 0
    %6481 = vmatprep.subr.bf16.mxu0 0
    %6482 = vmatpush2.bf16.msra.mxu0 0
    %6483 = vmatprep.subr.bf16.mxu0 0
    %6484 = vmatpush2.bf16.msra.mxu0 0
    %6485 = vmatprep.mubr.bf16.mxu0 0
    %6486 = vmatmul.mubr.bf16.gmra.mxu0 %v6291
    %v6487 = vpop.f32.mrf.mxu0
    %v6488 = vadd.f32 0.0, %v6487
    %v6489 = vpop.f32.mrf.mxu0
    %v6490 = vadd.f32 0.0, %v6489
    %v6491 = vpop.f32.mrf.mxu0
    %v6492 = vpop.f32.mrf.mxu0
    %6493 = vdwg.mxu0
    %6494 = vmatprep.subr.bf16.mxu0 %v6420
    %6495 = vmatpush1.bf16.msra.mxu0 %v6419
    %6496 = vmatprep.subr.bf16.mxu0 %v6416
    %6497 = vmatpush1.bf16.msra.mxu0 %v6415
    %6498 = vmatprep.subr.bf16.mxu0 %v6412
    %6499 = vmatpush1.bf16.msra.mxu0 %v6411
    %6500 = vmatprep.subr.bf16.mxu0 %v6408
    %6501 = vmatpush1.bf16.msra.mxu0 %v6407
    %6502 = vmatprep.subr.bf16.mxu0 %v6404
    %6503 = vmatpush1.bf16.msra.mxu0 %v6403
    %6504 = vmatprep.subr.bf16.mxu0 %v6400
    %6505 = vmatpush1.bf16.msra.mxu0 %v6399
    %6506 = vmatprep.subr.bf16.mxu0 %v6396
    %6507 = vmatpush1.bf16.msra.mxu0 %v6395
    %6508 = vmatprep.subr.bf16.mxu0 %v6392
    %6509 = vmatpush1.bf16.msra.mxu0 %v6391
    %6510 = vmatprep.subr.bf16.mxu0 0
    %6511 = vmatpush2.bf16.msra.mxu0 0
    %6512 = vmatprep.subr.bf16.mxu0 0
    %6513 = vmatpush2.bf16.msra.mxu0 0
    %6514 = vmatprep.subr.bf16.mxu0 0
    %6515 = vmatpush2.bf16.msra.mxu0 0
    %6516 = vmatprep.subr.bf16.mxu0 0
    %6517 = vmatpush2.bf16.msra.mxu0 0
    %6518 = vmatprep.subr.bf16.mxu0 0
    %6519 = vmatpush2.bf16.msra.mxu0 0
    %6520 = vmatprep.subr.bf16.mxu0 0
    %6521 = vmatpush2.bf16.msra.mxu0 0
    %6522 = vmatprep.subr.bf16.mxu0 0
    %6523 = vmatpush2.bf16.msra.mxu0 0
    %6524 = vmatprep.subr.bf16.mxu0 0
    %6525 = vmatpush2.bf16.msra.mxu0 0
    %6526 = vmatprep.mubr.bf16.mxu0 0
    %6527 = vmatmul.mubr.bf16.gmra.mxu0 %v6291
    %v6528 = vpop.f32.mrf.mxu0
    %v6529 = vadd.f32 0.0, %v6528
    %v6530 = vpop.f32.mrf.mxu0
    %v6531 = vadd.f32 0.0, %v6530
    %v6532 = vpop.f32.mrf.mxu0
    %v6533 = vpop.f32.mrf.mxu0
    %6534 = vdwg.mxu0
    %v6535 = vadd.f32 %v6251, %v6488
    %v6536 = vadd.f32 %v6252, %v6490
    %v6537 = vadd.f32 %v6253, %v6529
    %v6538 = vadd.f32 %v6254, %v6531
    %v6539 = vld [vmem:[#allocation5 + $0x14] sm:$0x3]
    %v6540 = vld [vmem:[#allocation2 + $0xa00] sm:$0xff]
    %v6541 = vld [vmem:[#allocation2 + $0xa08] sm:$0xff]
    %v6542 = vld [vmem:[#allocation2 + $0xa10] sm:$0xff]
    %v6543 = vld [vmem:[#allocation2 + $0xa18] sm:$0xff]
    %v6544 = vld [vmem:[#allocation2 + $0xa20] sm:$0xff]
    %v6545 = vld [vmem:[#allocation2 + $0xa28] sm:$0xff]
    %v6546 = vld [vmem:[#allocation2 + $0xa30] sm:$0xff]
    %v6547 = vld [vmem:[#allocation2 + $0xa38] sm:$0xff]
    %v6548 = vld [vmem:[#allocation2 + $0xa40] sm:$0xff]
    %v6549 = vld [vmem:[#allocation2 + $0xa48] sm:$0xff]
    %v6550 = vld [vmem:[#allocation2 + $0xa50] sm:$0xff]
    %v6551 = vld [vmem:[#allocation2 + $0xa58] sm:$0xff]
    %v6552 = vld [vmem:[#allocation2 + $0xa60] sm:$0xff]
    %v6553 = vld [vmem:[#allocation2 + $0xa68] sm:$0xff]
    %v6554 = vld [vmem:[#allocation2 + $0xa70] sm:$0xff]
    %v6555 = vld [vmem:[#allocation2 + $0xa78] sm:$0xff]
    %v6556 = vld [vmem:[#allocation2 + $0xa80] sm:$0xff]
    %v6557 = vld [vmem:[#allocation2 + $0xa88] sm:$0xff]
    %v6558 = vld [vmem:[#allocation2 + $0xa90] sm:$0xff]
    %v6559 = vld [vmem:[#allocation2 + $0xa98] sm:$0xff]
    %v6560 = vld [vmem:[#allocation2 + $0xaa0] sm:$0xff]
    %v6561 = vld [vmem:[#allocation2 + $0xaa8] sm:$0xff]
    %v6562 = vld [vmem:[#allocation2 + $0xab0] sm:$0xff]
    %v6563 = vld [vmem:[#allocation2 + $0xab8] sm:$0xff]
    %v6564 = vld [vmem:[#allocation2 + $0xac0] sm:$0xff]
    %v6565 = vld [vmem:[#allocation2 + $0xac8] sm:$0xff]
    %v6566 = vld [vmem:[#allocation2 + $0xad0] sm:$0xff]
    %v6567 = vld [vmem:[#allocation2 + $0xad8] sm:$0xff]
    %v6568 = vld [vmem:[#allocation2 + $0xae0] sm:$0xff]
    %v6569 = vld [vmem:[#allocation2 + $0xae8] sm:$0xff]
    %v6570 = vld [vmem:[#allocation2 + $0xaf0] sm:$0xff]
    %v6571 = vld [vmem:[#allocation2 + $0xaf8] sm:$0xff]
    %v6604 = vunpack.c.l.b16 %v6540
    %v6605 = vunpack.c.h.b16 %v6540
    %v6606 = vunpack.c.l.b16 %v6541
    %v6607 = vunpack.c.h.b16 %v6541
    %v6608 = vunpack.c.l.b16 %v6542
    %v6609 = vunpack.c.h.b16 %v6542
    %v6610 = vunpack.c.l.b16 %v6543
    %v6611 = vunpack.c.h.b16 %v6543
    %v6612 = vunpack.c.l.b16 %v6544
    %v6613 = vunpack.c.h.b16 %v6544
    %v6614 = vunpack.c.l.b16 %v6545
    %v6615 = vunpack.c.h.b16 %v6545
    %v6616 = vunpack.c.l.b16 %v6546
    %v6617 = vunpack.c.h.b16 %v6546
    %v6618 = vunpack.c.l.b16 %v6547
    %v6619 = vunpack.c.h.b16 %v6547
    %v6620 = vunpack.c.l.b16 %v6548
    %v6621 = vunpack.c.h.b16 %v6548
    %v6622 = vunpack.c.l.b16 %v6549
    %v6623 = vunpack.c.h.b16 %v6549
    %v6624 = vunpack.c.l.b16 %v6550
    %v6625 = vunpack.c.h.b16 %v6550
    %v6626 = vunpack.c.l.b16 %v6551
    %v6627 = vunpack.c.h.b16 %v6551
    %v6628 = vunpack.c.l.b16 %v6552
    %v6629 = vunpack.c.h.b16 %v6552
    %v6630 = vunpack.c.l.b16 %v6553
    %v6631 = vunpack.c.h.b16 %v6553
    %v6632 = vunpack.c.l.b16 %v6554
    %v6633 = vunpack.c.h.b16 %v6554
    %v6634 = vunpack.c.l.b16 %v6555
    %v6635 = vunpack.c.h.b16 %v6555
    %v6636 = vunpack.c.l.b16 %v6556
    %v6637 = vunpack.c.h.b16 %v6556
    %v6638 = vunpack.c.l.b16 %v6557
    %v6639 = vunpack.c.h.b16 %v6557
    %v6640 = vunpack.c.l.b16 %v6558
    %v6641 = vunpack.c.h.b16 %v6558
    %v6642 = vunpack.c.l.b16 %v6559
    %v6643 = vunpack.c.h.b16 %v6559
    %v6644 = vunpack.c.l.b16 %v6560
    %v6645 = vunpack.c.h.b16 %v6560
    %v6646 = vunpack.c.l.b16 %v6561
    %v6647 = vunpack.c.h.b16 %v6561
    %v6648 = vunpack.c.l.b16 %v6562
    %v6649 = vunpack.c.h.b16 %v6562
    %v6650 = vunpack.c.l.b16 %v6563
    %v6651 = vunpack.c.h.b16 %v6563
    %v6652 = vunpack.c.l.b16 %v6564
    %v6653 = vunpack.c.h.b16 %v6564
    %v6654 = vunpack.c.l.b16 %v6565
    %v6655 = vunpack.c.h.b16 %v6565
    %v6656 = vunpack.c.l.b16 %v6566
    %v6657 = vunpack.c.h.b16 %v6566
    %v6658 = vunpack.c.l.b16 %v6567
    %v6659 = vunpack.c.h.b16 %v6567
    %v6660 = vunpack.c.l.b16 %v6568
    %v6661 = vunpack.c.h.b16 %v6568
    %v6662 = vunpack.c.l.b16 %v6569
    %v6663 = vunpack.c.h.b16 %v6569
    %v6664 = vunpack.c.l.b16 %v6570
    %v6665 = vunpack.c.h.b16 %v6570
    %v6666 = vunpack.c.l.b16 %v6571
    %v6667 = vunpack.c.h.b16 %v6571
    %v6668 = vpack.c.b16 %v6608, %v6604
    %v6669 = vpack.c.b16 %v6609, %v6605
    %v6670 = vpack.c.b16 %v6610, %v6606
    %v6671 = vpack.c.b16 %v6611, %v6607
    %v6672 = vpack.c.b16 %v6616, %v6612
    %v6673 = vpack.c.b16 %v6617, %v6613
    %v6674 = vpack.c.b16 %v6618, %v6614
    %v6675 = vpack.c.b16 %v6619, %v6615
    %v6676 = vpack.c.b16 %v6624, %v6620
    %v6677 = vpack.c.b16 %v6625, %v6621
    %v6678 = vpack.c.b16 %v6626, %v6622
    %v6679 = vpack.c.b16 %v6627, %v6623
    %v6680 = vpack.c.b16 %v6632, %v6628
    %v6681 = vpack.c.b16 %v6633, %v6629
    %v6682 = vpack.c.b16 %v6634, %v6630
    %v6683 = vpack.c.b16 %v6635, %v6631
    %v6684 = vpack.c.b16 %v6640, %v6636
    %v6685 = vpack.c.b16 %v6641, %v6637
    %v6686 = vpack.c.b16 %v6642, %v6638
    %v6687 = vpack.c.b16 %v6643, %v6639
    %v6688 = vpack.c.b16 %v6648, %v6644
    %v6689 = vpack.c.b16 %v6649, %v6645
    %v6690 = vpack.c.b16 %v6650, %v6646
    %v6691 = vpack.c.b16 %v6651, %v6647
    %v6692 = vpack.c.b16 %v6656, %v6652
    %v6693 = vpack.c.b16 %v6657, %v6653
    %v6694 = vpack.c.b16 %v6658, %v6654
    %v6695 = vpack.c.b16 %v6659, %v6655
    %v6696 = vpack.c.b16 %v6664, %v6660
    %v6697 = vpack.c.b16 %v6665, %v6661
    %v6698 = vpack.c.b16 %v6666, %v6662
    %v6699 = vpack.c.b16 %v6667, %v6663
    %6732 = vmatprep.subr.bf16.mxu0 %v6697
    %6733 = vmatpush1.bf16.msra.mxu0 %v6696
    %6734 = vmatprep.subr.bf16.mxu0 %v6693
    %6735 = vmatpush1.bf16.msra.mxu0 %v6692
    %6736 = vmatprep.subr.bf16.mxu0 %v6689
    %6737 = vmatpush1.bf16.msra.mxu0 %v6688
    %6738 = vmatprep.subr.bf16.mxu0 %v6685
    %6739 = vmatpush1.bf16.msra.mxu0 %v6684
    %6740 = vmatprep.subr.bf16.mxu0 %v6681
    %6741 = vmatpush1.bf16.msra.mxu0 %v6680
    %6742 = vmatprep.subr.bf16.mxu0 %v6677
    %6743 = vmatpush1.bf16.msra.mxu0 %v6676
    %6744 = vmatprep.subr.bf16.mxu0 %v6673
    %6745 = vmatpush1.bf16.msra.mxu0 %v6672
    %6746 = vmatprep.subr.bf16.mxu0 %v6669
    %6747 = vmatpush1.bf16.msra.mxu0 %v6668
    %6748 = vmatprep.subr.bf16.mxu0 0
    %6749 = vmatpush2.bf16.msra.mxu0 0
    %6750 = vmatprep.subr.bf16.mxu0 0
    %6751 = vmatpush2.bf16.msra.mxu0 0
    %6752 = vmatprep.subr.bf16.mxu0 0
    %6753 = vmatpush2.bf16.msra.mxu0 0
    %6754 = vmatprep.subr.bf16.mxu0 0
    %6755 = vmatpush2.bf16.msra.mxu0 0
    %6756 = vmatprep.subr.bf16.mxu0 0
    %6757 = vmatpush2.bf16.msra.mxu0 0
    %6758 = vmatprep.subr.bf16.mxu0 0
    %6759 = vmatpush2.bf16.msra.mxu0 0
    %6760 = vmatprep.subr.bf16.mxu0 0
    %6761 = vmatpush2.bf16.msra.mxu0 0
    %6762 = vmatprep.subr.bf16.mxu0 0
    %6763 = vmatpush2.bf16.msra.mxu0 0
    %6764 = vmatprep.mubr.bf16.mxu0 0
    %6765 = vmatmul.mubr.bf16.gmra.mxu0 %v6539
    %v6766 = vpop.f32.mrf.mxu0
    %v6767 = vadd.f32 0.0, %v6766
    %v6768 = vpop.f32.mrf.mxu0
    %v6769 = vadd.f32 0.0, %v6768
    %v6770 = vpop.f32.mrf.mxu0
    %v6771 = vpop.f32.mrf.mxu0
    %6772 = vdwg.mxu0
    %6773 = vmatprep.subr.bf16.mxu0 %v6699
    %6774 = vmatpush1.bf16.msra.mxu0 %v6698
    %6775 = vmatprep.subr.bf16.mxu0 %v6695
    %6776 = vmatpush1.bf16.msra.mxu0 %v6694
    %6777 = vmatprep.subr.bf16.mxu0 %v6691
    %6778 = vmatpush1.bf16.msra.mxu0 %v6690
    %6779 = vmatprep.subr.bf16.mxu0 %v6687
    %6780 = vmatpush1.bf16.msra.mxu0 %v6686
    %6781 = vmatprep.subr.bf16.mxu0 %v6683
    %6782 = vmatpush1.bf16.msra.mxu0 %v6682
    %6783 = vmatprep.subr.bf16.mxu0 %v6679
    %6784 = vmatpush1.bf16.msra.mxu0 %v6678
    %6785 = vmatprep.subr.bf16.mxu0 %v6675
    %6786 = vmatpush1.bf16.msra.mxu0 %v6674
    %6787 = vmatprep.subr.bf16.mxu0 %v6671
    %6788 = vmatpush1.bf16.msra.mxu0 %v6670
    %6789 = vmatprep.subr.bf16.mxu0 0
    %6790 = vmatpush2.bf16.msra.mxu0 0
    %6791 = vmatprep.subr.bf16.mxu0 0
    %6792 = vmatpush2.bf16.msra.mxu0 0
    %6793 = vmatprep.subr.bf16.mxu0 0
    %6794 = vmatpush2.bf16.msra.mxu0 0
    %6795 = vmatprep.subr.bf16.mxu0 0
    %6796 = vmatpush2.bf16.msra.mxu0 0
    %6797 = vmatprep.subr.bf16.mxu0 0
    %6798 = vmatpush2.bf16.msra.mxu0 0
    %6799 = vmatprep.subr.bf16.mxu0 0
    %6800 = vmatpush2.bf16.msra.mxu0 0
    %6801 = vmatprep.subr.bf16.mxu0 0
    %6802 = vmatpush2.bf16.msra.mxu0 0
    %6803 = vmatprep.subr.bf16.mxu0 0
    %6804 = vmatpush2.bf16.msra.mxu0 0
    %6805 = vmatprep.mubr.bf16.mxu0 0
    %6806 = vmatmul.mubr.bf16.gmra.mxu0 %v6539
    %v6807 = vpop.f32.mrf.mxu0
    %v6808 = vadd.f32 0.0, %v6807
    %v6809 = vpop.f32.mrf.mxu0
    %v6810 = vadd.f32 0.0, %v6809
    %v6811 = vpop.f32.mrf.mxu0
    %v6812 = vpop.f32.mrf.mxu0
    %6813 = vdwg.mxu0
    %v6814 = vadd.f32 %v6535, %v6767
    %v6815 = vadd.f32 %v6536, %v6769
    %v6816 = vadd.f32 %v6537, %v6808
    %v6817 = vadd.f32 %v6538, %v6810
    %v6818 = vld [vmem:[#allocation5 + $0x14] sm:$0xc]
    %v6819 = vld [vmem:[#allocation2 + $0xb00] sm:$0xff]
    %v6820 = vld [vmem:[#allocation2 + $0xb08] sm:$0xff]
    %v6821 = vld [vmem:[#allocation2 + $0xb10] sm:$0xff]
    %v6822 = vld [vmem:[#allocation2 + $0xb18] sm:$0xff]
    %v6823 = vld [vmem:[#allocation2 + $0xb20] sm:$0xff]
    %v6824 = vld [vmem:[#allocation2 + $0xb28] sm:$0xff]
    %v6825 = vld [vmem:[#allocation2 + $0xb30] sm:$0xff]
    %v6826 = vld [vmem:[#allocation2 + $0xb38] sm:$0xff]
    %v6827 = vld [vmem:[#allocation2 + $0xb40] sm:$0xff]
    %v6828 = vld [vmem:[#allocation2 + $0xb48] sm:$0xff]
    %v6829 = vld [vmem:[#allocation2 + $0xb50] sm:$0xff]
    %v6830 = vld [vmem:[#allocation2 + $0xb58] sm:$0xff]
    %v6831 = vld [vmem:[#allocation2 + $0xb60] sm:$0xff]
    %v6832 = vld [vmem:[#allocation2 + $0xb68] sm:$0xff]
    %v6833 = vld [vmem:[#allocation2 + $0xb70] sm:$0xff]
    %v6834 = vld [vmem:[#allocation2 + $0xb78] sm:$0xff]
    %v6835 = vld [vmem:[#allocation2 + $0xb80] sm:$0xff]
    %v6836 = vld [vmem:[#allocation2 + $0xb88] sm:$0xff]
    %v6837 = vld [vmem:[#allocation2 + $0xb90] sm:$0xff]
    %v6838 = vld [vmem:[#allocation2 + $0xb98] sm:$0xff]
    %v6839 = vld [vmem:[#allocation2 + $0xba0] sm:$0xff]
    %v6840 = vld [vmem:[#allocation2 + $0xba8] sm:$0xff]
    %v6841 = vld [vmem:[#allocation2 + $0xbb0] sm:$0xff]
    %v6842 = vld [vmem:[#allocation2 + $0xbb8] sm:$0xff]
    %v6843 = vld [vmem:[#allocation2 + $0xbc0] sm:$0xff]
    %v6844 = vld [vmem:[#allocation2 + $0xbc8] sm:$0xff]
    %v6845 = vld [vmem:[#allocation2 + $0xbd0] sm:$0xff]
    %v6846 = vld [vmem:[#allocation2 + $0xbd8] sm:$0xff]
    %v6847 = vld [vmem:[#allocation2 + $0xbe0] sm:$0xff]
    %v6848 = vld [vmem:[#allocation2 + $0xbe8] sm:$0xff]
    %v6849 = vld [vmem:[#allocation2 + $0xbf0] sm:$0xff]
    %v6850 = vld [vmem:[#allocation2 + $0xbf8] sm:$0xff]
    %v6852 = vunpack.c.l.b16 %v6818
    %v6853 = vpack.c.b16 %v6852, %v6852
    %v6854 = vrot.slane %v6853, 2
    %v6888 = vunpack.c.l.b16 %v6819
    %v6889 = vunpack.c.h.b16 %v6819
    %v6890 = vunpack.c.l.b16 %v6820
    %v6891 = vunpack.c.h.b16 %v6820
    %v6892 = vunpack.c.l.b16 %v6821
    %v6893 = vunpack.c.h.b16 %v6821
    %v6894 = vunpack.c.l.b16 %v6822
    %v6895 = vunpack.c.h.b16 %v6822
    %v6896 = vunpack.c.l.b16 %v6823
    %v6897 = vunpack.c.h.b16 %v6823
    %v6898 = vunpack.c.l.b16 %v6824
    %v6899 = vunpack.c.h.b16 %v6824
    %v6900 = vunpack.c.l.b16 %v6825
    %v6901 = vunpack.c.h.b16 %v6825
    %v6902 = vunpack.c.l.b16 %v6826
    %v6903 = vunpack.c.h.b16 %v6826
    %v6904 = vunpack.c.l.b16 %v6827
    %v6905 = vunpack.c.h.b16 %v6827
    %v6906 = vunpack.c.l.b16 %v6828
    %v6907 = vunpack.c.h.b16 %v6828
    %v6908 = vunpack.c.l.b16 %v6829
    %v6909 = vunpack.c.h.b16 %v6829
    %v6910 = vunpack.c.l.b16 %v6830
    %v6911 = vunpack.c.h.b16 %v6830
    %v6912 = vunpack.c.l.b16 %v6831
    %v6913 = vunpack.c.h.b16 %v6831
    %v6914 = vunpack.c.l.b16 %v6832
    %v6915 = vunpack.c.h.b16 %v6832
    %v6916 = vunpack.c.l.b16 %v6833
    %v6917 = vunpack.c.h.b16 %v6833
    %v6918 = vunpack.c.l.b16 %v6834
    %v6919 = vunpack.c.h.b16 %v6834
    %v6920 = vunpack.c.l.b16 %v6835
    %v6921 = vunpack.c.h.b16 %v6835
    %v6922 = vunpack.c.l.b16 %v6836
    %v6923 = vunpack.c.h.b16 %v6836
    %v6924 = vunpack.c.l.b16 %v6837
    %v6925 = vunpack.c.h.b16 %v6837
    %v6926 = vunpack.c.l.b16 %v6838
    %v6927 = vunpack.c.h.b16 %v6838
    %v6928 = vunpack.c.l.b16 %v6839
    %v6929 = vunpack.c.h.b16 %v6839
    %v6930 = vunpack.c.l.b16 %v6840
    %v6931 = vunpack.c.h.b16 %v6840
    %v6932 = vunpack.c.l.b16 %v6841
    %v6933 = vunpack.c.h.b16 %v6841
    %v6934 = vunpack.c.l.b16 %v6842
    %v6935 = vunpack.c.h.b16 %v6842
    %v6936 = vunpack.c.l.b16 %v6843
    %v6937 = vunpack.c.h.b16 %v6843
    %v6938 = vunpack.c.l.b16 %v6844
    %v6939 = vunpack.c.h.b16 %v6844
    %v6940 = vunpack.c.l.b16 %v6845
    %v6941 = vunpack.c.h.b16 %v6845
    %v6942 = vunpack.c.l.b16 %v6846
    %v6943 = vunpack.c.h.b16 %v6846
    %v6944 = vunpack.c.l.b16 %v6847
    %v6945 = vunpack.c.h.b16 %v6847
    %v6946 = vunpack.c.l.b16 %v6848
    %v6947 = vunpack.c.h.b16 %v6848
    %v6948 = vunpack.c.l.b16 %v6849
    %v6949 = vunpack.c.h.b16 %v6849
    %v6950 = vunpack.c.l.b16 %v6850
    %v6951 = vunpack.c.h.b16 %v6850
    %v6952 = vpack.c.b16 %v6892, %v6888
    %v6953 = vpack.c.b16 %v6893, %v6889
    %v6954 = vpack.c.b16 %v6894, %v6890
    %v6955 = vpack.c.b16 %v6895, %v6891
    %v6956 = vpack.c.b16 %v6900, %v6896
    %v6957 = vpack.c.b16 %v6901, %v6897
    %v6958 = vpack.c.b16 %v6902, %v6898
    %v6959 = vpack.c.b16 %v6903, %v6899
    %v6960 = vpack.c.b16 %v6908, %v6904
    %v6961 = vpack.c.b16 %v6909, %v6905
    %v6962 = vpack.c.b16 %v6910, %v6906
    %v6963 = vpack.c.b16 %v6911, %v6907
    %v6964 = vpack.c.b16 %v6916, %v6912
    %v6965 = vpack.c.b16 %v6917, %v6913
    %v6966 = vpack.c.b16 %v6918, %v6914
    %v6967 = vpack.c.b16 %v6919, %v6915
    %v6968 = vpack.c.b16 %v6924, %v6920
    %v6969 = vpack.c.b16 %v6925, %v6921
    %v6970 = vpack.c.b16 %v6926, %v6922
    %v6971 = vpack.c.b16 %v6927, %v6923
    %v6972 = vpack.c.b16 %v6932, %v6928
    %v6973 = vpack.c.b16 %v6933, %v6929
    %v6974 = vpack.c.b16 %v6934, %v6930
    %v6975 = vpack.c.b16 %v6935, %v6931
    %v6976 = vpack.c.b16 %v6940, %v6936
    %v6977 = vpack.c.b16 %v6941, %v6937
    %v6978 = vpack.c.b16 %v6942, %v6938
    %v6979 = vpack.c.b16 %v6943, %v6939
    %v6980 = vpack.c.b16 %v6948, %v6944
    %v6981 = vpack.c.b16 %v6949, %v6945
    %v6982 = vpack.c.b16 %v6950, %v6946
    %v6983 = vpack.c.b16 %v6951, %v6947
    %7016 = vmatprep.subr.bf16.mxu0 %v6981
    %7017 = vmatpush1.bf16.msra.mxu0 %v6980
    %7018 = vmatprep.subr.bf16.mxu0 %v6977
    %7019 = vmatpush1.bf16.msra.mxu0 %v6976
    %7020 = vmatprep.subr.bf16.mxu0 %v6973
    %7021 = vmatpush1.bf16.msra.mxu0 %v6972
    %7022 = vmatprep.subr.bf16.mxu0 %v6969
    %7023 = vmatpush1.bf16.msra.mxu0 %v6968
    %7024 = vmatprep.subr.bf16.mxu0 %v6965
    %7025 = vmatpush1.bf16.msra.mxu0 %v6964
    %7026 = vmatprep.subr.bf16.mxu0 %v6961
    %7027 = vmatpush1.bf16.msra.mxu0 %v6960
    %7028 = vmatprep.subr.bf16.mxu0 %v6957
    %7029 = vmatpush1.bf16.msra.mxu0 %v6956
    %7030 = vmatprep.subr.bf16.mxu0 %v6953
    %7031 = vmatpush1.bf16.msra.mxu0 %v6952
    %7032 = vmatprep.subr.bf16.mxu0 0
    %7033 = vmatpush2.bf16.msra.mxu0 0
    %7034 = vmatprep.subr.bf16.mxu0 0
    %7035 = vmatpush2.bf16.msra.mxu0 0
    %7036 = vmatprep.subr.bf16.mxu0 0
    %7037 = vmatpush2.bf16.msra.mxu0 0
    %7038 = vmatprep.subr.bf16.mxu0 0
    %7039 = vmatpush2.bf16.msra.mxu0 0
    %7040 = vmatprep.subr.bf16.mxu0 0
    %7041 = vmatpush2.bf16.msra.mxu0 0
    %7042 = vmatprep.subr.bf16.mxu0 0
    %7043 = vmatpush2.bf16.msra.mxu0 0
    %7044 = vmatprep.subr.bf16.mxu0 0
    %7045 = vmatpush2.bf16.msra.mxu0 0
    %7046 = vmatprep.subr.bf16.mxu0 0
    %7047 = vmatpush2.bf16.msra.mxu0 0
    %7048 = vmatprep.mubr.bf16.mxu0 0
    %7049 = vmatmul.mubr.bf16.gmra.mxu0 %v6854
    %v7050 = vpop.f32.mrf.mxu0
    %v7051 = vadd.f32 0.0, %v7050
    %v7052 = vpop.f32.mrf.mxu0
    %v7053 = vadd.f32 0.0, %v7052
    %v7054 = vpop.f32.mrf.mxu0
    %v7055 = vpop.f32.mrf.mxu0
    %7056 = vdwg.mxu0
    %7057 = vmatprep.subr.bf16.mxu0 %v6983
    %7058 = vmatpush1.bf16.msra.mxu0 %v6982
    %7059 = vmatprep.subr.bf16.mxu0 %v6979
    %7060 = vmatpush1.bf16.msra.mxu0 %v6978
    %7061 = vmatprep.subr.bf16.mxu0 %v6975
    %7062 = vmatpush1.bf16.msra.mxu0 %v6974
    %7063 = vmatprep.subr.bf16.mxu0 %v6971
    %7064 = vmatpush1.bf16.msra.mxu0 %v6970
    %7065 = vmatprep.subr.bf16.mxu0 %v6967
    %7066 = vmatpush1.bf16.msra.mxu0 %v6966
    %7067 = vmatprep.subr.bf16.mxu0 %v6963
    %7068 = vmatpush1.bf16.msra.mxu0 %v6962
    %7069 = vmatprep.subr.bf16.mxu0 %v6959
    %7070 = vmatpush1.bf16.msra.mxu0 %v6958
    %7071 = vmatprep.subr.bf16.mxu0 %v6955
    %7072 = vmatpush1.bf16.msra.mxu0 %v6954
    %7073 = vmatprep.subr.bf16.mxu0 0
    %7074 = vmatpush2.bf16.msra.mxu0 0
    %7075 = vmatprep.subr.bf16.mxu0 0
    %7076 = vmatpush2.bf16.msra.mxu0 0
    %7077 = vmatprep.subr.bf16.mxu0 0
    %7078 = vmatpush2.bf16.msra.mxu0 0
    %7079 = vmatprep.subr.bf16.mxu0 0
    %7080 = vmatpush2.bf16.msra.mxu0 0
    %7081 = vmatprep.subr.bf16.mxu0 0
    %7082 = vmatpush2.bf16.msra.mxu0 0
    %7083 = vmatprep.subr.bf16.mxu0 0
    %7084 = vmatpush2.bf16.msra.mxu0 0
    %7085 = vmatprep.subr.bf16.mxu0 0
    %7086 = vmatpush2.bf16.msra.mxu0 0
    %7087 = vmatprep.subr.bf16.mxu0 0
    %7088 = vmatpush2.bf16.msra.mxu0 0
    %7089 = vmatprep.mubr.bf16.mxu0 0
    %7090 = vmatmul.mubr.bf16.gmra.mxu0 %v6854
    %v7091 = vpop.f32.mrf.mxu0
    %v7092 = vadd.f32 0.0, %v7091
    %v7093 = vpop.f32.mrf.mxu0
    %v7094 = vadd.f32 0.0, %v7093
    %v7095 = vpop.f32.mrf.mxu0
    %v7096 = vpop.f32.mrf.mxu0
    %7097 = vdwg.mxu0
    %v7098 = vadd.f32 %v6814, %v7051
    %v7099 = vadd.f32 %v6815, %v7053
    %v7100 = vadd.f32 %v6816, %v7092
    %v7101 = vadd.f32 %v6817, %v7094
    %v7102 = vld [vmem:[#allocation5 + $0x18] sm:$0x3]
    %v7103 = vld [vmem:[#allocation2 + $0xc00] sm:$0xff]
    %v7104 = vld [vmem:[#allocation2 + $0xc08] sm:$0xff]
    %v7105 = vld [vmem:[#allocation2 + $0xc10] sm:$0xff]
    %v7106 = vld [vmem:[#allocation2 + $0xc18] sm:$0xff]
    %v7107 = vld [vmem:[#allocation2 + $0xc20] sm:$0xff]
    %v7108 = vld [vmem:[#allocation2 + $0xc28] sm:$0xff]
    %v7109 = vld [vmem:[#allocation2 + $0xc30] sm:$0xff]
    %v7110 = vld [vmem:[#allocation2 + $0xc38] sm:$0xff]
    %v7111 = vld [vmem:[#allocation2 + $0xc40] sm:$0xff]
    %v7112 = vld [vmem:[#allocation2 + $0xc48] sm:$0xff]
    %v7113 = vld [vmem:[#allocation2 + $0xc50] sm:$0xff]
    %v7114 = vld [vmem:[#allocation2 + $0xc58] sm:$0xff]
    %v7115 = vld [vmem:[#allocation2 + $0xc60] sm:$0xff]
    %v7116 = vld [vmem:[#allocation2 + $0xc68] sm:$0xff]
    %v7117 = vld [vmem:[#allocation2 + $0xc70] sm:$0xff]
    %v7118 = vld [vmem:[#allocation2 + $0xc78] sm:$0xff]
    %v7119 = vld [vmem:[#allocation2 + $0xc80] sm:$0xff]
    %v7120 = vld [vmem:[#allocation2 + $0xc88] sm:$0xff]
    %v7121 = vld [vmem:[#allocation2 + $0xc90] sm:$0xff]
    %v7122 = vld [vmem:[#allocation2 + $0xc98] sm:$0xff]
    %v7123 = vld [vmem:[#allocation2 + $0xca0] sm:$0xff]
    %v7124 = vld [vmem:[#allocation2 + $0xca8] sm:$0xff]
    %v7125 = vld [vmem:[#allocation2 + $0xcb0] sm:$0xff]
    %v7126 = vld [vmem:[#allocation2 + $0xcb8] sm:$0xff]
    %v7127 = vld [vmem:[#allocation2 + $0xcc0] sm:$0xff]
    %v7128 = vld [vmem:[#allocation2 + $0xcc8] sm:$0xff]
    %v7129 = vld [vmem:[#allocation2 + $0xcd0] sm:$0xff]
    %v7130 = vld [vmem:[#allocation2 + $0xcd8] sm:$0xff]
    %v7131 = vld [vmem:[#allocation2 + $0xce0] sm:$0xff]
    %v7132 = vld [vmem:[#allocation2 + $0xce8] sm:$0xff]
    %v7133 = vld [vmem:[#allocation2 + $0xcf0] sm:$0xff]
    %v7134 = vld [vmem:[#allocation2 + $0xcf8] sm:$0xff]
    %v7167 = vunpack.c.l.b16 %v7103
    %v7168 = vunpack.c.h.b16 %v7103
    %v7169 = vunpack.c.l.b16 %v7104
    %v7170 = vunpack.c.h.b16 %v7104
    %v7171 = vunpack.c.l.b16 %v7105
    %v7172 = vunpack.c.h.b16 %v7105
    %v7173 = vunpack.c.l.b16 %v7106
    %v7174 = vunpack.c.h.b16 %v7106
    %v7175 = vunpack.c.l.b16 %v7107
    %v7176 = vunpack.c.h.b16 %v7107
    %v7177 = vunpack.c.l.b16 %v7108
    %v7178 = vunpack.c.h.b16 %v7108
    %v7179 = vunpack.c.l.b16 %v7109
    %v7180 = vunpack.c.h.b16 %v7109
    %v7181 = vunpack.c.l.b16 %v7110
    %v7182 = vunpack.c.h.b16 %v7110
    %v7183 = vunpack.c.l.b16 %v7111
    %v7184 = vunpack.c.h.b16 %v7111
    %v7185 = vunpack.c.l.b16 %v7112
    %v7186 = vunpack.c.h.b16 %v7112
    %v7187 = vunpack.c.l.b16 %v7113
    %v7188 = vunpack.c.h.b16 %v7113
    %v7189 = vunpack.c.l.b16 %v7114
    %v7190 = vunpack.c.h.b16 %v7114
    %v7191 = vunpack.c.l.b16 %v7115
    %v7192 = vunpack.c.h.b16 %v7115
    %v7193 = vunpack.c.l.b16 %v7116
    %v7194 = vunpack.c.h.b16 %v7116
    %v7195 = vunpack.c.l.b16 %v7117
    %v7196 = vunpack.c.h.b16 %v7117
    %v7197 = vunpack.c.l.b16 %v7118
    %v7198 = vunpack.c.h.b16 %v7118
    %v7199 = vunpack.c.l.b16 %v7119
    %v7200 = vunpack.c.h.b16 %v7119
    %v7201 = vunpack.c.l.b16 %v7120
    %v7202 = vunpack.c.h.b16 %v7120
    %v7203 = vunpack.c.l.b16 %v7121
    %v7204 = vunpack.c.h.b16 %v7121
    %v7205 = vunpack.c.l.b16 %v7122
    %v7206 = vunpack.c.h.b16 %v7122
    %v7207 = vunpack.c.l.b16 %v7123
    %v7208 = vunpack.c.h.b16 %v7123
    %v7209 = vunpack.c.l.b16 %v7124
    %v7210 = vunpack.c.h.b16 %v7124
    %v7211 = vunpack.c.l.b16 %v7125
    %v7212 = vunpack.c.h.b16 %v7125
    %v7213 = vunpack.c.l.b16 %v7126
    %v7214 = vunpack.c.h.b16 %v7126
    %v7215 = vunpack.c.l.b16 %v7127
    %v7216 = vunpack.c.h.b16 %v7127
    %v7217 = vunpack.c.l.b16 %v7128
    %v7218 = vunpack.c.h.b16 %v7128
    %v7219 = vunpack.c.l.b16 %v7129
    %v7220 = vunpack.c.h.b16 %v7129
    %v7221 = vunpack.c.l.b16 %v7130
    %v7222 = vunpack.c.h.b16 %v7130
    %v7223 = vunpack.c.l.b16 %v7131
    %v7224 = vunpack.c.h.b16 %v7131
    %v7225 = vunpack.c.l.b16 %v7132
    %v7226 = vunpack.c.h.b16 %v7132
    %v7227 = vunpack.c.l.b16 %v7133
    %v7228 = vunpack.c.h.b16 %v7133
    %v7229 = vunpack.c.l.b16 %v7134
    %v7230 = vunpack.c.h.b16 %v7134
    %v7231 = vpack.c.b16 %v7171, %v7167
    %v7232 = vpack.c.b16 %v7172, %v7168
    %v7233 = vpack.c.b16 %v7173, %v7169
    %v7234 = vpack.c.b16 %v7174, %v7170
    %v7235 = vpack.c.b16 %v7179, %v7175
    %v7236 = vpack.c.b16 %v7180, %v7176
    %v7237 = vpack.c.b16 %v7181, %v7177
    %v7238 = vpack.c.b16 %v7182, %v7178
    %v7239 = vpack.c.b16 %v7187, %v7183
    %v7240 = vpack.c.b16 %v7188, %v7184
    %v7241 = vpack.c.b16 %v7189, %v7185
    %v7242 = vpack.c.b16 %v7190, %v7186
    %v7243 = vpack.c.b16 %v7195, %v7191
    %v7244 = vpack.c.b16 %v7196, %v7192
    %v7245 = vpack.c.b16 %v7197, %v7193
    %v7246 = vpack.c.b16 %v7198, %v7194
    %v7247 = vpack.c.b16 %v7203, %v7199
    %v7248 = vpack.c.b16 %v7204, %v7200
    %v7249 = vpack.c.b16 %v7205, %v7201
    %v7250 = vpack.c.b16 %v7206, %v7202
    %v7251 = vpack.c.b16 %v7211, %v7207
    %v7252 = vpack.c.b16 %v7212, %v7208
    %v7253 = vpack.c.b16 %v7213, %v7209
    %v7254 = vpack.c.b16 %v7214, %v7210
    %v7255 = vpack.c.b16 %v7219, %v7215
    %v7256 = vpack.c.b16 %v7220, %v7216
    %v7257 = vpack.c.b16 %v7221, %v7217
    %v7258 = vpack.c.b16 %v7222, %v7218
    %v7259 = vpack.c.b16 %v7227, %v7223
    %v7260 = vpack.c.b16 %v7228, %v7224
    %v7261 = vpack.c.b16 %v7229, %v7225
    %v7262 = vpack.c.b16 %v7230, %v7226
    %7295 = vmatprep.subr.bf16.mxu0 %v7260
    %7296 = vmatpush1.bf16.msra.mxu0 %v7259
    %7297 = vmatprep.subr.bf16.mxu0 %v7256
    %7298 = vmatpush1.bf16.msra.mxu0 %v7255
    %7299 = vmatprep.subr.bf16.mxu0 %v7252
    %7300 = vmatpush1.bf16.msra.mxu0 %v7251
    %7301 = vmatprep.subr.bf16.mxu0 %v7248
    %7302 = vmatpush1.bf16.msra.mxu0 %v7247
    %7303 = vmatprep.subr.bf16.mxu0 %v7244
    %7304 = vmatpush1.bf16.msra.mxu0 %v7243
    %7305 = vmatprep.subr.bf16.mxu0 %v7240
    %7306 = vmatpush1.bf16.msra.mxu0 %v7239
    %7307 = vmatprep.subr.bf16.mxu0 %v7236
    %7308 = vmatpush1.bf16.msra.mxu0 %v7235
    %7309 = vmatprep.subr.bf16.mxu0 %v7232
    %7310 = vmatpush1.bf16.msra.mxu0 %v7231
    %7311 = vmatprep.subr.bf16.mxu0 0
    %7312 = vmatpush2.bf16.msra.mxu0 0
    %7313 = vmatprep.subr.bf16.mxu0 0
    %7314 = vmatpush2.bf16.msra.mxu0 0
    %7315 = vmatprep.subr.bf16.mxu0 0
    %7316 = vmatpush2.bf16.msra.mxu0 0
    %7317 = vmatprep.subr.bf16.mxu0 0
    %7318 = vmatpush2.bf16.msra.mxu0 0
    %7319 = vmatprep.subr.bf16.mxu0 0
    %7320 = vmatpush2.bf16.msra.mxu0 0
    %7321 = vmatprep.subr.bf16.mxu0 0
    %7322 = vmatpush2.bf16.msra.mxu0 0
    %7323 = vmatprep.subr.bf16.mxu0 0
    %7324 = vmatpush2.bf16.msra.mxu0 0
    %7325 = vmatprep.subr.bf16.mxu0 0
    %7326 = vmatpush2.bf16.msra.mxu0 0
    %7327 = vmatprep.mubr.bf16.mxu0 0
    %7328 = vmatmul.mubr.bf16.gmra.mxu0 %v7102
    %v7329 = vpop.f32.mrf.mxu0
    %v7330 = vadd.f32 0.0, %v7329
    %v7331 = vpop.f32.mrf.mxu0
    %v7332 = vadd.f32 0.0, %v7331
    %v7333 = vpop.f32.mrf.mxu0
    %v7334 = vpop.f32.mrf.mxu0
    %7335 = vdwg.mxu0
    %7336 = vmatprep.subr.bf16.mxu0 %v7262
    %7337 = vmatpush1.bf16.msra.mxu0 %v7261
    %7338 = vmatprep.subr.bf16.mxu0 %v7258
    %7339 = vmatpush1.bf16.msra.mxu0 %v7257
    %7340 = vmatprep.subr.bf16.mxu0 %v7254
    %7341 = vmatpush1.bf16.msra.mxu0 %v7253
    %7342 = vmatprep.subr.bf16.mxu0 %v7250
    %7343 = vmatpush1.bf16.msra.mxu0 %v7249
    %7344 = vmatprep.subr.bf16.mxu0 %v7246
    %7345 = vmatpush1.bf16.msra.mxu0 %v7245
    %7346 = vmatprep.subr.bf16.mxu0 %v7242
    %7347 = vmatpush1.bf16.msra.mxu0 %v7241
    %7348 = vmatprep.subr.bf16.mxu0 %v7238
    %7349 = vmatpush1.bf16.msra.mxu0 %v7237
    %7350 = vmatprep.subr.bf16.mxu0 %v7234
    %7351 = vmatpush1.bf16.msra.mxu0 %v7233
    %7352 = vmatprep.subr.bf16.mxu0 0
    %7353 = vmatpush2.bf16.msra.mxu0 0
    %7354 = vmatprep.subr.bf16.mxu0 0
    %7355 = vmatpush2.bf16.msra.mxu0 0
    %7356 = vmatprep.subr.bf16.mxu0 0
    %7357 = vmatpush2.bf16.msra.mxu0 0
    %7358 = vmatprep.subr.bf16.mxu0 0
    %7359 = vmatpush2.bf16.msra.mxu0 0
    %7360 = vmatprep.subr.bf16.mxu0 0
    %7361 = vmatpush2.bf16.msra.mxu0 0
    %7362 = vmatprep.subr.bf16.mxu0 0
    %7363 = vmatpush2.bf16.msra.mxu0 0
    %7364 = vmatprep.subr.bf16.mxu0 0
    %7365 = vmatpush2.bf16.msra.mxu0 0
    %7366 = vmatprep.subr.bf16.mxu0 0
    %7367 = vmatpush2.bf16.msra.mxu0 0
    %7368 = vmatprep.mubr.bf16.mxu0 0
    %7369 = vmatmul.mubr.bf16.gmra.mxu0 %v7102
    %v7370 = vpop.f32.mrf.mxu0
    %v7371 = vadd.f32 0.0, %v7370
    %v7372 = vpop.f32.mrf.mxu0
    %v7373 = vadd.f32 0.0, %v7372
    %v7374 = vpop.f32.mrf.mxu0
    %v7375 = vpop.f32.mrf.mxu0
    %7376 = vdwg.mxu0
    %v7377 = vadd.f32 %v7098, %v7330
    %v7378 = vadd.f32 %v7099, %v7332
    %v7379 = vadd.f32 %v7100, %v7371
    %v7380 = vadd.f32 %v7101, %v7373
    %v7381 = vld [vmem:[#allocation5 + $0x18] sm:$0xc]
    %v7382 = vld [vmem:[#allocation2 + $0xd00] sm:$0xff]
    %v7383 = vld [vmem:[#allocation2 + $0xd08] sm:$0xff]
    %v7384 = vld [vmem:[#allocation2 + $0xd10] sm:$0xff]
    %v7385 = vld [vmem:[#allocation2 + $0xd18] sm:$0xff]
    %v7386 = vld [vmem:[#allocation2 + $0xd20] sm:$0xff]
    %v7387 = vld [vmem:[#allocation2 + $0xd28] sm:$0xff]
    %v7388 = vld [vmem:[#allocation2 + $0xd30] sm:$0xff]
    %v7389 = vld [vmem:[#allocation2 + $0xd38] sm:$0xff]
    %v7390 = vld [vmem:[#allocation2 + $0xd40] sm:$0xff]
    %v7391 = vld [vmem:[#allocation2 + $0xd48] sm:$0xff]
    %v7392 = vld [vmem:[#allocation2 + $0xd50] sm:$0xff]
    %v7393 = vld [vmem:[#allocation2 + $0xd58] sm:$0xff]
    %v7394 = vld [vmem:[#allocation2 + $0xd60] sm:$0xff]
    %v7395 = vld [vmem:[#allocation2 + $0xd68] sm:$0xff]
    %v7396 = vld [vmem:[#allocation2 + $0xd70] sm:$0xff]
    %v7397 = vld [vmem:[#allocation2 + $0xd78] sm:$0xff]
    %v7398 = vld [vmem:[#allocation2 + $0xd80] sm:$0xff]
    %v7399 = vld [vmem:[#allocation2 + $0xd88] sm:$0xff]
    %v7400 = vld [vmem:[#allocation2 + $0xd90] sm:$0xff]
    %v7401 = vld [vmem:[#allocation2 + $0xd98] sm:$0xff]
    %v7402 = vld [vmem:[#allocation2 + $0xda0] sm:$0xff]
    %v7403 = vld [vmem:[#allocation2 + $0xda8] sm:$0xff]
    %v7404 = vld [vmem:[#allocation2 + $0xdb0] sm:$0xff]
    %v7405 = vld [vmem:[#allocation2 + $0xdb8] sm:$0xff]
    %v7406 = vld [vmem:[#allocation2 + $0xdc0] sm:$0xff]
    %v7407 = vld [vmem:[#allocation2 + $0xdc8] sm:$0xff]
    %v7408 = vld [vmem:[#allocation2 + $0xdd0] sm:$0xff]
    %v7409 = vld [vmem:[#allocation2 + $0xdd8] sm:$0xff]
    %v7410 = vld [vmem:[#allocation2 + $0xde0] sm:$0xff]
    %v7411 = vld [vmem:[#allocation2 + $0xde8] sm:$0xff]
    %v7412 = vld [vmem:[#allocation2 + $0xdf0] sm:$0xff]
    %v7413 = vld [vmem:[#allocation2 + $0xdf8] sm:$0xff]
    %v7415 = vunpack.c.l.b16 %v7381
    %v7416 = vpack.c.b16 %v7415, %v7415
    %v7417 = vrot.slane %v7416, 2
    %v7451 = vunpack.c.l.b16 %v7382
    %v7452 = vunpack.c.h.b16 %v7382
    %v7453 = vunpack.c.l.b16 %v7383
    %v7454 = vunpack.c.h.b16 %v7383
    %v7455 = vunpack.c.l.b16 %v7384
    %v7456 = vunpack.c.h.b16 %v7384
    %v7457 = vunpack.c.l.b16 %v7385
    %v7458 = vunpack.c.h.b16 %v7385
    %v7459 = vunpack.c.l.b16 %v7386
    %v7460 = vunpack.c.h.b16 %v7386
    %v7461 = vunpack.c.l.b16 %v7387
    %v7462 = vunpack.c.h.b16 %v7387
    %v7463 = vunpack.c.l.b16 %v7388
    %v7464 = vunpack.c.h.b16 %v7388
    %v7465 = vunpack.c.l.b16 %v7389
    %v7466 = vunpack.c.h.b16 %v7389
    %v7467 = vunpack.c.l.b16 %v7390
    %v7468 = vunpack.c.h.b16 %v7390
    %v7469 = vunpack.c.l.b16 %v7391
    %v7470 = vunpack.c.h.b16 %v7391
    %v7471 = vunpack.c.l.b16 %v7392
    %v7472 = vunpack.c.h.b16 %v7392
    %v7473 = vunpack.c.l.b16 %v7393
    %v7474 = vunpack.c.h.b16 %v7393
    %v7475 = vunpack.c.l.b16 %v7394
    %v7476 = vunpack.c.h.b16 %v7394
    %v7477 = vunpack.c.l.b16 %v7395
    %v7478 = vunpack.c.h.b16 %v7395
    %v7479 = vunpack.c.l.b16 %v7396
    %v7480 = vunpack.c.h.b16 %v7396
    %v7481 = vunpack.c.l.b16 %v7397
    %v7482 = vunpack.c.h.b16 %v7397
    %v7483 = vunpack.c.l.b16 %v7398
    %v7484 = vunpack.c.h.b16 %v7398
    %v7485 = vunpack.c.l.b16 %v7399
    %v7486 = vunpack.c.h.b16 %v7399
    %v7487 = vunpack.c.l.b16 %v7400
    %v7488 = vunpack.c.h.b16 %v7400
    %v7489 = vunpack.c.l.b16 %v7401
    %v7490 = vunpack.c.h.b16 %v7401
    %v7491 = vunpack.c.l.b16 %v7402
    %v7492 = vunpack.c.h.b16 %v7402
    %v7493 = vunpack.c.l.b16 %v7403
    %v7494 = vunpack.c.h.b16 %v7403
    %v7495 = vunpack.c.l.b16 %v7404
    %v7496 = vunpack.c.h.b16 %v7404
    %v7497 = vunpack.c.l.b16 %v7405
    %v7498 = vunpack.c.h.b16 %v7405
    %v7499 = vunpack.c.l.b16 %v7406
    %v7500 = vunpack.c.h.b16 %v7406
    %v7501 = vunpack.c.l.b16 %v7407
    %v7502 = vunpack.c.h.b16 %v7407
    %v7503 = vunpack.c.l.b16 %v7408
    %v7504 = vunpack.c.h.b16 %v7408
    %v7505 = vunpack.c.l.b16 %v7409
    %v7506 = vunpack.c.h.b16 %v7409
    %v7507 = vunpack.c.l.b16 %v7410
    %v7508 = vunpack.c.h.b16 %v7410
    %v7509 = vunpack.c.l.b16 %v7411
    %v7510 = vunpack.c.h.b16 %v7411
    %v7511 = vunpack.c.l.b16 %v7412
    %v7512 = vunpack.c.h.b16 %v7412
    %v7513 = vunpack.c.l.b16 %v7413
    %v7514 = vunpack.c.h.b16 %v7413
    %v7515 = vpack.c.b16 %v7455, %v7451
    %v7516 = vpack.c.b16 %v7456, %v7452
    %v7517 = vpack.c.b16 %v7457, %v7453
    %v7518 = vpack.c.b16 %v7458, %v7454
    %v7519 = vpack.c.b16 %v7463, %v7459
    %v7520 = vpack.c.b16 %v7464, %v7460
    %v7521 = vpack.c.b16 %v7465, %v7461
    %v7522 = vpack.c.b16 %v7466, %v7462
    %v7523 = vpack.c.b16 %v7471, %v7467
    %v7524 = vpack.c.b16 %v7472, %v7468
    %v7525 = vpack.c.b16 %v7473, %v7469
    %v7526 = vpack.c.b16 %v7474, %v7470
    %v7527 = vpack.c.b16 %v7479, %v7475
    %v7528 = vpack.c.b16 %v7480, %v7476
    %v7529 = vpack.c.b16 %v7481, %v7477
    %v7530 = vpack.c.b16 %v7482, %v7478
    %v7531 = vpack.c.b16 %v7487, %v7483
    %v7532 = vpack.c.b16 %v7488, %v7484
    %v7533 = vpack.c.b16 %v7489, %v7485
    %v7534 = vpack.c.b16 %v7490, %v7486
    %v7535 = vpack.c.b16 %v7495, %v7491
    %v7536 = vpack.c.b16 %v7496, %v7492
    %v7537 = vpack.c.b16 %v7497, %v7493
    %v7538 = vpack.c.b16 %v7498, %v7494
    %v7539 = vpack.c.b16 %v7503, %v7499
    %v7540 = vpack.c.b16 %v7504, %v7500
    %v7541 = vpack.c.b16 %v7505, %v7501
    %v7542 = vpack.c.b16 %v7506, %v7502
    %v7543 = vpack.c.b16 %v7511, %v7507
    %v7544 = vpack.c.b16 %v7512, %v7508
    %v7545 = vpack.c.b16 %v7513, %v7509
    %v7546 = vpack.c.b16 %v7514, %v7510
    %7579 = vmatprep.subr.bf16.mxu0 %v7544
    %7580 = vmatpush1.bf16.msra.mxu0 %v7543
    %7581 = vmatprep.subr.bf16.mxu0 %v7540
    %7582 = vmatpush1.bf16.msra.mxu0 %v7539
    %7583 = vmatprep.subr.bf16.mxu0 %v7536
    %7584 = vmatpush1.bf16.msra.mxu0 %v7535
    %7585 = vmatprep.subr.bf16.mxu0 %v7532
    %7586 = vmatpush1.bf16.msra.mxu0 %v7531
    %7587 = vmatprep.subr.bf16.mxu0 %v7528
    %7588 = vmatpush1.bf16.msra.mxu0 %v7527
    %7589 = vmatprep.subr.bf16.mxu0 %v7524
    %7590 = vmatpush1.bf16.msra.mxu0 %v7523
    %7591 = vmatprep.subr.bf16.mxu0 %v7520
    %7592 = vmatpush1.bf16.msra.mxu0 %v7519
    %7593 = vmatprep.subr.bf16.mxu0 %v7516
    %7594 = vmatpush1.bf16.msra.mxu0 %v7515
    %7595 = vmatprep.subr.bf16.mxu0 0
    %7596 = vmatpush2.bf16.msra.mxu0 0
    %7597 = vmatprep.subr.bf16.mxu0 0
    %7598 = vmatpush2.bf16.msra.mxu0 0
    %7599 = vmatprep.subr.bf16.mxu0 0
    %7600 = vmatpush2.bf16.msra.mxu0 0
    %7601 = vmatprep.subr.bf16.mxu0 0
    %7602 = vmatpush2.bf16.msra.mxu0 0
    %7603 = vmatprep.subr.bf16.mxu0 0
    %7604 = vmatpush2.bf16.msra.mxu0 0
    %7605 = vmatprep.subr.bf16.mxu0 0
    %7606 = vmatpush2.bf16.msra.mxu0 0
    %7607 = vmatprep.subr.bf16.mxu0 0
    %7608 = vmatpush2.bf16.msra.mxu0 0
    %7609 = vmatprep.subr.bf16.mxu0 0
    %7610 = vmatpush2.bf16.msra.mxu0 0
    %7611 = vmatprep.mubr.bf16.mxu0 0
    %7612 = vmatmul.mubr.bf16.gmra.mxu0 %v7417
    %v7613 = vpop.f32.mrf.mxu0
    %v7614 = vadd.f32 0.0, %v7613
    %v7615 = vpop.f32.mrf.mxu0
    %v7616 = vadd.f32 0.0, %v7615
    %v7617 = vpop.f32.mrf.mxu0
    %v7618 = vpop.f32.mrf.mxu0
    %7619 = vdwg.mxu0
    %7620 = vmatprep.subr.bf16.mxu0 %v7546
    %7621 = vmatpush1.bf16.msra.mxu0 %v7545
    %7622 = vmatprep.subr.bf16.mxu0 %v7542
    %7623 = vmatpush1.bf16.msra.mxu0 %v7541
    %7624 = vmatprep.subr.bf16.mxu0 %v7538
    %7625 = vmatpush1.bf16.msra.mxu0 %v7537
    %7626 = vmatprep.subr.bf16.mxu0 %v7534
    %7627 = vmatpush1.bf16.msra.mxu0 %v7533
    %7628 = vmatprep.subr.bf16.mxu0 %v7530
    %7629 = vmatpush1.bf16.msra.mxu0 %v7529
    %7630 = vmatprep.subr.bf16.mxu0 %v7526
    %7631 = vmatpush1.bf16.msra.mxu0 %v7525
    %7632 = vmatprep.subr.bf16.mxu0 %v7522
    %7633 = vmatpush1.bf16.msra.mxu0 %v7521
    %7634 = vmatprep.subr.bf16.mxu0 %v7518
    %7635 = vmatpush1.bf16.msra.mxu0 %v7517
    %7636 = vmatprep.subr.bf16.mxu0 0
    %7637 = vmatpush2.bf16.msra.mxu0 0
    %7638 = vmatprep.subr.bf16.mxu0 0
    %7639 = vmatpush2.bf16.msra.mxu0 0
    %7640 = vmatprep.subr.bf16.mxu0 0
    %7641 = vmatpush2.bf16.msra.mxu0 0
    %7642 = vmatprep.subr.bf16.mxu0 0
    %7643 = vmatpush2.bf16.msra.mxu0 0
    %7644 = vmatprep.subr.bf16.mxu0 0
    %7645 = vmatpush2.bf16.msra.mxu0 0
    %7646 = vmatprep.subr.bf16.mxu0 0
    %7647 = vmatpush2.bf16.msra.mxu0 0
    %7648 = vmatprep.subr.bf16.mxu0 0
    %7649 = vmatpush2.bf16.msra.mxu0 0
    %7650 = vmatprep.subr.bf16.mxu0 0
    %7651 = vmatpush2.bf16.msra.mxu0 0
    %7652 = vmatprep.mubr.bf16.mxu0 0
    %7653 = vmatmul.mubr.bf16.gmra.mxu0 %v7417
    %v7654 = vpop.f32.mrf.mxu0
    %v7655 = vadd.f32 0.0, %v7654
    %v7656 = vpop.f32.mrf.mxu0
    %v7657 = vadd.f32 0.0, %v7656
    %v7658 = vpop.f32.mrf.mxu0
    %v7659 = vpop.f32.mrf.mxu0
    %7660 = vdwg.mxu0
    %v7661 = vadd.f32 %v7377, %v7614
    %v7662 = vadd.f32 %v7378, %v7616
    %v7663 = vadd.f32 %v7379, %v7655
    %v7664 = vadd.f32 %v7380, %v7657
    %v7665 = vld [vmem:[#allocation5 + $0x1c] sm:$0x3]
    %v7666 = vld [vmem:[#allocation2 + $0xe00] sm:$0xff]
    %v7667 = vld [vmem:[#allocation2 + $0xe08] sm:$0xff]
    %v7668 = vld [vmem:[#allocation2 + $0xe10] sm:$0xff]
    %v7669 = vld [vmem:[#allocation2 + $0xe18] sm:$0xff]
    %v7670 = vld [vmem:[#allocation2 + $0xe20] sm:$0xff]
    %v7671 = vld [vmem:[#allocation2 + $0xe28] sm:$0xff]
    %v7672 = vld [vmem:[#allocation2 + $0xe30] sm:$0xff]
    %v7673 = vld [vmem:[#allocation2 + $0xe38] sm:$0xff]
    %v7674 = vld [vmem:[#allocation2 + $0xe40] sm:$0xff]
    %v7675 = vld [vmem:[#allocation2 + $0xe48] sm:$0xff]
    %v7676 = vld [vmem:[#allocation2 + $0xe50] sm:$0xff]
    %v7677 = vld [vmem:[#allocation2 + $0xe58] sm:$0xff]
    %v7678 = vld [vmem:[#allocation2 + $0xe60] sm:$0xff]
    %v7679 = vld [vmem:[#allocation2 + $0xe68] sm:$0xff]
    %v7680 = vld [vmem:[#allocation2 + $0xe70] sm:$0xff]
    %v7681 = vld [vmem:[#allocation2 + $0xe78] sm:$0xff]
    %v7682 = vld [vmem:[#allocation2 + $0xe80] sm:$0xff]
    %v7683 = vld [vmem:[#allocation2 + $0xe88] sm:$0xff]
    %v7684 = vld [vmem:[#allocation2 + $0xe90] sm:$0xff]
    %v7685 = vld [vmem:[#allocation2 + $0xe98] sm:$0xff]
    %v7686 = vld [vmem:[#allocation2 + $0xea0] sm:$0xff]
    %v7687 = vld [vmem:[#allocation2 + $0xea8] sm:$0xff]
    %v7688 = vld [vmem:[#allocation2 + $0xeb0] sm:$0xff]
    %v7689 = vld [vmem:[#allocation2 + $0xeb8] sm:$0xff]
    %v7690 = vld [vmem:[#allocation2 + $0xec0] sm:$0xff]
    %v7691 = vld [vmem:[#allocation2 + $0xec8] sm:$0xff]
    %v7692 = vld [vmem:[#allocation2 + $0xed0] sm:$0xff]
    %v7693 = vld [vmem:[#allocation2 + $0xed8] sm:$0xff]
    %v7694 = vld [vmem:[#allocation2 + $0xee0] sm:$0xff]
    %v7695 = vld [vmem:[#allocation2 + $0xee8] sm:$0xff]
    %v7696 = vld [vmem:[#allocation2 + $0xef0] sm:$0xff]
    %v7697 = vld [vmem:[#allocation2 + $0xef8] sm:$0xff]
    %v7730 = vunpack.c.l.b16 %v7666
    %v7731 = vunpack.c.h.b16 %v7666
    %v7732 = vunpack.c.l.b16 %v7667
    %v7733 = vunpack.c.h.b16 %v7667
    %v7734 = vunpack.c.l.b16 %v7668
    %v7735 = vunpack.c.h.b16 %v7668
    %v7736 = vunpack.c.l.b16 %v7669
    %v7737 = vunpack.c.h.b16 %v7669
    %v7738 = vunpack.c.l.b16 %v7670
    %v7739 = vunpack.c.h.b16 %v7670
    %v7740 = vunpack.c.l.b16 %v7671
    %v7741 = vunpack.c.h.b16 %v7671
    %v7742 = vunpack.c.l.b16 %v7672
    %v7743 = vunpack.c.h.b16 %v7672
    %v7744 = vunpack.c.l.b16 %v7673
    %v7745 = vunpack.c.h.b16 %v7673
    %v7746 = vunpack.c.l.b16 %v7674
    %v7747 = vunpack.c.h.b16 %v7674
    %v7748 = vunpack.c.l.b16 %v7675
    %v7749 = vunpack.c.h.b16 %v7675
    %v7750 = vunpack.c.l.b16 %v7676
    %v7751 = vunpack.c.h.b16 %v7676
    %v7752 = vunpack.c.l.b16 %v7677
    %v7753 = vunpack.c.h.b16 %v7677
    %v7754 = vunpack.c.l.b16 %v7678
    %v7755 = vunpack.c.h.b16 %v7678
    %v7756 = vunpack.c.l.b16 %v7679
    %v7757 = vunpack.c.h.b16 %v7679
    %v7758 = vunpack.c.l.b16 %v7680
    %v7759 = vunpack.c.h.b16 %v7680
    %v7760 = vunpack.c.l.b16 %v7681
    %v7761 = vunpack.c.h.b16 %v7681
    %v7762 = vunpack.c.l.b16 %v7682
    %v7763 = vunpack.c.h.b16 %v7682
    %v7764 = vunpack.c.l.b16 %v7683
    %v7765 = vunpack.c.h.b16 %v7683
    %v7766 = vunpack.c.l.b16 %v7684
    %v7767 = vunpack.c.h.b16 %v7684
    %v7768 = vunpack.c.l.b16 %v7685
    %v7769 = vunpack.c.h.b16 %v7685
    %v7770 = vunpack.c.l.b16 %v7686
    %v7771 = vunpack.c.h.b16 %v7686
    %v7772 = vunpack.c.l.b16 %v7687
    %v7773 = vunpack.c.h.b16 %v7687
    %v7774 = vunpack.c.l.b16 %v7688
    %v7775 = vunpack.c.h.b16 %v7688
    %v7776 = vunpack.c.l.b16 %v7689
    %v7777 = vunpack.c.h.b16 %v7689
    %v7778 = vunpack.c.l.b16 %v7690
    %v7779 = vunpack.c.h.b16 %v7690
    %v7780 = vunpack.c.l.b16 %v7691
    %v7781 = vunpack.c.h.b16 %v7691
    %v7782 = vunpack.c.l.b16 %v7692
    %v7783 = vunpack.c.h.b16 %v7692
    %v7784 = vunpack.c.l.b16 %v7693
    %v7785 = vunpack.c.h.b16 %v7693
    %v7786 = vunpack.c.l.b16 %v7694
    %v7787 = vunpack.c.h.b16 %v7694
    %v7788 = vunpack.c.l.b16 %v7695
    %v7789 = vunpack.c.h.b16 %v7695
    %v7790 = vunpack.c.l.b16 %v7696
    %v7791 = vunpack.c.h.b16 %v7696
    %v7792 = vunpack.c.l.b16 %v7697
    %v7793 = vunpack.c.h.b16 %v7697
    %v7794 = vpack.c.b16 %v7734, %v7730
    %v7795 = vpack.c.b16 %v7735, %v7731
    %v7796 = vpack.c.b16 %v7736, %v7732
    %v7797 = vpack.c.b16 %v7737, %v7733
    %v7798 = vpack.c.b16 %v7742, %v7738
    %v7799 = vpack.c.b16 %v7743, %v7739
    %v7800 = vpack.c.b16 %v7744, %v7740
    %v7801 = vpack.c.b16 %v7745, %v7741
    %v7802 = vpack.c.b16 %v7750, %v7746
    %v7803 = vpack.c.b16 %v7751, %v7747
    %v7804 = vpack.c.b16 %v7752, %v7748
    %v7805 = vpack.c.b16 %v7753, %v7749
    %v7806 = vpack.c.b16 %v7758, %v7754
    %v7807 = vpack.c.b16 %v7759, %v7755
    %v7808 = vpack.c.b16 %v7760, %v7756
    %v7809 = vpack.c.b16 %v7761, %v7757
    %v7810 = vpack.c.b16 %v7766, %v7762
    %v7811 = vpack.c.b16 %v7767, %v7763
    %v7812 = vpack.c.b16 %v7768, %v7764
    %v7813 = vpack.c.b16 %v7769, %v7765
    %v7814 = vpack.c.b16 %v7774, %v7770
    %v7815 = vpack.c.b16 %v7775, %v7771
    %v7816 = vpack.c.b16 %v7776, %v7772
    %v7817 = vpack.c.b16 %v7777, %v7773
    %v7818 = vpack.c.b16 %v7782, %v7778
    %v7819 = vpack.c.b16 %v7783, %v7779
    %v7820 = vpack.c.b16 %v7784, %v7780
    %v7821 = vpack.c.b16 %v7785, %v7781
    %v7822 = vpack.c.b16 %v7790, %v7786
    %v7823 = vpack.c.b16 %v7791, %v7787
    %v7824 = vpack.c.b16 %v7792, %v7788
    %v7825 = vpack.c.b16 %v7793, %v7789
    %7858 = vmatprep.subr.bf16.mxu0 %v7823
    %7859 = vmatpush1.bf16.msra.mxu0 %v7822
    %7860 = vmatprep.subr.bf16.mxu0 %v7819
    %7861 = vmatpush1.bf16.msra.mxu0 %v7818
    %7862 = vmatprep.subr.bf16.mxu0 %v7815
    %7863 = vmatpush1.bf16.msra.mxu0 %v7814
    %7864 = vmatprep.subr.bf16.mxu0 %v7811
    %7865 = vmatpush1.bf16.msra.mxu0 %v7810
    %7866 = vmatprep.subr.bf16.mxu0 %v7807
    %7867 = vmatpush1.bf16.msra.mxu0 %v7806
    %7868 = vmatprep.subr.bf16.mxu0 %v7803
    %7869 = vmatpush1.bf16.msra.mxu0 %v7802
    %7870 = vmatprep.subr.bf16.mxu0 %v7799
    %7871 = vmatpush1.bf16.msra.mxu0 %v7798
    %7872 = vmatprep.subr.bf16.mxu0 %v7795
    %7873 = vmatpush1.bf16.msra.mxu0 %v7794
    %7874 = vmatprep.subr.bf16.mxu0 0
    %7875 = vmatpush2.bf16.msra.mxu0 0
    %7876 = vmatprep.subr.bf16.mxu0 0
    %7877 = vmatpush2.bf16.msra.mxu0 0
    %7878 = vmatprep.subr.bf16.mxu0 0
    %7879 = vmatpush2.bf16.msra.mxu0 0
    %7880 = vmatprep.subr.bf16.mxu0 0
    %7881 = vmatpush2.bf16.msra.mxu0 0
    %7882 = vmatprep.subr.bf16.mxu0 0
    %7883 = vmatpush2.bf16.msra.mxu0 0
    %7884 = vmatprep.subr.bf16.mxu0 0
    %7885 = vmatpush2.bf16.msra.mxu0 0
    %7886 = vmatprep.subr.bf16.mxu0 0
    %7887 = vmatpush2.bf16.msra.mxu0 0
    %7888 = vmatprep.subr.bf16.mxu0 0
    %7889 = vmatpush2.bf16.msra.mxu0 0
    %7890 = vmatprep.mubr.bf16.mxu0 0
    %7891 = vmatmul.mubr.bf16.gmra.mxu0 %v7665
    %v7892 = vpop.f32.mrf.mxu0
    %v7893 = vadd.f32 0.0, %v7892
    %v7894 = vpop.f32.mrf.mxu0
    %v7895 = vadd.f32 0.0, %v7894
    %v7896 = vpop.f32.mrf.mxu0
    %v7897 = vpop.f32.mrf.mxu0
    %7898 = vdwg.mxu0
    %7899 = vmatprep.subr.bf16.mxu0 %v7825
    %7900 = vmatpush1.bf16.msra.mxu0 %v7824
    %7901 = vmatprep.subr.bf16.mxu0 %v7821
    %7902 = vmatpush1.bf16.msra.mxu0 %v7820
    %7903 = vmatprep.subr.bf16.mxu0 %v7817
    %7904 = vmatpush1.bf16.msra.mxu0 %v7816
    %7905 = vmatprep.subr.bf16.mxu0 %v7813
    %7906 = vmatpush1.bf16.msra.mxu0 %v7812
    %7907 = vmatprep.subr.bf16.mxu0 %v7809
    %7908 = vmatpush1.bf16.msra.mxu0 %v7808
    %7909 = vmatprep.subr.bf16.mxu0 %v7805
    %7910 = vmatpush1.bf16.msra.mxu0 %v7804
    %7911 = vmatprep.subr.bf16.mxu0 %v7801
    %7912 = vmatpush1.bf16.msra.mxu0 %v7800
    %7913 = vmatprep.subr.bf16.mxu0 %v7797
    %7914 = vmatpush1.bf16.msra.mxu0 %v7796
    %7915 = vmatprep.subr.bf16.mxu0 0
    %7916 = vmatpush2.bf16.msra.mxu0 0
    %7917 = vmatprep.subr.bf16.mxu0 0
    %7918 = vmatpush2.bf16.msra.mxu0 0
    %7919 = vmatprep.subr.bf16.mxu0 0
    %7920 = vmatpush2.bf16.msra.mxu0 0
    %7921 = vmatprep.subr.bf16.mxu0 0
    %7922 = vmatpush2.bf16.msra.mxu0 0
    %7923 = vmatprep.subr.bf16.mxu0 0
    %7924 = vmatpush2.bf16.msra.mxu0 0
    %7925 = vmatprep.subr.bf16.mxu0 0
    %7926 = vmatpush2.bf16.msra.mxu0 0
    %7927 = vmatprep.subr.bf16.mxu0 0
    %7928 = vmatpush2.bf16.msra.mxu0 0
    %7929 = vmatprep.subr.bf16.mxu0 0
    %7930 = vmatpush2.bf16.msra.mxu0 0
    %7931 = vmatprep.mubr.bf16.mxu0 0
    %7932 = vmatmul.mubr.bf16.gmra.mxu0 %v7665
    %v7933 = vpop.f32.mrf.mxu0
    %v7934 = vadd.f32 0.0, %v7933
    %v7935 = vpop.f32.mrf.mxu0
    %v7936 = vadd.f32 0.0, %v7935
    %v7937 = vpop.f32.mrf.mxu0
    %v7938 = vpop.f32.mrf.mxu0
    %7939 = vdwg.mxu0
    %v7940 = vadd.f32 %v7661, %v7893
    %v7941 = vadd.f32 %v7662, %v7895
    %v7942 = vadd.f32 %v7663, %v7934
    %v7943 = vadd.f32 %v7664, %v7936
    %v7944 = vld [vmem:[#allocation5 + $0x1c] sm:$0xc]
    %v7945 = vld [vmem:[#allocation2 + $0xf00] sm:$0xff]
    %v7946 = vld [vmem:[#allocation2 + $0xf08] sm:$0xff]
    %v7947 = vld [vmem:[#allocation2 + $0xf10] sm:$0xff]
    %v7948 = vld [vmem:[#allocation2 + $0xf18] sm:$0xff]
    %v7949 = vld [vmem:[#allocation2 + $0xf20] sm:$0xff]
    %v7950 = vld [vmem:[#allocation2 + $0xf28] sm:$0xff]
    %v7951 = vld [vmem:[#allocation2 + $0xf30] sm:$0xff]
    %v7952 = vld [vmem:[#allocation2 + $0xf38] sm:$0xff]
    %v7953 = vld [vmem:[#allocation2 + $0xf40] sm:$0xff]
    %v7954 = vld [vmem:[#allocation2 + $0xf48] sm:$0xff]
    %v7955 = vld [vmem:[#allocation2 + $0xf50] sm:$0xff]
    %v7956 = vld [vmem:[#allocation2 + $0xf58] sm:$0xff]
    %v7957 = vld [vmem:[#allocation2 + $0xf60] sm:$0xff]
    %v7958 = vld [vmem:[#allocation2 + $0xf68] sm:$0xff]
    %v7959 = vld [vmem:[#allocation2 + $0xf70] sm:$0xff]
    %v7960 = vld [vmem:[#allocation2 + $0xf78] sm:$0xff]
    %v7961 = vld [vmem:[#allocation2 + $0xf80] sm:$0xff]
    %v7962 = vld [vmem:[#allocation2 + $0xf88] sm:$0xff]
    %v7963 = vld [vmem:[#allocation2 + $0xf90] sm:$0xff]
    %v7964 = vld [vmem:[#allocation2 + $0xf98] sm:$0xff]
    %v7965 = vld [vmem:[#allocation2 + $0xfa0] sm:$0xff]
    %v7966 = vld [vmem:[#allocation2 + $0xfa8] sm:$0xff]
    %v7967 = vld [vmem:[#allocation2 + $0xfb0] sm:$0xff]
    %v7968 = vld [vmem:[#allocation2 + $0xfb8] sm:$0xff]
    %v7969 = vld [vmem:[#allocation2 + $0xfc0] sm:$0xff]
    %v7970 = vld [vmem:[#allocation2 + $0xfc8] sm:$0xff]
    %v7971 = vld [vmem:[#allocation2 + $0xfd0] sm:$0xff]
    %v7972 = vld [vmem:[#allocation2 + $0xfd8] sm:$0xff]
    %v7973 = vld [vmem:[#allocation2 + $0xfe0] sm:$0xff]
    %v7974 = vld [vmem:[#allocation2 + $0xfe8] sm:$0xff]
    %v7975 = vld [vmem:[#allocation2 + $0xff0] sm:$0xff]
    %v7976 = vld [vmem:[#allocation2 + $0xff8] sm:$0xff]
    %v7978 = vunpack.c.l.b16 %v7944
    %v7979 = vpack.c.b16 %v7978, %v7978
    %v7980 = vrot.slane %v7979, 2
    %v8014 = vunpack.c.l.b16 %v7945
    %v8015 = vunpack.c.h.b16 %v7945
    %v8016 = vunpack.c.l.b16 %v7946
    %v8017 = vunpack.c.h.b16 %v7946
    %v8018 = vunpack.c.l.b16 %v7947
    %v8019 = vunpack.c.h.b16 %v7947
    %v8020 = vunpack.c.l.b16 %v7948
    %v8021 = vunpack.c.h.b16 %v7948
    %v8022 = vunpack.c.l.b16 %v7949
    %v8023 = vunpack.c.h.b16 %v7949
    %v8024 = vunpack.c.l.b16 %v7950
    %v8025 = vunpack.c.h.b16 %v7950
    %v8026 = vunpack.c.l.b16 %v7951
    %v8027 = vunpack.c.h.b16 %v7951
    %v8028 = vunpack.c.l.b16 %v7952
    %v8029 = vunpack.c.h.b16 %v7952
    %v8030 = vunpack.c.l.b16 %v7953
    %v8031 = vunpack.c.h.b16 %v7953
    %v8032 = vunpack.c.l.b16 %v7954
    %v8033 = vunpack.c.h.b16 %v7954
    %v8034 = vunpack.c.l.b16 %v7955
    %v8035 = vunpack.c.h.b16 %v7955
    %v8036 = vunpack.c.l.b16 %v7956
    %v8037 = vunpack.c.h.b16 %v7956
    %v8038 = vunpack.c.l.b16 %v7957
    %v8039 = vunpack.c.h.b16 %v7957
    %v8040 = vunpack.c.l.b16 %v7958
    %v8041 = vunpack.c.h.b16 %v7958
    %v8042 = vunpack.c.l.b16 %v7959
    %v8043 = vunpack.c.h.b16 %v7959
    %v8044 = vunpack.c.l.b16 %v7960
    %v8045 = vunpack.c.h.b16 %v7960
    %v8046 = vunpack.c.l.b16 %v7961
    %v8047 = vunpack.c.h.b16 %v7961
    %v8048 = vunpack.c.l.b16 %v7962
    %v8049 = vunpack.c.h.b16 %v7962
    %v8050 = vunpack.c.l.b16 %v7963
    %v8051 = vunpack.c.h.b16 %v7963
    %v8052 = vunpack.c.l.b16 %v7964
    %v8053 = vunpack.c.h.b16 %v7964
    %v8054 = vunpack.c.l.b16 %v7965
    %v8055 = vunpack.c.h.b16 %v7965
    %v8056 = vunpack.c.l.b16 %v7966
    %v8057 = vunpack.c.h.b16 %v7966
    %v8058 = vunpack.c.l.b16 %v7967
    %v8059 = vunpack.c.h.b16 %v7967
    %v8060 = vunpack.c.l.b16 %v7968
    %v8061 = vunpack.c.h.b16 %v7968
    %v8062 = vunpack.c.l.b16 %v7969
    %v8063 = vunpack.c.h.b16 %v7969
    %v8064 = vunpack.c.l.b16 %v7970
    %v8065 = vunpack.c.h.b16 %v7970
    %v8066 = vunpack.c.l.b16 %v7971
    %v8067 = vunpack.c.h.b16 %v7971
    %v8068 = vunpack.c.l.b16 %v7972
    %v8069 = vunpack.c.h.b16 %v7972
    %v8070 = vunpack.c.l.b16 %v7973
    %v8071 = vunpack.c.h.b16 %v7973
    %v8072 = vunpack.c.l.b16 %v7974
    %v8073 = vunpack.c.h.b16 %v7974
    %v8074 = vunpack.c.l.b16 %v7975
    %v8075 = vunpack.c.h.b16 %v7975
    %v8076 = vunpack.c.l.b16 %v7976
    %v8077 = vunpack.c.h.b16 %v7976
    %v8078 = vpack.c.b16 %v8018, %v8014
    %v8079 = vpack.c.b16 %v8019, %v8015
    %v8080 = vpack.c.b16 %v8020, %v8016
    %v8081 = vpack.c.b16 %v8021, %v8017
    %v8082 = vpack.c.b16 %v8026, %v8022
    %v8083 = vpack.c.b16 %v8027, %v8023
    %v8084 = vpack.c.b16 %v8028, %v8024
    %v8085 = vpack.c.b16 %v8029, %v8025
    %v8086 = vpack.c.b16 %v8034, %v8030
    %v8087 = vpack.c.b16 %v8035, %v8031
    %v8088 = vpack.c.b16 %v8036, %v8032
    %v8089 = vpack.c.b16 %v8037, %v8033
    %v8090 = vpack.c.b16 %v8042, %v8038
    %v8091 = vpack.c.b16 %v8043, %v8039
    %v8092 = vpack.c.b16 %v8044, %v8040
    %v8093 = vpack.c.b16 %v8045, %v8041
    %v8094 = vpack.c.b16 %v8050, %v8046
    %v8095 = vpack.c.b16 %v8051, %v8047
    %v8096 = vpack.c.b16 %v8052, %v8048
    %v8097 = vpack.c.b16 %v8053, %v8049
    %v8098 = vpack.c.b16 %v8058, %v8054
    %v8099 = vpack.c.b16 %v8059, %v8055
    %v8100 = vpack.c.b16 %v8060, %v8056
    %v8101 = vpack.c.b16 %v8061, %v8057
    %v8102 = vpack.c.b16 %v8066, %v8062
    %v8103 = vpack.c.b16 %v8067, %v8063
    %v8104 = vpack.c.b16 %v8068, %v8064
    %v8105 = vpack.c.b16 %v8069, %v8065
    %v8106 = vpack.c.b16 %v8074, %v8070
    %v8107 = vpack.c.b16 %v8075, %v8071
    %v8108 = vpack.c.b16 %v8076, %v8072
    %v8109 = vpack.c.b16 %v8077, %v8073
    %8142 = vmatprep.subr.bf16.mxu0 %v8107
    %8143 = vmatpush1.bf16.msra.mxu0 %v8106
    %8144 = vmatprep.subr.bf16.mxu0 %v8103
    %8145 = vmatpush1.bf16.msra.mxu0 %v8102
    %8146 = vmatprep.subr.bf16.mxu0 %v8099
    %8147 = vmatpush1.bf16.msra.mxu0 %v8098
    %8148 = vmatprep.subr.bf16.mxu0 %v8095
    %8149 = vmatpush1.bf16.msra.mxu0 %v8094
    %8150 = vmatprep.subr.bf16.mxu0 %v8091
    %8151 = vmatpush1.bf16.msra.mxu0 %v8090
    %8152 = vmatprep.subr.bf16.mxu0 %v8087
    %8153 = vmatpush1.bf16.msra.mxu0 %v8086
    %8154 = vmatprep.subr.bf16.mxu0 %v8083
    %8155 = vmatpush1.bf16.msra.mxu0 %v8082
    %8156 = vmatprep.subr.bf16.mxu0 %v8079
    %8157 = vmatpush1.bf16.msra.mxu0 %v8078
    %8158 = vmatprep.subr.bf16.mxu0 0
    %8159 = vmatpush2.bf16.msra.mxu0 0
    %8160 = vmatprep.subr.bf16.mxu0 0
    %8161 = vmatpush2.bf16.msra.mxu0 0
    %8162 = vmatprep.subr.bf16.mxu0 0
    %8163 = vmatpush2.bf16.msra.mxu0 0
    %8164 = vmatprep.subr.bf16.mxu0 0
    %8165 = vmatpush2.bf16.msra.mxu0 0
    %8166 = vmatprep.subr.bf16.mxu0 0
    %8167 = vmatpush2.bf16.msra.mxu0 0
    %8168 = vmatprep.subr.bf16.mxu0 0
    %8169 = vmatpush2.bf16.msra.mxu0 0
    %8170 = vmatprep.subr.bf16.mxu0 0
    %8171 = vmatpush2.bf16.msra.mxu0 0
    %8172 = vmatprep.subr.bf16.mxu0 0
    %8173 = vmatpush2.bf16.msra.mxu0 0
    %8174 = vmatprep.mubr.bf16.mxu0 0
    %8175 = vmatmul.mubr.bf16.gmra.mxu0 %v7980
    %v8176 = vpop.f32.mrf.mxu0
    %v8177 = vadd.f32 0.0, %v8176
    %v8178 = vpop.f32.mrf.mxu0
    %v8179 = vadd.f32 0.0, %v8178
    %v8180 = vpop.f32.mrf.mxu0
    %v8181 = vpop.f32.mrf.mxu0
    %8182 = vdwg.mxu0
    %8183 = vmatprep.subr.bf16.mxu0 %v8109
    %8184 = vmatpush1.bf16.msra.mxu0 %v8108
    %8185 = vmatprep.subr.bf16.mxu0 %v8105
    %8186 = vmatpush1.bf16.msra.mxu0 %v8104
    %8187 = vmatprep.subr.bf16.mxu0 %v8101
    %8188 = vmatpush1.bf16.msra.mxu0 %v8100
    %8189 = vmatprep.subr.bf16.mxu0 %v8097
    %8190 = vmatpush1.bf16.msra.mxu0 %v8096
    %8191 = vmatprep.subr.bf16.mxu0 %v8093
    %8192 = vmatpush1.bf16.msra.mxu0 %v8092
    %8193 = vmatprep.subr.bf16.mxu0 %v8089
    %8194 = vmatpush1.bf16.msra.mxu0 %v8088
    %8195 = vmatprep.subr.bf16.mxu0 %v8085
    %8196 = vmatpush1.bf16.msra.mxu0 %v8084
    %8197 = vmatprep.subr.bf16.mxu0 %v8081
    %8198 = vmatpush1.bf16.msra.mxu0 %v8080
    %8199 = vmatprep.subr.bf16.mxu0 0
    %8200 = vmatpush2.bf16.msra.mxu0 0
    %8201 = vmatprep.subr.bf16.mxu0 0
    %8202 = vmatpush2.bf16.msra.mxu0 0
    %8203 = vmatprep.subr.bf16.mxu0 0
    %8204 = vmatpush2.bf16.msra.mxu0 0
    %8205 = vmatprep.subr.bf16.mxu0 0
    %8206 = vmatpush2.bf16.msra.mxu0 0
    %8207 = vmatprep.subr.bf16.mxu0 0
    %8208 = vmatpush2.bf16.msra.mxu0 0
    %8209 = vmatprep.subr.bf16.mxu0 0
    %8210 = vmatpush2.bf16.msra.mxu0 0
    %8211 = vmatprep.subr.bf16.mxu0 0
    %8212 = vmatpush2.bf16.msra.mxu0 0
    %8213 = vmatprep.subr.bf16.mxu0 0
    %8214 = vmatpush2.bf16.msra.mxu0 0
    %8215 = vmatprep.mubr.bf16.mxu0 0
    %8216 = vmatmul.mubr.bf16.gmra.mxu0 %v7980
    %v8217 = vpop.f32.mrf.mxu0
    %v8218 = vadd.f32 0.0, %v8217
    %v8219 = vpop.f32.mrf.mxu0
    %v8220 = vadd.f32 0.0, %v8219
    %v8221 = vpop.f32.mrf.mxu0
    %v8222 = vpop.f32.mrf.mxu0
    %8223 = vdwg.mxu0
    %v8224 = vadd.f32 %v7940, %v8177
    %v8225 = vadd.f32 %v7941, %v8179
    %v8226 = vadd.f32 %v7942, %v8218
    %v8227 = vadd.f32 %v7943, %v8220
    %v8228 = vld [vmem:[#allocation9] ss:$4 sm:$0xf]
    %v8230 = vlaneseq
    %v8231 = vshrl.u32 %v8230, 7
    %v8232 = vsub.s32 0, %v8231
    %v8233 = vrot.slane %v8228, %v8232
    %v8234 = vlaneseq
    %v8235 = vshrl.u32 %v8234, 7
    %v8236 = vsub.s32 1, %v8235
    %v8237 = vrot.slane %v8228, %v8236
    %v8238 = vlaneseq
    %v8239 = vshrl.u32 %v8238, 7
    %v8240 = vsub.s32 2, %v8239
    %v8241 = vrot.slane %v8228, %v8240
    %v8242 = vlaneseq
    %v8243 = vshrl.u32 %v8242, 7
    %v8244 = vsub.s32 3, %v8243
    %v8245 = vrot.slane %v8228, %v8244
    %v8250 = vadd.f32 %v8224, %v8233
    %v8251 = vadd.f32 %v8225, %v8237
    %v8252 = vadd.f32 %v8226, %v8241
    %v8253 = vadd.f32 %v8227, %v8245
    %v8254 = vmax.f32 %v8250, 0.0
    %v8255 = vmax.f32 %v8251, 0.0
    %v8256 = vmax.f32 %v8252, 0.0
    %v8257 = vmax.f32 %v8253, 0.0
    %v8258 = vpack.c.bf16 %v8254, %v8254
    %v8259 = vpack.c.bf16 %v8255, %v8255
    %v8260 = vpack.c.bf16 %v8256, %v8256
    %v8261 = vpack.c.bf16 %v8257, %v8257
    %v8262 = vld [vmem:[#allocation3] sm:$0xff]
    %v8263 = vld [vmem:[#allocation3 + $0x8] sm:$0xff]
    %v8264 = vld [vmem:[#allocation3 + $0x10] sm:$0xff]
    %v8265 = vld [vmem:[#allocation3 + $0x18] sm:$0xff]
    %v8266 = vld [vmem:[#allocation3 + $0x20] sm:$0xff]
    %v8267 = vld [vmem:[#allocation3 + $0x28] sm:$0xff]
    %v8268 = vld [vmem:[#allocation3 + $0x30] sm:$0xff]
    %v8269 = vld [vmem:[#allocation3 + $0x38] sm:$0xff]
    %v8270 = vld [vmem:[#allocation3 + $0x40] sm:$0xff]
    %v8271 = vld [vmem:[#allocation3 + $0x48] sm:$0xff]
    %v8272 = vld [vmem:[#allocation3 + $0x50] sm:$0xff]
    %v8273 = vld [vmem:[#allocation3 + $0x58] sm:$0xff]
    %v8274 = vld [vmem:[#allocation3 + $0x60] sm:$0xff]
    %v8275 = vld [vmem:[#allocation3 + $0x68] sm:$0xff]
    %v8276 = vld [vmem:[#allocation3 + $0x70] sm:$0xff]
    %v8277 = vld [vmem:[#allocation3 + $0x78] sm:$0xff]
    %v8278 = vld [vmem:[#allocation3 + $0x80] sm:$0xff]
    %v8279 = vld [vmem:[#allocation3 + $0x88] sm:$0xff]
    %v8280 = vld [vmem:[#allocation3 + $0x90] sm:$0xff]
    %v8281 = vld [vmem:[#allocation3 + $0x98] sm:$0xff]
    %v8282 = vld [vmem:[#allocation3 + $0xa0] sm:$0xff]
    %v8283 = vld [vmem:[#allocation3 + $0xa8] sm:$0xff]
    %v8284 = vld [vmem:[#allocation3 + $0xb0] sm:$0xff]
    %v8285 = vld [vmem:[#allocation3 + $0xb8] sm:$0xff]
    %v8286 = vld [vmem:[#allocation3 + $0xc0] sm:$0xff]
    %v8287 = vld [vmem:[#allocation3 + $0xc8] sm:$0xff]
    %v8288 = vld [vmem:[#allocation3 + $0xd0] sm:$0xff]
    %v8289 = vld [vmem:[#allocation3 + $0xd8] sm:$0xff]
    %v8290 = vld [vmem:[#allocation3 + $0xe0] sm:$0xff]
    %v8291 = vld [vmem:[#allocation3 + $0xe8] sm:$0xff]
    %v8292 = vld [vmem:[#allocation3 + $0xf0] sm:$0xff]
    %v8293 = vld [vmem:[#allocation3 + $0xf8] sm:$0xff]
    %v8294 = vld [vmem:[#allocation3 + $0x100] sm:$0xff]
    %v8295 = vld [vmem:[#allocation3 + $0x108] sm:$0xff]
    %v8296 = vld [vmem:[#allocation3 + $0x110] sm:$0xff]
    %v8297 = vld [vmem:[#allocation3 + $0x118] sm:$0xff]
    %v8298 = vld [vmem:[#allocation3 + $0x120] sm:$0xff]
    %v8299 = vld [vmem:[#allocation3 + $0x128] sm:$0xff]
    %v8300 = vld [vmem:[#allocation3 + $0x130] sm:$0xff]
    %v8301 = vld [vmem:[#allocation3 + $0x138] sm:$0xff]
    %v8302 = vld [vmem:[#allocation3 + $0x140] sm:$0xff]
    %v8303 = vld [vmem:[#allocation3 + $0x148] sm:$0xff]
    %v8304 = vld [vmem:[#allocation3 + $0x150] sm:$0xff]
    %v8305 = vld [vmem:[#allocation3 + $0x158] sm:$0xff]
    %v8306 = vld [vmem:[#allocation3 + $0x160] sm:$0xff]
    %v8307 = vld [vmem:[#allocation3 + $0x168] sm:$0xff]
    %v8308 = vld [vmem:[#allocation3 + $0x170] sm:$0xff]
    %v8309 = vld [vmem:[#allocation3 + $0x178] sm:$0xff]
    %v8310 = vld [vmem:[#allocation3 + $0x180] sm:$0xff]
    %v8311 = vld [vmem:[#allocation3 + $0x188] sm:$0xff]
    %v8312 = vld [vmem:[#allocation3 + $0x190] sm:$0xff]
    %v8313 = vld [vmem:[#allocation3 + $0x198] sm:$0xff]
    %v8314 = vld [vmem:[#allocation3 + $0x1a0] sm:$0xff]
    %v8315 = vld [vmem:[#allocation3 + $0x1a8] sm:$0xff]
    %v8316 = vld [vmem:[#allocation3 + $0x1b0] sm:$0xff]
    %v8317 = vld [vmem:[#allocation3 + $0x1b8] sm:$0xff]
    %v8318 = vld [vmem:[#allocation3 + $0x1c0] sm:$0xff]
    %v8319 = vld [vmem:[#allocation3 + $0x1c8] sm:$0xff]
    %v8320 = vld [vmem:[#allocation3 + $0x1d0] sm:$0xff]
    %v8321 = vld [vmem:[#allocation3 + $0x1d8] sm:$0xff]
    %v8322 = vld [vmem:[#allocation3 + $0x1e0] sm:$0xff]
    %v8323 = vld [vmem:[#allocation3 + $0x1e8] sm:$0xff]
    %v8324 = vld [vmem:[#allocation3 + $0x1f0] sm:$0xff]
    %v8325 = vld [vmem:[#allocation3 + $0x1f8] sm:$0xff]
    %v8326 = vld [vmem:[#allocation3 + $0x200] sm:$0xff]
    %v8327 = vld [vmem:[#allocation3 + $0x208] sm:$0xff]
    %v8328 = vld [vmem:[#allocation3 + $0x210] sm:$0xff]
    %v8329 = vld [vmem:[#allocation3 + $0x218] sm:$0xff]
    %v8330 = vld [vmem:[#allocation3 + $0x220] sm:$0xff]
    %v8331 = vld [vmem:[#allocation3 + $0x228] sm:$0xff]
    %v8332 = vld [vmem:[#allocation3 + $0x230] sm:$0xff]
    %v8333 = vld [vmem:[#allocation3 + $0x238] sm:$0xff]
    %v8334 = vld [vmem:[#allocation3 + $0x240] sm:$0xff]
    %v8335 = vld [vmem:[#allocation3 + $0x248] sm:$0xff]
    %v8336 = vld [vmem:[#allocation3 + $0x250] sm:$0xff]
    %v8337 = vld [vmem:[#allocation3 + $0x258] sm:$0xff]
    %v8338 = vld [vmem:[#allocation3 + $0x260] sm:$0xff]
    %v8339 = vld [vmem:[#allocation3 + $0x268] sm:$0xff]
    %v8340 = vld [vmem:[#allocation3 + $0x270] sm:$0xff]
    %v8341 = vld [vmem:[#allocation3 + $0x278] sm:$0xff]
    %v8342 = vld [vmem:[#allocation3 + $0x280] sm:$0xff]
    %v8343 = vld [vmem:[#allocation3 + $0x288] sm:$0xff]
    %v8344 = vld [vmem:[#allocation3 + $0x290] sm:$0xff]
    %v8345 = vld [vmem:[#allocation3 + $0x298] sm:$0xff]
    %v8346 = vld [vmem:[#allocation3 + $0x2a0] sm:$0xff]
    %v8347 = vld [vmem:[#allocation3 + $0x2a8] sm:$0xff]
    %v8348 = vld [vmem:[#allocation3 + $0x2b0] sm:$0xff]
    %v8349 = vld [vmem:[#allocation3 + $0x2b8] sm:$0xff]
    %v8350 = vld [vmem:[#allocation3 + $0x2c0] sm:$0xff]
    %v8351 = vld [vmem:[#allocation3 + $0x2c8] sm:$0xff]
    %v8352 = vld [vmem:[#allocation3 + $0x2d0] sm:$0xff]
    %v8353 = vld [vmem:[#allocation3 + $0x2d8] sm:$0xff]
    %v8354 = vld [vmem:[#allocation3 + $0x2e0] sm:$0xff]
    %v8355 = vld [vmem:[#allocation3 + $0x2e8] sm:$0xff]
    %v8356 = vld [vmem:[#allocation3 + $0x2f0] sm:$0xff]
    %v8357 = vld [vmem:[#allocation3 + $0x2f8] sm:$0xff]
    %v8358 = vld [vmem:[#allocation3 + $0x300] sm:$0xff]
    %v8359 = vld [vmem:[#allocation3 + $0x308] sm:$0xff]
    %v8360 = vld [vmem:[#allocation3 + $0x310] sm:$0xff]
    %v8361 = vld [vmem:[#allocation3 + $0x318] sm:$0xff]
    %v8362 = vld [vmem:[#allocation3 + $0x320] sm:$0xff]
    %v8363 = vld [vmem:[#allocation3 + $0x328] sm:$0xff]
    %v8364 = vld [vmem:[#allocation3 + $0x330] sm:$0xff]
    %v8365 = vld [vmem:[#allocation3 + $0x338] sm:$0xff]
    %v8366 = vld [vmem:[#allocation3 + $0x340] sm:$0xff]
    %v8367 = vld [vmem:[#allocation3 + $0x348] sm:$0xff]
    %v8368 = vld [vmem:[#allocation3 + $0x350] sm:$0xff]
    %v8369 = vld [vmem:[#allocation3 + $0x358] sm:$0xff]
    %v8370 = vld [vmem:[#allocation3 + $0x360] sm:$0xff]
    %v8371 = vld [vmem:[#allocation3 + $0x368] sm:$0xff]
    %v8372 = vld [vmem:[#allocation3 + $0x370] sm:$0xff]
    %v8373 = vld [vmem:[#allocation3 + $0x378] sm:$0xff]
    %v8374 = vld [vmem:[#allocation3 + $0x380] sm:$0xff]
    %v8375 = vld [vmem:[#allocation3 + $0x388] sm:$0xff]
    %v8376 = vld [vmem:[#allocation3 + $0x390] sm:$0xff]
    %v8377 = vld [vmem:[#allocation3 + $0x398] sm:$0xff]
    %v8378 = vld [vmem:[#allocation3 + $0x3a0] sm:$0xff]
    %v8379 = vld [vmem:[#allocation3 + $0x3a8] sm:$0xff]
    %v8380 = vld [vmem:[#allocation3 + $0x3b0] sm:$0xff]
    %v8381 = vld [vmem:[#allocation3 + $0x3b8] sm:$0xff]
    %v8382 = vld [vmem:[#allocation3 + $0x3c0] sm:$0xff]
    %v8383 = vld [vmem:[#allocation3 + $0x3c8] sm:$0xff]
    %v8384 = vld [vmem:[#allocation3 + $0x3d0] sm:$0xff]
    %v8385 = vld [vmem:[#allocation3 + $0x3d8] sm:$0xff]
    %v8386 = vld [vmem:[#allocation3 + $0x3e0] sm:$0xff]
    %v8387 = vld [vmem:[#allocation3 + $0x3e8] sm:$0xff]
    %v8388 = vld [vmem:[#allocation3 + $0x3f0] sm:$0xff]
    %v8389 = vld [vmem:[#allocation3 + $0x3f8] sm:$0xff]
    %s8390 = scalar_lea.vmem [#allocation9], 1
    %v8391 = vld [vmem:[%s8390] ss:$4 sm:$0xf]
    %v8393 = vlaneseq
    %v8394 = vshrl.u32 %v8393, 7
    %v8395 = vsub.s32 0, %v8394
    %v8396 = vrot.slane %v8391, %v8395
    %v8397 = vlaneseq
    %v8398 = vshrl.u32 %v8397, 7
    %v8399 = vsub.s32 1, %v8398
    %v8400 = vrot.slane %v8391, %v8399
    %v8401 = vlaneseq
    %v8402 = vshrl.u32 %v8401, 7
    %v8403 = vsub.s32 2, %v8402
    %v8404 = vrot.slane %v8391, %v8403
    %v8405 = vlaneseq
    %v8406 = vshrl.u32 %v8405, 7
    %v8407 = vsub.s32 3, %v8406
    %v8408 = vrot.slane %v8391, %v8407
    %v8541 = vunpack.c.l.b16 %v8262
    %v8542 = vunpack.c.h.b16 %v8262
    %v8543 = vunpack.c.l.b16 %v8263
    %v8544 = vunpack.c.h.b16 %v8263
    %v8545 = vunpack.c.l.b16 %v8264
    %v8546 = vunpack.c.h.b16 %v8264
    %v8547 = vunpack.c.l.b16 %v8265
    %v8548 = vunpack.c.h.b16 %v8265
    %v8549 = vunpack.c.l.b16 %v8266
    %v8550 = vunpack.c.h.b16 %v8266
    %v8551 = vunpack.c.l.b16 %v8267
    %v8552 = vunpack.c.h.b16 %v8267
    %v8553 = vunpack.c.l.b16 %v8268
    %v8554 = vunpack.c.h.b16 %v8268
    %v8555 = vunpack.c.l.b16 %v8269
    %v8556 = vunpack.c.h.b16 %v8269
    %v8557 = vunpack.c.l.b16 %v8270
    %v8558 = vunpack.c.h.b16 %v8270
    %v8559 = vunpack.c.l.b16 %v8271
    %v8560 = vunpack.c.h.b16 %v8271
    %v8561 = vunpack.c.l.b16 %v8272
    %v8562 = vunpack.c.h.b16 %v8272
    %v8563 = vunpack.c.l.b16 %v8273
    %v8564 = vunpack.c.h.b16 %v8273
    %v8565 = vunpack.c.l.b16 %v8274
    %v8566 = vunpack.c.h.b16 %v8274
    %v8567 = vunpack.c.l.b16 %v8275
    %v8568 = vunpack.c.h.b16 %v8275
    %v8569 = vunpack.c.l.b16 %v8276
    %v8570 = vunpack.c.h.b16 %v8276
    %v8571 = vunpack.c.l.b16 %v8277
    %v8572 = vunpack.c.h.b16 %v8277
    %v8573 = vunpack.c.l.b16 %v8278
    %v8574 = vunpack.c.h.b16 %v8278
    %v8575 = vunpack.c.l.b16 %v8279
    %v8576 = vunpack.c.h.b16 %v8279
    %v8577 = vunpack.c.l.b16 %v8280
    %v8578 = vunpack.c.h.b16 %v8280
    %v8579 = vunpack.c.l.b16 %v8281
    %v8580 = vunpack.c.h.b16 %v8281
    %v8581 = vunpack.c.l.b16 %v8282
    %v8582 = vunpack.c.h.b16 %v8282
    %v8583 = vunpack.c.l.b16 %v8283
    %v8584 = vunpack.c.h.b16 %v8283
    %v8585 = vunpack.c.l.b16 %v8284
    %v8586 = vunpack.c.h.b16 %v8284
    %v8587 = vunpack.c.l.b16 %v8285
    %v8588 = vunpack.c.h.b16 %v8285
    %v8589 = vunpack.c.l.b16 %v8286
    %v8590 = vunpack.c.h.b16 %v8286
    %v8591 = vunpack.c.l.b16 %v8287
    %v8592 = vunpack.c.h.b16 %v8287
    %v8593 = vunpack.c.l.b16 %v8288
    %v8594 = vunpack.c.h.b16 %v8288
    %v8595 = vunpack.c.l.b16 %v8289
    %v8596 = vunpack.c.h.b16 %v8289
    %v8597 = vunpack.c.l.b16 %v8290
    %v8598 = vunpack.c.h.b16 %v8290
    %v8599 = vunpack.c.l.b16 %v8291
    %v8600 = vunpack.c.h.b16 %v8291
    %v8601 = vunpack.c.l.b16 %v8292
    %v8602 = vunpack.c.h.b16 %v8292
    %v8603 = vunpack.c.l.b16 %v8293
    %v8604 = vunpack.c.h.b16 %v8293
    %v8605 = vunpack.c.l.b16 %v8294
    %v8606 = vunpack.c.h.b16 %v8294
    %v8607 = vunpack.c.l.b16 %v8295
    %v8608 = vunpack.c.h.b16 %v8295
    %v8609 = vunpack.c.l.b16 %v8296
    %v8610 = vunpack.c.h.b16 %v8296
    %v8611 = vunpack.c.l.b16 %v8297
    %v8612 = vunpack.c.h.b16 %v8297
    %v8613 = vunpack.c.l.b16 %v8298
    %v8614 = vunpack.c.h.b16 %v8298
    %v8615 = vunpack.c.l.b16 %v8299
    %v8616 = vunpack.c.h.b16 %v8299
    %v8617 = vunpack.c.l.b16 %v8300
    %v8618 = vunpack.c.h.b16 %v8300
    %v8619 = vunpack.c.l.b16 %v8301
    %v8620 = vunpack.c.h.b16 %v8301
    %v8621 = vunpack.c.l.b16 %v8302
    %v8622 = vunpack.c.h.b16 %v8302
    %v8623 = vunpack.c.l.b16 %v8303
    %v8624 = vunpack.c.h.b16 %v8303
    %v8625 = vunpack.c.l.b16 %v8304
    %v8626 = vunpack.c.h.b16 %v8304
    %v8627 = vunpack.c.l.b16 %v8305
    %v8628 = vunpack.c.h.b16 %v8305
    %v8629 = vunpack.c.l.b16 %v8306
    %v8630 = vunpack.c.h.b16 %v8306
    %v8631 = vunpack.c.l.b16 %v8307
    %v8632 = vunpack.c.h.b16 %v8307
    %v8633 = vunpack.c.l.b16 %v8308
    %v8634 = vunpack.c.h.b16 %v8308
    %v8635 = vunpack.c.l.b16 %v8309
    %v8636 = vunpack.c.h.b16 %v8309
    %v8637 = vunpack.c.l.b16 %v8310
    %v8638 = vunpack.c.h.b16 %v8310
    %v8639 = vunpack.c.l.b16 %v8311
    %v8640 = vunpack.c.h.b16 %v8311
    %v8641 = vunpack.c.l.b16 %v8312
    %v8642 = vunpack.c.h.b16 %v8312
    %v8643 = vunpack.c.l.b16 %v8313
    %v8644 = vunpack.c.h.b16 %v8313
    %v8645 = vunpack.c.l.b16 %v8314
    %v8646 = vunpack.c.h.b16 %v8314
    %v8647 = vunpack.c.l.b16 %v8315
    %v8648 = vunpack.c.h.b16 %v8315
    %v8649 = vunpack.c.l.b16 %v8316
    %v8650 = vunpack.c.h.b16 %v8316
    %v8651 = vunpack.c.l.b16 %v8317
    %v8652 = vunpack.c.h.b16 %v8317
    %v8653 = vunpack.c.l.b16 %v8318
    %v8654 = vunpack.c.h.b16 %v8318
    %v8655 = vunpack.c.l.b16 %v8319
    %v8656 = vunpack.c.h.b16 %v8319
    %v8657 = vunpack.c.l.b16 %v8320
    %v8658 = vunpack.c.h.b16 %v8320
    %v8659 = vunpack.c.l.b16 %v8321
    %v8660 = vunpack.c.h.b16 %v8321
    %v8661 = vunpack.c.l.b16 %v8322
    %v8662 = vunpack.c.h.b16 %v8322
    %v8663 = vunpack.c.l.b16 %v8323
    %v8664 = vunpack.c.h.b16 %v8323
    %v8665 = vunpack.c.l.b16 %v8324
    %v8666 = vunpack.c.h.b16 %v8324
    %v8667 = vunpack.c.l.b16 %v8325
    %v8668 = vunpack.c.h.b16 %v8325
    %v8669 = vunpack.c.l.b16 %v8326
    %v8670 = vunpack.c.h.b16 %v8326
    %v8671 = vunpack.c.l.b16 %v8327
    %v8672 = vunpack.c.h.b16 %v8327
    %v8673 = vunpack.c.l.b16 %v8328
    %v8674 = vunpack.c.h.b16 %v8328
    %v8675 = vunpack.c.l.b16 %v8329
    %v8676 = vunpack.c.h.b16 %v8329
    %v8677 = vunpack.c.l.b16 %v8330
    %v8678 = vunpack.c.h.b16 %v8330
    %v8679 = vunpack.c.l.b16 %v8331
    %v8680 = vunpack.c.h.b16 %v8331
    %v8681 = vunpack.c.l.b16 %v8332
    %v8682 = vunpack.c.h.b16 %v8332
    %v8683 = vunpack.c.l.b16 %v8333
    %v8684 = vunpack.c.h.b16 %v8333
    %v8685 = vunpack.c.l.b16 %v8334
    %v8686 = vunpack.c.h.b16 %v8334
    %v8687 = vunpack.c.l.b16 %v8335
    %v8688 = vunpack.c.h.b16 %v8335
    %v8689 = vunpack.c.l.b16 %v8336
    %v8690 = vunpack.c.h.b16 %v8336
    %v8691 = vunpack.c.l.b16 %v8337
    %v8692 = vunpack.c.h.b16 %v8337
    %v8693 = vunpack.c.l.b16 %v8338
    %v8694 = vunpack.c.h.b16 %v8338
    %v8695 = vunpack.c.l.b16 %v8339
    %v8696 = vunpack.c.h.b16 %v8339
    %v8697 = vunpack.c.l.b16 %v8340
    %v8698 = vunpack.c.h.b16 %v8340
    %v8699 = vunpack.c.l.b16 %v8341
    %v8700 = vunpack.c.h.b16 %v8341
    %v8701 = vunpack.c.l.b16 %v8342
    %v8702 = vunpack.c.h.b16 %v8342
    %v8703 = vunpack.c.l.b16 %v8343
    %v8704 = vunpack.c.h.b16 %v8343
    %v8705 = vunpack.c.l.b16 %v8344
    %v8706 = vunpack.c.h.b16 %v8344
    %v8707 = vunpack.c.l.b16 %v8345
    %v8708 = vunpack.c.h.b16 %v8345
    %v8709 = vunpack.c.l.b16 %v8346
    %v8710 = vunpack.c.h.b16 %v8346
    %v8711 = vunpack.c.l.b16 %v8347
    %v8712 = vunpack.c.h.b16 %v8347
    %v8713 = vunpack.c.l.b16 %v8348
    %v8714 = vunpack.c.h.b16 %v8348
    %v8715 = vunpack.c.l.b16 %v8349
    %v8716 = vunpack.c.h.b16 %v8349
    %v8717 = vunpack.c.l.b16 %v8350
    %v8718 = vunpack.c.h.b16 %v8350
    %v8719 = vunpack.c.l.b16 %v8351
    %v8720 = vunpack.c.h.b16 %v8351
    %v8721 = vunpack.c.l.b16 %v8352
    %v8722 = vunpack.c.h.b16 %v8352
    %v8723 = vunpack.c.l.b16 %v8353
    %v8724 = vunpack.c.h.b16 %v8353
    %v8725 = vunpack.c.l.b16 %v8354
    %v8726 = vunpack.c.h.b16 %v8354
    %v8727 = vunpack.c.l.b16 %v8355
    %v8728 = vunpack.c.h.b16 %v8355
    %v8729 = vunpack.c.l.b16 %v8356
    %v8730 = vunpack.c.h.b16 %v8356
    %v8731 = vunpack.c.l.b16 %v8357
    %v8732 = vunpack.c.h.b16 %v8357
    %v8733 = vunpack.c.l.b16 %v8358
    %v8734 = vunpack.c.h.b16 %v8358
    %v8735 = vunpack.c.l.b16 %v8359
    %v8736 = vunpack.c.h.b16 %v8359
    %v8737 = vunpack.c.l.b16 %v8360
    %v8738 = vunpack.c.h.b16 %v8360
    %v8739 = vunpack.c.l.b16 %v8361
    %v8740 = vunpack.c.h.b16 %v8361
    %v8741 = vunpack.c.l.b16 %v8362
    %v8742 = vunpack.c.h.b16 %v8362
    %v8743 = vunpack.c.l.b16 %v8363
    %v8744 = vunpack.c.h.b16 %v8363
    %v8745 = vunpack.c.l.b16 %v8364
    %v8746 = vunpack.c.h.b16 %v8364
    %v8747 = vunpack.c.l.b16 %v8365
    %v8748 = vunpack.c.h.b16 %v8365
    %v8749 = vunpack.c.l.b16 %v8366
    %v8750 = vunpack.c.h.b16 %v8366
    %v8751 = vunpack.c.l.b16 %v8367
    %v8752 = vunpack.c.h.b16 %v8367
    %v8753 = vunpack.c.l.b16 %v8368
    %v8754 = vunpack.c.h.b16 %v8368
    %v8755 = vunpack.c.l.b16 %v8369
    %v8756 = vunpack.c.h.b16 %v8369
    %v8757 = vunpack.c.l.b16 %v8370
    %v8758 = vunpack.c.h.b16 %v8370
    %v8759 = vunpack.c.l.b16 %v8371
    %v8760 = vunpack.c.h.b16 %v8371
    %v8761 = vunpack.c.l.b16 %v8372
    %v8762 = vunpack.c.h.b16 %v8372
    %v8763 = vunpack.c.l.b16 %v8373
    %v8764 = vunpack.c.h.b16 %v8373
    %v8765 = vunpack.c.l.b16 %v8374
    %v8766 = vunpack.c.h.b16 %v8374
    %v8767 = vunpack.c.l.b16 %v8375
    %v8768 = vunpack.c.h.b16 %v8375
    %v8769 = vunpack.c.l.b16 %v8376
    %v8770 = vunpack.c.h.b16 %v8376
    %v8771 = vunpack.c.l.b16 %v8377
    %v8772 = vunpack.c.h.b16 %v8377
    %v8773 = vunpack.c.l.b16 %v8378
    %v8774 = vunpack.c.h.b16 %v8378
    %v8775 = vunpack.c.l.b16 %v8379
    %v8776 = vunpack.c.h.b16 %v8379
    %v8777 = vunpack.c.l.b16 %v8380
    %v8778 = vunpack.c.h.b16 %v8380
    %v8779 = vunpack.c.l.b16 %v8381
    %v8780 = vunpack.c.h.b16 %v8381
    %v8781 = vunpack.c.l.b16 %v8382
    %v8782 = vunpack.c.h.b16 %v8382
    %v8783 = vunpack.c.l.b16 %v8383
    %v8784 = vunpack.c.h.b16 %v8383
    %v8785 = vunpack.c.l.b16 %v8384
    %v8786 = vunpack.c.h.b16 %v8384
    %v8787 = vunpack.c.l.b16 %v8385
    %v8788 = vunpack.c.h.b16 %v8385
    %v8789 = vunpack.c.l.b16 %v8386
    %v8790 = vunpack.c.h.b16 %v8386
    %v8791 = vunpack.c.l.b16 %v8387
    %v8792 = vunpack.c.h.b16 %v8387
    %v8793 = vunpack.c.l.b16 %v8388
    %v8794 = vunpack.c.h.b16 %v8388
    %v8795 = vunpack.c.l.b16 %v8389
    %v8796 = vunpack.c.h.b16 %v8389
    %v8797 = vpack.c.b16 %v8545, %v8541
    %v8798 = vpack.c.b16 %v8546, %v8542
    %v8799 = vpack.c.b16 %v8547, %v8543
    %v8800 = vpack.c.b16 %v8548, %v8544
    %v8801 = vpack.c.b16 %v8553, %v8549
    %v8802 = vpack.c.b16 %v8554, %v8550
    %v8803 = vpack.c.b16 %v8555, %v8551
    %v8804 = vpack.c.b16 %v8556, %v8552
    %v8805 = vpack.c.b16 %v8561, %v8557
    %v8806 = vpack.c.b16 %v8562, %v8558
    %v8807 = vpack.c.b16 %v8563, %v8559
    %v8808 = vpack.c.b16 %v8564, %v8560
    %v8809 = vpack.c.b16 %v8569, %v8565
    %v8810 = vpack.c.b16 %v8570, %v8566
    %v8811 = vpack.c.b16 %v8571, %v8567
    %v8812 = vpack.c.b16 %v8572, %v8568
    %v8813 = vpack.c.b16 %v8577, %v8573
    %v8814 = vpack.c.b16 %v8578, %v8574
    %v8815 = vpack.c.b16 %v8579, %v8575
    %v8816 = vpack.c.b16 %v8580, %v8576
    %v8817 = vpack.c.b16 %v8585, %v8581
    %v8818 = vpack.c.b16 %v8586, %v8582
    %v8819 = vpack.c.b16 %v8587, %v8583
    %v8820 = vpack.c.b16 %v8588, %v8584
    %v8821 = vpack.c.b16 %v8593, %v8589
    %v8822 = vpack.c.b16 %v8594, %v8590
    %v8823 = vpack.c.b16 %v8595, %v8591
    %v8824 = vpack.c.b16 %v8596, %v8592
    %v8825 = vpack.c.b16 %v8601, %v8597
    %v8826 = vpack.c.b16 %v8602, %v8598
    %v8827 = vpack.c.b16 %v8603, %v8599
    %v8828 = vpack.c.b16 %v8604, %v8600
    %v8829 = vpack.c.b16 %v8609, %v8605
    %v8830 = vpack.c.b16 %v8610, %v8606
    %v8831 = vpack.c.b16 %v8611, %v8607
    %v8832 = vpack.c.b16 %v8612, %v8608
    %v8833 = vpack.c.b16 %v8617, %v8613
    %v8834 = vpack.c.b16 %v8618, %v8614
    %v8835 = vpack.c.b16 %v8619, %v8615
    %v8836 = vpack.c.b16 %v8620, %v8616
    %v8837 = vpack.c.b16 %v8625, %v8621
    %v8838 = vpack.c.b16 %v8626, %v8622
    %v8839 = vpack.c.b16 %v8627, %v8623
    %v8840 = vpack.c.b16 %v8628, %v8624
    %v8841 = vpack.c.b16 %v8633, %v8629
    %v8842 = vpack.c.b16 %v8634, %v8630
    %v8843 = vpack.c.b16 %v8635, %v8631
    %v8844 = vpack.c.b16 %v8636, %v8632
    %v8845 = vpack.c.b16 %v8641, %v8637
    %v8846 = vpack.c.b16 %v8642, %v8638
    %v8847 = vpack.c.b16 %v8643, %v8639
    %v8848 = vpack.c.b16 %v8644, %v8640
    %v8849 = vpack.c.b16 %v8649, %v8645
    %v8850 = vpack.c.b16 %v8650, %v8646
    %v8851 = vpack.c.b16 %v8651, %v8647
    %v8852 = vpack.c.b16 %v8652, %v8648
    %v8853 = vpack.c.b16 %v8657, %v8653
    %v8854 = vpack.c.b16 %v8658, %v8654
    %v8855 = vpack.c.b16 %v8659, %v8655
    %v8856 = vpack.c.b16 %v8660, %v8656
    %v8857 = vpack.c.b16 %v8665, %v8661
    %v8858 = vpack.c.b16 %v8666, %v8662
    %v8859 = vpack.c.b16 %v8667, %v8663
    %v8860 = vpack.c.b16 %v8668, %v8664
    %v8861 = vpack.c.b16 %v8673, %v8669
    %v8862 = vpack.c.b16 %v8674, %v8670
    %v8863 = vpack.c.b16 %v8675, %v8671
    %v8864 = vpack.c.b16 %v8676, %v8672
    %v8865 = vpack.c.b16 %v8681, %v8677
    %v8866 = vpack.c.b16 %v8682, %v8678
    %v8867 = vpack.c.b16 %v8683, %v8679
    %v8868 = vpack.c.b16 %v8684, %v8680
    %v8869 = vpack.c.b16 %v8689, %v8685
    %v8870 = vpack.c.b16 %v8690, %v8686
    %v8871 = vpack.c.b16 %v8691, %v8687
    %v8872 = vpack.c.b16 %v8692, %v8688
    %v8873 = vpack.c.b16 %v8697, %v8693
    %v8874 = vpack.c.b16 %v8698, %v8694
    %v8875 = vpack.c.b16 %v8699, %v8695
    %v8876 = vpack.c.b16 %v8700, %v8696
    %v8877 = vpack.c.b16 %v8705, %v8701
    %v8878 = vpack.c.b16 %v8706, %v8702
    %v8879 = vpack.c.b16 %v8707, %v8703
    %v8880 = vpack.c.b16 %v8708, %v8704
    %v8881 = vpack.c.b16 %v8713, %v8709
    %v8882 = vpack.c.b16 %v8714, %v8710
    %v8883 = vpack.c.b16 %v8715, %v8711
    %v8884 = vpack.c.b16 %v8716, %v8712
    %v8885 = vpack.c.b16 %v8721, %v8717
    %v8886 = vpack.c.b16 %v8722, %v8718
    %v8887 = vpack.c.b16 %v8723, %v8719
    %v8888 = vpack.c.b16 %v8724, %v8720
    %v8889 = vpack.c.b16 %v8729, %v8725
    %v8890 = vpack.c.b16 %v8730, %v8726
    %v8891 = vpack.c.b16 %v8731, %v8727
    %v8892 = vpack.c.b16 %v8732, %v8728
    %v8893 = vpack.c.b16 %v8737, %v8733
    %v8894 = vpack.c.b16 %v8738, %v8734
    %v8895 = vpack.c.b16 %v8739, %v8735
    %v8896 = vpack.c.b16 %v8740, %v8736
    %v8897 = vpack.c.b16 %v8745, %v8741
    %v8898 = vpack.c.b16 %v8746, %v8742
    %v8899 = vpack.c.b16 %v8747, %v8743
    %v8900 = vpack.c.b16 %v8748, %v8744
    %v8901 = vpack.c.b16 %v8753, %v8749
    %v8902 = vpack.c.b16 %v8754, %v8750
    %v8903 = vpack.c.b16 %v8755, %v8751
    %v8904 = vpack.c.b16 %v8756, %v8752
    %v8905 = vpack.c.b16 %v8761, %v8757
    %v8906 = vpack.c.b16 %v8762, %v8758
    %v8907 = vpack.c.b16 %v8763, %v8759
    %v8908 = vpack.c.b16 %v8764, %v8760
    %v8909 = vpack.c.b16 %v8769, %v8765
    %v8910 = vpack.c.b16 %v8770, %v8766
    %v8911 = vpack.c.b16 %v8771, %v8767
    %v8912 = vpack.c.b16 %v8772, %v8768
    %v8913 = vpack.c.b16 %v8777, %v8773
    %v8914 = vpack.c.b16 %v8778, %v8774
    %v8915 = vpack.c.b16 %v8779, %v8775
    %v8916 = vpack.c.b16 %v8780, %v8776
    %v8917 = vpack.c.b16 %v8785, %v8781
    %v8918 = vpack.c.b16 %v8786, %v8782
    %v8919 = vpack.c.b16 %v8787, %v8783
    %v8920 = vpack.c.b16 %v8788, %v8784
    %v8921 = vpack.c.b16 %v8793, %v8789
    %v8922 = vpack.c.b16 %v8794, %v8790
    %v8923 = vpack.c.b16 %v8795, %v8791
    %v8924 = vpack.c.b16 %v8796, %v8792
    %9053 = vmatprep.subr.bf16.mxu0 %v8826
    %9054 = vmatpush1.bf16.msra.mxu0 %v8825
    %9055 = vmatprep.subr.bf16.mxu0 %v8822
    %9056 = vmatpush1.bf16.msra.mxu0 %v8821
    %9057 = vmatprep.subr.bf16.mxu0 %v8818
    %9058 = vmatpush1.bf16.msra.mxu0 %v8817
    %9059 = vmatprep.subr.bf16.mxu0 %v8814
    %9060 = vmatpush1.bf16.msra.mxu0 %v8813
    %9061 = vmatprep.subr.bf16.mxu0 %v8810
    %9062 = vmatpush1.bf16.msra.mxu0 %v8809
    %9063 = vmatprep.subr.bf16.mxu0 %v8806
    %9064 = vmatpush1.bf16.msra.mxu0 %v8805
    %9065 = vmatprep.subr.bf16.mxu0 %v8802
    %9066 = vmatpush1.bf16.msra.mxu0 %v8801
    %9067 = vmatprep.subr.bf16.mxu0 %v8798
    %9068 = vmatpush1.bf16.msra.mxu0 %v8797
    %9069 = vmatprep.subr.bf16.mxu0 %v8858
    %9070 = vmatpush2.bf16.msra.mxu0 %v8857
    %9071 = vmatprep.subr.bf16.mxu0 %v8854
    %9072 = vmatpush2.bf16.msra.mxu0 %v8853
    %9073 = vmatprep.subr.bf16.mxu0 %v8850
    %9074 = vmatpush2.bf16.msra.mxu0 %v8849
    %9075 = vmatprep.subr.bf16.mxu0 %v8846
    %9076 = vmatpush2.bf16.msra.mxu0 %v8845
    %9077 = vmatprep.subr.bf16.mxu0 %v8842
    %9078 = vmatpush2.bf16.msra.mxu0 %v8841
    %9079 = vmatprep.subr.bf16.mxu0 %v8838
    %9080 = vmatpush2.bf16.msra.mxu0 %v8837
    %9081 = vmatprep.subr.bf16.mxu0 %v8834
    %9082 = vmatpush2.bf16.msra.mxu0 %v8833
    %9083 = vmatprep.subr.bf16.mxu0 %v8830
    %9084 = vmatpush2.bf16.msra.mxu0 %v8829
    %9085 = vmatprep.mubr.bf16.mxu0 %v8259
    %9086 = vmatmul.mubr.bf16.gmra.mxu0 %v8258
    %v9087 = vpop.f32.mrf.mxu0
    %v9088 = vadd.f32 %v8396, %v9087
    %v9089 = vpop.f32.mrf.mxu0
    %v9090 = vadd.f32 %v8400, %v9089
    %v9091 = vpop.f32.mrf.mxu0
    %v9092 = vpop.f32.mrf.mxu0
    %9093 = vdwg.mxu0
    %9094 = vmatprep.subr.bf16.mxu0 %v8890
    %9095 = vmatpush1.bf16.msra.mxu0 %v8889
    %9096 = vmatprep.subr.bf16.mxu0 %v8886
    %9097 = vmatpush1.bf16.msra.mxu0 %v8885
    %9098 = vmatprep.subr.bf16.mxu0 %v8882
    %9099 = vmatpush1.bf16.msra.mxu0 %v8881
    %9100 = vmatprep.subr.bf16.mxu0 %v8878
    %9101 = vmatpush1.bf16.msra.mxu0 %v8877
    %9102 = vmatprep.subr.bf16.mxu0 %v8874
    %9103 = vmatpush1.bf16.msra.mxu0 %v8873
    %9104 = vmatprep.subr.bf16.mxu0 %v8870
    %9105 = vmatpush1.bf16.msra.mxu0 %v8869
    %9106 = vmatprep.subr.bf16.mxu0 %v8866
    %9107 = vmatpush1.bf16.msra.mxu0 %v8865
    %9108 = vmatprep.subr.bf16.mxu0 %v8862
    %9109 = vmatpush1.bf16.msra.mxu0 %v8861
    %9110 = vmatprep.subr.bf16.mxu0 %v8922
    %9111 = vmatpush2.bf16.msra.mxu0 %v8921
    %9112 = vmatprep.subr.bf16.mxu0 %v8918
    %9113 = vmatpush2.bf16.msra.mxu0 %v8917
    %9114 = vmatprep.subr.bf16.mxu0 %v8914
    %9115 = vmatpush2.bf16.msra.mxu0 %v8913
    %9116 = vmatprep.subr.bf16.mxu0 %v8910
    %9117 = vmatpush2.bf16.msra.mxu0 %v8909
    %9118 = vmatprep.subr.bf16.mxu0 %v8906
    %9119 = vmatpush2.bf16.msra.mxu0 %v8905
    %9120 = vmatprep.subr.bf16.mxu0 %v8902
    %9121 = vmatpush2.bf16.msra.mxu0 %v8901
    %9122 = vmatprep.subr.bf16.mxu0 %v8898
    %9123 = vmatpush2.bf16.msra.mxu0 %v8897
    %9124 = vmatprep.subr.bf16.mxu0 %v8894
    %9125 = vmatpush2.bf16.msra.mxu0 %v8893
    %9126 = vmatprep.mubr.bf16.mxu0 %v8261
    %9127 = vmatmul.mubr.bf16.gmra.mxu0 %v8260
    %v9128 = vpop.f32.mrf.mxu0
    %v9129 = vadd.f32 %v9088, %v9128
    %v9130 = vpop.f32.mrf.mxu0
    %v9131 = vadd.f32 %v9090, %v9130
    %v9132 = vpop.f32.mrf.mxu0
    %v9133 = vpop.f32.mrf.mxu0
    %9134 = vdwg.mxu0
    %9135 = vmatprep.subr.bf16.mxu0 %v8828
    %9136 = vmatpush1.bf16.msra.mxu0 %v8827
    %9137 = vmatprep.subr.bf16.mxu0 %v8824
    %9138 = vmatpush1.bf16.msra.mxu0 %v8823
    %9139 = vmatprep.subr.bf16.mxu0 %v8820
    %9140 = vmatpush1.bf16.msra.mxu0 %v8819
    %9141 = vmatprep.subr.bf16.mxu0 %v8816
    %9142 = vmatpush1.bf16.msra.mxu0 %v8815
    %9143 = vmatprep.subr.bf16.mxu0 %v8812
    %9144 = vmatpush1.bf16.msra.mxu0 %v8811
    %9145 = vmatprep.subr.bf16.mxu0 %v8808
    %9146 = vmatpush1.bf16.msra.mxu0 %v8807
    %9147 = vmatprep.subr.bf16.mxu0 %v8804
    %9148 = vmatpush1.bf16.msra.mxu0 %v8803
    %9149 = vmatprep.subr.bf16.mxu0 %v8800
    %9150 = vmatpush1.bf16.msra.mxu0 %v8799
    %9151 = vmatprep.subr.bf16.mxu0 %v8860
    %9152 = vmatpush2.bf16.msra.mxu0 %v8859
    %9153 = vmatprep.subr.bf16.mxu0 %v8856
    %9154 = vmatpush2.bf16.msra.mxu0 %v8855
    %9155 = vmatprep.subr.bf16.mxu0 %v8852
    %9156 = vmatpush2.bf16.msra.mxu0 %v8851
    %9157 = vmatprep.subr.bf16.mxu0 %v8848
    %9158 = vmatpush2.bf16.msra.mxu0 %v8847
    %9159 = vmatprep.subr.bf16.mxu0 %v8844
    %9160 = vmatpush2.bf16.msra.mxu0 %v8843
    %9161 = vmatprep.subr.bf16.mxu0 %v8840
    %9162 = vmatpush2.bf16.msra.mxu0 %v8839
    %9163 = vmatprep.subr.bf16.mxu0 %v8836
    %9164 = vmatpush2.bf16.msra.mxu0 %v8835
    %9165 = vmatprep.subr.bf16.mxu0 %v8832
    %9166 = vmatpush2.bf16.msra.mxu0 %v8831
    %9167 = vmatprep.mubr.bf16.mxu0 %v8259
    %9168 = vmatmul.mubr.bf16.gmra.mxu0 %v8258
    %v9169 = vpop.f32.mrf.mxu0
    %v9170 = vadd.f32 %v8404, %v9169
    %v9171 = vpop.f32.mrf.mxu0
    %v9172 = vadd.f32 %v8408, %v9171
    %v9173 = vpop.f32.mrf.mxu0
    %v9174 = vpop.f32.mrf.mxu0
    %9175 = vdwg.mxu0
    %9176 = vmatprep.subr.bf16.mxu0 %v8892
    %9177 = vmatpush1.bf16.msra.mxu0 %v8891
    %9178 = vmatprep.subr.bf16.mxu0 %v8888
    %9179 = vmatpush1.bf16.msra.mxu0 %v8887
    %9180 = vmatprep.subr.bf16.mxu0 %v8884
    %9181 = vmatpush1.bf16.msra.mxu0 %v8883
    %9182 = vmatprep.subr.bf16.mxu0 %v8880
    %9183 = vmatpush1.bf16.msra.mxu0 %v8879
    %9184 = vmatprep.subr.bf16.mxu0 %v8876
    %9185 = vmatpush1.bf16.msra.mxu0 %v8875
    %9186 = vmatprep.subr.bf16.mxu0 %v8872
    %9187 = vmatpush1.bf16.msra.mxu0 %v8871
    %9188 = vmatprep.subr.bf16.mxu0 %v8868
    %9189 = vmatpush1.bf16.msra.mxu0 %v8867
    %9190 = vmatprep.subr.bf16.mxu0 %v8864
    %9191 = vmatpush1.bf16.msra.mxu0 %v8863
    %9192 = vmatprep.subr.bf16.mxu0 %v8924
    %9193 = vmatpush2.bf16.msra.mxu0 %v8923
    %9194 = vmatprep.subr.bf16.mxu0 %v8920
    %9195 = vmatpush2.bf16.msra.mxu0 %v8919
    %9196 = vmatprep.subr.bf16.mxu0 %v8916
    %9197 = vmatpush2.bf16.msra.mxu0 %v8915
    %9198 = vmatprep.subr.bf16.mxu0 %v8912
    %9199 = vmatpush2.bf16.msra.mxu0 %v8911
    %9200 = vmatprep.subr.bf16.mxu0 %v8908
    %9201 = vmatpush2.bf16.msra.mxu0 %v8907
    %9202 = vmatprep.subr.bf16.mxu0 %v8904
    %9203 = vmatpush2.bf16.msra.mxu0 %v8903
    %9204 = vmatprep.subr.bf16.mxu0 %v8900
    %9205 = vmatpush2.bf16.msra.mxu0 %v8899
    %9206 = vmatprep.subr.bf16.mxu0 %v8896
    %9207 = vmatpush2.bf16.msra.mxu0 %v8895
    %9208 = vmatprep.mubr.bf16.mxu0 %v8261
    %9209 = vmatmul.mubr.bf16.gmra.mxu0 %v8260
    %v9210 = vpop.f32.mrf.mxu0
    %v9211 = vadd.f32 %v9170, %v9210
    %v9212 = vpop.f32.mrf.mxu0
    %v9213 = vadd.f32 %v9172, %v9212
    %v9214 = vpop.f32.mrf.mxu0
    %v9215 = vpop.f32.mrf.mxu0
    %9216 = vdwg.mxu0
    %v9217 = vmax.f32 %v9129, 0.0
    %v9218 = vmax.f32 %v9131, 0.0
    %v9219 = vmax.f32 %v9211, 0.0
    %v9220 = vmax.f32 %v9213, 0.0
    %v9221 = vpack.c.bf16 %v9217, %v9217
    %v9222 = vpack.c.bf16 %v9218, %v9218
    %v9223 = vpack.c.bf16 %v9219, %v9219
    %v9224 = vpack.c.bf16 %v9220, %v9220
    %v9225 = vld [vmem:[#allocation4] sm:$0xf]
    %v9226 = vld [vmem:[#allocation4 + $0x4] sm:$0xf]
    %v9227 = vld [vmem:[#allocation4 + $0x8] sm:$0xf]
    %v9228 = vld [vmem:[#allocation4 + $0xc] sm:$0xf]
    %v9229 = vld [vmem:[#allocation4 + $0x10] sm:$0xf]
    %v9230 = vld [vmem:[#allocation4 + $0x14] sm:$0xf]
    %v9231 = vld [vmem:[#allocation4 + $0x18] sm:$0xf]
    %v9232 = vld [vmem:[#allocation4 + $0x1c] sm:$0xf]
    %v9233 = vld [vmem:[#allocation4 + $0x20] sm:$0xf]
    %v9234 = vld [vmem:[#allocation4 + $0x24] sm:$0xf]
    %v9235 = vld [vmem:[#allocation4 + $0x28] sm:$0xf]
    %v9236 = vld [vmem:[#allocation4 + $0x2c] sm:$0xf]
    %v9237 = vld [vmem:[#allocation4 + $0x30] sm:$0xf]
    %v9238 = vld [vmem:[#allocation4 + $0x34] sm:$0xf]
    %v9239 = vld [vmem:[#allocation4 + $0x38] sm:$0xf]
    %v9240 = vld [vmem:[#allocation4 + $0x3c] sm:$0xf]
    %v9241 = vld [vmem:[#allocation4 + $0x40] sm:$0xf]
    %v9242 = vld [vmem:[#allocation4 + $0x44] sm:$0xf]
    %v9243 = vld [vmem:[#allocation4 + $0x48] sm:$0xf]
    %v9244 = vld [vmem:[#allocation4 + $0x4c] sm:$0xf]
    %v9245 = vld [vmem:[#allocation4 + $0x50] sm:$0xf]
    %v9246 = vld [vmem:[#allocation4 + $0x54] sm:$0xf]
    %v9247 = vld [vmem:[#allocation4 + $0x58] sm:$0xf]
    %v9248 = vld [vmem:[#allocation4 + $0x5c] sm:$0xf]
    %v9249 = vld [vmem:[#allocation4 + $0x60] sm:$0xf]
    %v9250 = vld [vmem:[#allocation4 + $0x64] sm:$0xf]
    %v9251 = vld [vmem:[#allocation4 + $0x68] sm:$0xf]
    %v9252 = vld [vmem:[#allocation4 + $0x6c] sm:$0xf]
    %v9253 = vld [vmem:[#allocation4 + $0x70] sm:$0xf]
    %v9254 = vld [vmem:[#allocation4 + $0x74] sm:$0xf]
    %v9255 = vld [vmem:[#allocation4 + $0x78] sm:$0xf]
    %v9256 = vld [vmem:[#allocation4 + $0x7c] sm:$0xf]
    %v9257 = vld [vmem:[#allocation4 + $0x80] sm:$0xf]
    %v9258 = vld [vmem:[#allocation4 + $0x84] sm:$0xf]
    %v9259 = vld [vmem:[#allocation4 + $0x88] sm:$0xf]
    %v9260 = vld [vmem:[#allocation4 + $0x8c] sm:$0xf]
    %v9261 = vld [vmem:[#allocation4 + $0x90] sm:$0xf]
    %v9262 = vld [vmem:[#allocation4 + $0x94] sm:$0xf]
    %v9263 = vld [vmem:[#allocation4 + $0x98] sm:$0xf]
    %v9264 = vld [vmem:[#allocation4 + $0x9c] sm:$0xf]
    %v9265 = vld [vmem:[#allocation4 + $0xa0] sm:$0xf]
    %v9266 = vld [vmem:[#allocation4 + $0xa4] sm:$0xf]
    %v9267 = vld [vmem:[#allocation4 + $0xa8] sm:$0xf]
    %v9268 = vld [vmem:[#allocation4 + $0xac] sm:$0xf]
    %v9269 = vld [vmem:[#allocation4 + $0xb0] sm:$0xf]
    %v9270 = vld [vmem:[#allocation4 + $0xb4] sm:$0xf]
    %v9271 = vld [vmem:[#allocation4 + $0xb8] sm:$0xf]
    %v9272 = vld [vmem:[#allocation4 + $0xbc] sm:$0xf]
    %v9273 = vld [vmem:[#allocation4 + $0xc0] sm:$0xf]
    %v9274 = vld [vmem:[#allocation4 + $0xc4] sm:$0xf]
    %v9275 = vld [vmem:[#allocation4 + $0xc8] sm:$0xf]
    %v9276 = vld [vmem:[#allocation4 + $0xcc] sm:$0xf]
    %v9277 = vld [vmem:[#allocation4 + $0xd0] sm:$0xf]
    %v9278 = vld [vmem:[#allocation4 + $0xd4] sm:$0xf]
    %v9279 = vld [vmem:[#allocation4 + $0xd8] sm:$0xf]
    %v9280 = vld [vmem:[#allocation4 + $0xdc] sm:$0xf]
    %v9281 = vld [vmem:[#allocation4 + $0xe0] sm:$0xf]
    %v9282 = vld [vmem:[#allocation4 + $0xe4] sm:$0xf]
    %v9283 = vld [vmem:[#allocation4 + $0xe8] sm:$0xf]
    %v9284 = vld [vmem:[#allocation4 + $0xec] sm:$0xf]
    %v9285 = vld [vmem:[#allocation4 + $0xf0] sm:$0xf]
    %v9286 = vld [vmem:[#allocation4 + $0xf4] sm:$0xf]
    %v9287 = vld [vmem:[#allocation4 + $0xf8] sm:$0xf]
    %v9288 = vld [vmem:[#allocation4 + $0xfc] sm:$0xf]
    %v9289 = vld [vmem:[#allocation9 + $0x2] sm:$0x1]
    %v9290 = vlaneseq
    %v9291 = vshrl.u32 %v9290, 7
    %v9292 = vsub.s32 0, %v9291
    %v9293 = vrot.slane %v9289, %v9292
    %v9358 = vunpack.c.l.b16 %v9225
    %v9359 = vunpack.c.l.b16 %v9226
    %v9360 = vunpack.c.l.b16 %v9227
    %v9361 = vunpack.c.l.b16 %v9228
    %v9362 = vunpack.c.l.b16 %v9229
    %v9363 = vunpack.c.l.b16 %v9230
    %v9364 = vunpack.c.l.b16 %v9231
    %v9365 = vunpack.c.l.b16 %v9232
    %v9366 = vunpack.c.l.b16 %v9233
    %v9367 = vunpack.c.l.b16 %v9234
    %v9368 = vunpack.c.l.b16 %v9235
    %v9369 = vunpack.c.l.b16 %v9236
    %v9370 = vunpack.c.l.b16 %v9237
    %v9371 = vunpack.c.l.b16 %v9238
    %v9372 = vunpack.c.l.b16 %v9239
    %v9373 = vunpack.c.l.b16 %v9240
    %v9374 = vunpack.c.l.b16 %v9241
    %v9375 = vunpack.c.l.b16 %v9242
    %v9376 = vunpack.c.l.b16 %v9243
    %v9377 = vunpack.c.l.b16 %v9244
    %v9378 = vunpack.c.l.b16 %v9245
    %v9379 = vunpack.c.l.b16 %v9246
    %v9380 = vunpack.c.l.b16 %v9247
    %v9381 = vunpack.c.l.b16 %v9248
    %v9382 = vunpack.c.l.b16 %v9249
    %v9383 = vunpack.c.l.b16 %v9250
    %v9384 = vunpack.c.l.b16 %v9251
    %v9385 = vunpack.c.l.b16 %v9252
    %v9386 = vunpack.c.l.b16 %v9253
    %v9387 = vunpack.c.l.b16 %v9254
    %v9388 = vunpack.c.l.b16 %v9255
    %v9389 = vunpack.c.l.b16 %v9256
    %v9390 = vunpack.c.l.b16 %v9257
    %v9391 = vunpack.c.l.b16 %v9258
    %v9392 = vunpack.c.l.b16 %v9259
    %v9393 = vunpack.c.l.b16 %v9260
    %v9394 = vunpack.c.l.b16 %v9261
    %v9395 = vunpack.c.l.b16 %v9262
    %v9396 = vunpack.c.l.b16 %v9263
    %v9397 = vunpack.c.l.b16 %v9264
    %v9398 = vunpack.c.l.b16 %v9265
    %v9399 = vunpack.c.l.b16 %v9266
    %v9400 = vunpack.c.l.b16 %v9267
    %v9401 = vunpack.c.l.b16 %v9268
    %v9402 = vunpack.c.l.b16 %v9269
    %v9403 = vunpack.c.l.b16 %v9270
    %v9404 = vunpack.c.l.b16 %v9271
    %v9405 = vunpack.c.l.b16 %v9272
    %v9406 = vunpack.c.l.b16 %v9273
    %v9407 = vunpack.c.l.b16 %v9274
    %v9408 = vunpack.c.l.b16 %v9275
    %v9409 = vunpack.c.l.b16 %v9276
    %v9410 = vunpack.c.l.b16 %v9277
    %v9411 = vunpack.c.l.b16 %v9278
    %v9412 = vunpack.c.l.b16 %v9279
    %v9413 = vunpack.c.l.b16 %v9280
    %v9414 = vunpack.c.l.b16 %v9281
    %v9415 = vunpack.c.l.b16 %v9282
    %v9416 = vunpack.c.l.b16 %v9283
    %v9417 = vunpack.c.l.b16 %v9284
    %v9418 = vunpack.c.l.b16 %v9285
    %v9419 = vunpack.c.l.b16 %v9286
    %v9420 = vunpack.c.l.b16 %v9287
    %v9421 = vunpack.c.l.b16 %v9288
    %v9422 = vpack.c.b16 %v9359, %v9358
    %v9423 = vpack.c.b16 %v9361, %v9360
    %v9424 = vpack.c.b16 %v9363, %v9362
    %v9425 = vpack.c.b16 %v9365, %v9364
    %v9426 = vpack.c.b16 %v9367, %v9366
    %v9427 = vpack.c.b16 %v9369, %v9368
    %v9428 = vpack.c.b16 %v9371, %v9370
    %v9429 = vpack.c.b16 %v9373, %v9372
    %v9430 = vpack.c.b16 %v9375, %v9374
    %v9431 = vpack.c.b16 %v9377, %v9376
    %v9432 = vpack.c.b16 %v9379, %v9378
    %v9433 = vpack.c.b16 %v9381, %v9380
    %v9434 = vpack.c.b16 %v9383, %v9382
    %v9435 = vpack.c.b16 %v9385, %v9384
    %v9436 = vpack.c.b16 %v9387, %v9386
    %v9437 = vpack.c.b16 %v9389, %v9388
    %v9438 = vpack.c.b16 %v9391, %v9390
    %v9439 = vpack.c.b16 %v9393, %v9392
    %v9440 = vpack.c.b16 %v9395, %v9394
    %v9441 = vpack.c.b16 %v9397, %v9396
    %v9442 = vpack.c.b16 %v9399, %v9398
    %v9443 = vpack.c.b16 %v9401, %v9400
    %v9444 = vpack.c.b16 %v9403, %v9402
    %v9445 = vpack.c.b16 %v9405, %v9404
    %v9446 = vpack.c.b16 %v9407, %v9406
    %v9447 = vpack.c.b16 %v9409, %v9408
    %v9448 = vpack.c.b16 %v9411, %v9410
    %v9449 = vpack.c.b16 %v9413, %v9412
    %v9450 = vpack.c.b16 %v9415, %v9414
    %v9451 = vpack.c.b16 %v9417, %v9416
    %v9452 = vpack.c.b16 %v9419, %v9418
    %v9453 = vpack.c.b16 %v9421, %v9420
    %9486 = vmatprep.subr.bf16.mxu0 0
    %9487 = vmatpush1.bf16.msra.mxu0 %v9429
    %9488 = vmatprep.subr.bf16.mxu0 0
    %9489 = vmatpush1.bf16.msra.mxu0 %v9428
    %9490 = vmatprep.subr.bf16.mxu0 0
    %9491 = vmatpush1.bf16.msra.mxu0 %v9427
    %9492 = vmatprep.subr.bf16.mxu0 0
    %9493 = vmatpush1.bf16.msra.mxu0 %v9426
    %9494 = vmatprep.subr.bf16.mxu0 0
    %9495 = vmatpush1.bf16.msra.mxu0 %v9425
    %9496 = vmatprep.subr.bf16.mxu0 0
    %9497 = vmatpush1.bf16.msra.mxu0 %v9424
    %9498 = vmatprep.subr.bf16.mxu0 0
    %9499 = vmatpush1.bf16.msra.mxu0 %v9423
    %9500 = vmatprep.subr.bf16.mxu0 0
    %9501 = vmatpush1.bf16.msra.mxu0 %v9422
    %9502 = vmatprep.subr.bf16.mxu0 0
    %9503 = vmatpush2.bf16.msra.mxu0 %v9437
    %9504 = vmatprep.subr.bf16.mxu0 0
    %9505 = vmatpush2.bf16.msra.mxu0 %v9436
    %9506 = vmatprep.subr.bf16.mxu0 0
    %9507 = vmatpush2.bf16.msra.mxu0 %v9435
    %9508 = vmatprep.subr.bf16.mxu0 0
    %9509 = vmatpush2.bf16.msra.mxu0 %v9434
    %9510 = vmatprep.subr.bf16.mxu0 0
    %9511 = vmatpush2.bf16.msra.mxu0 %v9433
    %9512 = vmatprep.subr.bf16.mxu0 0
    %9513 = vmatpush2.bf16.msra.mxu0 %v9432
    %9514 = vmatprep.subr.bf16.mxu0 0
    %9515 = vmatpush2.bf16.msra.mxu0 %v9431
    %9516 = vmatprep.subr.bf16.mxu0 0
    %9517 = vmatpush2.bf16.msra.mxu0 %v9430
    %9518 = vmatprep.mubr.bf16.mxu0 %v9222
    %9519 = vmatmul.mubr.bf16.gmra.mxu0 %v9221
    %v9520 = vpop.f32.mrf.mxu0
    %v9521 = vadd.f32 %v9293, %v9520
    %v9522 = vpop.f32.mrf.mxu0
    %v9523 = vpop.f32.mrf.mxu0
    %v9524 = vpop.f32.mrf.mxu0
    %9525 = vdwg.mxu0
    %9526 = vmatprep.subr.bf16.mxu0 0
    %9527 = vmatpush1.bf16.msra.mxu0 %v9445
    %9528 = vmatprep.subr.bf16.mxu0 0
    %9529 = vmatpush1.bf16.msra.mxu0 %v9444
    %9530 = vmatprep.subr.bf16.mxu0 0
    %9531 = vmatpush1.bf16.msra.mxu0 %v9443
    %9532 = vmatprep.subr.bf16.mxu0 0
    %9533 = vmatpush1.bf16.msra.mxu0 %v9442
    %9534 = vmatprep.subr.bf16.mxu0 0
    %9535 = vmatpush1.bf16.msra.mxu0 %v9441
    %9536 = vmatprep.subr.bf16.mxu0 0
    %9537 = vmatpush1.bf16.msra.mxu0 %v9440
    %9538 = vmatprep.subr.bf16.mxu0 0
    %9539 = vmatpush1.bf16.msra.mxu0 %v9439
    %9540 = vmatprep.subr.bf16.mxu0 0
    %9541 = vmatpush1.bf16.msra.mxu0 %v9438
    %9542 = vmatprep.subr.bf16.mxu0 0
    %9543 = vmatpush2.bf16.msra.mxu0 %v9453
    %9544 = vmatprep.subr.bf16.mxu0 0
    %9545 = vmatpush2.bf16.msra.mxu0 %v9452
    %9546 = vmatprep.subr.bf16.mxu0 0
    %9547 = vmatpush2.bf16.msra.mxu0 %v9451
    %9548 = vmatprep.subr.bf16.mxu0 0
    %9549 = vmatpush2.bf16.msra.mxu0 %v9450
    %9550 = vmatprep.subr.bf16.mxu0 0
    %9551 = vmatpush2.bf16.msra.mxu0 %v9449
    %9552 = vmatprep.subr.bf16.mxu0 0
    %9553 = vmatpush2.bf16.msra.mxu0 %v9448
    %9554 = vmatprep.subr.bf16.mxu0 0
    %9555 = vmatpush2.bf16.msra.mxu0 %v9447
    %9556 = vmatprep.subr.bf16.mxu0 0
    %9557 = vmatpush2.bf16.msra.mxu0 %v9446
    %9558 = vmatprep.mubr.bf16.mxu0 %v9224
    %9559 = vmatmul.mubr.bf16.gmra.mxu0 %v9223
    %v9560 = vpop.f32.mrf.mxu0
    %v9561 = vadd.f32 %v9521, %v9560
    %v9562 = vpop.f32.mrf.mxu0
    %v9563 = vpop.f32.mrf.mxu0
    %v9564 = vpop.f32.mrf.mxu0
    %9565 = vdwg.mxu0
    %9566 = vst [vmem:[%s6] sm:$0xf] %v9561
    // Predicated region
    $region34: #{_forward.1} parent=1 // pred_check
      _
    $region35: #{_forward.1} parent=1 // pred_check_branch
      %9568 = sbr.rel (0) target = $region37
    $region36: #{_forward.1} parent=1 // pred_region
      _
    $region37: #{_forward.1} parent=1 // pred_fallthru
      _
    // Predicated region
    $region38: #{_forward.1} parent=1 // pred_check
      _
    $region39: #{_forward.1} parent=1 // pred_check_branch
      %9570 = sbr.rel (0) target = $region41
    $region40: #{_forward.1} parent=1 // pred_region
      _
    $region41: #{_forward.1} parent=1 // pred_fallthru
      _
    %9571 = vsyncpa [#allocation8], 1
    %9572 = vsyncpa [#allocation10], 1
  %9573 = vsyncmov [#allocation6]
  %s9574 = vpop.sfrf %9573
  %p9575 = scmp.eq.s32.totalorder %s9574, 0
  %p9576 = pneg %p9575
  %9578 = shalt.err (%p9576)
  %s9579 = scalar_lea.sflag [#allocation6], 1
  %9580 = vsyncmov %s9579
  %s9581 = vpop.sfrf %9580
  %p9582 = scmp.eq.s32.totalorder %s9581, 0
  %p9583 = pneg %p9582
  %9585 = shalt.err (%p9583)
  %s9586 = scalar_lea.sflag [#allocation6], 2
  %9587 = vsyncmov %s9586
  %s9588 = vpop.sfrf %9587
  %p9589 = scmp.eq.s32.totalorder %s9588, 0
  %p9590 = pneg %p9589
  %9592 = shalt.err (%p9590)

</llo_original>
